<compile_context>
chip_gen: v5e
topology: v5e:2x2
jax: 0.10.0
libtpu: 0.0.40
codegen_flags: <defaults>
</compile_context>

<pallas_src>
import jax
import jax.numpy as jnp
from jax.experimental import pallas as pl
from jax.experimental.pallas import tpu as pltpu

HIDDEN = 50  # hidden_size in the PyTorch script


# ----------------------------------------------------------------------------
# Pallas kernel: the whole forward pass for one batch tile.
# ----------------------------------------------------------------------------
def cnn_lstm_kernel(x_ref, w1_ref, b1_ref, w2_ref, b2_ref,
                    wih_ref, whh_ref, bg_ref, wfc_ref, bfc_ref,
                    out_ref):
    B, L = x_ref.shape
    H = HIDDEN
    T1 = L - 1          # length after conv1 (kernel_size=2)
    T2 = L - 2          # length after conv2 (kernel_size=2)

    x = x_ref[...].astype(jnp.float32)                        # (B, L)

    # ---- conv1: Conv1d(1, 16, k=2) + ReLU -----------------------------------
    # The K=2 tap contraction is done on the VPU (two FMAs) straight into the
    # (rows, channels-on-lanes) layout that conv2's im2col matmul consumes —
    # a degenerate K=2 MXU matmul would waste a full MXU pass.
    w1 = w1_ref[...]                                           # (2, 16) = w[k, o]
    h1 = jnp.maximum(
        x[:, :T1, None] * w1[0, :] + x[:, 1:, None] * w1[1, :]
        + b1_ref[...].reshape(1, 1, 16),
        0.0)                                                   # (B, T1, 16)

    # ---- conv2: Conv1d(16, 32, k=2) + ReLU as one im2col matmul -------------
    h1_cols = jnp.concatenate([h1[:, :T2, :], h1[:, 1:, :]], axis=-1)
    h1_cols = h1_cols.reshape(B * T2, 32)                      # rows = (b, t)
    h2 = jnp.dot(h1_cols, w2_ref[...], preferred_element_type=jnp.float32)
    h2 = jnp.maximum(h2 + b2_ref[...], 0.0)                    # (B*T2, 32)

    # ---- LSTM input projection, hoisted out of the recurrence ----------------
    # One (B*T2, 32) @ (32, 4H) matmul instead of T2 tiny ones on the serial
    # path.  Gate order after wrapper permutation: i | f | o | g.
    gates_x = (jnp.dot(h2, wih_ref[...], preferred_element_type=jnp.float32)
               + bg_ref[...]).reshape(B, T2, 4 * H)

    # ---- LSTM recurrence: h/c carried in vregs, loop fully unrolled ----------
    whh = whh_ref[...]                                         # (H, 4H), i|f|o|g
    h = jnp.zeros((B, H), jnp.float32)
    c = jnp.zeros((B, H), jnp.float32)
    for t in range(T2):   # static trip count -> full unroll, static slices
        gates = gates_x[:, t, :] + jnp.dot(
            h, whh, preferred_element_type=jnp.float32)        # (B, 4H)
        s = jax.nn.sigmoid(gates[:, :3 * H])                   # i, f, o in one launch
        g = jnp.tanh(gates[:, 3 * H:])
        c = s[:, H:2 * H] * c + s[:, :H] * g
        h = s[:, 2 * H:] * jnp.tanh(c)

    # ---- fc on last hidden state, then exp -----------------------------------
    y = jnp.dot(h, wfc_ref[...], preferred_element_type=jnp.float32) + bfc_ref[...]
    out_ref[...] = jnp.exp(y)                                   # (B, 1)


# ----------------------------------------------------------------------------
# Wrapper: parameter layout plumbing + pallas_call.
# ----------------------------------------------------------------------------
def _reorder_gates_ifgo_to_ifog(w):
    """Permute the PyTorch (i, f, g, o) gate blocks (leading axis) to (i, f, o, g)."""
    i, f, g, o = jnp.split(w, 4, axis=0)
    return jnp.concatenate([i, f, o, g], axis=0)


def cnn_lstm_forward(x, params, *, batch_tile=None):
    (conv1_w, conv1_b, conv2_w, conv2_b,
     w_ih, w_hh, b_ih, b_hh, fc_w, fc_b) = params
    B, C, L = x.shape
    assert C == 1
    H = HIDDEN

    x2d = x[:, 0, :].astype(jnp.float32)                       # (B, L)

    # Kernel-friendly layouts (right-multiplies everywhere).
    w1 = jnp.transpose(conv1_w[:, 0, :], (1, 0))                # (2, 16)   w[k, o]
    b1 = conv1_b.reshape(1, 16)
    # conv2 im2col weight: rows = [16 ch @ t, 16 ch @ t+1], cols = out channels.
    w2 = jnp.concatenate([conv2_w[:, :, 0].T, conv2_w[:, :, 1].T], axis=0)  # (32, 32)
    b2 = conv2_b.reshape(1, 32)
    # LSTM weights permuted to gate order (i, f, o, g) and transposed.
    wih = _reorder_gates_ifgo_to_ifog(w_ih).T                   # (32, 4H)
    whh = _reorder_gates_ifgo_to_ifog(w_hh).T                   # (H, 4H)
    bg = _reorder_gates_ifgo_to_ifog(b_ih + b_hh).reshape(1, 4 * H)
    wfc = fc_w.T                                                # (H, 1)
    bfc = fc_b.reshape(1, 1)

    weights = (w1, b1, w2, b2, wih, whh, bg, wfc, bfc)

    # Batch tile: whole batch for small B, 8-row tiles (f32 sublane tile) when
    # B allows, sharded across TensorCores via the "parallel" grid axis.
    if batch_tile is None:
        bt = 8 if (B % 8 == 0) else B
    else:
        bt = batch_tile
    assert B % bt == 0
    grid = (B // bt,)

    def _const_spec(a):
        nd = a.ndim
        return pl.BlockSpec(a.shape, lambda i, _nd=nd: (0,) * _nd)

    in_specs = ([pl.BlockSpec((bt, L), lambda i: (i, 0))]
                + [_const_spec(a) for a in weights])
    out_specs = pl.BlockSpec((bt, 1), lambda i: (i, 0))

    return pl.pallas_call(
        cnn_lstm_kernel,
        out_shape=jax.ShapeDtypeStruct((B, 1), jnp.float32),
        grid=grid,
        in_specs=in_specs,
        out_specs=out_specs,
        compiler_params=pltpu.CompilerParams(
            dimension_semantics=("parallel",)),
    )(x2d, *weights)


# ----------------------------------------------------------------------------
# Deterministic parameter init (PyTorch-style uniform bounds).
# ----------------------------------------------------------------------------
def init_params(key):
    ks = jax.random.split(key, 10)

    def u(k, shape, bound):
        return jax.random.uniform(k, shape, jnp.float32, -bound, bound)

    H = HIDDEN
    b1 = 1.0 / (1 * 2) ** 0.5
    b2 = 1.0 / (16 * 2) ** 0.5
    bl = 1.0 / H ** 0.5
    return (
        u(ks[0], (16, 1, 2), b1),      # conv1.weight
        u(ks[1], (16,), b1),           # conv1.bias
        u(ks[2], (32, 16, 2), b2),     # conv2.weight
        u(ks[3], (32,), b2),           # conv2.bias
        u(ks[4], (4 * H, 32), bl),     # lstm.weight_ih_l0  (i, f, g, o)
        u(ks[5], (4 * H, H), bl),      # lstm.weight_hh_l0
        u(ks[6], (4 * H,), bl),        # lstm.bias_ih_l0
        u(ks[7], (4 * H,), bl),        # lstm.bias_hh_l0
        u(ks[8], (1, H), bl),          # fc.weight
        u(ks[9], (1,), bl),            # fc.bias
    )


# ----------------------------------------------------------------------------
# Pure-JAX reference (mirrors the PyTorch forward) for the correctness check.
# ----------------------------------------------------------------------------
def reference_forward(x, params):
    conv1_w, conv1_b, conv2_w, conv2_b, w_ih, w_hh, b_ih, b_hh, fc_w, fc_b = params
    H = HIDDEN
    xs = x[:, 0, :]
    B, L = xs.shape
    # conv1 + relu
    h1 = (jnp.stack([xs[:, :-1], xs[:, 1:]], axis=-1)
          @ jnp.transpose(conv1_w[:, 0, :], (1, 0)) + conv1_b)
    h1 = jnp.maximum(h1, 0.0)                                   # (B, L-1, 16)
    # conv2 + relu
    h2 = (h1[:, :-1, :] @ jnp.transpose(conv2_w[:, :, 0], (1, 0))
          + h1[:, 1:, :] @ jnp.transpose(conv2_w[:, :, 1], (1, 0)) + conv2_b)
    h2 = jnp.maximum(h2, 0.0)                                   # (B, L-2, 32)
    # LSTM (PyTorch gate order i, f, g, o)
    h = jnp.zeros((B, H), jnp.float32)
    c = jnp.zeros((B, H), jnp.float32)
    for t in range(h2.shape[1]):
        gates = h2[:, t, :] @ w_ih.T + h @ w_hh.T + b_ih + b_hh
        i_g = jax.nn.sigmoid(gates[:, 0:H])
        f_g = jax.nn.sigmoid(gates[:, H:2 * H])
        g_g = jnp.tanh(gates[:, 2 * H:3 * H])
        o_g = jax.nn.sigmoid(gates[:, 3 * H:4 * H])
        c = f_g * c + i_g * g_g
        h = o_g * jnp.tanh(c)
    return jnp.exp(h @ fc_w.T + fc_b)


if __name__ == "__main__":
    # Full-precision f32 reference matmuls so the tolerance can be tight.
    jax.config.update("jax_default_matmul_precision", "highest")

    key = jax.random.PRNGKey(0)
    pkey, xkey = jax.random.split(key)
    params = init_params(pkey)

    B, L = 2, 16
    x = jax.random.normal(xkey, (B, 1, L), jnp.float32)

    out = jax.block_until_ready(cnn_lstm_forward(x, params))
    ref = reference_forward(x, params)

    assert out.shape == (B, 1)
    # Tightened from 2e-2: all math is f32, only summation-order differences remain.
    assert jnp.allclose(out, ref, rtol=1e-4, atol=1e-5), (out, ref)

    print("KERNEL_OK")
</pallas_src>

<mosaic_0001>
module attributes {stable_mosaic.version = 11 : i64} {
  func.func @cnn_lstm_kernel(%arg0: i32, %arg1: memref<2x16xf32, #tpu.memory_space<vmem>>, %arg2: memref<2x16xf32, #tpu.memory_space<vmem>>, %arg3: memref<1x16xf32, #tpu.memory_space<vmem>>, %arg4: memref<32x32xf32, #tpu.memory_space<vmem>>, %arg5: memref<1x32xf32, #tpu.memory_space<vmem>>, %arg6: memref<32x200xf32, #tpu.memory_space<vmem>>, %arg7: memref<50x200xf32, #tpu.memory_space<vmem>>, %arg8: memref<1x200xf32, #tpu.memory_space<vmem>>, %arg9: memref<50x1xf32, #tpu.memory_space<vmem>>, %arg10: memref<1x1xf32, #tpu.memory_space<vmem>>, %arg11: memref<2x1xf32, #tpu.memory_space<vmem>>) attributes {dimension_semantics = [#tpu.dimension_semantics<parallel>], iteration_bounds = array<i64: 1>, scalar_prefetch = 0 : i64, scratch_operands = 0 : i64, tpu.core_type = #tpu.core_type<tc>, window_params = [{transform_indices = @transform_0, window_bounds = array<i64: 2, 16>}, {pipeline_mode = #tpu.pipeline_mode<synchronous>, transform_indices = @transform_1, window_bounds = array<i64: 2, 16>}, {pipeline_mode = #tpu.pipeline_mode<synchronous>, transform_indices = @transform_2, window_bounds = array<i64: 1, 16>}, {pipeline_mode = #tpu.pipeline_mode<synchronous>, transform_indices = @transform_3, window_bounds = array<i64: 32, 32>}, {pipeline_mode = #tpu.pipeline_mode<synchronous>, transform_indices = @transform_4, window_bounds = array<i64: 1, 32>}, {pipeline_mode = #tpu.pipeline_mode<synchronous>, transform_indices = @transform_5, window_bounds = array<i64: 32, 200>}, {pipeline_mode = #tpu.pipeline_mode<synchronous>, transform_indices = @transform_6, window_bounds = array<i64: 50, 200>}, {pipeline_mode = #tpu.pipeline_mode<synchronous>, transform_indices = @transform_7, window_bounds = array<i64: 1, 200>}, {pipeline_mode = #tpu.pipeline_mode<synchronous>, transform_indices = @transform_8, window_bounds = array<i64: 50, 1>}, {pipeline_mode = #tpu.pipeline_mode<synchronous>, transform_indices = @transform_9, window_bounds = array<i64: 1, 1>}, {transform_indices = @transform_10, window_bounds = array<i64: 2, 1>}]} {
    %c0 = arith.constant 0 : index
    %c0_0 = arith.constant 0 : index
    %0 = vector.load %arg1[%c0, %c0_0] : memref<2x16xf32, #tpu.memory_space<vmem>>, vector<2x16xf32>
    %c0_1 = arith.constant 0 : index
    %c0_2 = arith.constant 0 : index
    %1 = vector.load %arg2[%c0_1, %c0_2] : memref<2x16xf32, #tpu.memory_space<vmem>>, vector<2x16xf32>
    %2 = vector.extract_strided_slice %0 {offsets = [0, 0], sizes = [2, 15], strides = [1, 1]} : vector<2x16xf32> to vector<2x15xf32>
    %3 = vector.shape_cast %2 : vector<2x15xf32> to vector<2x15x1xf32>
    %4 = vector.extract_strided_slice %1 {offsets = [0, 0], sizes = [1, 16], strides = [1, 1]} : vector<2x16xf32> to vector<1x16xf32>
    %5 = vector.shape_cast %4 : vector<1x16xf32> to vector<16xf32>
    %6 = vector.shape_cast %5 : vector<16xf32> to vector<1x1x16xf32>
    %7 = vector.broadcast %3 : vector<2x15x1xf32> to vector<2x15x16xf32>
    %8 = vector.broadcast %6 : vector<1x1x16xf32> to vector<2x15x16xf32>
    %9 = arith.mulf %7, %8 : vector<2x15x16xf32>
    %10 = vector.extract_strided_slice %0 {offsets = [0, 1], sizes = [2, 15], strides = [1, 1]} : vector<2x16xf32> to vector<2x15xf32>
    %11 = vector.shape_cast %10 : vector<2x15xf32> to vector<2x15x1xf32>
    %12 = vector.extract_strided_slice %1 {offsets = [1, 0], sizes = [1, 16], strides = [1, 1]} : vector<2x16xf32> to vector<1x16xf32>
    %13 = vector.shape_cast %12 : vector<1x16xf32> to vector<16xf32>
    %14 = vector.shape_cast %13 : vector<16xf32> to vector<1x1x16xf32>
    %15 = vector.broadcast %11 : vector<2x15x1xf32> to vector<2x15x16xf32>
    %16 = vector.broadcast %14 : vector<1x1x16xf32> to vector<2x15x16xf32>
    %17 = arith.mulf %15, %16 : vector<2x15x16xf32>
    %18 = arith.addf %9, %17 : vector<2x15x16xf32>
    %c0_3 = arith.constant 0 : index
    %c0_4 = arith.constant 0 : index
    %19 = vector.load %arg3[%c0_3, %c0_4] : memref<1x16xf32, #tpu.memory_space<vmem>>, vector<1x16xf32>
    %20 = vector.shape_cast %19 : vector<1x16xf32> to vector<1x1x16xf32>
    %21 = vector.broadcast %20 : vector<1x1x16xf32> to vector<2x15x16xf32>
    %22 = arith.addf %18, %21 : vector<2x15x16xf32>
    %cst = arith.constant 0.000000e+00 : f32
    %23 = vector.broadcast %cst : f32 to vector<2x15x16xf32>
    %24 = arith.maximumf %22, %23 : vector<2x15x16xf32>
    %25 = vector.extract_strided_slice %24 {offsets = [0, 0, 0], sizes = [2, 14, 16], strides = [1, 1, 1]} : vector<2x15x16xf32> to vector<2x14x16xf32>
    %26 = vector.extract_strided_slice %24 {offsets = [0, 1, 0], sizes = [2, 14, 16], strides = [1, 1, 1]} : vector<2x15x16xf32> to vector<2x14x16xf32>
    %27 = tpu.concatenate %25, %26 in 2 : vector<2x14x16xf32>, vector<2x14x16xf32> -> vector<2x14x32xf32>
    %28 = vector.shape_cast %27 : vector<2x14x32xf32> to vector<28x32xf32>
    %c0_5 = arith.constant 0 : index
    %c0_6 = arith.constant 0 : index
    %29 = vector.load %arg4[%c0_5, %c0_6] : memref<32x32xf32, #tpu.memory_space<vmem>>, vector<32x32xf32>
    %cst_7 = arith.constant dense<0.000000e+00> : vector<28x32xf32>
    %30 = tpu.matmul %28, %29, %cst_7 {dimension_numbers = #tpu.dot_dimension_numbers<[1], [0], [0], [1], [0, 0, 1, 1], [], []>, precision = #tpu.contract_precision<fp32>} : vector<28x32xf32>, vector<32x32xf32>, vector<28x32xf32> -> vector<28x32xf32>
    %c0_8 = arith.constant 0 : index
    %c0_9 = arith.constant 0 : index
    %31 = vector.load %arg5[%c0_8, %c0_9] : memref<1x32xf32, #tpu.memory_space<vmem>>, vector<1x32xf32>
    %32 = vector.broadcast %31 : vector<1x32xf32> to vector<28x32xf32>
    %33 = arith.addf %30, %32 : vector<28x32xf32>
    %cst_10 = arith.constant 0.000000e+00 : f32
    %34 = vector.broadcast %cst_10 : f32 to vector<28x32xf32>
    %35 = arith.maximumf %33, %34 : vector<28x32xf32>
    %c0_11 = arith.constant 0 : index
    %c0_12 = arith.constant 0 : index
    %36 = vector.load %arg6[%c0_11, %c0_12] : memref<32x200xf32, #tpu.memory_space<vmem>>, vector<32x200xf32>
    %cst_13 = arith.constant dense<0.000000e+00> : vector<28x200xf32>
    %37 = tpu.matmul %35, %36, %cst_13 {dimension_numbers = #tpu.dot_dimension_numbers<[1], [0], [0], [1], [0, 0, 1, 1], [], []>, precision = #tpu.contract_precision<fp32>} : vector<28x32xf32>, vector<32x200xf32>, vector<28x200xf32> -> vector<28x200xf32>
    %c0_14 = arith.constant 0 : index
    %c0_15 = arith.constant 0 : index
    %38 = vector.load %arg8[%c0_14, %c0_15] : memref<1x200xf32, #tpu.memory_space<vmem>>, vector<1x200xf32>
    %39 = vector.broadcast %38 : vector<1x200xf32> to vector<28x200xf32>
    %40 = arith.addf %37, %39 : vector<28x200xf32>
    %41 = vector.shape_cast %40 : vector<28x200xf32> to vector<2x14x200xf32>
    %c0_16 = arith.constant 0 : index
    %c0_17 = arith.constant 0 : index
    %42 = vector.load %arg7[%c0_16, %c0_17] : memref<50x200xf32, #tpu.memory_space<vmem>>, vector<50x200xf32>
    %cst_18 = arith.constant 0.000000e+00 : f32
    %43 = vector.broadcast %cst_18 : f32 to vector<2x50xf32>
    %cst_19 = arith.constant 0.000000e+00 : f32
    %44 = vector.broadcast %cst_19 : f32 to vector<2x50xf32>
    %45 = vector.extract_strided_slice %41 {offsets = [0, 0, 0], sizes = [2, 1, 200], strides = [1, 1, 1]} : vector<2x14x200xf32> to vector<2x1x200xf32>
    %46 = vector.shape_cast %45 : vector<2x1x200xf32> to vector<2x200xf32>
    %cst_20 = arith.constant dense<0.000000e+00> : vector<2x200xf32>
    %47 = tpu.matmul %43, %42, %cst_20 {dimension_numbers = #tpu.dot_dimension_numbers<[1], [0], [0], [1], [0, 0, 1, 1], [], []>, precision = #tpu.contract_precision<fp32>} : vector<2x50xf32>, vector<50x200xf32>, vector<2x200xf32> -> vector<2x200xf32>
    %48 = arith.addf %46, %47 : vector<2x200xf32>
    %49 = vector.extract_strided_slice %48 {offsets = [0, 0], sizes = [2, 150], strides = [1, 1]} : vector<2x200xf32> to vector<2x150xf32>
    %50 = arith.negf %49 : vector<2x150xf32>
    %51 = math.exp %50 : vector<2x150xf32>
    %cst_21 = arith.constant 1.000000e+00 : f32
    %52 = vector.broadcast %cst_21 : f32 to vector<2x150xf32>
    %53 = arith.addf %52, %51 : vector<2x150xf32>
    %54 = arith.divf %52, %53 : vector<2x150xf32>
    %55 = vector.extract_strided_slice %48 {offsets = [0, 150], sizes = [2, 50], strides = [1, 1]} : vector<2x200xf32> to vector<2x50xf32>
    %56 = math.tanh %55 : vector<2x50xf32>
    %57 = vector.extract_strided_slice %54 {offsets = [0, 50], sizes = [2, 50], strides = [1, 1]} : vector<2x150xf32> to vector<2x50xf32>
    %58 = arith.mulf %57, %44 : vector<2x50xf32>
    %59 = vector.extract_strided_slice %54 {offsets = [0, 0], sizes = [2, 50], strides = [1, 1]} : vector<2x150xf32> to vector<2x50xf32>
    %60 = arith.mulf %59, %56 : vector<2x50xf32>
    %61 = arith.addf %58, %60 : vector<2x50xf32>
    %62 = vector.extract_strided_slice %54 {offsets = [0, 100], sizes = [2, 50], strides = [1, 1]} : vector<2x150xf32> to vector<2x50xf32>
    %63 = math.tanh %61 : vector<2x50xf32>
    %64 = arith.mulf %62, %63 : vector<2x50xf32>
    %65 = vector.extract_strided_slice %41 {offsets = [0, 1, 0], sizes = [2, 1, 200], strides = [1, 1, 1]} : vector<2x14x200xf32> to vector<2x1x200xf32>
    %66 = vector.shape_cast %65 : vector<2x1x200xf32> to vector<2x200xf32>
    %cst_22 = arith.constant dense<0.000000e+00> : vector<2x200xf32>
    %67 = tpu.matmul %64, %42, %cst_22 {dimension_numbers = #tpu.dot_dimension_numbers<[1], [0], [0], [1], [0, 0, 1, 1], [], []>, precision = #tpu.contract_precision<fp32>} : vector<2x50xf32>, vector<50x200xf32>, vector<2x200xf32> -> vector<2x200xf32>
    %68 = arith.addf %66, %67 : vector<2x200xf32>
    %69 = vector.extract_strided_slice %68 {offsets = [0, 0], sizes = [2, 150], strides = [1, 1]} : vector<2x200xf32> to vector<2x150xf32>
    %70 = arith.negf %69 : vector<2x150xf32>
    %71 = math.exp %70 : vector<2x150xf32>
    %cst_23 = arith.constant 1.000000e+00 : f32
    %72 = vector.broadcast %cst_23 : f32 to vector<2x150xf32>
    %73 = arith.addf %72, %71 : vector<2x150xf32>
    %74 = arith.divf %72, %73 : vector<2x150xf32>
    %75 = vector.extract_strided_slice %68 {offsets = [0, 150], sizes = [2, 50], strides = [1, 1]} : vector<2x200xf32> to vector<2x50xf32>
    %76 = math.tanh %75 : vector<2x50xf32>
    %77 = vector.extract_strided_slice %74 {offsets = [0, 50], sizes = [2, 50], strides = [1, 1]} : vector<2x150xf32> to vector<2x50xf32>
    %78 = arith.mulf %77, %61 : vector<2x50xf32>
    %79 = vector.extract_strided_slice %74 {offsets = [0, 0], sizes = [2, 50], strides = [1, 1]} : vector<2x150xf32> to vector<2x50xf32>
    %80 = arith.mulf %79, %76 : vector<2x50xf32>
    %81 = arith.addf %78, %80 : vector<2x50xf32>
    %82 = vector.extract_strided_slice %74 {offsets = [0, 100], sizes = [2, 50], strides = [1, 1]} : vector<2x150xf32> to vector<2x50xf32>
    %83 = math.tanh %81 : vector<2x50xf32>
    %84 = arith.mulf %82, %83 : vector<2x50xf32>
    %85 = vector.extract_strided_slice %41 {offsets = [0, 2, 0], sizes = [2, 1, 200], strides = [1, 1, 1]} : vector<2x14x200xf32> to vector<2x1x200xf32>
    %86 = vector.shape_cast %85 : vector<2x1x200xf32> to vector<2x200xf32>
    %cst_24 = arith.constant dense<0.000000e+00> : vector<2x200xf32>
    %87 = tpu.matmul %84, %42, %cst_24 {dimension_numbers = #tpu.dot_dimension_numbers<[1], [0], [0], [1], [0, 0, 1, 1], [], []>, precision = #tpu.contract_precision<fp32>} : vector<2x50xf32>, vector<50x200xf32>, vector<2x200xf32> -> vector<2x200xf32>
    %88 = arith.addf %86, %87 : vector<2x200xf32>
    %89 = vector.extract_strided_slice %88 {offsets = [0, 0], sizes = [2, 150], strides = [1, 1]} : vector<2x200xf32> to vector<2x150xf32>
    %90 = arith.negf %89 : vector<2x150xf32>
    %91 = math.exp %90 : vector<2x150xf32>
    %cst_25 = arith.constant 1.000000e+00 : f32
    %92 = vector.broadcast %cst_25 : f32 to vector<2x150xf32>
    %93 = arith.addf %92, %91 : vector<2x150xf32>
    %94 = arith.divf %92, %93 : vector<2x150xf32>
    %95 = vector.extract_strided_slice %88 {offsets = [0, 150], sizes = [2, 50], strides = [1, 1]} : vector<2x200xf32> to vector<2x50xf32>
    %96 = math.tanh %95 : vector<2x50xf32>
    %97 = vector.extract_strided_slice %94 {offsets = [0, 50], sizes = [2, 50], strides = [1, 1]} : vector<2x150xf32> to vector<2x50xf32>
    %98 = arith.mulf %97, %81 : vector<2x50xf32>
    %99 = vector.extract_strided_slice %94 {offsets = [0, 0], sizes = [2, 50], strides = [1, 1]} : vector<2x150xf32> to vector<2x50xf32>
    %100 = arith.mulf %99, %96 : vector<2x50xf32>
    %101 = arith.addf %98, %100 : vector<2x50xf32>
    %102 = vector.extract_strided_slice %94 {offsets = [0, 100], sizes = [2, 50], strides = [1, 1]} : vector<2x150xf32> to vector<2x50xf32>
    %103 = math.tanh %101 : vector<2x50xf32>
    %104 = arith.mulf %102, %103 : vector<2x50xf32>
    %105 = vector.extract_strided_slice %41 {offsets = [0, 3, 0], sizes = [2, 1, 200], strides = [1, 1, 1]} : vector<2x14x200xf32> to vector<2x1x200xf32>
    %106 = vector.shape_cast %105 : vector<2x1x200xf32> to vector<2x200xf32>
    %cst_26 = arith.constant dense<0.000000e+00> : vector<2x200xf32>
    %107 = tpu.matmul %104, %42, %cst_26 {dimension_numbers = #tpu.dot_dimension_numbers<[1], [0], [0], [1], [0, 0, 1, 1], [], []>, precision = #tpu.contract_precision<fp32>} : vector<2x50xf32>, vector<50x200xf32>, vector<2x200xf32> -> vector<2x200xf32>
    %108 = arith.addf %106, %107 : vector<2x200xf32>
    %109 = vector.extract_strided_slice %108 {offsets = [0, 0], sizes = [2, 150], strides = [1, 1]} : vector<2x200xf32> to vector<2x150xf32>
    %110 = arith.negf %109 : vector<2x150xf32>
    %111 = math.exp %110 : vector<2x150xf32>
    %cst_27 = arith.constant 1.000000e+00 : f32
    %112 = vector.broadcast %cst_27 : f32 to vector<2x150xf32>
    %113 = arith.addf %112, %111 : vector<2x150xf32>
    %114 = arith.divf %112, %113 : vector<2x150xf32>
    %115 = vector.extract_strided_slice %108 {offsets = [0, 150], sizes = [2, 50], strides = [1, 1]} : vector<2x200xf32> to vector<2x50xf32>
    %116 = math.tanh %115 : vector<2x50xf32>
    %117 = vector.extract_strided_slice %114 {offsets = [0, 50], sizes = [2, 50], strides = [1, 1]} : vector<2x150xf32> to vector<2x50xf32>
    %118 = arith.mulf %117, %101 : vector<2x50xf32>
    %119 = vector.extract_strided_slice %114 {offsets = [0, 0], sizes = [2, 50], strides = [1, 1]} : vector<2x150xf32> to vector<2x50xf32>
    %120 = arith.mulf %119, %116 : vector<2x50xf32>
    %121 = arith.addf %118, %120 : vector<2x50xf32>
    %122 = vector.extract_strided_slice %114 {offsets = [0, 100], sizes = [2, 50], strides = [1, 1]} : vector<2x150xf32> to vector<2x50xf32>
    %123 = math.tanh %121 : vector<2x50xf32>
    %124 = arith.mulf %122, %123 : vector<2x50xf32>
    %125 = vector.extract_strided_slice %41 {offsets = [0, 4, 0], sizes = [2, 1, 200], strides = [1, 1, 1]} : vector<2x14x200xf32> to vector<2x1x200xf32>
    %126 = vector.shape_cast %125 : vector<2x1x200xf32> to vector<2x200xf32>
    %cst_28 = arith.constant dense<0.000000e+00> : vector<2x200xf32>
    %127 = tpu.matmul %124, %42, %cst_28 {dimension_numbers = #tpu.dot_dimension_numbers<[1], [0], [0], [1], [0, 0, 1, 1], [], []>, precision = #tpu.contract_precision<fp32>} : vector<2x50xf32>, vector<50x200xf32>, vector<2x200xf32> -> vector<2x200xf32>
    %128 = arith.addf %126, %127 : vector<2x200xf32>
    %129 = vector.extract_strided_slice %128 {offsets = [0, 0], sizes = [2, 150], strides = [1, 1]} : vector<2x200xf32> to vector<2x150xf32>
    %130 = arith.negf %129 : vector<2x150xf32>
    %131 = math.exp %130 : vector<2x150xf32>
    %cst_29 = arith.constant 1.000000e+00 : f32
    %132 = vector.broadcast %cst_29 : f32 to vector<2x150xf32>
    %133 = arith.addf %132, %131 : vector<2x150xf32>
    %134 = arith.divf %132, %133 : vector<2x150xf32>
    %135 = vector.extract_strided_slice %128 {offsets = [0, 150], sizes = [2, 50], strides = [1, 1]} : vector<2x200xf32> to vector<2x50xf32>
    %136 = math.tanh %135 : vector<2x50xf32>
    %137 = vector.extract_strided_slice %134 {offsets = [0, 50], sizes = [2, 50], strides = [1, 1]} : vector<2x150xf32> to vector<2x50xf32>
    %138 = arith.mulf %137, %121 : vector<2x50xf32>
    %139 = vector.extract_strided_slice %134 {offsets = [0, 0], sizes = [2, 50], strides = [1, 1]} : vector<2x150xf32> to vector<2x50xf32>
    %140 = arith.mulf %139, %136 : vector<2x50xf32>
    %141 = arith.addf %138, %140 : vector<2x50xf32>
    %142 = vector.extract_strided_slice %134 {offsets = [0, 100], sizes = [2, 50], strides = [1, 1]} : vector<2x150xf32> to vector<2x50xf32>
    %143 = math.tanh %141 : vector<2x50xf32>
    %144 = arith.mulf %142, %143 : vector<2x50xf32>
    %145 = vector.extract_strided_slice %41 {offsets = [0, 5, 0], sizes = [2, 1, 200], strides = [1, 1, 1]} : vector<2x14x200xf32> to vector<2x1x200xf32>
    %146 = vector.shape_cast %145 : vector<2x1x200xf32> to vector<2x200xf32>
    %cst_30 = arith.constant dense<0.000000e+00> : vector<2x200xf32>
    %147 = tpu.matmul %144, %42, %cst_30 {dimension_numbers = #tpu.dot_dimension_numbers<[1], [0], [0], [1], [0, 0, 1, 1], [], []>, precision = #tpu.contract_precision<fp32>} : vector<2x50xf32>, vector<50x200xf32>, vector<2x200xf32> -> vector<2x200xf32>
    %148 = arith.addf %146, %147 : vector<2x200xf32>
    %149 = vector.extract_strided_slice %148 {offsets = [0, 0], sizes = [2, 150], strides = [1, 1]} : vector<2x200xf32> to vector<2x150xf32>
    %150 = arith.negf %149 : vector<2x150xf32>
    %151 = math.exp %150 : vector<2x150xf32>
    %cst_31 = arith.constant 1.000000e+00 : f32
    %152 = vector.broadcast %cst_31 : f32 to vector<2x150xf32>
    %153 = arith.addf %152, %151 : vector<2x150xf32>
    %154 = arith.divf %152, %153 : vector<2x150xf32>
    %155 = vector.extract_strided_slice %148 {offsets = [0, 150], sizes = [2, 50], strides = [1, 1]} : vector<2x200xf32> to vector<2x50xf32>
    %156 = math.tanh %155 : vector<2x50xf32>
    %157 = vector.extract_strided_slice %154 {offsets = [0, 50], sizes = [2, 50], strides = [1, 1]} : vector<2x150xf32> to vector<2x50xf32>
    %158 = arith.mulf %157, %141 : vector<2x50xf32>
    %159 = vector.extract_strided_slice %154 {offsets = [0, 0], sizes = [2, 50], strides = [1, 1]} : vector<2x150xf32> to vector<2x50xf32>
    %160 = arith.mulf %159, %156 : vector<2x50xf32>
    %161 = arith.addf %158, %160 : vector<2x50xf32>
    %162 = vector.extract_strided_slice %154 {offsets = [0, 100], sizes = [2, 50], strides = [1, 1]} : vector<2x150xf32> to vector<2x50xf32>
    %163 = math.tanh %161 : vector<2x50xf32>
    %164 = arith.mulf %162, %163 : vector<2x50xf32>
    %165 = vector.extract_strided_slice %41 {offsets = [0, 6, 0], sizes = [2, 1, 200], strides = [1, 1, 1]} : vector<2x14x200xf32> to vector<2x1x200xf32>
    %166 = vector.shape_cast %165 : vector<2x1x200xf32> to vector<2x200xf32>
    %cst_32 = arith.constant dense<0.000000e+00> : vector<2x200xf32>
    %167 = tpu.matmul %164, %42, %cst_32 {dimension_numbers = #tpu.dot_dimension_numbers<[1], [0], [0], [1], [0, 0, 1, 1], [], []>, precision = #tpu.contract_precision<fp32>} : vector<2x50xf32>, vector<50x200xf32>, vector<2x200xf32> -> vector<2x200xf32>
    %168 = arith.addf %166, %167 : vector<2x200xf32>
    %169 = vector.extract_strided_slice %168 {offsets = [0, 0], sizes = [2, 150], strides = [1, 1]} : vector<2x200xf32> to vector<2x150xf32>
    %170 = arith.negf %169 : vector<2x150xf32>
    %171 = math.exp %170 : vector<2x150xf32>
    %cst_33 = arith.constant 1.000000e+00 : f32
    %172 = vector.broadcast %cst_33 : f32 to vector<2x150xf32>
    %173 = arith.addf %172, %171 : vector<2x150xf32>
    %174 = arith.divf %172, %173 : vector<2x150xf32>
    %175 = vector.extract_strided_slice %168 {offsets = [0, 150], sizes = [2, 50], strides = [1, 1]} : vector<2x200xf32> to vector<2x50xf32>
    %176 = math.tanh %175 : vector<2x50xf32>
    %177 = vector.extract_strided_slice %174 {offsets = [0, 50], sizes = [2, 50], strides = [1, 1]} : vector<2x150xf32> to vector<2x50xf32>
    %178 = arith.mulf %177, %161 : vector<2x50xf32>
    %179 = vector.extract_strided_slice %174 {offsets = [0, 0], sizes = [2, 50], strides = [1, 1]} : vector<2x150xf32> to vector<2x50xf32>
    %180 = arith.mulf %179, %176 : vector<2x50xf32>
    %181 = arith.addf %178, %180 : vector<2x50xf32>
    %182 = vector.extract_strided_slice %174 {offsets = [0, 100], sizes = [2, 50], strides = [1, 1]} : vector<2x150xf32> to vector<2x50xf32>
    %183 = math.tanh %181 : vector<2x50xf32>
    %184 = arith.mulf %182, %183 : vector<2x50xf32>
    %185 = vector.extract_strided_slice %41 {offsets = [0, 7, 0], sizes = [2, 1, 200], strides = [1, 1, 1]} : vector<2x14x200xf32> to vector<2x1x200xf32>
    %186 = vector.shape_cast %185 : vector<2x1x200xf32> to vector<2x200xf32>
    %cst_34 = arith.constant dense<0.000000e+00> : vector<2x200xf32>
    %187 = tpu.matmul %184, %42, %cst_34 {dimension_numbers = #tpu.dot_dimension_numbers<[1], [0], [0], [1], [0, 0, 1, 1], [], []>, precision = #tpu.contract_precision<fp32>} : vector<2x50xf32>, vector<50x200xf32>, vector<2x200xf32> -> vector<2x200xf32>
    %188 = arith.addf %186, %187 : vector<2x200xf32>
    %189 = vector.extract_strided_slice %188 {offsets = [0, 0], sizes = [2, 150], strides = [1, 1]} : vector<2x200xf32> to vector<2x150xf32>
    %190 = arith.negf %189 : vector<2x150xf32>
    %191 = math.exp %190 : vector<2x150xf32>
    %cst_35 = arith.constant 1.000000e+00 : f32
    %192 = vector.broadcast %cst_35 : f32 to vector<2x150xf32>
    %193 = arith.addf %192, %191 : vector<2x150xf32>
    %194 = arith.divf %192, %193 : vector<2x150xf32>
    %195 = vector.extract_strided_slice %188 {offsets = [0, 150], sizes = [2, 50], strides = [1, 1]} : vector<2x200xf32> to vector<2x50xf32>
    %196 = math.tanh %195 : vector<2x50xf32>
    %197 = vector.extract_strided_slice %194 {offsets = [0, 50], sizes = [2, 50], strides = [1, 1]} : vector<2x150xf32> to vector<2x50xf32>
    %198 = arith.mulf %197, %181 : vector<2x50xf32>
    %199 = vector.extract_strided_slice %194 {offsets = [0, 0], sizes = [2, 50], strides = [1, 1]} : vector<2x150xf32> to vector<2x50xf32>
    %200 = arith.mulf %199, %196 : vector<2x50xf32>
    %201 = arith.addf %198, %200 : vector<2x50xf32>
    %202 = vector.extract_strided_slice %194 {offsets = [0, 100], sizes = [2, 50], strides = [1, 1]} : vector<2x150xf32> to vector<2x50xf32>
    %203 = math.tanh %201 : vector<2x50xf32>
    %204 = arith.mulf %202, %203 : vector<2x50xf32>
    %205 = vector.extract_strided_slice %41 {offsets = [0, 8, 0], sizes = [2, 1, 200], strides = [1, 1, 1]} : vector<2x14x200xf32> to vector<2x1x200xf32>
    %206 = vector.shape_cast %205 : vector<2x1x200xf32> to vector<2x200xf32>
    %cst_36 = arith.constant dense<0.000000e+00> : vector<2x200xf32>
    %207 = tpu.matmul %204, %42, %cst_36 {dimension_numbers = #tpu.dot_dimension_numbers<[1], [0], [0], [1], [0, 0, 1, 1], [], []>, precision = #tpu.contract_precision<fp32>} : vector<2x50xf32>, vector<50x200xf32>, vector<2x200xf32> -> vector<2x200xf32>
    %208 = arith.addf %206, %207 : vector<2x200xf32>
    %209 = vector.extract_strided_slice %208 {offsets = [0, 0], sizes = [2, 150], strides = [1, 1]} : vector<2x200xf32> to vector<2x150xf32>
    %210 = arith.negf %209 : vector<2x150xf32>
    %211 = math.exp %210 : vector<2x150xf32>
    %cst_37 = arith.constant 1.000000e+00 : f32
    %212 = vector.broadcast %cst_37 : f32 to vector<2x150xf32>
    %213 = arith.addf %212, %211 : vector<2x150xf32>
    %214 = arith.divf %212, %213 : vector<2x150xf32>
    %215 = vector.extract_strided_slice %208 {offsets = [0, 150], sizes = [2, 50], strides = [1, 1]} : vector<2x200xf32> to vector<2x50xf32>
    %216 = math.tanh %215 : vector<2x50xf32>
    %217 = vector.extract_strided_slice %214 {offsets = [0, 50], sizes = [2, 50], strides = [1, 1]} : vector<2x150xf32> to vector<2x50xf32>
    %218 = arith.mulf %217, %201 : vector<2x50xf32>
    %219 = vector.extract_strided_slice %214 {offsets = [0, 0], sizes = [2, 50], strides = [1, 1]} : vector<2x150xf32> to vector<2x50xf32>
    %220 = arith.mulf %219, %216 : vector<2x50xf32>
    %221 = arith.addf %218, %220 : vector<2x50xf32>
    %222 = vector.extract_strided_slice %214 {offsets = [0, 100], sizes = [2, 50], strides = [1, 1]} : vector<2x150xf32> to vector<2x50xf32>
    %223 = math.tanh %221 : vector<2x50xf32>
    %224 = arith.mulf %222, %223 : vector<2x50xf32>
    %225 = vector.extract_strided_slice %41 {offsets = [0, 9, 0], sizes = [2, 1, 200], strides = [1, 1, 1]} : vector<2x14x200xf32> to vector<2x1x200xf32>
    %226 = vector.shape_cast %225 : vector<2x1x200xf32> to vector<2x200xf32>
    %cst_38 = arith.constant dense<0.000000e+00> : vector<2x200xf32>
    %227 = tpu.matmul %224, %42, %cst_38 {dimension_numbers = #tpu.dot_dimension_numbers<[1], [0], [0], [1], [0, 0, 1, 1], [], []>, precision = #tpu.contract_precision<fp32>} : vector<2x50xf32>, vector<50x200xf32>, vector<2x200xf32> -> vector<2x200xf32>
    %228 = arith.addf %226, %227 : vector<2x200xf32>
    %229 = vector.extract_strided_slice %228 {offsets = [0, 0], sizes = [2, 150], strides = [1, 1]} : vector<2x200xf32> to vector<2x150xf32>
    %230 = arith.negf %229 : vector<2x150xf32>
    %231 = math.exp %230 : vector<2x150xf32>
    %cst_39 = arith.constant 1.000000e+00 : f32
    %232 = vector.broadcast %cst_39 : f32 to vector<2x150xf32>
    %233 = arith.addf %232, %231 : vector<2x150xf32>
    %234 = arith.divf %232, %233 : vector<2x150xf32>
    %235 = vector.extract_strided_slice %228 {offsets = [0, 150], sizes = [2, 50], strides = [1, 1]} : vector<2x200xf32> to vector<2x50xf32>
    %236 = math.tanh %235 : vector<2x50xf32>
    %237 = vector.extract_strided_slice %234 {offsets = [0, 50], sizes = [2, 50], strides = [1, 1]} : vector<2x150xf32> to vector<2x50xf32>
    %238 = arith.mulf %237, %221 : vector<2x50xf32>
    %239 = vector.extract_strided_slice %234 {offsets = [0, 0], sizes = [2, 50], strides = [1, 1]} : vector<2x150xf32> to vector<2x50xf32>
    %240 = arith.mulf %239, %236 : vector<2x50xf32>
    %241 = arith.addf %238, %240 : vector<2x50xf32>
    %242 = vector.extract_strided_slice %234 {offsets = [0, 100], sizes = [2, 50], strides = [1, 1]} : vector<2x150xf32> to vector<2x50xf32>
    %243 = math.tanh %241 : vector<2x50xf32>
    %244 = arith.mulf %242, %243 : vector<2x50xf32>
    %245 = vector.extract_strided_slice %41 {offsets = [0, 10, 0], sizes = [2, 1, 200], strides = [1, 1, 1]} : vector<2x14x200xf32> to vector<2x1x200xf32>
    %246 = vector.shape_cast %245 : vector<2x1x200xf32> to vector<2x200xf32>
    %cst_40 = arith.constant dense<0.000000e+00> : vector<2x200xf32>
    %247 = tpu.matmul %244, %42, %cst_40 {dimension_numbers = #tpu.dot_dimension_numbers<[1], [0], [0], [1], [0, 0, 1, 1], [], []>, precision = #tpu.contract_precision<fp32>} : vector<2x50xf32>, vector<50x200xf32>, vector<2x200xf32> -> vector<2x200xf32>
    %248 = arith.addf %246, %247 : vector<2x200xf32>
    %249 = vector.extract_strided_slice %248 {offsets = [0, 0], sizes = [2, 150], strides = [1, 1]} : vector<2x200xf32> to vector<2x150xf32>
    %250 = arith.negf %249 : vector<2x150xf32>
    %251 = math.exp %250 : vector<2x150xf32>
    %cst_41 = arith.constant 1.000000e+00 : f32
    %252 = vector.broadcast %cst_41 : f32 to vector<2x150xf32>
    %253 = arith.addf %252, %251 : vector<2x150xf32>
    %254 = arith.divf %252, %253 : vector<2x150xf32>
    %255 = vector.extract_strided_slice %248 {offsets = [0, 150], sizes = [2, 50], strides = [1, 1]} : vector<2x200xf32> to vector<2x50xf32>
    %256 = math.tanh %255 : vector<2x50xf32>
    %257 = vector.extract_strided_slice %254 {offsets = [0, 50], sizes = [2, 50], strides = [1, 1]} : vector<2x150xf32> to vector<2x50xf32>
    %258 = arith.mulf %257, %241 : vector<2x50xf32>
    %259 = vector.extract_strided_slice %254 {offsets = [0, 0], sizes = [2, 50], strides = [1, 1]} : vector<2x150xf32> to vector<2x50xf32>
    %260 = arith.mulf %259, %256 : vector<2x50xf32>
    %261 = arith.addf %258, %260 : vector<2x50xf32>
    %262 = vector.extract_strided_slice %254 {offsets = [0, 100], sizes = [2, 50], strides = [1, 1]} : vector<2x150xf32> to vector<2x50xf32>
    %263 = math.tanh %261 : vector<2x50xf32>
    %264 = arith.mulf %262, %263 : vector<2x50xf32>
    %265 = vector.extract_strided_slice %41 {offsets = [0, 11, 0], sizes = [2, 1, 200], strides = [1, 1, 1]} : vector<2x14x200xf32> to vector<2x1x200xf32>
    %266 = vector.shape_cast %265 : vector<2x1x200xf32> to vector<2x200xf32>
    %cst_42 = arith.constant dense<0.000000e+00> : vector<2x200xf32>
    %267 = tpu.matmul %264, %42, %cst_42 {dimension_numbers = #tpu.dot_dimension_numbers<[1], [0], [0], [1], [0, 0, 1, 1], [], []>, precision = #tpu.contract_precision<fp32>} : vector<2x50xf32>, vector<50x200xf32>, vector<2x200xf32> -> vector<2x200xf32>
    %268 = arith.addf %266, %267 : vector<2x200xf32>
    %269 = vector.extract_strided_slice %268 {offsets = [0, 0], sizes = [2, 150], strides = [1, 1]} : vector<2x200xf32> to vector<2x150xf32>
    %270 = arith.negf %269 : vector<2x150xf32>
    %271 = math.exp %270 : vector<2x150xf32>
    %cst_43 = arith.constant 1.000000e+00 : f32
    %272 = vector.broadcast %cst_43 : f32 to vector<2x150xf32>
    %273 = arith.addf %272, %271 : vector<2x150xf32>
    %274 = arith.divf %272, %273 : vector<2x150xf32>
    %275 = vector.extract_strided_slice %268 {offsets = [0, 150], sizes = [2, 50], strides = [1, 1]} : vector<2x200xf32> to vector<2x50xf32>
    %276 = math.tanh %275 : vector<2x50xf32>
    %277 = vector.extract_strided_slice %274 {offsets = [0, 50], sizes = [2, 50], strides = [1, 1]} : vector<2x150xf32> to vector<2x50xf32>
    %278 = arith.mulf %277, %261 : vector<2x50xf32>
    %279 = vector.extract_strided_slice %274 {offsets = [0, 0], sizes = [2, 50], strides = [1, 1]} : vector<2x150xf32> to vector<2x50xf32>
    %280 = arith.mulf %279, %276 : vector<2x50xf32>
    %281 = arith.addf %278, %280 : vector<2x50xf32>
    %282 = vector.extract_strided_slice %274 {offsets = [0, 100], sizes = [2, 50], strides = [1, 1]} : vector<2x150xf32> to vector<2x50xf32>
    %283 = math.tanh %281 : vector<2x50xf32>
    %284 = arith.mulf %282, %283 : vector<2x50xf32>
    %285 = vector.extract_strided_slice %41 {offsets = [0, 12, 0], sizes = [2, 1, 200], strides = [1, 1, 1]} : vector<2x14x200xf32> to vector<2x1x200xf32>
    %286 = vector.shape_cast %285 : vector<2x1x200xf32> to vector<2x200xf32>
    %cst_44 = arith.constant dense<0.000000e+00> : vector<2x200xf32>
    %287 = tpu.matmul %284, %42, %cst_44 {dimension_numbers = #tpu.dot_dimension_numbers<[1], [0], [0], [1], [0, 0, 1, 1], [], []>, precision = #tpu.contract_precision<fp32>} : vector<2x50xf32>, vector<50x200xf32>, vector<2x200xf32> -> vector<2x200xf32>
    %288 = arith.addf %286, %287 : vector<2x200xf32>
    %289 = vector.extract_strided_slice %288 {offsets = [0, 0], sizes = [2, 150], strides = [1, 1]} : vector<2x200xf32> to vector<2x150xf32>
    %290 = arith.negf %289 : vector<2x150xf32>
    %291 = math.exp %290 : vector<2x150xf32>
    %cst_45 = arith.constant 1.000000e+00 : f32
    %292 = vector.broadcast %cst_45 : f32 to vector<2x150xf32>
    %293 = arith.addf %292, %291 : vector<2x150xf32>
    %294 = arith.divf %292, %293 : vector<2x150xf32>
    %295 = vector.extract_strided_slice %288 {offsets = [0, 150], sizes = [2, 50], strides = [1, 1]} : vector<2x200xf32> to vector<2x50xf32>
    %296 = math.tanh %295 : vector<2x50xf32>
    %297 = vector.extract_strided_slice %294 {offsets = [0, 50], sizes = [2, 50], strides = [1, 1]} : vector<2x150xf32> to vector<2x50xf32>
    %298 = arith.mulf %297, %281 : vector<2x50xf32>
    %299 = vector.extract_strided_slice %294 {offsets = [0, 0], sizes = [2, 50], strides = [1, 1]} : vector<2x150xf32> to vector<2x50xf32>
    %300 = arith.mulf %299, %296 : vector<2x50xf32>
    %301 = arith.addf %298, %300 : vector<2x50xf32>
    %302 = vector.extract_strided_slice %294 {offsets = [0, 100], sizes = [2, 50], strides = [1, 1]} : vector<2x150xf32> to vector<2x50xf32>
    %303 = math.tanh %301 : vector<2x50xf32>
    %304 = arith.mulf %302, %303 : vector<2x50xf32>
    %305 = vector.extract_strided_slice %41 {offsets = [0, 13, 0], sizes = [2, 1, 200], strides = [1, 1, 1]} : vector<2x14x200xf32> to vector<2x1x200xf32>
    %306 = vector.shape_cast %305 : vector<2x1x200xf32> to vector<2x200xf32>
    %cst_46 = arith.constant dense<0.000000e+00> : vector<2x200xf32>
    %307 = tpu.matmul %304, %42, %cst_46 {dimension_numbers = #tpu.dot_dimension_numbers<[1], [0], [0], [1], [0, 0, 1, 1], [], []>, precision = #tpu.contract_precision<fp32>} : vector<2x50xf32>, vector<50x200xf32>, vector<2x200xf32> -> vector<2x200xf32>
    %308 = arith.addf %306, %307 : vector<2x200xf32>
    %309 = vector.extract_strided_slice %308 {offsets = [0, 0], sizes = [2, 150], strides = [1, 1]} : vector<2x200xf32> to vector<2x150xf32>
    %310 = arith.negf %309 : vector<2x150xf32>
    %311 = math.exp %310 : vector<2x150xf32>
    %cst_47 = arith.constant 1.000000e+00 : f32
    %312 = vector.broadcast %cst_47 : f32 to vector<2x150xf32>
    %313 = arith.addf %312, %311 : vector<2x150xf32>
    %314 = arith.divf %312, %313 : vector<2x150xf32>
    %315 = vector.extract_strided_slice %308 {offsets = [0, 150], sizes = [2, 50], strides = [1, 1]} : vector<2x200xf32> to vector<2x50xf32>
    %316 = math.tanh %315 : vector<2x50xf32>
    %317 = vector.extract_strided_slice %314 {offsets = [0, 50], sizes = [2, 50], strides = [1, 1]} : vector<2x150xf32> to vector<2x50xf32>
    %318 = arith.mulf %317, %301 : vector<2x50xf32>
    %319 = vector.extract_strided_slice %314 {offsets = [0, 0], sizes = [2, 50], strides = [1, 1]} : vector<2x150xf32> to vector<2x50xf32>
    %320 = arith.mulf %319, %316 : vector<2x50xf32>
    %321 = arith.addf %318, %320 : vector<2x50xf32>
    %322 = vector.extract_strided_slice %314 {offsets = [0, 100], sizes = [2, 50], strides = [1, 1]} : vector<2x150xf32> to vector<2x50xf32>
    %323 = math.tanh %321 : vector<2x50xf32>
    %324 = arith.mulf %322, %323 : vector<2x50xf32>
    %c0_48 = arith.constant 0 : index
    %c0_49 = arith.constant 0 : index
    %325 = vector.load %arg9[%c0_48, %c0_49] : memref<50x1xf32, #tpu.memory_space<vmem>>, vector<50x1xf32>
    %cst_50 = arith.constant dense<0.000000e+00> : vector<2x1xf32>
    %326 = tpu.matmul %324, %325, %cst_50 {dimension_numbers = #tpu.dot_dimension_numbers<[1], [0], [0], [1], [0, 0, 1, 1], [], []>, precision = #tpu.contract_precision<fp32>} : vector<2x50xf32>, vector<50x1xf32>, vector<2x1xf32> -> vector<2x1xf32>
    %c0_51 = arith.constant 0 : index
    %c0_52 = arith.constant 0 : index
    %327 = vector.load %arg10[%c0_51, %c0_52] : memref<1x1xf32, #tpu.memory_space<vmem>>, vector<1x1xf32>
    %328 = vector.broadcast %327 : vector<1x1xf32> to vector<2x1xf32>
    %329 = arith.addf %326, %328 : vector<2x1xf32>
    %330 = math.exp %329 : vector<2x1xf32>
    %c0_53 = arith.constant 0 : index
    %c0_54 = arith.constant 0 : index
    %331 = vector.load %arg11[%c0_53, %c0_54] : memref<2x1xf32, #tpu.memory_space<vmem>>, vector<2x1xf32>
    tpu.vector_store %arg11[%c0_53, %c0_54], %330 {strides = array<i32>} : memref<2x1xf32, #tpu.memory_space<vmem>>, vector<2x1xf32>,
    return
  }
  func.func @transform_0(%arg0: i32) -> (i32, i32) {
    %c0_i32 = arith.constant 0 : i32
    %c0_i32_0 = arith.constant 0 : i32
    return %arg0, %c0_i32 : i32, i32
  }
  func.func @transform_1(%arg0: i32) -> (i32, i32) {
    %c0_i32 = arith.constant 0 : i32
    %c0_i32_0 = arith.constant 0 : i32
    %c0_i32_1 = arith.constant 0 : i32
    return %c0_i32, %c0_i32_0 : i32, i32
  }
  func.func @transform_2(%arg0: i32) -> (i32, i32) {
    %c0_i32 = arith.constant 0 : i32
    %c0_i32_0 = arith.constant 0 : i32
    %c0_i32_1 = arith.constant 0 : i32
    return %c0_i32, %c0_i32_0 : i32, i32
  }
  func.func @transform_3(%arg0: i32) -> (i32, i32) {
    %c0_i32 = arith.constant 0 : i32
    %c0_i32_0 = arith.constant 0 : i32
    %c0_i32_1 = arith.constant 0 : i32
    return %c0_i32, %c0_i32_0 : i32, i32
  }
  func.func @transform_4(%arg0: i32) -> (i32, i32) {
    %c0_i32 = arith.constant 0 : i32
    %c0_i32_0 = arith.constant 0 : i32
    %c0_i32_1 = arith.constant 0 : i32
    return %c0_i32, %c0_i32_0 : i32, i32
  }
  func.func @transform_5(%arg0: i32) -> (i32, i32) {
    %c0_i32 = arith.constant 0 : i32
    %c0_i32_0 = arith.constant 0 : i32
    %c0_i32_1 = arith.constant 0 : i32
    return %c0_i32, %c0_i32_0 : i32, i32
  }
  func.func @transform_6(%arg0: i32) -> (i32, i32) {
    %c0_i32 = arith.constant 0 : i32
    %c0_i32_0 = arith.constant 0 : i32
    %c0_i32_1 = arith.constant 0 : i32
    return %c0_i32, %c0_i32_0 : i32, i32
  }
  func.func @transform_7(%arg0: i32) -> (i32, i32) {
    %c0_i32 = arith.constant 0 : i32
    %c0_i32_0 = arith.constant 0 : i32
    %c0_i32_1 = arith.constant 0 : i32
    return %c0_i32, %c0_i32_0 : i32, i32
  }
  func.func @transform_8(%arg0: i32) -> (i32, i32) {
    %c0_i32 = arith.constant 0 : i32
    %c0_i32_0 = arith.constant 0 : i32
    %c0_i32_1 = arith.constant 0 : i32
    return %c0_i32, %c0_i32_0 : i32, i32
  }
  func.func @transform_9(%arg0: i32) -> (i32, i32) {
    %c0_i32 = arith.constant 0 : i32
    %c0_i32_0 = arith.constant 0 : i32
    %c0_i32_1 = arith.constant 0 : i32
    return %c0_i32, %c0_i32_0 : i32, i32
  }
  func.func @transform_10(%arg0: i32) -> (i32, i32) {
    %c0_i32 = arith.constant 0 : i32
    %c0_i32_0 = arith.constant 0 : i32
    return %arg0, %c0_i32 : i32, i32
  }
}

</mosaic_0001>

<llo_original>
// kernel: tpu_custom_call.1
$region0: #{tpu_custom_call.1}
  #allocation0 [shape = 'u32[]', space=smem, size = 0x4, offset = 0x4, fixed_abs, tag = 'smem constant byte address 0x4 - core index']
  #allocation1 [shape = 'u32[72,128]{1,0:T(1,128)}', space=vmem, size = 0x9000, scoped, tag = 'internal scratch']
  #allocation2 [shape = 'f32[1,1]{1,0:T(1,128)S(1)}', space=vmem, size = 0x200, scoped, tag = 'scoped memory for tpu_custom_call.1']
  %s0 = inlined_call_operand.vmem [shape: f32[2,16], index: 0, kind: input, shape index: {}]
  %s1 = inlined_call_operand.vmem [shape: f32[2,16], index: 1, kind: input, shape index: {}]
  %s2 = inlined_call_operand.vmem [shape: f32[1,16], index: 2, kind: input, shape index: {}]
  %s3 = inlined_call_operand.vmem [shape: f32[32,32], index: 3, kind: input, shape index: {}]
  %s4 = inlined_call_operand.vmem [shape: f32[1,32], index: 4, kind: input, shape index: {}]
  %s5 = inlined_call_operand.hbm [shape: f32[32,200], index: 5, kind: input, shape index: {}]
  %s6 = inlined_call_operand.hbm [shape: f32[50,200], index: 6, kind: input, shape index: {}]
  %s7 = inlined_call_operand.vmem [shape: f32[1,200], index: 7, kind: input, shape index: {}]
  %s8 = inlined_call_operand.vmem [shape: f32[50,1], index: 8, kind: input, shape index: {}]
  %s9 = inlined_call_operand.<no memory space> [shape: f32[1,1], index: 9, kind: input, shape index: {}]
  %s10 = inlined_call_operand.vmem [shape: f32[2,1], index: 10, kind: output, shape index: {}]
  %s11 = sld [smem:[#allocation0]]
  $region58: #{tpu_custom_call.1} parent=0
    _
  %s13 = ssub.s32 1, %s11
  %s14 = scalar_select 0, %s13, %s11
  %v15 = vstv %s9
  %16 = vst [vmem:[#allocation2] sm:$0x1] %v15
  $region1: #{tpu_custom_call.1} parent=0
    #allocation3 [shape = 'u8[32768]{0}', space=vmem, size = 0x8000, scoped, tag = 'input window, operand 5, single buffered']
    #allocation4 [shape = 's32[1]{0}', space=sflag, size = 0x4, scoped, tag = 'scoped memory for tpu_custom_call.1']
    #allocation5 [shape = 'u8[57344]{0}', space=vmem, size = 0xe000, scoped, tag = 'input window, operand 6, single buffered']
    #allocation6 [shape = 's32[1]{0}', space=sflag, size = 0x4, scoped, tag = 'scoped memory for tpu_custom_call.1']
    %17 = vsyncpa [#allocation4], 0
    %18 = vsyncpa [#allocation6], 0
    // Predicated region
    $region2: #{tpu_custom_call.1} parent=1 // pred_check
      _
    $region3: #{tpu_custom_call.1} parent=1 // pred_check_branch
      %20 = sbr.rel (0) target = $region5
    $region4: #{tpu_custom_call.1} parent=1 // pred_region
      _
    $region5: #{tpu_custom_call.1} parent=1 // pred_fallthru
      _
    // Predicated region
    $region6: #{tpu_custom_call.1} parent=1 // pred_check
      _
    $region7: #{tpu_custom_call.1} parent=1 // pred_check_branch
      %22 = sbr.rel (0) target = $region9
    $region8: #{tpu_custom_call.1} parent=1 // pred_region
      _
    $region9: #{tpu_custom_call.1} parent=1 // pred_fallthru
      _
    // Predicated region
    $region10: #{tpu_custom_call.1} parent=1 // pred_check
      _
    $region11: #{tpu_custom_call.1} parent=1 // pred_check_branch
      %24 = sbr.rel (0) target = $region13
    $region12: #{tpu_custom_call.1} parent=1 // pred_region
      _
    $region13: #{tpu_custom_call.1} parent=1 // pred_fallthru
      _
    // Predicated region
    $region14: #{tpu_custom_call.1} parent=1 // pred_check
      _
    $region15: #{tpu_custom_call.1} parent=1 // pred_check_branch
      %26 = sbr.rel (0) target = $region17
    $region16: #{tpu_custom_call.1} parent=1 // pred_region
      _
    $region17: #{tpu_custom_call.1} parent=1 // pred_fallthru
      _
    // Predicated region
    $region18: #{tpu_custom_call.1} parent=1 // pred_check
      _
    $region19: #{tpu_custom_call.1} parent=1 // pred_check_branch
      %28 = sbr.rel (0) target = $region21
    $region20: #{tpu_custom_call.1} parent=1 // pred_region
      _
    $region21: #{tpu_custom_call.1} parent=1 // pred_fallthru
      _
    // Predicated region
    $region22: #{tpu_custom_call.1} parent=1 // pred_check
      _
    $region23: #{tpu_custom_call.1} parent=1 // pred_check_branch
      %30 = sbr.rel (0) target = $region25
    $region24: #{tpu_custom_call.1} parent=1 // pred_region
      %32 = vsyncadd [#allocation4], 0
      %s33 = sshll.u32 %s5, 4
      %s34 = int_to_ptr.hbm [resolvable:$true] %s33
      %s35 = sshll.u32 [#allocation3], 4
      %s36 = int_to_ptr.vmem [resolvable:$true] %s35
      %41 = dma.hbm_to_vmem [thread:$0]  %s34, 1024, %s36, [#allocation4], 256, 256, 16
    $region25: #{tpu_custom_call.1} parent=1 // pred_fallthru
      _
    // Predicated region
    $region26: #{tpu_custom_call.1} parent=1 // pred_check
      _
    $region27: #{tpu_custom_call.1} parent=1 // pred_check_branch
      %43 = sbr.rel (0) target = $region29
    $region28: #{tpu_custom_call.1} parent=1 // pred_region
      %45 = vsyncadd [#allocation6], 0
      %s46 = sshll.u32 %s6, 4
      %s47 = int_to_ptr.hbm [resolvable:$true] %s46
      %s48 = sshll.u32 [#allocation5], 4
      %s49 = int_to_ptr.vmem [resolvable:$true] %s48
      %54 = dma.hbm_to_vmem [thread:$0]  %s47, 1792, %s49, [#allocation6], 256, 256, 16
    $region29: #{tpu_custom_call.1} parent=1 // pred_fallthru
      _
    // Predicated region
    $region30: #{tpu_custom_call.1} parent=1 // pred_check
      _
    $region31: #{tpu_custom_call.1} parent=1 // pred_check_branch
      %56 = sbr.rel (0) target = $region33
    $region32: #{tpu_custom_call.1} parent=1 // pred_region
      _
    $region33: #{tpu_custom_call.1} parent=1 // pred_fallthru
      _
    // Predicated region
    $region34: #{tpu_custom_call.1} parent=1 // pred_check
      _
    $region35: #{tpu_custom_call.1} parent=1 // pred_check_branch
      %58 = sbr.rel (0) target = $region37
    $region36: #{tpu_custom_call.1} parent=1 // pred_region
      _
    $region37: #{tpu_custom_call.1} parent=1 // pred_fallthru
      _
    // Predicated region
    $region38: #{tpu_custom_call.1} parent=1 // pred_check
      _
    $region39: #{tpu_custom_call.1} parent=1 // pred_check_branch
      %60 = sbr.rel (0) target = $region41
    $region40: #{tpu_custom_call.1} parent=1 // pred_region
      _
    $region41: #{tpu_custom_call.1} parent=1 // pred_fallthru
      _
    // Predicated region
    $region42: #{tpu_custom_call.1} parent=1 // pred_check
      _
    $region43: #{tpu_custom_call.1} parent=1 // pred_check_branch
      %62 = sbr.rel (0) target = $region45
    $region44: #{tpu_custom_call.1} parent=1 // pred_region
      %64 = dma.done [#allocation4], 1024
    $region45: #{tpu_custom_call.1} parent=1 // pred_fallthru
      _
    // Predicated region
    $region46: #{tpu_custom_call.1} parent=1 // pred_check
      _
    $region47: #{tpu_custom_call.1} parent=1 // pred_check_branch
      %66 = sbr.rel (0) target = $region49
    $region48: #{tpu_custom_call.1} parent=1 // pred_region
      %68 = dma.done [#allocation6], 1792
    $region49: #{tpu_custom_call.1} parent=1 // pred_fallthru
      _
    %v69 = vld [vmem:[%s0] sm:$0x3]
    %v70 = vld [vmem:[%s1] sm:$0x3]
    %v71 = vperm.slane %v69, 0
    %v72 = vlaneseq
    %v73 = vshrl.u32 %v72, 7
    %75 = vset.pattern.permute.xlu0 %v73
    %76 = vperm.xlu0 %75, %v71
    %v77 = vpop.permute.xlu0 %76
    %v78 = vlaneseq
    %v79 = vshrl.u32 %v78, 7
    %v80 = vadd.s32 %v79, 8
    %81 = vset.pattern.permute.xlu0 %v80
    %82 = vperm.xlu0 %81, %v71
    %v83 = vpop.permute.xlu0 %82
    %v84 = vperm.slane %v69, 1
    %v85 = vlaneseq
    %v86 = vshrl.u32 %v85, 7
    %88 = vset.pattern.permute.xlu0 %v86
    %89 = vperm.xlu0 %88, %v84
    %v90 = vpop.permute.xlu0 %89
    %v91 = vlaneseq
    %v92 = vshrl.u32 %v91, 7
    %v93 = vadd.s32 %v92, 8
    %94 = vset.pattern.permute.xlu0 %v93
    %95 = vperm.xlu0 %94, %v84
    %v96 = vpop.permute.xlu0 %95
    %v97 = vperm.slane %v70, 0
    %v98 = vmul.f32 %v77, %v97
    %v99 = vmul.f32 %v83, %v97
    %v100 = vmul.f32 %v90, %v97
    %v101 = vmul.f32 %v96, %v97
    %v102 = vlaneseq
    %v103 = vshrl.u32 %v102, 7
    %v104 = vadd.s32 %v103, 1
    %105 = vset.pattern.permute.xlu0 %v104
    %106 = vperm.xlu0 %105, %v71
    %v107 = vpop.permute.xlu0 %106
    %v108 = vlaneseq
    %v109 = vshrl.u32 %v108, 7
    %v110 = vadd.s32 %v109, 9
    %111 = vset.pattern.permute.xlu0 %v110
    %112 = vperm.xlu0 %111, %v71
    %v113 = vpop.permute.xlu0 %112
    %v114 = vlaneseq
    %v115 = vshrl.u32 %v114, 7
    %v116 = vadd.s32 %v115, 1
    %117 = vset.pattern.permute.xlu0 %v116
    %118 = vperm.xlu0 %117, %v84
    %v119 = vpop.permute.xlu0 %118
    %v120 = vlaneseq
    %v121 = vshrl.u32 %v120, 7
    %v122 = vadd.s32 %v121, 9
    %123 = vset.pattern.permute.xlu0 %v122
    %124 = vperm.xlu0 %123, %v84
    %v125 = vpop.permute.xlu0 %124
    %v126 = vperm.slane %v70, 1
    %v127 = vmul.f32 %v107, %v126
    %v128 = vmul.f32 %v113, %v126
    %v129 = vmul.f32 %v119, %v126
    %v130 = vmul.f32 %v125, %v126
    %v131 = vadd.f32 %v98, %v127
    %v132 = vadd.f32 %v99, %v128
    %v133 = vadd.f32 %v100, %v129
    %v134 = vadd.f32 %v101, %v130
    %v135 = vld [vmem:[%s2] sm:$0x1]
    %v137 = vperm.slane %v135, 0
    %v139 = vadd.f32 %v131, %v137
    %v140 = vadd.f32 %v132, %v137
    %v141 = vadd.f32 %v133, %v137
    %v142 = vadd.f32 %v134, %v137
    %v143 = vmax.f32 %v139, 0.0
    %v144 = vmax.f32 %v140, 0.0
    %v145 = vmax.f32 %v141, 0.0
    %v146 = vmax.f32 %v142, 0.0
    %vm151 = vcmask 1046528
    %v152 = vrot.slane %v143, 1
    %v153 = vrot.slane %v144, 1
    %v154 = vsel %vm151, %v152, %v153
    %v155 = vrot.slane %v145, 1
    %v156 = vrot.slane %v146, 1
    %v157 = vsel %vm151, %v155, %v156
    %158 = vrot.lane.b32.xlu0 %v154, 16
    %v159 = vpop.permute.xlu0 %158
    %160 = vrot.lane.b32.xlu0 %v153, 16
    %v161 = vpop.permute.xlu0 %160
    %162 = vrot.lane.b32.xlu0 %v157, 16
    %v163 = vpop.permute.xlu0 %162
    %164 = vrot.lane.b32.xlu0 %v156, 16
    %v165 = vpop.permute.xlu0 %164
    %vm170 = vcmask 130048
    %v171 = vsel %vm170, %v143, %v159
    %v172 = vsel %vm170, %v144, %v161
    %v173 = vsel %vm170, %v145, %v163
    %v174 = vsel %vm170, %v146, %v165
    %v179 = vrot.slane %v171, 2
    %v180 = vrot.slane %v171, 4
    %v181 = vrot.slane %v171, 6
    %v182 = vrot.slane %v172, 2
    %v183 = vrot.slane %v172, 4
    %v184 = vrot.slane %v173, 2
    %v185 = vrot.slane %v173, 4
    %v186 = vrot.slane %v173, 6
    %v187 = vrot.slane %v174, 2
    %v188 = vrot.slane %v174, 4
    %v189 = vld [vmem:[%s3] sm:$0xff]
    %v190 = vld [vmem:[%s3 + $0x8] sm:$0xff]
    %v191 = vld [vmem:[%s3 + $0x10] sm:$0xff]
    %v192 = vld [vmem:[%s3 + $0x18] sm:$0xff]
    %v193 = vld [vmem:[%s4] sm:$0x1]
    %v195 = vperm.slane %v193, 0
    %197 = vst [vmem:[#allocation1] ss:$4 sm:$0xff] %v171
    %s198 = scalar_lea.vmem [#allocation1], 1
    %199 = vst [vmem:[%s198] ss:$4 sm:$0xff] %v179
    %s200 = scalar_lea.vmem [#allocation1], 2
    %201 = vst [vmem:[%s200] ss:$4 sm:$0xff] %v180
    %s202 = scalar_lea.vmem [#allocation1], 3
    %203 = vst [vmem:[%s202] ss:$4 sm:$0xff] %v181
    %s204 = scalar_lea.vmem [#allocation1], 32
    %205 = vst [vmem:[%s204] ss:$4 sm:$0xff] %v172
    %s206 = scalar_lea.vmem [#allocation1], 33
    %207 = vst [vmem:[%s206] ss:$4 sm:$0xff] %v182
    %s208 = scalar_lea.vmem [#allocation1], 34
    %209 = vst [vmem:[%s208] ss:$4 sm:$0xff] %v183
    %s210 = scalar_lea.vmem [#allocation1], 35
    %211 = vst [vmem:[%s210] ss:$4 sm:$0xff] %v173
    %v212 = vld.sshfl [vmem:[#allocation1] sm:$0xff pattern:$0x73625140]
    %v213 = vld.sshfl [vmem:[#allocation1 + $0x20] sm:$0xff pattern:$0x73625140]
    %214 = vst [vmem:[#allocation1] ss:$4 sm:$0xff] %v184
    %215 = vst [vmem:[%s198] ss:$4 sm:$0xff] %v185
    %216 = vst [vmem:[%s200] ss:$4 sm:$0xff] %v186
    %217 = vst [vmem:[%s202] ss:$4 sm:$0xff] %v174
    %218 = vst [vmem:[%s204] ss:$4 sm:$0xff] %v187
    %219 = vst [vmem:[%s206] ss:$4 sm:$0xff] %v188
    %v220 = vld.sshfl [vmem:[#allocation1] sm:$0xff pattern:$0x73625140]
    %v221 = vld.sshfl [vmem:[#allocation1 + $0x20] sm:$0xff pattern:$0x73625140]
    %vm222 = vcmask 261120
    %v223 = vsel %vm222, %v212, 0
    %v225 = vsel %vm222, %v213, 0
    %v227 = vsel %vm222, %v220, 0
    %v229 = vsel %vm222, %v221, 0
    %231 = vmatpush.msra.mxu0 0.0
    %232 = vmatpush.msra.mxu0 0.0
    %233 = vmatpush.msra.mxu0 0.0
    %234 = vmatpush.msra.mxu0 0.0
    %235 = vmatpush.msra.mxu0 0.0
    %236 = vmatpush.msra.mxu0 0.0
    %237 = vmatpush.msra.mxu0 0.0
    %238 = vmatpush.msra.mxu0 0.0
    %239 = vmatpush.msra.mxu0 0.0
    %240 = vmatpush.msra.mxu0 0.0
    %241 = vmatpush.msra.mxu0 0.0
    %242 = vmatpush.msra.mxu0 0.0
    %v243 = vand.u32 %v192, 4294901760
    %244 = vmatpush.msra.mxu0 %v243
    %v245 = vand.u32 %v191, 4294901760
    %246 = vmatpush.msra.mxu0 %v245
    %v247 = vand.u32 %v190, 4294901760
    %248 = vmatpush.msra.mxu0 %v247
    %v249 = vand.u32 %v189, 4294901760
    %250 = vmatpush.msra.mxu0 %v249
    %v251 = vand.u32 %v223, 4294901760
    %v252 = vsub.f32 %v223, %v251
    %v253 = vand.u32 %v252, 4294901760
    %v254 = vsub.f32 %v252, %v253
    %v255 = vand.u32 %v254, 4294901760
    %256 = vmatmul.f32.gmra.mxu0 %v255
    %v257 = vpop.f32.mrf.mxu0
    %v258 = vadd.f32 %v195, %v257
    %v259 = vand.u32 %v225, 4294901760
    %v260 = vsub.f32 %v225, %v259
    %v261 = vand.u32 %v260, 4294901760
    %v262 = vsub.f32 %v260, %v261
    %v263 = vand.u32 %v262, 4294901760
    %264 = vmatmul.f32.gmra.mxu0 %v263
    %v265 = vpop.f32.mrf.mxu0
    %v266 = vadd.f32 %v195, %v265
    %v267 = vand.u32 %v227, 4294901760
    %v268 = vsub.f32 %v227, %v267
    %v269 = vand.u32 %v268, 4294901760
    %v270 = vsub.f32 %v268, %v269
    %v271 = vand.u32 %v270, 4294901760
    %272 = vmatmul.f32.gmra.mxu0 %v271
    %v273 = vpop.f32.mrf.mxu0
    %v274 = vadd.f32 %v195, %v273
    %v275 = vand.u32 %v229, 4294901760
    %v276 = vsub.f32 %v229, %v275
    %v277 = vand.u32 %v276, 4294901760
    %v278 = vsub.f32 %v276, %v277
    %v279 = vand.u32 %v278, 4294901760
    %280 = vmatmul.f32.gmra.mxu0 %v279
    %v281 = vpop.f32.mrf.mxu0
    %v282 = vadd.f32 %v195, %v281
    %283 = vdwg.mxu0
    %284 = vmatpush.msra.mxu0 0.0
    %285 = vmatpush.msra.mxu0 0.0
    %286 = vmatpush.msra.mxu0 0.0
    %287 = vmatpush.msra.mxu0 0.0
    %288 = vmatpush.msra.mxu0 0.0
    %289 = vmatpush.msra.mxu0 0.0
    %290 = vmatpush.msra.mxu0 0.0
    %291 = vmatpush.msra.mxu0 0.0
    %292 = vmatpush.msra.mxu0 0.0
    %293 = vmatpush.msra.mxu0 0.0
    %294 = vmatpush.msra.mxu0 0.0
    %295 = vmatpush.msra.mxu0 0.0
    %v296 = vand.u32 %v192, 4294901760
    %v297 = vsub.f32 %v192, %v296
    %v298 = vand.u32 %v297, 4294901760
    %v299 = vsub.f32 %v297, %v298
    %v300 = vand.u32 %v299, 4294901760
    %301 = vmatpush.msra.mxu0 %v300
    %v302 = vand.u32 %v191, 4294901760
    %v303 = vsub.f32 %v191, %v302
    %v304 = vand.u32 %v303, 4294901760
    %v305 = vsub.f32 %v303, %v304
    %v306 = vand.u32 %v305, 4294901760
    %307 = vmatpush.msra.mxu0 %v306
    %v308 = vand.u32 %v190, 4294901760
    %v309 = vsub.f32 %v190, %v308
    %v310 = vand.u32 %v309, 4294901760
    %v311 = vsub.f32 %v309, %v310
    %v312 = vand.u32 %v311, 4294901760
    %313 = vmatpush.msra.mxu0 %v312
    %v314 = vand.u32 %v189, 4294901760
    %v315 = vsub.f32 %v189, %v314
    %v316 = vand.u32 %v315, 4294901760
    %v317 = vsub.f32 %v315, %v316
    %v318 = vand.u32 %v317, 4294901760
    %319 = vmatpush.msra.mxu0 %v318
    %v320 = vand.u32 %v223, 4294901760
    %321 = vmatmul.f32.gmra.mxu0 %v320
    %v322 = vpop.f32.mrf.mxu0
    %v323 = vadd.f32 %v258, %v322
    %v324 = vand.u32 %v225, 4294901760
    %325 = vmatmul.f32.gmra.mxu0 %v324
    %v326 = vpop.f32.mrf.mxu0
    %v327 = vadd.f32 %v266, %v326
    %v328 = vand.u32 %v227, 4294901760
    %329 = vmatmul.f32.gmra.mxu0 %v328
    %v330 = vpop.f32.mrf.mxu0
    %v331 = vadd.f32 %v274, %v330
    %v332 = vand.u32 %v229, 4294901760
    %333 = vmatmul.f32.gmra.mxu0 %v332
    %v334 = vpop.f32.mrf.mxu0
    %v335 = vadd.f32 %v282, %v334
    %336 = vdwg.mxu0
    %337 = vmatpush.msra.mxu0 0.0
    %338 = vmatpush.msra.mxu0 0.0
    %339 = vmatpush.msra.mxu0 0.0
    %340 = vmatpush.msra.mxu0 0.0
    %341 = vmatpush.msra.mxu0 0.0
    %342 = vmatpush.msra.mxu0 0.0
    %343 = vmatpush.msra.mxu0 0.0
    %344 = vmatpush.msra.mxu0 0.0
    %345 = vmatpush.msra.mxu0 0.0
    %346 = vmatpush.msra.mxu0 0.0
    %347 = vmatpush.msra.mxu0 0.0
    %348 = vmatpush.msra.mxu0 0.0
    %v349 = vand.u32 %v192, 4294901760
    %v350 = vsub.f32 %v192, %v349
    %351 = vmatpush.msra.mxu0 %v350
    %v352 = vand.u32 %v191, 4294901760
    %v353 = vsub.f32 %v191, %v352
    %354 = vmatpush.msra.mxu0 %v353
    %v355 = vand.u32 %v190, 4294901760
    %v356 = vsub.f32 %v190, %v355
    %357 = vmatpush.msra.mxu0 %v356
    %v358 = vand.u32 %v189, 4294901760
    %v359 = vsub.f32 %v189, %v358
    %360 = vmatpush.msra.mxu0 %v359
    %v361 = vand.u32 %v223, 4294901760
    %v362 = vsub.f32 %v223, %v361
    %363 = vmatmul.f32.gmra.mxu0 %v362
    %v364 = vpop.f32.mrf.mxu0
    %v365 = vadd.f32 %v323, %v364
    %v366 = vand.u32 %v225, 4294901760
    %v367 = vsub.f32 %v225, %v366
    %368 = vmatmul.f32.gmra.mxu0 %v367
    %v369 = vpop.f32.mrf.mxu0
    %v370 = vadd.f32 %v327, %v369
    %v371 = vand.u32 %v227, 4294901760
    %v372 = vsub.f32 %v227, %v371
    %373 = vmatmul.f32.gmra.mxu0 %v372
    %v374 = vpop.f32.mrf.mxu0
    %v375 = vadd.f32 %v331, %v374
    %v376 = vand.u32 %v229, 4294901760
    %v377 = vsub.f32 %v229, %v376
    %378 = vmatmul.f32.gmra.mxu0 %v377
    %v379 = vpop.f32.mrf.mxu0
    %v380 = vadd.f32 %v335, %v379
    %381 = vdwg.mxu0
    %382 = vmatpush.msra.mxu0 0.0
    %383 = vmatpush.msra.mxu0 0.0
    %384 = vmatpush.msra.mxu0 0.0
    %385 = vmatpush.msra.mxu0 0.0
    %386 = vmatpush.msra.mxu0 0.0
    %387 = vmatpush.msra.mxu0 0.0
    %388 = vmatpush.msra.mxu0 0.0
    %389 = vmatpush.msra.mxu0 0.0
    %390 = vmatpush.msra.mxu0 0.0
    %391 = vmatpush.msra.mxu0 0.0
    %392 = vmatpush.msra.mxu0 0.0
    %393 = vmatpush.msra.mxu0 0.0
    %v394 = vand.u32 %v192, 4294901760
    %395 = vmatpush.msra.mxu0 %v394
    %v396 = vand.u32 %v191, 4294901760
    %397 = vmatpush.msra.mxu0 %v396
    %v398 = vand.u32 %v190, 4294901760
    %399 = vmatpush.msra.mxu0 %v398
    %v400 = vand.u32 %v189, 4294901760
    %401 = vmatpush.msra.mxu0 %v400
    %v402 = vand.u32 %v223, 4294901760
    %v403 = vsub.f32 %v223, %v402
    %v404 = vand.u32 %v403, 4294901760
    %405 = vmatmul.f32.gmra.mxu0 %v404
    %v406 = vpop.f32.mrf.mxu0
    %v407 = vadd.f32 %v365, %v406
    %v408 = vand.u32 %v225, 4294901760
    %v409 = vsub.f32 %v225, %v408
    %v410 = vand.u32 %v409, 4294901760
    %411 = vmatmul.f32.gmra.mxu0 %v410
    %v412 = vpop.f32.mrf.mxu0
    %v413 = vadd.f32 %v370, %v412
    %v414 = vand.u32 %v227, 4294901760
    %v415 = vsub.f32 %v227, %v414
    %v416 = vand.u32 %v415, 4294901760
    %417 = vmatmul.f32.gmra.mxu0 %v416
    %v418 = vpop.f32.mrf.mxu0
    %v419 = vadd.f32 %v375, %v418
    %v420 = vand.u32 %v229, 4294901760
    %v421 = vsub.f32 %v229, %v420
    %v422 = vand.u32 %v421, 4294901760
    %423 = vmatmul.f32.gmra.mxu0 %v422
    %v424 = vpop.f32.mrf.mxu0
    %v425 = vadd.f32 %v380, %v424
    %426 = vdwg.mxu0
    %427 = vmatpush.msra.mxu0 0.0
    %428 = vmatpush.msra.mxu0 0.0
    %429 = vmatpush.msra.mxu0 0.0
    %430 = vmatpush.msra.mxu0 0.0
    %431 = vmatpush.msra.mxu0 0.0
    %432 = vmatpush.msra.mxu0 0.0
    %433 = vmatpush.msra.mxu0 0.0
    %434 = vmatpush.msra.mxu0 0.0
    %435 = vmatpush.msra.mxu0 0.0
    %436 = vmatpush.msra.mxu0 0.0
    %437 = vmatpush.msra.mxu0 0.0
    %438 = vmatpush.msra.mxu0 0.0
    %v439 = vand.u32 %v192, 4294901760
    %v440 = vsub.f32 %v192, %v439
    %v441 = vand.u32 %v440, 4294901760
    %442 = vmatpush.msra.mxu0 %v441
    %v443 = vand.u32 %v191, 4294901760
    %v444 = vsub.f32 %v191, %v443
    %v445 = vand.u32 %v444, 4294901760
    %446 = vmatpush.msra.mxu0 %v445
    %v447 = vand.u32 %v190, 4294901760
    %v448 = vsub.f32 %v190, %v447
    %v449 = vand.u32 %v448, 4294901760
    %450 = vmatpush.msra.mxu0 %v449
    %v451 = vand.u32 %v189, 4294901760
    %v452 = vsub.f32 %v189, %v451
    %v453 = vand.u32 %v452, 4294901760
    %454 = vmatpush.msra.mxu0 %v453
    %v455 = vand.u32 %v223, 4294901760
    %456 = vmatmul.f32.gmra.mxu0 %v455
    %v457 = vpop.f32.mrf.mxu0
    %v458 = vadd.f32 %v407, %v457
    %v459 = vand.u32 %v225, 4294901760
    %460 = vmatmul.f32.gmra.mxu0 %v459
    %v461 = vpop.f32.mrf.mxu0
    %v462 = vadd.f32 %v413, %v461
    %v463 = vand.u32 %v227, 4294901760
    %464 = vmatmul.f32.gmra.mxu0 %v463
    %v465 = vpop.f32.mrf.mxu0
    %v466 = vadd.f32 %v419, %v465
    %v467 = vand.u32 %v229, 4294901760
    %468 = vmatmul.f32.gmra.mxu0 %v467
    %v469 = vpop.f32.mrf.mxu0
    %v470 = vadd.f32 %v425, %v469
    %471 = vdwg.mxu0
    %472 = vmatpush.msra.mxu0 0.0
    %473 = vmatpush.msra.mxu0 0.0
    %474 = vmatpush.msra.mxu0 0.0
    %475 = vmatpush.msra.mxu0 0.0
    %476 = vmatpush.msra.mxu0 0.0
    %477 = vmatpush.msra.mxu0 0.0
    %478 = vmatpush.msra.mxu0 0.0
    %479 = vmatpush.msra.mxu0 0.0
    %480 = vmatpush.msra.mxu0 0.0
    %481 = vmatpush.msra.mxu0 0.0
    %482 = vmatpush.msra.mxu0 0.0
    %483 = vmatpush.msra.mxu0 0.0
    %v484 = vand.u32 %v192, 4294901760
    %485 = vmatpush.msra.mxu0 %v484
    %v486 = vand.u32 %v191, 4294901760
    %487 = vmatpush.msra.mxu0 %v486
    %v488 = vand.u32 %v190, 4294901760
    %489 = vmatpush.msra.mxu0 %v488
    %v490 = vand.u32 %v189, 4294901760
    %491 = vmatpush.msra.mxu0 %v490
    %v492 = vand.u32 %v223, 4294901760
    %493 = vmatmul.f32.gmra.mxu0 %v492
    %v494 = vpop.f32.mrf.mxu0
    %v495 = vadd.f32 %v458, %v494
    %v496 = vand.u32 %v225, 4294901760
    %497 = vmatmul.f32.gmra.mxu0 %v496
    %v498 = vpop.f32.mrf.mxu0
    %v499 = vadd.f32 %v462, %v498
    %v500 = vand.u32 %v227, 4294901760
    %501 = vmatmul.f32.gmra.mxu0 %v500
    %v502 = vpop.f32.mrf.mxu0
    %v503 = vadd.f32 %v466, %v502
    %v504 = vand.u32 %v229, 4294901760
    %505 = vmatmul.f32.gmra.mxu0 %v504
    %v506 = vpop.f32.mrf.mxu0
    %v507 = vadd.f32 %v470, %v506
    %508 = vdwg.mxu0
    %v509 = vmax.f32 %v495, 0.0
    %v510 = vmax.f32 %v499, 0.0
    %v511 = vmax.f32 %v503, 0.0
    %v512 = vmax.f32 %v507, 0.0
    %v513 = vld [vmem:[#allocation3] sm:$0xff]
    %v514 = vld [vmem:[#allocation3 + $0x8] sm:$0xff]
    %v515 = vld [vmem:[#allocation3 + $0x10] sm:$0xff]
    %v516 = vld [vmem:[#allocation3 + $0x18] sm:$0xff]
    %v517 = vld [vmem:[#allocation3 + $0x20] sm:$0xff]
    %v518 = vld [vmem:[#allocation3 + $0x28] sm:$0xff]
    %v519 = vld [vmem:[#allocation3 + $0x30] sm:$0xff]
    %v520 = vld [vmem:[#allocation3 + $0x38] sm:$0xff]
    %v521 = vld [vmem:[%s7] sm:$0x3]
    %v523 = vperm.slane %v521, 0
    %v524 = vperm.slane %v521, 1
    %v528 = vsel %vm222, %v509, 0
    %v531 = vsel %vm222, %v510, 0
    %v534 = vsel %vm222, %v511, 0
    %v537 = vsel %vm222, %v512, 0
    %539 = vmatpush.msra.mxu0 0.0
    %540 = vmatpush.msra.mxu0 0.0
    %541 = vmatpush.msra.mxu0 0.0
    %542 = vmatpush.msra.mxu0 0.0
    %543 = vmatpush.msra.mxu0 0.0
    %544 = vmatpush.msra.mxu0 0.0
    %545 = vmatpush.msra.mxu0 0.0
    %546 = vmatpush.msra.mxu0 0.0
    %547 = vmatpush.msra.mxu0 0.0
    %548 = vmatpush.msra.mxu0 0.0
    %549 = vmatpush.msra.mxu0 0.0
    %550 = vmatpush.msra.mxu0 0.0
    %v551 = vand.u32 %v519, 4294901760
    %552 = vmatpush.msra.mxu0 %v551
    %v553 = vand.u32 %v517, 4294901760
    %554 = vmatpush.msra.mxu0 %v553
    %v555 = vand.u32 %v515, 4294901760
    %556 = vmatpush.msra.mxu0 %v555
    %v557 = vand.u32 %v513, 4294901760
    %558 = vmatpush.msra.mxu0 %v557
    %v559 = vand.u32 %v528, 4294901760
    %v560 = vsub.f32 %v528, %v559
    %v561 = vand.u32 %v560, 4294901760
    %v562 = vsub.f32 %v560, %v561
    %v563 = vand.u32 %v562, 4294901760
    %564 = vmatmul.f32.gmra.mxu0 %v563
    %v565 = vpop.f32.mrf.mxu0
    %v566 = vadd.f32 %v523, %v565
    %v567 = vand.u32 %v531, 4294901760
    %v568 = vsub.f32 %v531, %v567
    %v569 = vand.u32 %v568, 4294901760
    %v570 = vsub.f32 %v568, %v569
    %v571 = vand.u32 %v570, 4294901760
    %572 = vmatmul.f32.gmra.mxu0 %v571
    %v573 = vpop.f32.mrf.mxu0
    %v574 = vadd.f32 %v523, %v573
    %v575 = vand.u32 %v534, 4294901760
    %v576 = vsub.f32 %v534, %v575
    %v577 = vand.u32 %v576, 4294901760
    %v578 = vsub.f32 %v576, %v577
    %v579 = vand.u32 %v578, 4294901760
    %580 = vmatmul.f32.gmra.mxu0 %v579
    %v581 = vpop.f32.mrf.mxu0
    %v582 = vadd.f32 %v523, %v581
    %v583 = vand.u32 %v537, 4294901760
    %v584 = vsub.f32 %v537, %v583
    %v585 = vand.u32 %v584, 4294901760
    %v586 = vsub.f32 %v584, %v585
    %v587 = vand.u32 %v586, 4294901760
    %588 = vmatmul.f32.gmra.mxu0 %v587
    %v589 = vpop.f32.mrf.mxu0
    %v590 = vadd.f32 %v523, %v589
    %591 = vdwg.mxu0
    %592 = vmatpush.msra.mxu0 0.0
    %593 = vmatpush.msra.mxu0 0.0
    %594 = vmatpush.msra.mxu0 0.0
    %595 = vmatpush.msra.mxu0 0.0
    %596 = vmatpush.msra.mxu0 0.0
    %597 = vmatpush.msra.mxu0 0.0
    %598 = vmatpush.msra.mxu0 0.0
    %599 = vmatpush.msra.mxu0 0.0
    %600 = vmatpush.msra.mxu0 0.0
    %601 = vmatpush.msra.mxu0 0.0
    %602 = vmatpush.msra.mxu0 0.0
    %603 = vmatpush.msra.mxu0 0.0
    %v604 = vand.u32 %v519, 4294901760
    %v605 = vsub.f32 %v519, %v604
    %v606 = vand.u32 %v605, 4294901760
    %v607 = vsub.f32 %v605, %v606
    %v608 = vand.u32 %v607, 4294901760
    %609 = vmatpush.msra.mxu0 %v608
    %v610 = vand.u32 %v517, 4294901760
    %v611 = vsub.f32 %v517, %v610
    %v612 = vand.u32 %v611, 4294901760
    %v613 = vsub.f32 %v611, %v612
    %v614 = vand.u32 %v613, 4294901760
    %615 = vmatpush.msra.mxu0 %v614
    %v616 = vand.u32 %v515, 4294901760
    %v617 = vsub.f32 %v515, %v616
    %v618 = vand.u32 %v617, 4294901760
    %v619 = vsub.f32 %v617, %v618
    %v620 = vand.u32 %v619, 4294901760
    %621 = vmatpush.msra.mxu0 %v620
    %v622 = vand.u32 %v513, 4294901760
    %v623 = vsub.f32 %v513, %v622
    %v624 = vand.u32 %v623, 4294901760
    %v625 = vsub.f32 %v623, %v624
    %v626 = vand.u32 %v625, 4294901760
    %627 = vmatpush.msra.mxu0 %v626
    %v628 = vand.u32 %v528, 4294901760
    %629 = vmatmul.f32.gmra.mxu0 %v628
    %v630 = vpop.f32.mrf.mxu0
    %v631 = vadd.f32 %v566, %v630
    %v632 = vand.u32 %v531, 4294901760
    %633 = vmatmul.f32.gmra.mxu0 %v632
    %v634 = vpop.f32.mrf.mxu0
    %v635 = vadd.f32 %v574, %v634
    %v636 = vand.u32 %v534, 4294901760
    %637 = vmatmul.f32.gmra.mxu0 %v636
    %v638 = vpop.f32.mrf.mxu0
    %v639 = vadd.f32 %v582, %v638
    %v640 = vand.u32 %v537, 4294901760
    %641 = vmatmul.f32.gmra.mxu0 %v640
    %v642 = vpop.f32.mrf.mxu0
    %v643 = vadd.f32 %v590, %v642
    %644 = vdwg.mxu0
    %645 = vmatpush.msra.mxu0 0.0
    %646 = vmatpush.msra.mxu0 0.0
    %647 = vmatpush.msra.mxu0 0.0
    %648 = vmatpush.msra.mxu0 0.0
    %649 = vmatpush.msra.mxu0 0.0
    %650 = vmatpush.msra.mxu0 0.0
    %651 = vmatpush.msra.mxu0 0.0
    %652 = vmatpush.msra.mxu0 0.0
    %653 = vmatpush.msra.mxu0 0.0
    %654 = vmatpush.msra.mxu0 0.0
    %655 = vmatpush.msra.mxu0 0.0
    %656 = vmatpush.msra.mxu0 0.0
    %v657 = vand.u32 %v519, 4294901760
    %v658 = vsub.f32 %v519, %v657
    %659 = vmatpush.msra.mxu0 %v658
    %v660 = vand.u32 %v517, 4294901760
    %v661 = vsub.f32 %v517, %v660
    %662 = vmatpush.msra.mxu0 %v661
    %v663 = vand.u32 %v515, 4294901760
    %v664 = vsub.f32 %v515, %v663
    %665 = vmatpush.msra.mxu0 %v664
    %v666 = vand.u32 %v513, 4294901760
    %v667 = vsub.f32 %v513, %v666
    %668 = vmatpush.msra.mxu0 %v667
    %v669 = vand.u32 %v528, 4294901760
    %v670 = vsub.f32 %v528, %v669
    %671 = vmatmul.f32.gmra.mxu0 %v670
    %v672 = vpop.f32.mrf.mxu0
    %v673 = vadd.f32 %v631, %v672
    %v674 = vand.u32 %v531, 4294901760
    %v675 = vsub.f32 %v531, %v674
    %676 = vmatmul.f32.gmra.mxu0 %v675
    %v677 = vpop.f32.mrf.mxu0
    %v678 = vadd.f32 %v635, %v677
    %v679 = vand.u32 %v534, 4294901760
    %v680 = vsub.f32 %v534, %v679
    %681 = vmatmul.f32.gmra.mxu0 %v680
    %v682 = vpop.f32.mrf.mxu0
    %v683 = vadd.f32 %v639, %v682
    %v684 = vand.u32 %v537, 4294901760
    %v685 = vsub.f32 %v537, %v684
    %686 = vmatmul.f32.gmra.mxu0 %v685
    %v687 = vpop.f32.mrf.mxu0
    %v688 = vadd.f32 %v643, %v687
    %689 = vdwg.mxu0
    %690 = vmatpush.msra.mxu0 0.0
    %691 = vmatpush.msra.mxu0 0.0
    %692 = vmatpush.msra.mxu0 0.0
    %693 = vmatpush.msra.mxu0 0.0
    %694 = vmatpush.msra.mxu0 0.0
    %695 = vmatpush.msra.mxu0 0.0
    %696 = vmatpush.msra.mxu0 0.0
    %697 = vmatpush.msra.mxu0 0.0
    %698 = vmatpush.msra.mxu0 0.0
    %699 = vmatpush.msra.mxu0 0.0
    %700 = vmatpush.msra.mxu0 0.0
    %701 = vmatpush.msra.mxu0 0.0
    %v702 = vand.u32 %v519, 4294901760
    %703 = vmatpush.msra.mxu0 %v702
    %v704 = vand.u32 %v517, 4294901760
    %705 = vmatpush.msra.mxu0 %v704
    %v706 = vand.u32 %v515, 4294901760
    %707 = vmatpush.msra.mxu0 %v706
    %v708 = vand.u32 %v513, 4294901760
    %709 = vmatpush.msra.mxu0 %v708
    %v710 = vand.u32 %v528, 4294901760
    %v711 = vsub.f32 %v528, %v710
    %v712 = vand.u32 %v711, 4294901760
    %713 = vmatmul.f32.gmra.mxu0 %v712
    %v714 = vpop.f32.mrf.mxu0
    %v715 = vadd.f32 %v673, %v714
    %v716 = vand.u32 %v531, 4294901760
    %v717 = vsub.f32 %v531, %v716
    %v718 = vand.u32 %v717, 4294901760
    %719 = vmatmul.f32.gmra.mxu0 %v718
    %v720 = vpop.f32.mrf.mxu0
    %v721 = vadd.f32 %v678, %v720
    %v722 = vand.u32 %v534, 4294901760
    %v723 = vsub.f32 %v534, %v722
    %v724 = vand.u32 %v723, 4294901760
    %725 = vmatmul.f32.gmra.mxu0 %v724
    %v726 = vpop.f32.mrf.mxu0
    %v727 = vadd.f32 %v683, %v726
    %v728 = vand.u32 %v537, 4294901760
    %v729 = vsub.f32 %v537, %v728
    %v730 = vand.u32 %v729, 4294901760
    %731 = vmatmul.f32.gmra.mxu0 %v730
    %v732 = vpop.f32.mrf.mxu0
    %v733 = vadd.f32 %v688, %v732
    %734 = vdwg.mxu0
    %735 = vmatpush.msra.mxu0 0.0
    %736 = vmatpush.msra.mxu0 0.0
    %737 = vmatpush.msra.mxu0 0.0
    %738 = vmatpush.msra.mxu0 0.0
    %739 = vmatpush.msra.mxu0 0.0
    %740 = vmatpush.msra.mxu0 0.0
    %741 = vmatpush.msra.mxu0 0.0
    %742 = vmatpush.msra.mxu0 0.0
    %743 = vmatpush.msra.mxu0 0.0
    %744 = vmatpush.msra.mxu0 0.0
    %745 = vmatpush.msra.mxu0 0.0
    %746 = vmatpush.msra.mxu0 0.0
    %v747 = vand.u32 %v519, 4294901760
    %v748 = vsub.f32 %v519, %v747
    %v749 = vand.u32 %v748, 4294901760
    %750 = vmatpush.msra.mxu0 %v749
    %v751 = vand.u32 %v517, 4294901760
    %v752 = vsub.f32 %v517, %v751
    %v753 = vand.u32 %v752, 4294901760
    %754 = vmatpush.msra.mxu0 %v753
    %v755 = vand.u32 %v515, 4294901760
    %v756 = vsub.f32 %v515, %v755
    %v757 = vand.u32 %v756, 4294901760
    %758 = vmatpush.msra.mxu0 %v757
    %v759 = vand.u32 %v513, 4294901760
    %v760 = vsub.f32 %v513, %v759
    %v761 = vand.u32 %v760, 4294901760
    %762 = vmatpush.msra.mxu0 %v761
    %v763 = vand.u32 %v528, 4294901760
    %764 = vmatmul.f32.gmra.mxu0 %v763
    %v765 = vpop.f32.mrf.mxu0
    %v766 = vadd.f32 %v715, %v765
    %v767 = vand.u32 %v531, 4294901760
    %768 = vmatmul.f32.gmra.mxu0 %v767
    %v769 = vpop.f32.mrf.mxu0
    %v770 = vadd.f32 %v721, %v769
    %v771 = vand.u32 %v534, 4294901760
    %772 = vmatmul.f32.gmra.mxu0 %v771
    %v773 = vpop.f32.mrf.mxu0
    %v774 = vadd.f32 %v727, %v773
    %v775 = vand.u32 %v537, 4294901760
    %776 = vmatmul.f32.gmra.mxu0 %v775
    %v777 = vpop.f32.mrf.mxu0
    %v778 = vadd.f32 %v733, %v777
    %779 = vdwg.mxu0
    %780 = vmatpush.msra.mxu0 0.0
    %781 = vmatpush.msra.mxu0 0.0
    %782 = vmatpush.msra.mxu0 0.0
    %783 = vmatpush.msra.mxu0 0.0
    %784 = vmatpush.msra.mxu0 0.0
    %785 = vmatpush.msra.mxu0 0.0
    %786 = vmatpush.msra.mxu0 0.0
    %787 = vmatpush.msra.mxu0 0.0
    %788 = vmatpush.msra.mxu0 0.0
    %789 = vmatpush.msra.mxu0 0.0
    %790 = vmatpush.msra.mxu0 0.0
    %791 = vmatpush.msra.mxu0 0.0
    %v792 = vand.u32 %v519, 4294901760
    %793 = vmatpush.msra.mxu0 %v792
    %v794 = vand.u32 %v517, 4294901760
    %795 = vmatpush.msra.mxu0 %v794
    %v796 = vand.u32 %v515, 4294901760
    %797 = vmatpush.msra.mxu0 %v796
    %v798 = vand.u32 %v513, 4294901760
    %799 = vmatpush.msra.mxu0 %v798
    %v800 = vand.u32 %v528, 4294901760
    %801 = vmatmul.f32.gmra.mxu0 %v800
    %v802 = vpop.f32.mrf.mxu0
    %v803 = vadd.f32 %v766, %v802
    %v804 = vand.u32 %v531, 4294901760
    %805 = vmatmul.f32.gmra.mxu0 %v804
    %v806 = vpop.f32.mrf.mxu0
    %v807 = vadd.f32 %v770, %v806
    %v808 = vand.u32 %v534, 4294901760
    %809 = vmatmul.f32.gmra.mxu0 %v808
    %v810 = vpop.f32.mrf.mxu0
    %v811 = vadd.f32 %v774, %v810
    %v812 = vand.u32 %v537, 4294901760
    %813 = vmatmul.f32.gmra.mxu0 %v812
    %v814 = vpop.f32.mrf.mxu0
    %v815 = vadd.f32 %v778, %v814
    %816 = vdwg.mxu0
    %817 = vmatpush.msra.mxu0 0.0
    %818 = vmatpush.msra.mxu0 0.0
    %819 = vmatpush.msra.mxu0 0.0
    %820 = vmatpush.msra.mxu0 0.0
    %821 = vmatpush.msra.mxu0 0.0
    %822 = vmatpush.msra.mxu0 0.0
    %823 = vmatpush.msra.mxu0 0.0
    %824 = vmatpush.msra.mxu0 0.0
    %825 = vmatpush.msra.mxu0 0.0
    %826 = vmatpush.msra.mxu0 0.0
    %827 = vmatpush.msra.mxu0 0.0
    %828 = vmatpush.msra.mxu0 0.0
    %v829 = vand.u32 %v520, 4294901760
    %830 = vmatpush.msra.mxu0 %v829
    %v831 = vand.u32 %v518, 4294901760
    %832 = vmatpush.msra.mxu0 %v831
    %v833 = vand.u32 %v516, 4294901760
    %834 = vmatpush.msra.mxu0 %v833
    %v835 = vand.u32 %v514, 4294901760
    %836 = vmatpush.msra.mxu0 %v835
    %v837 = vand.u32 %v528, 4294901760
    %v838 = vsub.f32 %v528, %v837
    %v839 = vand.u32 %v838, 4294901760
    %v840 = vsub.f32 %v838, %v839
    %v841 = vand.u32 %v840, 4294901760
    %842 = vmatmul.f32.gmra.mxu0 %v841
    %v843 = vpop.f32.mrf.mxu0
    %v844 = vadd.f32 %v524, %v843
    %v845 = vand.u32 %v531, 4294901760
    %v846 = vsub.f32 %v531, %v845
    %v847 = vand.u32 %v846, 4294901760
    %v848 = vsub.f32 %v846, %v847
    %v849 = vand.u32 %v848, 4294901760
    %850 = vmatmul.f32.gmra.mxu0 %v849
    %v851 = vpop.f32.mrf.mxu0
    %v852 = vadd.f32 %v524, %v851
    %v853 = vand.u32 %v534, 4294901760
    %v854 = vsub.f32 %v534, %v853
    %v855 = vand.u32 %v854, 4294901760
    %v856 = vsub.f32 %v854, %v855
    %v857 = vand.u32 %v856, 4294901760
    %858 = vmatmul.f32.gmra.mxu0 %v857
    %v859 = vpop.f32.mrf.mxu0
    %v860 = vadd.f32 %v524, %v859
    %v861 = vand.u32 %v537, 4294901760
    %v862 = vsub.f32 %v537, %v861
    %v863 = vand.u32 %v862, 4294901760
    %v864 = vsub.f32 %v862, %v863
    %v865 = vand.u32 %v864, 4294901760
    %866 = vmatmul.f32.gmra.mxu0 %v865
    %v867 = vpop.f32.mrf.mxu0
    %v868 = vadd.f32 %v524, %v867
    %869 = vdwg.mxu0
    %870 = vmatpush.msra.mxu0 0.0
    %871 = vmatpush.msra.mxu0 0.0
    %872 = vmatpush.msra.mxu0 0.0
    %873 = vmatpush.msra.mxu0 0.0
    %874 = vmatpush.msra.mxu0 0.0
    %875 = vmatpush.msra.mxu0 0.0
    %876 = vmatpush.msra.mxu0 0.0
    %877 = vmatpush.msra.mxu0 0.0
    %878 = vmatpush.msra.mxu0 0.0
    %879 = vmatpush.msra.mxu0 0.0
    %880 = vmatpush.msra.mxu0 0.0
    %881 = vmatpush.msra.mxu0 0.0
    %v882 = vand.u32 %v520, 4294901760
    %v883 = vsub.f32 %v520, %v882
    %v884 = vand.u32 %v883, 4294901760
    %v885 = vsub.f32 %v883, %v884
    %v886 = vand.u32 %v885, 4294901760
    %887 = vmatpush.msra.mxu0 %v886
    %v888 = vand.u32 %v518, 4294901760
    %v889 = vsub.f32 %v518, %v888
    %v890 = vand.u32 %v889, 4294901760
    %v891 = vsub.f32 %v889, %v890
    %v892 = vand.u32 %v891, 4294901760
    %893 = vmatpush.msra.mxu0 %v892
    %v894 = vand.u32 %v516, 4294901760
    %v895 = vsub.f32 %v516, %v894
    %v896 = vand.u32 %v895, 4294901760
    %v897 = vsub.f32 %v895, %v896
    %v898 = vand.u32 %v897, 4294901760
    %899 = vmatpush.msra.mxu0 %v898
    %v900 = vand.u32 %v514, 4294901760
    %v901 = vsub.f32 %v514, %v900
    %v902 = vand.u32 %v901, 4294901760
    %v903 = vsub.f32 %v901, %v902
    %v904 = vand.u32 %v903, 4294901760
    %905 = vmatpush.msra.mxu0 %v904
    %v906 = vand.u32 %v528, 4294901760
    %907 = vmatmul.f32.gmra.mxu0 %v906
    %v908 = vpop.f32.mrf.mxu0
    %v909 = vadd.f32 %v844, %v908
    %v910 = vand.u32 %v531, 4294901760
    %911 = vmatmul.f32.gmra.mxu0 %v910
    %v912 = vpop.f32.mrf.mxu0
    %v913 = vadd.f32 %v852, %v912
    %v914 = vand.u32 %v534, 4294901760
    %915 = vmatmul.f32.gmra.mxu0 %v914
    %v916 = vpop.f32.mrf.mxu0
    %v917 = vadd.f32 %v860, %v916
    %v918 = vand.u32 %v537, 4294901760
    %919 = vmatmul.f32.gmra.mxu0 %v918
    %v920 = vpop.f32.mrf.mxu0
    %v921 = vadd.f32 %v868, %v920
    %922 = vdwg.mxu0
    %923 = vmatpush.msra.mxu0 0.0
    %924 = vmatpush.msra.mxu0 0.0
    %925 = vmatpush.msra.mxu0 0.0
    %926 = vmatpush.msra.mxu0 0.0
    %927 = vmatpush.msra.mxu0 0.0
    %928 = vmatpush.msra.mxu0 0.0
    %929 = vmatpush.msra.mxu0 0.0
    %930 = vmatpush.msra.mxu0 0.0
    %931 = vmatpush.msra.mxu0 0.0
    %932 = vmatpush.msra.mxu0 0.0
    %933 = vmatpush.msra.mxu0 0.0
    %934 = vmatpush.msra.mxu0 0.0
    %v935 = vand.u32 %v520, 4294901760
    %v936 = vsub.f32 %v520, %v935
    %937 = vmatpush.msra.mxu0 %v936
    %v938 = vand.u32 %v518, 4294901760
    %v939 = vsub.f32 %v518, %v938
    %940 = vmatpush.msra.mxu0 %v939
    %v941 = vand.u32 %v516, 4294901760
    %v942 = vsub.f32 %v516, %v941
    %943 = vmatpush.msra.mxu0 %v942
    %v944 = vand.u32 %v514, 4294901760
    %v945 = vsub.f32 %v514, %v944
    %946 = vmatpush.msra.mxu0 %v945
    %v947 = vand.u32 %v528, 4294901760
    %v948 = vsub.f32 %v528, %v947
    %949 = vmatmul.f32.gmra.mxu0 %v948
    %v950 = vpop.f32.mrf.mxu0
    %v951 = vadd.f32 %v909, %v950
    %v952 = vand.u32 %v531, 4294901760
    %v953 = vsub.f32 %v531, %v952
    %954 = vmatmul.f32.gmra.mxu0 %v953
    %v955 = vpop.f32.mrf.mxu0
    %v956 = vadd.f32 %v913, %v955
    %v957 = vand.u32 %v534, 4294901760
    %v958 = vsub.f32 %v534, %v957
    %959 = vmatmul.f32.gmra.mxu0 %v958
    %v960 = vpop.f32.mrf.mxu0
    %v961 = vadd.f32 %v917, %v960
    %v962 = vand.u32 %v537, 4294901760
    %v963 = vsub.f32 %v537, %v962
    %964 = vmatmul.f32.gmra.mxu0 %v963
    %v965 = vpop.f32.mrf.mxu0
    %v966 = vadd.f32 %v921, %v965
    %967 = vdwg.mxu0
    %968 = vmatpush.msra.mxu0 0.0
    %969 = vmatpush.msra.mxu0 0.0
    %970 = vmatpush.msra.mxu0 0.0
    %971 = vmatpush.msra.mxu0 0.0
    %972 = vmatpush.msra.mxu0 0.0
    %973 = vmatpush.msra.mxu0 0.0
    %974 = vmatpush.msra.mxu0 0.0
    %975 = vmatpush.msra.mxu0 0.0
    %976 = vmatpush.msra.mxu0 0.0
    %977 = vmatpush.msra.mxu0 0.0
    %978 = vmatpush.msra.mxu0 0.0
    %979 = vmatpush.msra.mxu0 0.0
    %v980 = vand.u32 %v520, 4294901760
    %981 = vmatpush.msra.mxu0 %v980
    %v982 = vand.u32 %v518, 4294901760
    %983 = vmatpush.msra.mxu0 %v982
    %v984 = vand.u32 %v516, 4294901760
    %985 = vmatpush.msra.mxu0 %v984
    %v986 = vand.u32 %v514, 4294901760
    %987 = vmatpush.msra.mxu0 %v986
    %v988 = vand.u32 %v528, 4294901760
    %v989 = vsub.f32 %v528, %v988
    %v990 = vand.u32 %v989, 4294901760
    %991 = vmatmul.f32.gmra.mxu0 %v990
    %v992 = vpop.f32.mrf.mxu0
    %v993 = vadd.f32 %v951, %v992
    %v994 = vand.u32 %v531, 4294901760
    %v995 = vsub.f32 %v531, %v994
    %v996 = vand.u32 %v995, 4294901760
    %997 = vmatmul.f32.gmra.mxu0 %v996
    %v998 = vpop.f32.mrf.mxu0
    %v999 = vadd.f32 %v956, %v998
    %v1000 = vand.u32 %v534, 4294901760
    %v1001 = vsub.f32 %v534, %v1000
    %v1002 = vand.u32 %v1001, 4294901760
    %1003 = vmatmul.f32.gmra.mxu0 %v1002
    %v1004 = vpop.f32.mrf.mxu0
    %v1005 = vadd.f32 %v961, %v1004
    %v1006 = vand.u32 %v537, 4294901760
    %v1007 = vsub.f32 %v537, %v1006
    %v1008 = vand.u32 %v1007, 4294901760
    %1009 = vmatmul.f32.gmra.mxu0 %v1008
    %v1010 = vpop.f32.mrf.mxu0
    %v1011 = vadd.f32 %v966, %v1010
    %1012 = vdwg.mxu0
    %1013 = vmatpush.msra.mxu0 0.0
    %1014 = vmatpush.msra.mxu0 0.0
    %1015 = vmatpush.msra.mxu0 0.0
    %1016 = vmatpush.msra.mxu0 0.0
    %1017 = vmatpush.msra.mxu0 0.0
    %1018 = vmatpush.msra.mxu0 0.0
    %1019 = vmatpush.msra.mxu0 0.0
    %1020 = vmatpush.msra.mxu0 0.0
    %1021 = vmatpush.msra.mxu0 0.0
    %1022 = vmatpush.msra.mxu0 0.0
    %1023 = vmatpush.msra.mxu0 0.0
    %1024 = vmatpush.msra.mxu0 0.0
    %v1025 = vand.u32 %v520, 4294901760
    %v1026 = vsub.f32 %v520, %v1025
    %v1027 = vand.u32 %v1026, 4294901760
    %1028 = vmatpush.msra.mxu0 %v1027
    %v1029 = vand.u32 %v518, 4294901760
    %v1030 = vsub.f32 %v518, %v1029
    %v1031 = vand.u32 %v1030, 4294901760
    %1032 = vmatpush.msra.mxu0 %v1031
    %v1033 = vand.u32 %v516, 4294901760
    %v1034 = vsub.f32 %v516, %v1033
    %v1035 = vand.u32 %v1034, 4294901760
    %1036 = vmatpush.msra.mxu0 %v1035
    %v1037 = vand.u32 %v514, 4294901760
    %v1038 = vsub.f32 %v514, %v1037
    %v1039 = vand.u32 %v1038, 4294901760
    %1040 = vmatpush.msra.mxu0 %v1039
    %v1041 = vand.u32 %v528, 4294901760
    %1042 = vmatmul.f32.gmra.mxu0 %v1041
    %v1043 = vpop.f32.mrf.mxu0
    %v1044 = vadd.f32 %v993, %v1043
    %v1045 = vand.u32 %v531, 4294901760
    %1046 = vmatmul.f32.gmra.mxu0 %v1045
    %v1047 = vpop.f32.mrf.mxu0
    %v1048 = vadd.f32 %v999, %v1047
    %v1049 = vand.u32 %v534, 4294901760
    %1050 = vmatmul.f32.gmra.mxu0 %v1049
    %v1051 = vpop.f32.mrf.mxu0
    %v1052 = vadd.f32 %v1005, %v1051
    %v1053 = vand.u32 %v537, 4294901760
    %1054 = vmatmul.f32.gmra.mxu0 %v1053
    %v1055 = vpop.f32.mrf.mxu0
    %v1056 = vadd.f32 %v1011, %v1055
    %1057 = vdwg.mxu0
    %1058 = vmatpush.msra.mxu0 0.0
    %1059 = vmatpush.msra.mxu0 0.0
    %1060 = vmatpush.msra.mxu0 0.0
    %1061 = vmatpush.msra.mxu0 0.0
    %1062 = vmatpush.msra.mxu0 0.0
    %1063 = vmatpush.msra.mxu0 0.0
    %1064 = vmatpush.msra.mxu0 0.0
    %1065 = vmatpush.msra.mxu0 0.0
    %1066 = vmatpush.msra.mxu0 0.0
    %1067 = vmatpush.msra.mxu0 0.0
    %1068 = vmatpush.msra.mxu0 0.0
    %1069 = vmatpush.msra.mxu0 0.0
    %v1070 = vand.u32 %v520, 4294901760
    %1071 = vmatpush.msra.mxu0 %v1070
    %v1072 = vand.u32 %v518, 4294901760
    %1073 = vmatpush.msra.mxu0 %v1072
    %v1074 = vand.u32 %v516, 4294901760
    %1075 = vmatpush.msra.mxu0 %v1074
    %v1076 = vand.u32 %v514, 4294901760
    %1077 = vmatpush.msra.mxu0 %v1076
    %v1078 = vand.u32 %v528, 4294901760
    %1079 = vmatmul.f32.gmra.mxu0 %v1078
    %v1080 = vpop.f32.mrf.mxu0
    %v1081 = vadd.f32 %v1044, %v1080
    %v1082 = vand.u32 %v531, 4294901760
    %1083 = vmatmul.f32.gmra.mxu0 %v1082
    %v1084 = vpop.f32.mrf.mxu0
    %v1085 = vadd.f32 %v1048, %v1084
    %v1086 = vand.u32 %v534, 4294901760
    %1087 = vmatmul.f32.gmra.mxu0 %v1086
    %v1088 = vpop.f32.mrf.mxu0
    %v1089 = vadd.f32 %v1052, %v1088
    %v1090 = vand.u32 %v537, 4294901760
    %1091 = vmatmul.f32.gmra.mxu0 %v1090
    %v1092 = vpop.f32.mrf.mxu0
    %v1093 = vadd.f32 %v1056, %v1092
    %1094 = vdwg.mxu0
    %v1103 = vrot.slane %v1081, 6
    %v1104 = vrot.slane %v1085, 6
    %v1105 = vrot.slane %v1089, 6
    %v1106 = vrot.slane %v1093, 6
    %vm1107 = vcmask 1041408
    %v1108 = vsel %vm1107, %v803, %v1103
    %vm1109 = vcmask 1043458
    %v1110 = vsel %vm1109, %v803, %v1103
    %v1111 = vrot.slane %v1110, 2
    %vm1112 = vcmask 1045508
    %v1113 = vsel %vm1112, %v803, %v1103
    %v1114 = vrot.slane %v1113, 4
    %vm1115 = vcmask 1045504
    %v1116 = vsel %vm1115, %v1103, %v803
    %v1117 = vrot.slane %v1116, 6
    %v1118 = vsel %vm1107, %v807, %v1104
    %v1119 = vsel %vm1109, %v807, %v1104
    %v1120 = vrot.slane %v1119, 2
    %v1121 = vsel %vm1112, %v807, %v1104
    %v1122 = vrot.slane %v1121, 4
    %v1123 = vsel %vm1115, %v1104, %v807
    %v1124 = vrot.slane %v1123, 6
    %v1125 = vsel %vm1107, %v811, %v1105
    %v1126 = vsel %vm1109, %v811, %v1105
    %v1127 = vrot.slane %v1126, 2
    %v1128 = vsel %vm1112, %v811, %v1105
    %v1129 = vrot.slane %v1128, 4
    %v1130 = vsel %vm1115, %v1105, %v811
    %v1131 = vrot.slane %v1130, 6
    %v1132 = vsel %vm1107, %v815, %v1106
    %v1133 = vsel %vm1109, %v815, %v1106
    %v1134 = vrot.slane %v1133, 2
    %v1149 = vld [vmem:[#allocation5] sm:$0xff]
    %v1150 = vld [vmem:[#allocation5 + $0x8] sm:$0xff]
    %v1151 = vld [vmem:[#allocation5 + $0x10] sm:$0xff]
    %v1152 = vld [vmem:[#allocation5 + $0x18] sm:$0xff]
    %v1153 = vld [vmem:[#allocation5 + $0x20] sm:$0xff]
    %v1154 = vld [vmem:[#allocation5 + $0x28] sm:$0xff]
    %v1155 = vld [vmem:[#allocation5 + $0x30] sm:$0xff]
    %v1156 = vld [vmem:[#allocation5 + $0x38] sm:$0xff]
    %v1157 = vld [vmem:[#allocation5 + $0x40] sm:$0xff]
    %v1158 = vld [vmem:[#allocation5 + $0x48] sm:$0xff]
    %v1159 = vld [vmem:[#allocation5 + $0x50] sm:$0xff]
    %v1160 = vld [vmem:[#allocation5 + $0x58] sm:$0xff]
    %v1161 = vld [vmem:[#allocation5 + $0x60] sm:$0x3]
    %v1162 = vld [vmem:[#allocation5 + $0x68] sm:$0x3]
    %vm1163 = vcmask 408576
    %v1165 = vsel %vm1163, 0.0, 0
    %v1168 = vsel %vm1107, %v1161, 0
    %v1171 = vsel %vm1107, %v1162, 0
    %1173 = vmatpush.msra.mxu0 0.0
    %1174 = vmatpush.msra.mxu0 0.0
    %1175 = vmatpush.msra.mxu0 0.0
    %1176 = vmatpush.msra.mxu0 0.0
    %1177 = vmatpush.msra.mxu0 0.0
    %1178 = vmatpush.msra.mxu0 0.0
    %1179 = vmatpush.msra.mxu0 0.0
    %1180 = vmatpush.msra.mxu0 0.0
    %1181 = vmatpush.msra.mxu0 0.0
    %v1182 = vand.u32 %v1168, 4294901760
    %1183 = vmatpush.msra.mxu0 %v1182
    %v1184 = vand.u32 %v1159, 4294901760
    %1185 = vmatpush.msra.mxu0 %v1184
    %v1186 = vand.u32 %v1157, 4294901760
    %1187 = vmatpush.msra.mxu0 %v1186
    %v1188 = vand.u32 %v1155, 4294901760
    %1189 = vmatpush.msra.mxu0 %v1188
    %v1190 = vand.u32 %v1153, 4294901760
    %1191 = vmatpush.msra.mxu0 %v1190
    %v1192 = vand.u32 %v1151, 4294901760
    %1193 = vmatpush.msra.mxu0 %v1192
    %v1194 = vand.u32 %v1149, 4294901760
    %1195 = vmatpush.msra.mxu0 %v1194
    %v1196 = vand.u32 %v1165, 4294901760
    %v1197 = vsub.f32 %v1165, %v1196
    %v1198 = vand.u32 %v1197, 4294901760
    %v1199 = vsub.f32 %v1197, %v1198
    %v1200 = vand.u32 %v1199, 4294901760
    %1201 = vmatmul.f32.gmra.mxu0 %v1200
    %v1202 = vpop.f32.mrf.mxu0
    %v1203 = vadd.f32 0.0, %v1202
    %1204 = vdwg.mxu0
    %1205 = vmatpush.msra.mxu0 0.0
    %1206 = vmatpush.msra.mxu0 0.0
    %1207 = vmatpush.msra.mxu0 0.0
    %1208 = vmatpush.msra.mxu0 0.0
    %1209 = vmatpush.msra.mxu0 0.0
    %1210 = vmatpush.msra.mxu0 0.0
    %1211 = vmatpush.msra.mxu0 0.0
    %1212 = vmatpush.msra.mxu0 0.0
    %1213 = vmatpush.msra.mxu0 0.0
    %v1214 = vand.u32 %v1168, 4294901760
    %v1215 = vsub.f32 %v1168, %v1214
    %v1216 = vand.u32 %v1215, 4294901760
    %v1217 = vsub.f32 %v1215, %v1216
    %v1218 = vand.u32 %v1217, 4294901760
    %1219 = vmatpush.msra.mxu0 %v1218
    %v1220 = vand.u32 %v1159, 4294901760
    %v1221 = vsub.f32 %v1159, %v1220
    %v1222 = vand.u32 %v1221, 4294901760
    %v1223 = vsub.f32 %v1221, %v1222
    %v1224 = vand.u32 %v1223, 4294901760
    %1225 = vmatpush.msra.mxu0 %v1224
    %v1226 = vand.u32 %v1157, 4294901760
    %v1227 = vsub.f32 %v1157, %v1226
    %v1228 = vand.u32 %v1227, 4294901760
    %v1229 = vsub.f32 %v1227, %v1228
    %v1230 = vand.u32 %v1229, 4294901760
    %1231 = vmatpush.msra.mxu0 %v1230
    %v1232 = vand.u32 %v1155, 4294901760
    %v1233 = vsub.f32 %v1155, %v1232
    %v1234 = vand.u32 %v1233, 4294901760
    %v1235 = vsub.f32 %v1233, %v1234
    %v1236 = vand.u32 %v1235, 4294901760
    %1237 = vmatpush.msra.mxu0 %v1236
    %v1238 = vand.u32 %v1153, 4294901760
    %v1239 = vsub.f32 %v1153, %v1238
    %v1240 = vand.u32 %v1239, 4294901760
    %v1241 = vsub.f32 %v1239, %v1240
    %v1242 = vand.u32 %v1241, 4294901760
    %1243 = vmatpush.msra.mxu0 %v1242
    %v1244 = vand.u32 %v1151, 4294901760
    %v1245 = vsub.f32 %v1151, %v1244
    %v1246 = vand.u32 %v1245, 4294901760
    %v1247 = vsub.f32 %v1245, %v1246
    %v1248 = vand.u32 %v1247, 4294901760
    %1249 = vmatpush.msra.mxu0 %v1248
    %v1250 = vand.u32 %v1149, 4294901760
    %v1251 = vsub.f32 %v1149, %v1250
    %v1252 = vand.u32 %v1251, 4294901760
    %v1253 = vsub.f32 %v1251, %v1252
    %v1254 = vand.u32 %v1253, 4294901760
    %1255 = vmatpush.msra.mxu0 %v1254
    %v1256 = vand.u32 %v1165, 4294901760
    %1257 = vmatmul.f32.gmra.mxu0 %v1256
    %v1258 = vpop.f32.mrf.mxu0
    %v1259 = vadd.f32 %v1203, %v1258
    %1260 = vdwg.mxu0
    %1261 = vmatpush.msra.mxu0 0.0
    %1262 = vmatpush.msra.mxu0 0.0
    %1263 = vmatpush.msra.mxu0 0.0
    %1264 = vmatpush.msra.mxu0 0.0
    %1265 = vmatpush.msra.mxu0 0.0
    %1266 = vmatpush.msra.mxu0 0.0
    %1267 = vmatpush.msra.mxu0 0.0
    %1268 = vmatpush.msra.mxu0 0.0
    %1269 = vmatpush.msra.mxu0 0.0
    %v1270 = vand.u32 %v1168, 4294901760
    %v1271 = vsub.f32 %v1168, %v1270
    %1272 = vmatpush.msra.mxu0 %v1271
    %v1273 = vand.u32 %v1159, 4294901760
    %v1274 = vsub.f32 %v1159, %v1273
    %1275 = vmatpush.msra.mxu0 %v1274
    %v1276 = vand.u32 %v1157, 4294901760
    %v1277 = vsub.f32 %v1157, %v1276
    %1278 = vmatpush.msra.mxu0 %v1277
    %v1279 = vand.u32 %v1155, 4294901760
    %v1280 = vsub.f32 %v1155, %v1279
    %1281 = vmatpush.msra.mxu0 %v1280
    %v1282 = vand.u32 %v1153, 4294901760
    %v1283 = vsub.f32 %v1153, %v1282
    %1284 = vmatpush.msra.mxu0 %v1283
    %v1285 = vand.u32 %v1151, 4294901760
    %v1286 = vsub.f32 %v1151, %v1285
    %1287 = vmatpush.msra.mxu0 %v1286
    %v1288 = vand.u32 %v1149, 4294901760
    %v1289 = vsub.f32 %v1149, %v1288
    %1290 = vmatpush.msra.mxu0 %v1289
    %v1291 = vand.u32 %v1165, 4294901760
    %v1292 = vsub.f32 %v1165, %v1291
    %1293 = vmatmul.f32.gmra.mxu0 %v1292
    %v1294 = vpop.f32.mrf.mxu0
    %v1295 = vadd.f32 %v1259, %v1294
    %1296 = vdwg.mxu0
    %1297 = vmatpush.msra.mxu0 0.0
    %1298 = vmatpush.msra.mxu0 0.0
    %1299 = vmatpush.msra.mxu0 0.0
    %1300 = vmatpush.msra.mxu0 0.0
    %1301 = vmatpush.msra.mxu0 0.0
    %1302 = vmatpush.msra.mxu0 0.0
    %1303 = vmatpush.msra.mxu0 0.0
    %1304 = vmatpush.msra.mxu0 0.0
    %1305 = vmatpush.msra.mxu0 0.0
    %v1306 = vand.u32 %v1168, 4294901760
    %1307 = vmatpush.msra.mxu0 %v1306
    %v1308 = vand.u32 %v1159, 4294901760
    %1309 = vmatpush.msra.mxu0 %v1308
    %v1310 = vand.u32 %v1157, 4294901760
    %1311 = vmatpush.msra.mxu0 %v1310
    %v1312 = vand.u32 %v1155, 4294901760
    %1313 = vmatpush.msra.mxu0 %v1312
    %v1314 = vand.u32 %v1153, 4294901760
    %1315 = vmatpush.msra.mxu0 %v1314
    %v1316 = vand.u32 %v1151, 4294901760
    %1317 = vmatpush.msra.mxu0 %v1316
    %v1318 = vand.u32 %v1149, 4294901760
    %1319 = vmatpush.msra.mxu0 %v1318
    %v1320 = vand.u32 %v1165, 4294901760
    %v1321 = vsub.f32 %v1165, %v1320
    %v1322 = vand.u32 %v1321, 4294901760
    %1323 = vmatmul.f32.gmra.mxu0 %v1322
    %v1324 = vpop.f32.mrf.mxu0
    %v1325 = vadd.f32 %v1295, %v1324
    %1326 = vdwg.mxu0
    %1327 = vmatpush.msra.mxu0 0.0
    %1328 = vmatpush.msra.mxu0 0.0
    %1329 = vmatpush.msra.mxu0 0.0
    %1330 = vmatpush.msra.mxu0 0.0
    %1331 = vmatpush.msra.mxu0 0.0
    %1332 = vmatpush.msra.mxu0 0.0
    %1333 = vmatpush.msra.mxu0 0.0
    %1334 = vmatpush.msra.mxu0 0.0
    %1335 = vmatpush.msra.mxu0 0.0
    %v1336 = vand.u32 %v1168, 4294901760
    %v1337 = vsub.f32 %v1168, %v1336
    %v1338 = vand.u32 %v1337, 4294901760
    %1339 = vmatpush.msra.mxu0 %v1338
    %v1340 = vand.u32 %v1159, 4294901760
    %v1341 = vsub.f32 %v1159, %v1340
    %v1342 = vand.u32 %v1341, 4294901760
    %1343 = vmatpush.msra.mxu0 %v1342
    %v1344 = vand.u32 %v1157, 4294901760
    %v1345 = vsub.f32 %v1157, %v1344
    %v1346 = vand.u32 %v1345, 4294901760
    %1347 = vmatpush.msra.mxu0 %v1346
    %v1348 = vand.u32 %v1155, 4294901760
    %v1349 = vsub.f32 %v1155, %v1348
    %v1350 = vand.u32 %v1349, 4294901760
    %1351 = vmatpush.msra.mxu0 %v1350
    %v1352 = vand.u32 %v1153, 4294901760
    %v1353 = vsub.f32 %v1153, %v1352
    %v1354 = vand.u32 %v1353, 4294901760
    %1355 = vmatpush.msra.mxu0 %v1354
    %v1356 = vand.u32 %v1151, 4294901760
    %v1357 = vsub.f32 %v1151, %v1356
    %v1358 = vand.u32 %v1357, 4294901760
    %1359 = vmatpush.msra.mxu0 %v1358
    %v1360 = vand.u32 %v1149, 4294901760
    %v1361 = vsub.f32 %v1149, %v1360
    %v1362 = vand.u32 %v1361, 4294901760
    %1363 = vmatpush.msra.mxu0 %v1362
    %v1364 = vand.u32 %v1165, 4294901760
    %1365 = vmatmul.f32.gmra.mxu0 %v1364
    %v1366 = vpop.f32.mrf.mxu0
    %v1367 = vadd.f32 %v1325, %v1366
    %1368 = vdwg.mxu0
    %1369 = vmatpush.msra.mxu0 0.0
    %1370 = vmatpush.msra.mxu0 0.0
    %1371 = vmatpush.msra.mxu0 0.0
    %1372 = vmatpush.msra.mxu0 0.0
    %1373 = vmatpush.msra.mxu0 0.0
    %1374 = vmatpush.msra.mxu0 0.0
    %1375 = vmatpush.msra.mxu0 0.0
    %1376 = vmatpush.msra.mxu0 0.0
    %1377 = vmatpush.msra.mxu0 0.0
    %v1378 = vand.u32 %v1168, 4294901760
    %1379 = vmatpush.msra.mxu0 %v1378
    %v1380 = vand.u32 %v1159, 4294901760
    %1381 = vmatpush.msra.mxu0 %v1380
    %v1382 = vand.u32 %v1157, 4294901760
    %1383 = vmatpush.msra.mxu0 %v1382
    %v1384 = vand.u32 %v1155, 4294901760
    %1385 = vmatpush.msra.mxu0 %v1384
    %v1386 = vand.u32 %v1153, 4294901760
    %1387 = vmatpush.msra.mxu0 %v1386
    %v1388 = vand.u32 %v1151, 4294901760
    %1389 = vmatpush.msra.mxu0 %v1388
    %v1390 = vand.u32 %v1149, 4294901760
    %1391 = vmatpush.msra.mxu0 %v1390
    %v1392 = vand.u32 %v1165, 4294901760
    %1393 = vmatmul.f32.gmra.mxu0 %v1392
    %v1394 = vpop.f32.mrf.mxu0
    %v1395 = vadd.f32 %v1367, %v1394
    %1396 = vdwg.mxu0
    %1397 = vmatpush.msra.mxu0 0.0
    %1398 = vmatpush.msra.mxu0 0.0
    %1399 = vmatpush.msra.mxu0 0.0
    %1400 = vmatpush.msra.mxu0 0.0
    %1401 = vmatpush.msra.mxu0 0.0
    %1402 = vmatpush.msra.mxu0 0.0
    %1403 = vmatpush.msra.mxu0 0.0
    %1404 = vmatpush.msra.mxu0 0.0
    %1405 = vmatpush.msra.mxu0 0.0
    %v1406 = vand.u32 %v1171, 4294901760
    %1407 = vmatpush.msra.mxu0 %v1406
    %v1408 = vand.u32 %v1160, 4294901760
    %1409 = vmatpush.msra.mxu0 %v1408
    %v1410 = vand.u32 %v1158, 4294901760
    %1411 = vmatpush.msra.mxu0 %v1410
    %v1412 = vand.u32 %v1156, 4294901760
    %1413 = vmatpush.msra.mxu0 %v1412
    %v1414 = vand.u32 %v1154, 4294901760
    %1415 = vmatpush.msra.mxu0 %v1414
    %v1416 = vand.u32 %v1152, 4294901760
    %1417 = vmatpush.msra.mxu0 %v1416
    %v1418 = vand.u32 %v1150, 4294901760
    %1419 = vmatpush.msra.mxu0 %v1418
    %v1420 = vand.u32 %v1165, 4294901760
    %v1421 = vsub.f32 %v1165, %v1420
    %v1422 = vand.u32 %v1421, 4294901760
    %v1423 = vsub.f32 %v1421, %v1422
    %v1424 = vand.u32 %v1423, 4294901760
    %1425 = vmatmul.f32.gmra.mxu0 %v1424
    %v1426 = vpop.f32.mrf.mxu0
    %v1427 = vadd.f32 0.0, %v1426
    %1428 = vdwg.mxu0
    %1429 = vmatpush.msra.mxu0 0.0
    %1430 = vmatpush.msra.mxu0 0.0
    %1431 = vmatpush.msra.mxu0 0.0
    %1432 = vmatpush.msra.mxu0 0.0
    %1433 = vmatpush.msra.mxu0 0.0
    %1434 = vmatpush.msra.mxu0 0.0
    %1435 = vmatpush.msra.mxu0 0.0
    %1436 = vmatpush.msra.mxu0 0.0
    %1437 = vmatpush.msra.mxu0 0.0
    %v1438 = vand.u32 %v1171, 4294901760
    %v1439 = vsub.f32 %v1171, %v1438
    %v1440 = vand.u32 %v1439, 4294901760
    %v1441 = vsub.f32 %v1439, %v1440
    %v1442 = vand.u32 %v1441, 4294901760
    %1443 = vmatpush.msra.mxu0 %v1442
    %v1444 = vand.u32 %v1160, 4294901760
    %v1445 = vsub.f32 %v1160, %v1444
    %v1446 = vand.u32 %v1445, 4294901760
    %v1447 = vsub.f32 %v1445, %v1446
    %v1448 = vand.u32 %v1447, 4294901760
    %1449 = vmatpush.msra.mxu0 %v1448
    %v1450 = vand.u32 %v1158, 4294901760
    %v1451 = vsub.f32 %v1158, %v1450
    %v1452 = vand.u32 %v1451, 4294901760
    %v1453 = vsub.f32 %v1451, %v1452
    %v1454 = vand.u32 %v1453, 4294901760
    %1455 = vmatpush.msra.mxu0 %v1454
    %v1456 = vand.u32 %v1156, 4294901760
    %v1457 = vsub.f32 %v1156, %v1456
    %v1458 = vand.u32 %v1457, 4294901760
    %v1459 = vsub.f32 %v1457, %v1458
    %v1460 = vand.u32 %v1459, 4294901760
    %1461 = vmatpush.msra.mxu0 %v1460
    %v1462 = vand.u32 %v1154, 4294901760
    %v1463 = vsub.f32 %v1154, %v1462
    %v1464 = vand.u32 %v1463, 4294901760
    %v1465 = vsub.f32 %v1463, %v1464
    %v1466 = vand.u32 %v1465, 4294901760
    %1467 = vmatpush.msra.mxu0 %v1466
    %v1468 = vand.u32 %v1152, 4294901760
    %v1469 = vsub.f32 %v1152, %v1468
    %v1470 = vand.u32 %v1469, 4294901760
    %v1471 = vsub.f32 %v1469, %v1470
    %v1472 = vand.u32 %v1471, 4294901760
    %1473 = vmatpush.msra.mxu0 %v1472
    %v1474 = vand.u32 %v1150, 4294901760
    %v1475 = vsub.f32 %v1150, %v1474
    %v1476 = vand.u32 %v1475, 4294901760
    %v1477 = vsub.f32 %v1475, %v1476
    %v1478 = vand.u32 %v1477, 4294901760
    %1479 = vmatpush.msra.mxu0 %v1478
    %v1480 = vand.u32 %v1165, 4294901760
    %1481 = vmatmul.f32.gmra.mxu0 %v1480
    %v1482 = vpop.f32.mrf.mxu0
    %v1483 = vadd.f32 %v1427, %v1482
    %1484 = vdwg.mxu0
    %1485 = vmatpush.msra.mxu0 0.0
    %1486 = vmatpush.msra.mxu0 0.0
    %1487 = vmatpush.msra.mxu0 0.0
    %1488 = vmatpush.msra.mxu0 0.0
    %1489 = vmatpush.msra.mxu0 0.0
    %1490 = vmatpush.msra.mxu0 0.0
    %1491 = vmatpush.msra.mxu0 0.0
    %1492 = vmatpush.msra.mxu0 0.0
    %1493 = vmatpush.msra.mxu0 0.0
    %v1494 = vand.u32 %v1171, 4294901760
    %v1495 = vsub.f32 %v1171, %v1494
    %1496 = vmatpush.msra.mxu0 %v1495
    %v1497 = vand.u32 %v1160, 4294901760
    %v1498 = vsub.f32 %v1160, %v1497
    %1499 = vmatpush.msra.mxu0 %v1498
    %v1500 = vand.u32 %v1158, 4294901760
    %v1501 = vsub.f32 %v1158, %v1500
    %1502 = vmatpush.msra.mxu0 %v1501
    %v1503 = vand.u32 %v1156, 4294901760
    %v1504 = vsub.f32 %v1156, %v1503
    %1505 = vmatpush.msra.mxu0 %v1504
    %v1506 = vand.u32 %v1154, 4294901760
    %v1507 = vsub.f32 %v1154, %v1506
    %1508 = vmatpush.msra.mxu0 %v1507
    %v1509 = vand.u32 %v1152, 4294901760
    %v1510 = vsub.f32 %v1152, %v1509
    %1511 = vmatpush.msra.mxu0 %v1510
    %v1512 = vand.u32 %v1150, 4294901760
    %v1513 = vsub.f32 %v1150, %v1512
    %1514 = vmatpush.msra.mxu0 %v1513
    %v1515 = vand.u32 %v1165, 4294901760
    %v1516 = vsub.f32 %v1165, %v1515
    %1517 = vmatmul.f32.gmra.mxu0 %v1516
    %v1518 = vpop.f32.mrf.mxu0
    %v1519 = vadd.f32 %v1483, %v1518
    %1520 = vdwg.mxu0
    %1521 = vmatpush.msra.mxu0 0.0
    %1522 = vmatpush.msra.mxu0 0.0
    %1523 = vmatpush.msra.mxu0 0.0
    %1524 = vmatpush.msra.mxu0 0.0
    %1525 = vmatpush.msra.mxu0 0.0
    %1526 = vmatpush.msra.mxu0 0.0
    %1527 = vmatpush.msra.mxu0 0.0
    %1528 = vmatpush.msra.mxu0 0.0
    %1529 = vmatpush.msra.mxu0 0.0
    %v1530 = vand.u32 %v1171, 4294901760
    %1531 = vmatpush.msra.mxu0 %v1530
    %v1532 = vand.u32 %v1160, 4294901760
    %1533 = vmatpush.msra.mxu0 %v1532
    %v1534 = vand.u32 %v1158, 4294901760
    %1535 = vmatpush.msra.mxu0 %v1534
    %v1536 = vand.u32 %v1156, 4294901760
    %1537 = vmatpush.msra.mxu0 %v1536
    %v1538 = vand.u32 %v1154, 4294901760
    %1539 = vmatpush.msra.mxu0 %v1538
    %v1540 = vand.u32 %v1152, 4294901760
    %1541 = vmatpush.msra.mxu0 %v1540
    %v1542 = vand.u32 %v1150, 4294901760
    %1543 = vmatpush.msra.mxu0 %v1542
    %v1544 = vand.u32 %v1165, 4294901760
    %v1545 = vsub.f32 %v1165, %v1544
    %v1546 = vand.u32 %v1545, 4294901760
    %1547 = vmatmul.f32.gmra.mxu0 %v1546
    %v1548 = vpop.f32.mrf.mxu0
    %v1549 = vadd.f32 %v1519, %v1548
    %1550 = vdwg.mxu0
    %1551 = vmatpush.msra.mxu0 0.0
    %1552 = vmatpush.msra.mxu0 0.0
    %1553 = vmatpush.msra.mxu0 0.0
    %1554 = vmatpush.msra.mxu0 0.0
    %1555 = vmatpush.msra.mxu0 0.0
    %1556 = vmatpush.msra.mxu0 0.0
    %1557 = vmatpush.msra.mxu0 0.0
    %1558 = vmatpush.msra.mxu0 0.0
    %1559 = vmatpush.msra.mxu0 0.0
    %v1560 = vand.u32 %v1171, 4294901760
    %v1561 = vsub.f32 %v1171, %v1560
    %v1562 = vand.u32 %v1561, 4294901760
    %1563 = vmatpush.msra.mxu0 %v1562
    %v1564 = vand.u32 %v1160, 4294901760
    %v1565 = vsub.f32 %v1160, %v1564
    %v1566 = vand.u32 %v1565, 4294901760
    %1567 = vmatpush.msra.mxu0 %v1566
    %v1568 = vand.u32 %v1158, 4294901760
    %v1569 = vsub.f32 %v1158, %v1568
    %v1570 = vand.u32 %v1569, 4294901760
    %1571 = vmatpush.msra.mxu0 %v1570
    %v1572 = vand.u32 %v1156, 4294901760
    %v1573 = vsub.f32 %v1156, %v1572
    %v1574 = vand.u32 %v1573, 4294901760
    %1575 = vmatpush.msra.mxu0 %v1574
    %v1576 = vand.u32 %v1154, 4294901760
    %v1577 = vsub.f32 %v1154, %v1576
    %v1578 = vand.u32 %v1577, 4294901760
    %1579 = vmatpush.msra.mxu0 %v1578
    %v1580 = vand.u32 %v1152, 4294901760
    %v1581 = vsub.f32 %v1152, %v1580
    %v1582 = vand.u32 %v1581, 4294901760
    %1583 = vmatpush.msra.mxu0 %v1582
    %v1584 = vand.u32 %v1150, 4294901760
    %v1585 = vsub.f32 %v1150, %v1584
    %v1586 = vand.u32 %v1585, 4294901760
    %1587 = vmatpush.msra.mxu0 %v1586
    %v1588 = vand.u32 %v1165, 4294901760
    %1589 = vmatmul.f32.gmra.mxu0 %v1588
    %v1590 = vpop.f32.mrf.mxu0
    %v1591 = vadd.f32 %v1549, %v1590
    %1592 = vdwg.mxu0
    %1593 = vmatpush.msra.mxu0 0.0
    %1594 = vmatpush.msra.mxu0 0.0
    %1595 = vmatpush.msra.mxu0 0.0
    %1596 = vmatpush.msra.mxu0 0.0
    %1597 = vmatpush.msra.mxu0 0.0
    %1598 = vmatpush.msra.mxu0 0.0
    %1599 = vmatpush.msra.mxu0 0.0
    %1600 = vmatpush.msra.mxu0 0.0
    %1601 = vmatpush.msra.mxu0 0.0
    %v1602 = vand.u32 %v1171, 4294901760
    %1603 = vmatpush.msra.mxu0 %v1602
    %v1604 = vand.u32 %v1160, 4294901760
    %1605 = vmatpush.msra.mxu0 %v1604
    %v1606 = vand.u32 %v1158, 4294901760
    %1607 = vmatpush.msra.mxu0 %v1606
    %v1608 = vand.u32 %v1156, 4294901760
    %1609 = vmatpush.msra.mxu0 %v1608
    %v1610 = vand.u32 %v1154, 4294901760
    %1611 = vmatpush.msra.mxu0 %v1610
    %v1612 = vand.u32 %v1152, 4294901760
    %1613 = vmatpush.msra.mxu0 %v1612
    %v1614 = vand.u32 %v1150, 4294901760
    %1615 = vmatpush.msra.mxu0 %v1614
    %v1616 = vand.u32 %v1165, 4294901760
    %1617 = vmatmul.f32.gmra.mxu0 %v1616
    %v1618 = vpop.f32.mrf.mxu0
    %v1619 = vadd.f32 %v1591, %v1618
    %1620 = vdwg.mxu0
    %v1623 = vrot.slane %v1619, 6
    %v1624 = vsel %vm1107, %v1395, %v1623
    %v1625 = vrot.slane %v1624, 1
    %v1628 = vadd.f32 %v1108, %v1624
    %v1629 = vadd.f32 %v1124, %v1625
    %v1630 = vxor.u32 %v1628, 2147483648
    %v1631 = vxor.u32 %v1629, 2147483648
    %v1632 = vmul.f32 %v1630, 1.442695
    %v1633 = vpow.pop %v1632
    %v1634 = vmul.f32 %v1631, 1.442695
    %v1635 = vpow.pop %v1634
    %v1636 = vadd.f32 %v1633, 1.0
    %v1637 = vadd.f32 %v1635, 1.0
    %v1638 = vrcp.pop %v1636
    %v1639 = vmul.f32 %v1636, %v1638
    %v1640 = vsub.f32 1.0, %v1639
    %v1641 = vmul.f32 %v1638, %v1640
    %v1642 = vadd.f32 %v1638, %v1641
    %vm1643 = vweird.f32 %v1636
    %vm1644 = vweird.f32 %v1638
    %vm1645 = vmor %vm1643, %vm1644
    %v1646 = vsel %vm1645, %v1638, %v1642
    %v1647 = vand.u32 2147483647, %v1636
    %vm1648 = vcmp.eq.f32.partialorder %v1647, 8.507059e+37
    %v1649 = vand.u32 %v1636, 2147483648
    %v1650 = vor.u32 1.1754944e-38, %v1649
    %v1651 = vsel %vm1648, %v1650, %v1646
    %v1652 = vmul.f32 1.0, %v1651
    %v1653 = vrcp.pop %v1637
    %v1654 = vmul.f32 %v1637, %v1653
    %v1655 = vsub.f32 1.0, %v1654
    %v1656 = vmul.f32 %v1653, %v1655
    %v1657 = vadd.f32 %v1653, %v1656
    %vm1658 = vweird.f32 %v1637
    %vm1659 = vweird.f32 %v1653
    %vm1660 = vmor %vm1658, %vm1659
    %v1661 = vsel %vm1660, %v1653, %v1657
    %v1662 = vand.u32 2147483647, %v1637
    %vm1663 = vcmp.eq.f32.partialorder %v1662, 8.507059e+37
    %v1664 = vand.u32 %v1637, 2147483648
    %v1665 = vor.u32 1.1754944e-38, %v1664
    %v1666 = vsel %vm1663, %v1665, %v1661
    %v1667 = vmul.f32 1.0, %v1666
    %1670 = vrot.lane.b32.xlu0 %v1628, 106
    %v1671 = vpop.permute.xlu0 %1670
    %1672 = vrot.lane.b32.xlu0 %v1629, 106
    %v1673 = vpop.permute.xlu0 %1672
    %v1674 = vrot.slane %v1671, 2
    %v1675 = vrot.slane %v1673, 2
    %v1678 = vtanh.pop %v1674
    %v1679 = vtanh.pop %v1675
    %v1680 = vmul.f32 %v1652, 0.0
    %v1681 = vmul.f32 %v1667, 0.0
    %v1682 = vmul.f32 %v1652, %v1678
    %v1683 = vmul.f32 %v1667, %v1679
    %1686 = vrot.lane.b32.xlu0 %v1682, 50
    %v1687 = vpop.permute.xlu0 %1686
    %1688 = vrot.lane.b32.xlu0 %v1683, 50
    %v1689 = vpop.permute.xlu0 %1688
    %v1692 = vadd.f32 %v1680, %v1687
    %v1693 = vadd.f32 %v1681, %v1689
    %v1694 = vtanh.pop %v1692
    %v1695 = vtanh.pop %v1693
    %1698 = vrot.lane.b32.xlu0 %v1694, 50
    %v1699 = vpop.permute.xlu0 %1698
    %1700 = vrot.lane.b32.xlu0 %v1695, 50
    %v1701 = vpop.permute.xlu0 %1700
    %v1702 = vrot.slane %v1699, 6
    %v1703 = vrot.slane %v1701, 6
    %v1704 = vsel %vm1163, %v1702, %v1699
    %v1705 = vsel %vm1163, %v1703, %v1701
    %v1708 = vmul.f32 %v1652, %v1704
    %v1709 = vmul.f32 %v1667, %v1705
    %v1712 = vperm.slane %v1708, 0
    %v1713 = vperm.slane %v1708, 2
    %v1714 = vperm.slane %v1709, 0
    %v1715 = vperm.slane %v1709, 2
    %vm1716 = vcmask 1041409
    %v1717 = vsel %vm1716, %v1714, %v1712
    %v1718 = vsel %vm1716, %v1715, %v1713
    %1719 = vrot.lane.b32.xlu0 %v1717, 28
    %v1720 = vpop.permute.xlu0 %1719
    %1721 = vrot.lane.b32.xlu0 %v1718, 28
    %v1722 = vpop.permute.xlu0 %1721
    %vm1723 = vcmask 228352
    %v1724 = vsel %vm1723, %v1720, %v1722
    %v1725 = vsel %vm1163, %v1724, 0
    %1727 = vmatpush.msra.mxu0 0.0
    %1728 = vmatpush.msra.mxu0 0.0
    %1729 = vmatpush.msra.mxu0 0.0
    %1730 = vmatpush.msra.mxu0 0.0
    %1731 = vmatpush.msra.mxu0 0.0
    %1732 = vmatpush.msra.mxu0 0.0
    %1733 = vmatpush.msra.mxu0 0.0
    %1734 = vmatpush.msra.mxu0 0.0
    %1735 = vmatpush.msra.mxu0 0.0
    %v1736 = vand.u32 %v1168, 4294901760
    %1737 = vmatpush.msra.mxu0 %v1736
    %v1738 = vand.u32 %v1159, 4294901760
    %1739 = vmatpush.msra.mxu0 %v1738
    %v1740 = vand.u32 %v1157, 4294901760
    %1741 = vmatpush.msra.mxu0 %v1740
    %v1742 = vand.u32 %v1155, 4294901760
    %1743 = vmatpush.msra.mxu0 %v1742
    %v1744 = vand.u32 %v1153, 4294901760
    %1745 = vmatpush.msra.mxu0 %v1744
    %v1746 = vand.u32 %v1151, 4294901760
    %1747 = vmatpush.msra.mxu0 %v1746
    %v1748 = vand.u32 %v1149, 4294901760
    %1749 = vmatpush.msra.mxu0 %v1748
    %v1750 = vand.u32 %v1725, 4294901760
    %v1751 = vsub.f32 %v1725, %v1750
    %v1752 = vand.u32 %v1751, 4294901760
    %v1753 = vsub.f32 %v1751, %v1752
    %v1754 = vand.u32 %v1753, 4294901760
    %1755 = vmatmul.f32.gmra.mxu0 %v1754
    %v1756 = vpop.f32.mrf.mxu0
    %v1757 = vadd.f32 0.0, %v1756
    %1758 = vdwg.mxu0
    %1759 = vmatpush.msra.mxu0 0.0
    %1760 = vmatpush.msra.mxu0 0.0
    %1761 = vmatpush.msra.mxu0 0.0
    %1762 = vmatpush.msra.mxu0 0.0
    %1763 = vmatpush.msra.mxu0 0.0
    %1764 = vmatpush.msra.mxu0 0.0
    %1765 = vmatpush.msra.mxu0 0.0
    %1766 = vmatpush.msra.mxu0 0.0
    %1767 = vmatpush.msra.mxu0 0.0
    %v1768 = vand.u32 %v1168, 4294901760
    %v1769 = vsub.f32 %v1168, %v1768
    %v1770 = vand.u32 %v1769, 4294901760
    %v1771 = vsub.f32 %v1769, %v1770
    %v1772 = vand.u32 %v1771, 4294901760
    %1773 = vmatpush.msra.mxu0 %v1772
    %v1774 = vand.u32 %v1159, 4294901760
    %v1775 = vsub.f32 %v1159, %v1774
    %v1776 = vand.u32 %v1775, 4294901760
    %v1777 = vsub.f32 %v1775, %v1776
    %v1778 = vand.u32 %v1777, 4294901760
    %1779 = vmatpush.msra.mxu0 %v1778
    %v1780 = vand.u32 %v1157, 4294901760
    %v1781 = vsub.f32 %v1157, %v1780
    %v1782 = vand.u32 %v1781, 4294901760
    %v1783 = vsub.f32 %v1781, %v1782
    %v1784 = vand.u32 %v1783, 4294901760
    %1785 = vmatpush.msra.mxu0 %v1784
    %v1786 = vand.u32 %v1155, 4294901760
    %v1787 = vsub.f32 %v1155, %v1786
    %v1788 = vand.u32 %v1787, 4294901760
    %v1789 = vsub.f32 %v1787, %v1788
    %v1790 = vand.u32 %v1789, 4294901760
    %1791 = vmatpush.msra.mxu0 %v1790
    %v1792 = vand.u32 %v1153, 4294901760
    %v1793 = vsub.f32 %v1153, %v1792
    %v1794 = vand.u32 %v1793, 4294901760
    %v1795 = vsub.f32 %v1793, %v1794
    %v1796 = vand.u32 %v1795, 4294901760
    %1797 = vmatpush.msra.mxu0 %v1796
    %v1798 = vand.u32 %v1151, 4294901760
    %v1799 = vsub.f32 %v1151, %v1798
    %v1800 = vand.u32 %v1799, 4294901760
    %v1801 = vsub.f32 %v1799, %v1800
    %v1802 = vand.u32 %v1801, 4294901760
    %1803 = vmatpush.msra.mxu0 %v1802
    %v1804 = vand.u32 %v1149, 4294901760
    %v1805 = vsub.f32 %v1149, %v1804
    %v1806 = vand.u32 %v1805, 4294901760
    %v1807 = vsub.f32 %v1805, %v1806
    %v1808 = vand.u32 %v1807, 4294901760
    %1809 = vmatpush.msra.mxu0 %v1808
    %v1810 = vand.u32 %v1725, 4294901760
    %1811 = vmatmul.f32.gmra.mxu0 %v1810
    %v1812 = vpop.f32.mrf.mxu0
    %v1813 = vadd.f32 %v1757, %v1812
    %1814 = vdwg.mxu0
    %1815 = vmatpush.msra.mxu0 0.0
    %1816 = vmatpush.msra.mxu0 0.0
    %1817 = vmatpush.msra.mxu0 0.0
    %1818 = vmatpush.msra.mxu0 0.0
    %1819 = vmatpush.msra.mxu0 0.0
    %1820 = vmatpush.msra.mxu0 0.0
    %1821 = vmatpush.msra.mxu0 0.0
    %1822 = vmatpush.msra.mxu0 0.0
    %1823 = vmatpush.msra.mxu0 0.0
    %v1824 = vand.u32 %v1168, 4294901760
    %v1825 = vsub.f32 %v1168, %v1824
    %1826 = vmatpush.msra.mxu0 %v1825
    %v1827 = vand.u32 %v1159, 4294901760
    %v1828 = vsub.f32 %v1159, %v1827
    %1829 = vmatpush.msra.mxu0 %v1828
    %v1830 = vand.u32 %v1157, 4294901760
    %v1831 = vsub.f32 %v1157, %v1830
    %1832 = vmatpush.msra.mxu0 %v1831
    %v1833 = vand.u32 %v1155, 4294901760
    %v1834 = vsub.f32 %v1155, %v1833
    %1835 = vmatpush.msra.mxu0 %v1834
    %v1836 = vand.u32 %v1153, 4294901760
    %v1837 = vsub.f32 %v1153, %v1836
    %1838 = vmatpush.msra.mxu0 %v1837
    %v1839 = vand.u32 %v1151, 4294901760
    %v1840 = vsub.f32 %v1151, %v1839
    %1841 = vmatpush.msra.mxu0 %v1840
    %v1842 = vand.u32 %v1149, 4294901760
    %v1843 = vsub.f32 %v1149, %v1842
    %1844 = vmatpush.msra.mxu0 %v1843
    %v1845 = vand.u32 %v1725, 4294901760
    %v1846 = vsub.f32 %v1725, %v1845
    %1847 = vmatmul.f32.gmra.mxu0 %v1846
    %v1848 = vpop.f32.mrf.mxu0
    %v1849 = vadd.f32 %v1813, %v1848
    %1850 = vdwg.mxu0
    %1851 = vmatpush.msra.mxu0 0.0
    %1852 = vmatpush.msra.mxu0 0.0
    %1853 = vmatpush.msra.mxu0 0.0
    %1854 = vmatpush.msra.mxu0 0.0
    %1855 = vmatpush.msra.mxu0 0.0
    %1856 = vmatpush.msra.mxu0 0.0
    %1857 = vmatpush.msra.mxu0 0.0
    %1858 = vmatpush.msra.mxu0 0.0
    %1859 = vmatpush.msra.mxu0 0.0
    %v1860 = vand.u32 %v1168, 4294901760
    %1861 = vmatpush.msra.mxu0 %v1860
    %v1862 = vand.u32 %v1159, 4294901760
    %1863 = vmatpush.msra.mxu0 %v1862
    %v1864 = vand.u32 %v1157, 4294901760
    %1865 = vmatpush.msra.mxu0 %v1864
    %v1866 = vand.u32 %v1155, 4294901760
    %1867 = vmatpush.msra.mxu0 %v1866
    %v1868 = vand.u32 %v1153, 4294901760
    %1869 = vmatpush.msra.mxu0 %v1868
    %v1870 = vand.u32 %v1151, 4294901760
    %1871 = vmatpush.msra.mxu0 %v1870
    %v1872 = vand.u32 %v1149, 4294901760
    %1873 = vmatpush.msra.mxu0 %v1872
    %v1874 = vand.u32 %v1725, 4294901760
    %v1875 = vsub.f32 %v1725, %v1874
    %v1876 = vand.u32 %v1875, 4294901760
    %1877 = vmatmul.f32.gmra.mxu0 %v1876
    %v1878 = vpop.f32.mrf.mxu0
    %v1879 = vadd.f32 %v1849, %v1878
    %1880 = vdwg.mxu0
    %1881 = vmatpush.msra.mxu0 0.0
    %1882 = vmatpush.msra.mxu0 0.0
    %1883 = vmatpush.msra.mxu0 0.0
    %1884 = vmatpush.msra.mxu0 0.0
    %1885 = vmatpush.msra.mxu0 0.0
    %1886 = vmatpush.msra.mxu0 0.0
    %1887 = vmatpush.msra.mxu0 0.0
    %1888 = vmatpush.msra.mxu0 0.0
    %1889 = vmatpush.msra.mxu0 0.0
    %v1890 = vand.u32 %v1168, 4294901760
    %v1891 = vsub.f32 %v1168, %v1890
    %v1892 = vand.u32 %v1891, 4294901760
    %1893 = vmatpush.msra.mxu0 %v1892
    %v1894 = vand.u32 %v1159, 4294901760
    %v1895 = vsub.f32 %v1159, %v1894
    %v1896 = vand.u32 %v1895, 4294901760
    %1897 = vmatpush.msra.mxu0 %v1896
    %v1898 = vand.u32 %v1157, 4294901760
    %v1899 = vsub.f32 %v1157, %v1898
    %v1900 = vand.u32 %v1899, 4294901760
    %1901 = vmatpush.msra.mxu0 %v1900
    %v1902 = vand.u32 %v1155, 4294901760
    %v1903 = vsub.f32 %v1155, %v1902
    %v1904 = vand.u32 %v1903, 4294901760
    %1905 = vmatpush.msra.mxu0 %v1904
    %v1906 = vand.u32 %v1153, 4294901760
    %v1907 = vsub.f32 %v1153, %v1906
    %v1908 = vand.u32 %v1907, 4294901760
    %1909 = vmatpush.msra.mxu0 %v1908
    %v1910 = vand.u32 %v1151, 4294901760
    %v1911 = vsub.f32 %v1151, %v1910
    %v1912 = vand.u32 %v1911, 4294901760
    %1913 = vmatpush.msra.mxu0 %v1912
    %v1914 = vand.u32 %v1149, 4294901760
    %v1915 = vsub.f32 %v1149, %v1914
    %v1916 = vand.u32 %v1915, 4294901760
    %1917 = vmatpush.msra.mxu0 %v1916
    %v1918 = vand.u32 %v1725, 4294901760
    %1919 = vmatmul.f32.gmra.mxu0 %v1918
    %v1920 = vpop.f32.mrf.mxu0
    %v1921 = vadd.f32 %v1879, %v1920
    %1922 = vdwg.mxu0
    %1923 = vmatpush.msra.mxu0 0.0
    %1924 = vmatpush.msra.mxu0 0.0
    %1925 = vmatpush.msra.mxu0 0.0
    %1926 = vmatpush.msra.mxu0 0.0
    %1927 = vmatpush.msra.mxu0 0.0
    %1928 = vmatpush.msra.mxu0 0.0
    %1929 = vmatpush.msra.mxu0 0.0
    %1930 = vmatpush.msra.mxu0 0.0
    %1931 = vmatpush.msra.mxu0 0.0
    %v1932 = vand.u32 %v1168, 4294901760
    %1933 = vmatpush.msra.mxu0 %v1932
    %v1934 = vand.u32 %v1159, 4294901760
    %1935 = vmatpush.msra.mxu0 %v1934
    %v1936 = vand.u32 %v1157, 4294901760
    %1937 = vmatpush.msra.mxu0 %v1936
    %v1938 = vand.u32 %v1155, 4294901760
    %1939 = vmatpush.msra.mxu0 %v1938
    %v1940 = vand.u32 %v1153, 4294901760
    %1941 = vmatpush.msra.mxu0 %v1940
    %v1942 = vand.u32 %v1151, 4294901760
    %1943 = vmatpush.msra.mxu0 %v1942
    %v1944 = vand.u32 %v1149, 4294901760
    %1945 = vmatpush.msra.mxu0 %v1944
    %v1946 = vand.u32 %v1725, 4294901760
    %1947 = vmatmul.f32.gmra.mxu0 %v1946
    %v1948 = vpop.f32.mrf.mxu0
    %v1949 = vadd.f32 %v1921, %v1948
    %1950 = vdwg.mxu0
    %1951 = vmatpush.msra.mxu0 0.0
    %1952 = vmatpush.msra.mxu0 0.0
    %1953 = vmatpush.msra.mxu0 0.0
    %1954 = vmatpush.msra.mxu0 0.0
    %1955 = vmatpush.msra.mxu0 0.0
    %1956 = vmatpush.msra.mxu0 0.0
    %1957 = vmatpush.msra.mxu0 0.0
    %1958 = vmatpush.msra.mxu0 0.0
    %1959 = vmatpush.msra.mxu0 0.0
    %v1960 = vand.u32 %v1171, 4294901760
    %1961 = vmatpush.msra.mxu0 %v1960
    %v1962 = vand.u32 %v1160, 4294901760
    %1963 = vmatpush.msra.mxu0 %v1962
    %v1964 = vand.u32 %v1158, 4294901760
    %1965 = vmatpush.msra.mxu0 %v1964
    %v1966 = vand.u32 %v1156, 4294901760
    %1967 = vmatpush.msra.mxu0 %v1966
    %v1968 = vand.u32 %v1154, 4294901760
    %1969 = vmatpush.msra.mxu0 %v1968
    %v1970 = vand.u32 %v1152, 4294901760
    %1971 = vmatpush.msra.mxu0 %v1970
    %v1972 = vand.u32 %v1150, 4294901760
    %1973 = vmatpush.msra.mxu0 %v1972
    %v1974 = vand.u32 %v1725, 4294901760
    %v1975 = vsub.f32 %v1725, %v1974
    %v1976 = vand.u32 %v1975, 4294901760
    %v1977 = vsub.f32 %v1975, %v1976
    %v1978 = vand.u32 %v1977, 4294901760
    %1979 = vmatmul.f32.gmra.mxu0 %v1978
    %v1980 = vpop.f32.mrf.mxu0
    %v1981 = vadd.f32 0.0, %v1980
    %1982 = vdwg.mxu0
    %1983 = vmatpush.msra.mxu0 0.0
    %1984 = vmatpush.msra.mxu0 0.0
    %1985 = vmatpush.msra.mxu0 0.0
    %1986 = vmatpush.msra.mxu0 0.0
    %1987 = vmatpush.msra.mxu0 0.0
    %1988 = vmatpush.msra.mxu0 0.0
    %1989 = vmatpush.msra.mxu0 0.0
    %1990 = vmatpush.msra.mxu0 0.0
    %1991 = vmatpush.msra.mxu0 0.0
    %v1992 = vand.u32 %v1171, 4294901760
    %v1993 = vsub.f32 %v1171, %v1992
    %v1994 = vand.u32 %v1993, 4294901760
    %v1995 = vsub.f32 %v1993, %v1994
    %v1996 = vand.u32 %v1995, 4294901760
    %1997 = vmatpush.msra.mxu0 %v1996
    %v1998 = vand.u32 %v1160, 4294901760
    %v1999 = vsub.f32 %v1160, %v1998
    %v2000 = vand.u32 %v1999, 4294901760
    %v2001 = vsub.f32 %v1999, %v2000
    %v2002 = vand.u32 %v2001, 4294901760
    %2003 = vmatpush.msra.mxu0 %v2002
    %v2004 = vand.u32 %v1158, 4294901760
    %v2005 = vsub.f32 %v1158, %v2004
    %v2006 = vand.u32 %v2005, 4294901760
    %v2007 = vsub.f32 %v2005, %v2006
    %v2008 = vand.u32 %v2007, 4294901760
    %2009 = vmatpush.msra.mxu0 %v2008
    %v2010 = vand.u32 %v1156, 4294901760
    %v2011 = vsub.f32 %v1156, %v2010
    %v2012 = vand.u32 %v2011, 4294901760
    %v2013 = vsub.f32 %v2011, %v2012
    %v2014 = vand.u32 %v2013, 4294901760
    %2015 = vmatpush.msra.mxu0 %v2014
    %v2016 = vand.u32 %v1154, 4294901760
    %v2017 = vsub.f32 %v1154, %v2016
    %v2018 = vand.u32 %v2017, 4294901760
    %v2019 = vsub.f32 %v2017, %v2018
    %v2020 = vand.u32 %v2019, 4294901760
    %2021 = vmatpush.msra.mxu0 %v2020
    %v2022 = vand.u32 %v1152, 4294901760
    %v2023 = vsub.f32 %v1152, %v2022
    %v2024 = vand.u32 %v2023, 4294901760
    %v2025 = vsub.f32 %v2023, %v2024
    %v2026 = vand.u32 %v2025, 4294901760
    %2027 = vmatpush.msra.mxu0 %v2026
    %v2028 = vand.u32 %v1150, 4294901760
    %v2029 = vsub.f32 %v1150, %v2028
    %v2030 = vand.u32 %v2029, 4294901760
    %v2031 = vsub.f32 %v2029, %v2030
    %v2032 = vand.u32 %v2031, 4294901760
    %2033 = vmatpush.msra.mxu0 %v2032
    %v2034 = vand.u32 %v1725, 4294901760
    %2035 = vmatmul.f32.gmra.mxu0 %v2034
    %v2036 = vpop.f32.mrf.mxu0
    %v2037 = vadd.f32 %v1981, %v2036
    %2038 = vdwg.mxu0
    %2039 = vmatpush.msra.mxu0 0.0
    %2040 = vmatpush.msra.mxu0 0.0
    %2041 = vmatpush.msra.mxu0 0.0
    %2042 = vmatpush.msra.mxu0 0.0
    %2043 = vmatpush.msra.mxu0 0.0
    %2044 = vmatpush.msra.mxu0 0.0
    %2045 = vmatpush.msra.mxu0 0.0
    %2046 = vmatpush.msra.mxu0 0.0
    %2047 = vmatpush.msra.mxu0 0.0
    %v2048 = vand.u32 %v1171, 4294901760
    %v2049 = vsub.f32 %v1171, %v2048
    %2050 = vmatpush.msra.mxu0 %v2049
    %v2051 = vand.u32 %v1160, 4294901760
    %v2052 = vsub.f32 %v1160, %v2051
    %2053 = vmatpush.msra.mxu0 %v2052
    %v2054 = vand.u32 %v1158, 4294901760
    %v2055 = vsub.f32 %v1158, %v2054
    %2056 = vmatpush.msra.mxu0 %v2055
    %v2057 = vand.u32 %v1156, 4294901760
    %v2058 = vsub.f32 %v1156, %v2057
    %2059 = vmatpush.msra.mxu0 %v2058
    %v2060 = vand.u32 %v1154, 4294901760
    %v2061 = vsub.f32 %v1154, %v2060
    %2062 = vmatpush.msra.mxu0 %v2061
    %v2063 = vand.u32 %v1152, 4294901760
    %v2064 = vsub.f32 %v1152, %v2063
    %2065 = vmatpush.msra.mxu0 %v2064
    %v2066 = vand.u32 %v1150, 4294901760
    %v2067 = vsub.f32 %v1150, %v2066
    %2068 = vmatpush.msra.mxu0 %v2067
    %v2069 = vand.u32 %v1725, 4294901760
    %v2070 = vsub.f32 %v1725, %v2069
    %2071 = vmatmul.f32.gmra.mxu0 %v2070
    %v2072 = vpop.f32.mrf.mxu0
    %v2073 = vadd.f32 %v2037, %v2072
    %2074 = vdwg.mxu0
    %2075 = vmatpush.msra.mxu0 0.0
    %2076 = vmatpush.msra.mxu0 0.0
    %2077 = vmatpush.msra.mxu0 0.0
    %2078 = vmatpush.msra.mxu0 0.0
    %2079 = vmatpush.msra.mxu0 0.0
    %2080 = vmatpush.msra.mxu0 0.0
    %2081 = vmatpush.msra.mxu0 0.0
    %2082 = vmatpush.msra.mxu0 0.0
    %2083 = vmatpush.msra.mxu0 0.0
    %v2084 = vand.u32 %v1171, 4294901760
    %2085 = vmatpush.msra.mxu0 %v2084
    %v2086 = vand.u32 %v1160, 4294901760
    %2087 = vmatpush.msra.mxu0 %v2086
    %v2088 = vand.u32 %v1158, 4294901760
    %2089 = vmatpush.msra.mxu0 %v2088
    %v2090 = vand.u32 %v1156, 4294901760
    %2091 = vmatpush.msra.mxu0 %v2090
    %v2092 = vand.u32 %v1154, 4294901760
    %2093 = vmatpush.msra.mxu0 %v2092
    %v2094 = vand.u32 %v1152, 4294901760
    %2095 = vmatpush.msra.mxu0 %v2094
    %v2096 = vand.u32 %v1150, 4294901760
    %2097 = vmatpush.msra.mxu0 %v2096
    %v2098 = vand.u32 %v1725, 4294901760
    %v2099 = vsub.f32 %v1725, %v2098
    %v2100 = vand.u32 %v2099, 4294901760
    %2101 = vmatmul.f32.gmra.mxu0 %v2100
    %v2102 = vpop.f32.mrf.mxu0
    %v2103 = vadd.f32 %v2073, %v2102
    %2104 = vdwg.mxu0
    %2105 = vmatpush.msra.mxu0 0.0
    %2106 = vmatpush.msra.mxu0 0.0
    %2107 = vmatpush.msra.mxu0 0.0
    %2108 = vmatpush.msra.mxu0 0.0
    %2109 = vmatpush.msra.mxu0 0.0
    %2110 = vmatpush.msra.mxu0 0.0
    %2111 = vmatpush.msra.mxu0 0.0
    %2112 = vmatpush.msra.mxu0 0.0
    %2113 = vmatpush.msra.mxu0 0.0
    %v2114 = vand.u32 %v1171, 4294901760
    %v2115 = vsub.f32 %v1171, %v2114
    %v2116 = vand.u32 %v2115, 4294901760
    %2117 = vmatpush.msra.mxu0 %v2116
    %v2118 = vand.u32 %v1160, 4294901760
    %v2119 = vsub.f32 %v1160, %v2118
    %v2120 = vand.u32 %v2119, 4294901760
    %2121 = vmatpush.msra.mxu0 %v2120
    %v2122 = vand.u32 %v1158, 4294901760
    %v2123 = vsub.f32 %v1158, %v2122
    %v2124 = vand.u32 %v2123, 4294901760
    %2125 = vmatpush.msra.mxu0 %v2124
    %v2126 = vand.u32 %v1156, 4294901760
    %v2127 = vsub.f32 %v1156, %v2126
    %v2128 = vand.u32 %v2127, 4294901760
    %2129 = vmatpush.msra.mxu0 %v2128
    %v2130 = vand.u32 %v1154, 4294901760
    %v2131 = vsub.f32 %v1154, %v2130
    %v2132 = vand.u32 %v2131, 4294901760
    %2133 = vmatpush.msra.mxu0 %v2132
    %v2134 = vand.u32 %v1152, 4294901760
    %v2135 = vsub.f32 %v1152, %v2134
    %v2136 = vand.u32 %v2135, 4294901760
    %2137 = vmatpush.msra.mxu0 %v2136
    %v2138 = vand.u32 %v1150, 4294901760
    %v2139 = vsub.f32 %v1150, %v2138
    %v2140 = vand.u32 %v2139, 4294901760
    %2141 = vmatpush.msra.mxu0 %v2140
    %v2142 = vand.u32 %v1725, 4294901760
    %2143 = vmatmul.f32.gmra.mxu0 %v2142
    %v2144 = vpop.f32.mrf.mxu0
    %v2145 = vadd.f32 %v2103, %v2144
    %2146 = vdwg.mxu0
    %2147 = vmatpush.msra.mxu0 0.0
    %2148 = vmatpush.msra.mxu0 0.0
    %2149 = vmatpush.msra.mxu0 0.0
    %2150 = vmatpush.msra.mxu0 0.0
    %2151 = vmatpush.msra.mxu0 0.0
    %2152 = vmatpush.msra.mxu0 0.0
    %2153 = vmatpush.msra.mxu0 0.0
    %2154 = vmatpush.msra.mxu0 0.0
    %2155 = vmatpush.msra.mxu0 0.0
    %v2156 = vand.u32 %v1171, 4294901760
    %2157 = vmatpush.msra.mxu0 %v2156
    %v2158 = vand.u32 %v1160, 4294901760
    %2159 = vmatpush.msra.mxu0 %v2158
    %v2160 = vand.u32 %v1158, 4294901760
    %2161 = vmatpush.msra.mxu0 %v2160
    %v2162 = vand.u32 %v1156, 4294901760
    %2163 = vmatpush.msra.mxu0 %v2162
    %v2164 = vand.u32 %v1154, 4294901760
    %2165 = vmatpush.msra.mxu0 %v2164
    %v2166 = vand.u32 %v1152, 4294901760
    %2167 = vmatpush.msra.mxu0 %v2166
    %v2168 = vand.u32 %v1150, 4294901760
    %2169 = vmatpush.msra.mxu0 %v2168
    %v2170 = vand.u32 %v1725, 4294901760
    %2171 = vmatmul.f32.gmra.mxu0 %v2170
    %v2172 = vpop.f32.mrf.mxu0
    %v2173 = vadd.f32 %v2145, %v2172
    %2174 = vdwg.mxu0
    %v2177 = vrot.slane %v2173, 6
    %v2178 = vsel %vm1107, %v1949, %v2177
    %v2179 = vrot.slane %v2178, 7
    %v2182 = vadd.f32 %v1108, %v2179
    %v2183 = vadd.f32 %v1124, %v2178
    %v2184 = vxor.u32 %v2182, 2147483648
    %v2185 = vxor.u32 %v2183, 2147483648
    %v2186 = vmul.f32 %v2184, 1.442695
    %v2187 = vpow.pop %v2186
    %v2188 = vmul.f32 %v2185, 1.442695
    %v2189 = vpow.pop %v2188
    %v2190 = vadd.f32 %v2187, 1.0
    %v2191 = vadd.f32 %v2189, 1.0
    %v2192 = vrcp.pop %v2190
    %v2193 = vmul.f32 %v2190, %v2192
    %v2194 = vsub.f32 1.0, %v2193
    %v2195 = vmul.f32 %v2192, %v2194
    %v2196 = vadd.f32 %v2192, %v2195
    %vm2197 = vweird.f32 %v2190
    %vm2198 = vweird.f32 %v2192
    %vm2199 = vmor %vm2197, %vm2198
    %v2200 = vsel %vm2199, %v2192, %v2196
    %v2201 = vand.u32 2147483647, %v2190
    %vm2202 = vcmp.eq.f32.partialorder %v2201, 8.507059e+37
    %v2203 = vand.u32 %v2190, 2147483648
    %v2204 = vor.u32 1.1754944e-38, %v2203
    %v2205 = vsel %vm2202, %v2204, %v2200
    %v2206 = vmul.f32 1.0, %v2205
    %v2207 = vrcp.pop %v2191
    %v2208 = vmul.f32 %v2191, %v2207
    %v2209 = vsub.f32 1.0, %v2208
    %v2210 = vmul.f32 %v2207, %v2209
    %v2211 = vadd.f32 %v2207, %v2210
    %vm2212 = vweird.f32 %v2191
    %vm2213 = vweird.f32 %v2207
    %vm2214 = vmor %vm2212, %vm2213
    %v2215 = vsel %vm2214, %v2207, %v2211
    %v2216 = vand.u32 2147483647, %v2191
    %vm2217 = vcmp.eq.f32.partialorder %v2216, 8.507059e+37
    %v2218 = vand.u32 %v2191, 2147483648
    %v2219 = vor.u32 1.1754944e-38, %v2218
    %v2220 = vsel %vm2217, %v2219, %v2215
    %v2221 = vmul.f32 1.0, %v2220
    %2224 = vrot.lane.b32.xlu0 %v2182, 106
    %v2225 = vpop.permute.xlu0 %2224
    %2226 = vrot.lane.b32.xlu0 %v2183, 106
    %v2227 = vpop.permute.xlu0 %2226
    %v2228 = vrot.slane %v2225, 2
    %v2229 = vrot.slane %v2227, 2
    %v2232 = vtanh.pop %v2228
    %v2233 = vtanh.pop %v2229
    %v2236 = vrot.slane %v1692, 7
    %v2237 = vrot.slane %v1693, 7
    %v2240 = vmul.f32 %v2206, %v2236
    %v2241 = vmul.f32 %v2221, %v2237
    %v2242 = vmul.f32 %v2206, %v2232
    %v2243 = vmul.f32 %v2221, %v2233
    %2246 = vrot.lane.b32.xlu0 %v2242, 50
    %v2247 = vpop.permute.xlu0 %2246
    %2248 = vrot.lane.b32.xlu0 %v2243, 50
    %v2249 = vpop.permute.xlu0 %2248
    %v2252 = vadd.f32 %v2240, %v2247
    %v2253 = vadd.f32 %v2241, %v2249
    %v2254 = vtanh.pop %v2252
    %v2255 = vtanh.pop %v2253
    %2258 = vrot.lane.b32.xlu0 %v2254, 50
    %v2259 = vpop.permute.xlu0 %2258
    %2260 = vrot.lane.b32.xlu0 %v2255, 50
    %v2261 = vpop.permute.xlu0 %2260
    %v2262 = vrot.slane %v2259, 6
    %v2263 = vrot.slane %v2261, 6
    %v2264 = vsel %vm1163, %v2262, %v2259
    %v2265 = vsel %vm1163, %v2263, %v2261
    %v2268 = vmul.f32 %v2206, %v2264
    %v2269 = vmul.f32 %v2221, %v2265
    %v2272 = vperm.slane %v2268, 1
    %v2273 = vperm.slane %v2268, 3
    %v2274 = vperm.slane %v2269, 1
    %v2275 = vperm.slane %v2269, 3
    %v2276 = vsel %vm1716, %v2274, %v2272
    %v2277 = vsel %vm1716, %v2275, %v2273
    %2278 = vrot.lane.b32.xlu0 %v2276, 28
    %v2279 = vpop.permute.xlu0 %2278
    %2280 = vrot.lane.b32.xlu0 %v2277, 28
    %v2281 = vpop.permute.xlu0 %2280
    %v2282 = vsel %vm1723, %v2279, %v2281
    %v2283 = vsel %vm1163, %v2282, 0
    %2285 = vmatpush.msra.mxu0 0.0
    %2286 = vmatpush.msra.mxu0 0.0
    %2287 = vmatpush.msra.mxu0 0.0
    %2288 = vmatpush.msra.mxu0 0.0
    %2289 = vmatpush.msra.mxu0 0.0
    %2290 = vmatpush.msra.mxu0 0.0
    %2291 = vmatpush.msra.mxu0 0.0
    %2292 = vmatpush.msra.mxu0 0.0
    %2293 = vmatpush.msra.mxu0 0.0
    %v2294 = vand.u32 %v1168, 4294901760
    %2295 = vmatpush.msra.mxu0 %v2294
    %v2296 = vand.u32 %v1159, 4294901760
    %2297 = vmatpush.msra.mxu0 %v2296
    %v2298 = vand.u32 %v1157, 4294901760
    %2299 = vmatpush.msra.mxu0 %v2298
    %v2300 = vand.u32 %v1155, 4294901760
    %2301 = vmatpush.msra.mxu0 %v2300
    %v2302 = vand.u32 %v1153, 4294901760
    %2303 = vmatpush.msra.mxu0 %v2302
    %v2304 = vand.u32 %v1151, 4294901760
    %2305 = vmatpush.msra.mxu0 %v2304
    %v2306 = vand.u32 %v1149, 4294901760
    %2307 = vmatpush.msra.mxu0 %v2306
    %v2308 = vand.u32 %v2283, 4294901760
    %v2309 = vsub.f32 %v2283, %v2308
    %v2310 = vand.u32 %v2309, 4294901760
    %v2311 = vsub.f32 %v2309, %v2310
    %v2312 = vand.u32 %v2311, 4294901760
    %2313 = vmatmul.f32.gmra.mxu0 %v2312
    %v2314 = vpop.f32.mrf.mxu0
    %v2315 = vadd.f32 0.0, %v2314
    %2316 = vdwg.mxu0
    %2317 = vmatpush.msra.mxu0 0.0
    %2318 = vmatpush.msra.mxu0 0.0
    %2319 = vmatpush.msra.mxu0 0.0
    %2320 = vmatpush.msra.mxu0 0.0
    %2321 = vmatpush.msra.mxu0 0.0
    %2322 = vmatpush.msra.mxu0 0.0
    %2323 = vmatpush.msra.mxu0 0.0
    %2324 = vmatpush.msra.mxu0 0.0
    %2325 = vmatpush.msra.mxu0 0.0
    %v2326 = vand.u32 %v1168, 4294901760
    %v2327 = vsub.f32 %v1168, %v2326
    %v2328 = vand.u32 %v2327, 4294901760
    %v2329 = vsub.f32 %v2327, %v2328
    %v2330 = vand.u32 %v2329, 4294901760
    %2331 = vmatpush.msra.mxu0 %v2330
    %v2332 = vand.u32 %v1159, 4294901760
    %v2333 = vsub.f32 %v1159, %v2332
    %v2334 = vand.u32 %v2333, 4294901760
    %v2335 = vsub.f32 %v2333, %v2334
    %v2336 = vand.u32 %v2335, 4294901760
    %2337 = vmatpush.msra.mxu0 %v2336
    %v2338 = vand.u32 %v1157, 4294901760
    %v2339 = vsub.f32 %v1157, %v2338
    %v2340 = vand.u32 %v2339, 4294901760
    %v2341 = vsub.f32 %v2339, %v2340
    %v2342 = vand.u32 %v2341, 4294901760
    %2343 = vmatpush.msra.mxu0 %v2342
    %v2344 = vand.u32 %v1155, 4294901760
    %v2345 = vsub.f32 %v1155, %v2344
    %v2346 = vand.u32 %v2345, 4294901760
    %v2347 = vsub.f32 %v2345, %v2346
    %v2348 = vand.u32 %v2347, 4294901760
    %2349 = vmatpush.msra.mxu0 %v2348
    %v2350 = vand.u32 %v1153, 4294901760
    %v2351 = vsub.f32 %v1153, %v2350
    %v2352 = vand.u32 %v2351, 4294901760
    %v2353 = vsub.f32 %v2351, %v2352
    %v2354 = vand.u32 %v2353, 4294901760
    %2355 = vmatpush.msra.mxu0 %v2354
    %v2356 = vand.u32 %v1151, 4294901760
    %v2357 = vsub.f32 %v1151, %v2356
    %v2358 = vand.u32 %v2357, 4294901760
    %v2359 = vsub.f32 %v2357, %v2358
    %v2360 = vand.u32 %v2359, 4294901760
    %2361 = vmatpush.msra.mxu0 %v2360
    %v2362 = vand.u32 %v1149, 4294901760
    %v2363 = vsub.f32 %v1149, %v2362
    %v2364 = vand.u32 %v2363, 4294901760
    %v2365 = vsub.f32 %v2363, %v2364
    %v2366 = vand.u32 %v2365, 4294901760
    %2367 = vmatpush.msra.mxu0 %v2366
    %v2368 = vand.u32 %v2283, 4294901760
    %2369 = vmatmul.f32.gmra.mxu0 %v2368
    %v2370 = vpop.f32.mrf.mxu0
    %v2371 = vadd.f32 %v2315, %v2370
    %2372 = vdwg.mxu0
    %2373 = vmatpush.msra.mxu0 0.0
    %2374 = vmatpush.msra.mxu0 0.0
    %2375 = vmatpush.msra.mxu0 0.0
    %2376 = vmatpush.msra.mxu0 0.0
    %2377 = vmatpush.msra.mxu0 0.0
    %2378 = vmatpush.msra.mxu0 0.0
    %2379 = vmatpush.msra.mxu0 0.0
    %2380 = vmatpush.msra.mxu0 0.0
    %2381 = vmatpush.msra.mxu0 0.0
    %v2382 = vand.u32 %v1168, 4294901760
    %v2383 = vsub.f32 %v1168, %v2382
    %2384 = vmatpush.msra.mxu0 %v2383
    %v2385 = vand.u32 %v1159, 4294901760
    %v2386 = vsub.f32 %v1159, %v2385
    %2387 = vmatpush.msra.mxu0 %v2386
    %v2388 = vand.u32 %v1157, 4294901760
    %v2389 = vsub.f32 %v1157, %v2388
    %2390 = vmatpush.msra.mxu0 %v2389
    %v2391 = vand.u32 %v1155, 4294901760
    %v2392 = vsub.f32 %v1155, %v2391
    %2393 = vmatpush.msra.mxu0 %v2392
    %v2394 = vand.u32 %v1153, 4294901760
    %v2395 = vsub.f32 %v1153, %v2394
    %2396 = vmatpush.msra.mxu0 %v2395
    %v2397 = vand.u32 %v1151, 4294901760
    %v2398 = vsub.f32 %v1151, %v2397
    %2399 = vmatpush.msra.mxu0 %v2398
    %v2400 = vand.u32 %v1149, 4294901760
    %v2401 = vsub.f32 %v1149, %v2400
    %2402 = vmatpush.msra.mxu0 %v2401
    %v2403 = vand.u32 %v2283, 4294901760
    %v2404 = vsub.f32 %v2283, %v2403
    %2405 = vmatmul.f32.gmra.mxu0 %v2404
    %v2406 = vpop.f32.mrf.mxu0
    %v2407 = vadd.f32 %v2371, %v2406
    %2408 = vdwg.mxu0
    %2409 = vmatpush.msra.mxu0 0.0
    %2410 = vmatpush.msra.mxu0 0.0
    %2411 = vmatpush.msra.mxu0 0.0
    %2412 = vmatpush.msra.mxu0 0.0
    %2413 = vmatpush.msra.mxu0 0.0
    %2414 = vmatpush.msra.mxu0 0.0
    %2415 = vmatpush.msra.mxu0 0.0
    %2416 = vmatpush.msra.mxu0 0.0
    %2417 = vmatpush.msra.mxu0 0.0
    %v2418 = vand.u32 %v1168, 4294901760
    %2419 = vmatpush.msra.mxu0 %v2418
    %v2420 = vand.u32 %v1159, 4294901760
    %2421 = vmatpush.msra.mxu0 %v2420
    %v2422 = vand.u32 %v1157, 4294901760
    %2423 = vmatpush.msra.mxu0 %v2422
    %v2424 = vand.u32 %v1155, 4294901760
    %2425 = vmatpush.msra.mxu0 %v2424
    %v2426 = vand.u32 %v1153, 4294901760
    %2427 = vmatpush.msra.mxu0 %v2426
    %v2428 = vand.u32 %v1151, 4294901760
    %2429 = vmatpush.msra.mxu0 %v2428
    %v2430 = vand.u32 %v1149, 4294901760
    %2431 = vmatpush.msra.mxu0 %v2430
    %v2432 = vand.u32 %v2283, 4294901760
    %v2433 = vsub.f32 %v2283, %v2432
    %v2434 = vand.u32 %v2433, 4294901760
    %2435 = vmatmul.f32.gmra.mxu0 %v2434
    %v2436 = vpop.f32.mrf.mxu0
    %v2437 = vadd.f32 %v2407, %v2436
    %2438 = vdwg.mxu0
    %2439 = vmatpush.msra.mxu0 0.0
    %2440 = vmatpush.msra.mxu0 0.0
    %2441 = vmatpush.msra.mxu0 0.0
    %2442 = vmatpush.msra.mxu0 0.0
    %2443 = vmatpush.msra.mxu0 0.0
    %2444 = vmatpush.msra.mxu0 0.0
    %2445 = vmatpush.msra.mxu0 0.0
    %2446 = vmatpush.msra.mxu0 0.0
    %2447 = vmatpush.msra.mxu0 0.0
    %v2448 = vand.u32 %v1168, 4294901760
    %v2449 = vsub.f32 %v1168, %v2448
    %v2450 = vand.u32 %v2449, 4294901760
    %2451 = vmatpush.msra.mxu0 %v2450
    %v2452 = vand.u32 %v1159, 4294901760
    %v2453 = vsub.f32 %v1159, %v2452
    %v2454 = vand.u32 %v2453, 4294901760
    %2455 = vmatpush.msra.mxu0 %v2454
    %v2456 = vand.u32 %v1157, 4294901760
    %v2457 = vsub.f32 %v1157, %v2456
    %v2458 = vand.u32 %v2457, 4294901760
    %2459 = vmatpush.msra.mxu0 %v2458
    %v2460 = vand.u32 %v1155, 4294901760
    %v2461 = vsub.f32 %v1155, %v2460
    %v2462 = vand.u32 %v2461, 4294901760
    %2463 = vmatpush.msra.mxu0 %v2462
    %v2464 = vand.u32 %v1153, 4294901760
    %v2465 = vsub.f32 %v1153, %v2464
    %v2466 = vand.u32 %v2465, 4294901760
    %2467 = vmatpush.msra.mxu0 %v2466
    %v2468 = vand.u32 %v1151, 4294901760
    %v2469 = vsub.f32 %v1151, %v2468
    %v2470 = vand.u32 %v2469, 4294901760
    %2471 = vmatpush.msra.mxu0 %v2470
    %v2472 = vand.u32 %v1149, 4294901760
    %v2473 = vsub.f32 %v1149, %v2472
    %v2474 = vand.u32 %v2473, 4294901760
    %2475 = vmatpush.msra.mxu0 %v2474
    %v2476 = vand.u32 %v2283, 4294901760
    %2477 = vmatmul.f32.gmra.mxu0 %v2476
    %v2478 = vpop.f32.mrf.mxu0
    %v2479 = vadd.f32 %v2437, %v2478
    %2480 = vdwg.mxu0
    %2481 = vmatpush.msra.mxu0 0.0
    %2482 = vmatpush.msra.mxu0 0.0
    %2483 = vmatpush.msra.mxu0 0.0
    %2484 = vmatpush.msra.mxu0 0.0
    %2485 = vmatpush.msra.mxu0 0.0
    %2486 = vmatpush.msra.mxu0 0.0
    %2487 = vmatpush.msra.mxu0 0.0
    %2488 = vmatpush.msra.mxu0 0.0
    %2489 = vmatpush.msra.mxu0 0.0
    %v2490 = vand.u32 %v1168, 4294901760
    %2491 = vmatpush.msra.mxu0 %v2490
    %v2492 = vand.u32 %v1159, 4294901760
    %2493 = vmatpush.msra.mxu0 %v2492
    %v2494 = vand.u32 %v1157, 4294901760
    %2495 = vmatpush.msra.mxu0 %v2494
    %v2496 = vand.u32 %v1155, 4294901760
    %2497 = vmatpush.msra.mxu0 %v2496
    %v2498 = vand.u32 %v1153, 4294901760
    %2499 = vmatpush.msra.mxu0 %v2498
    %v2500 = vand.u32 %v1151, 4294901760
    %2501 = vmatpush.msra.mxu0 %v2500
    %v2502 = vand.u32 %v1149, 4294901760
    %2503 = vmatpush.msra.mxu0 %v2502
    %v2504 = vand.u32 %v2283, 4294901760
    %2505 = vmatmul.f32.gmra.mxu0 %v2504
    %v2506 = vpop.f32.mrf.mxu0
    %v2507 = vadd.f32 %v2479, %v2506
    %2508 = vdwg.mxu0
    %2509 = vmatpush.msra.mxu0 0.0
    %2510 = vmatpush.msra.mxu0 0.0
    %2511 = vmatpush.msra.mxu0 0.0
    %2512 = vmatpush.msra.mxu0 0.0
    %2513 = vmatpush.msra.mxu0 0.0
    %2514 = vmatpush.msra.mxu0 0.0
    %2515 = vmatpush.msra.mxu0 0.0
    %2516 = vmatpush.msra.mxu0 0.0
    %2517 = vmatpush.msra.mxu0 0.0
    %v2518 = vand.u32 %v1171, 4294901760
    %2519 = vmatpush.msra.mxu0 %v2518
    %v2520 = vand.u32 %v1160, 4294901760
    %2521 = vmatpush.msra.mxu0 %v2520
    %v2522 = vand.u32 %v1158, 4294901760
    %2523 = vmatpush.msra.mxu0 %v2522
    %v2524 = vand.u32 %v1156, 4294901760
    %2525 = vmatpush.msra.mxu0 %v2524
    %v2526 = vand.u32 %v1154, 4294901760
    %2527 = vmatpush.msra.mxu0 %v2526
    %v2528 = vand.u32 %v1152, 4294901760
    %2529 = vmatpush.msra.mxu0 %v2528
    %v2530 = vand.u32 %v1150, 4294901760
    %2531 = vmatpush.msra.mxu0 %v2530
    %v2532 = vand.u32 %v2283, 4294901760
    %v2533 = vsub.f32 %v2283, %v2532
    %v2534 = vand.u32 %v2533, 4294901760
    %v2535 = vsub.f32 %v2533, %v2534
    %v2536 = vand.u32 %v2535, 4294901760
    %2537 = vmatmul.f32.gmra.mxu0 %v2536
    %v2538 = vpop.f32.mrf.mxu0
    %v2539 = vadd.f32 0.0, %v2538
    %2540 = vdwg.mxu0
    %2541 = vmatpush.msra.mxu0 0.0
    %2542 = vmatpush.msra.mxu0 0.0
    %2543 = vmatpush.msra.mxu0 0.0
    %2544 = vmatpush.msra.mxu0 0.0
    %2545 = vmatpush.msra.mxu0 0.0
    %2546 = vmatpush.msra.mxu0 0.0
    %2547 = vmatpush.msra.mxu0 0.0
    %2548 = vmatpush.msra.mxu0 0.0
    %2549 = vmatpush.msra.mxu0 0.0
    %v2550 = vand.u32 %v1171, 4294901760
    %v2551 = vsub.f32 %v1171, %v2550
    %v2552 = vand.u32 %v2551, 4294901760
    %v2553 = vsub.f32 %v2551, %v2552
    %v2554 = vand.u32 %v2553, 4294901760
    %2555 = vmatpush.msra.mxu0 %v2554
    %v2556 = vand.u32 %v1160, 4294901760
    %v2557 = vsub.f32 %v1160, %v2556
    %v2558 = vand.u32 %v2557, 4294901760
    %v2559 = vsub.f32 %v2557, %v2558
    %v2560 = vand.u32 %v2559, 4294901760
    %2561 = vmatpush.msra.mxu0 %v2560
    %v2562 = vand.u32 %v1158, 4294901760
    %v2563 = vsub.f32 %v1158, %v2562
    %v2564 = vand.u32 %v2563, 4294901760
    %v2565 = vsub.f32 %v2563, %v2564
    %v2566 = vand.u32 %v2565, 4294901760
    %2567 = vmatpush.msra.mxu0 %v2566
    %v2568 = vand.u32 %v1156, 4294901760
    %v2569 = vsub.f32 %v1156, %v2568
    %v2570 = vand.u32 %v2569, 4294901760
    %v2571 = vsub.f32 %v2569, %v2570
    %v2572 = vand.u32 %v2571, 4294901760
    %2573 = vmatpush.msra.mxu0 %v2572
    %v2574 = vand.u32 %v1154, 4294901760
    %v2575 = vsub.f32 %v1154, %v2574
    %v2576 = vand.u32 %v2575, 4294901760
    %v2577 = vsub.f32 %v2575, %v2576
    %v2578 = vand.u32 %v2577, 4294901760
    %2579 = vmatpush.msra.mxu0 %v2578
    %v2580 = vand.u32 %v1152, 4294901760
    %v2581 = vsub.f32 %v1152, %v2580
    %v2582 = vand.u32 %v2581, 4294901760
    %v2583 = vsub.f32 %v2581, %v2582
    %v2584 = vand.u32 %v2583, 4294901760
    %2585 = vmatpush.msra.mxu0 %v2584
    %v2586 = vand.u32 %v1150, 4294901760
    %v2587 = vsub.f32 %v1150, %v2586
    %v2588 = vand.u32 %v2587, 4294901760
    %v2589 = vsub.f32 %v2587, %v2588
    %v2590 = vand.u32 %v2589, 4294901760
    %2591 = vmatpush.msra.mxu0 %v2590
    %v2592 = vand.u32 %v2283, 4294901760
    %2593 = vmatmul.f32.gmra.mxu0 %v2592
    %v2594 = vpop.f32.mrf.mxu0
    %v2595 = vadd.f32 %v2539, %v2594
    %2596 = vdwg.mxu0
    %2597 = vmatpush.msra.mxu0 0.0
    %2598 = vmatpush.msra.mxu0 0.0
    %2599 = vmatpush.msra.mxu0 0.0
    %2600 = vmatpush.msra.mxu0 0.0
    %2601 = vmatpush.msra.mxu0 0.0
    %2602 = vmatpush.msra.mxu0 0.0
    %2603 = vmatpush.msra.mxu0 0.0
    %2604 = vmatpush.msra.mxu0 0.0
    %2605 = vmatpush.msra.mxu0 0.0
    %v2606 = vand.u32 %v1171, 4294901760
    %v2607 = vsub.f32 %v1171, %v2606
    %2608 = vmatpush.msra.mxu0 %v2607
    %v2609 = vand.u32 %v1160, 4294901760
    %v2610 = vsub.f32 %v1160, %v2609
    %2611 = vmatpush.msra.mxu0 %v2610
    %v2612 = vand.u32 %v1158, 4294901760
    %v2613 = vsub.f32 %v1158, %v2612
    %2614 = vmatpush.msra.mxu0 %v2613
    %v2615 = vand.u32 %v1156, 4294901760
    %v2616 = vsub.f32 %v1156, %v2615
    %2617 = vmatpush.msra.mxu0 %v2616
    %v2618 = vand.u32 %v1154, 4294901760
    %v2619 = vsub.f32 %v1154, %v2618
    %2620 = vmatpush.msra.mxu0 %v2619
    %v2621 = vand.u32 %v1152, 4294901760
    %v2622 = vsub.f32 %v1152, %v2621
    %2623 = vmatpush.msra.mxu0 %v2622
    %v2624 = vand.u32 %v1150, 4294901760
    %v2625 = vsub.f32 %v1150, %v2624
    %2626 = vmatpush.msra.mxu0 %v2625
    %v2627 = vand.u32 %v2283, 4294901760
    %v2628 = vsub.f32 %v2283, %v2627
    %2629 = vmatmul.f32.gmra.mxu0 %v2628
    %v2630 = vpop.f32.mrf.mxu0
    %v2631 = vadd.f32 %v2595, %v2630
    %2632 = vdwg.mxu0
    %2633 = vmatpush.msra.mxu0 0.0
    %2634 = vmatpush.msra.mxu0 0.0
    %2635 = vmatpush.msra.mxu0 0.0
    %2636 = vmatpush.msra.mxu0 0.0
    %2637 = vmatpush.msra.mxu0 0.0
    %2638 = vmatpush.msra.mxu0 0.0
    %2639 = vmatpush.msra.mxu0 0.0
    %2640 = vmatpush.msra.mxu0 0.0
    %2641 = vmatpush.msra.mxu0 0.0
    %v2642 = vand.u32 %v1171, 4294901760
    %2643 = vmatpush.msra.mxu0 %v2642
    %v2644 = vand.u32 %v1160, 4294901760
    %2645 = vmatpush.msra.mxu0 %v2644
    %v2646 = vand.u32 %v1158, 4294901760
    %2647 = vmatpush.msra.mxu0 %v2646
    %v2648 = vand.u32 %v1156, 4294901760
    %2649 = vmatpush.msra.mxu0 %v2648
    %v2650 = vand.u32 %v1154, 4294901760
    %2651 = vmatpush.msra.mxu0 %v2650
    %v2652 = vand.u32 %v1152, 4294901760
    %2653 = vmatpush.msra.mxu0 %v2652
    %v2654 = vand.u32 %v1150, 4294901760
    %2655 = vmatpush.msra.mxu0 %v2654
    %v2656 = vand.u32 %v2283, 4294901760
    %v2657 = vsub.f32 %v2283, %v2656
    %v2658 = vand.u32 %v2657, 4294901760
    %2659 = vmatmul.f32.gmra.mxu0 %v2658
    %v2660 = vpop.f32.mrf.mxu0
    %v2661 = vadd.f32 %v2631, %v2660
    %2662 = vdwg.mxu0
    %2663 = vmatpush.msra.mxu0 0.0
    %2664 = vmatpush.msra.mxu0 0.0
    %2665 = vmatpush.msra.mxu0 0.0
    %2666 = vmatpush.msra.mxu0 0.0
    %2667 = vmatpush.msra.mxu0 0.0
    %2668 = vmatpush.msra.mxu0 0.0
    %2669 = vmatpush.msra.mxu0 0.0
    %2670 = vmatpush.msra.mxu0 0.0
    %2671 = vmatpush.msra.mxu0 0.0
    %v2672 = vand.u32 %v1171, 4294901760
    %v2673 = vsub.f32 %v1171, %v2672
    %v2674 = vand.u32 %v2673, 4294901760
    %2675 = vmatpush.msra.mxu0 %v2674
    %v2676 = vand.u32 %v1160, 4294901760
    %v2677 = vsub.f32 %v1160, %v2676
    %v2678 = vand.u32 %v2677, 4294901760
    %2679 = vmatpush.msra.mxu0 %v2678
    %v2680 = vand.u32 %v1158, 4294901760
    %v2681 = vsub.f32 %v1158, %v2680
    %v2682 = vand.u32 %v2681, 4294901760
    %2683 = vmatpush.msra.mxu0 %v2682
    %v2684 = vand.u32 %v1156, 4294901760
    %v2685 = vsub.f32 %v1156, %v2684
    %v2686 = vand.u32 %v2685, 4294901760
    %2687 = vmatpush.msra.mxu0 %v2686
    %v2688 = vand.u32 %v1154, 4294901760
    %v2689 = vsub.f32 %v1154, %v2688
    %v2690 = vand.u32 %v2689, 4294901760
    %2691 = vmatpush.msra.mxu0 %v2690
    %v2692 = vand.u32 %v1152, 4294901760
    %v2693 = vsub.f32 %v1152, %v2692
    %v2694 = vand.u32 %v2693, 4294901760
    %2695 = vmatpush.msra.mxu0 %v2694
    %v2696 = vand.u32 %v1150, 4294901760
    %v2697 = vsub.f32 %v1150, %v2696
    %v2698 = vand.u32 %v2697, 4294901760
    %2699 = vmatpush.msra.mxu0 %v2698
    %v2700 = vand.u32 %v2283, 4294901760
    %2701 = vmatmul.f32.gmra.mxu0 %v2700
    %v2702 = vpop.f32.mrf.mxu0
    %v2703 = vadd.f32 %v2661, %v2702
    %2704 = vdwg.mxu0
    %2705 = vmatpush.msra.mxu0 0.0
    %2706 = vmatpush.msra.mxu0 0.0
    %2707 = vmatpush.msra.mxu0 0.0
    %2708 = vmatpush.msra.mxu0 0.0
    %2709 = vmatpush.msra.mxu0 0.0
    %2710 = vmatpush.msra.mxu0 0.0
    %2711 = vmatpush.msra.mxu0 0.0
    %2712 = vmatpush.msra.mxu0 0.0
    %2713 = vmatpush.msra.mxu0 0.0
    %v2714 = vand.u32 %v1171, 4294901760
    %2715 = vmatpush.msra.mxu0 %v2714
    %v2716 = vand.u32 %v1160, 4294901760
    %2717 = vmatpush.msra.mxu0 %v2716
    %v2718 = vand.u32 %v1158, 4294901760
    %2719 = vmatpush.msra.mxu0 %v2718
    %v2720 = vand.u32 %v1156, 4294901760
    %2721 = vmatpush.msra.mxu0 %v2720
    %v2722 = vand.u32 %v1154, 4294901760
    %2723 = vmatpush.msra.mxu0 %v2722
    %v2724 = vand.u32 %v1152, 4294901760
    %2725 = vmatpush.msra.mxu0 %v2724
    %v2726 = vand.u32 %v1150, 4294901760
    %2727 = vmatpush.msra.mxu0 %v2726
    %v2728 = vand.u32 %v2283, 4294901760
    %2729 = vmatmul.f32.gmra.mxu0 %v2728
    %v2730 = vpop.f32.mrf.mxu0
    %v2731 = vadd.f32 %v2703, %v2730
    %2732 = vdwg.mxu0
    %v2735 = vrot.slane %v2731, 6
    %v2736 = vsel %vm1107, %v2507, %v2735
    %v2737 = vrot.slane %v2736, 1
    %v2740 = vadd.f32 %v1111, %v2736
    %v2741 = vadd.f32 %v1125, %v2737
    %v2742 = vxor.u32 %v2740, 2147483648
    %v2743 = vxor.u32 %v2741, 2147483648
    %v2744 = vmul.f32 %v2742, 1.442695
    %v2745 = vpow.pop %v2744
    %v2746 = vmul.f32 %v2743, 1.442695
    %v2747 = vpow.pop %v2746
    %v2748 = vadd.f32 %v2745, 1.0
    %v2749 = vadd.f32 %v2747, 1.0
    %v2750 = vrcp.pop %v2748
    %v2751 = vmul.f32 %v2748, %v2750
    %v2752 = vsub.f32 1.0, %v2751
    %v2753 = vmul.f32 %v2750, %v2752
    %v2754 = vadd.f32 %v2750, %v2753
    %vm2755 = vweird.f32 %v2748
    %vm2756 = vweird.f32 %v2750
    %vm2757 = vmor %vm2755, %vm2756
    %v2758 = vsel %vm2757, %v2750, %v2754
    %v2759 = vand.u32 2147483647, %v2748
    %vm2760 = vcmp.eq.f32.partialorder %v2759, 8.507059e+37
    %v2761 = vand.u32 %v2748, 2147483648
    %v2762 = vor.u32 1.1754944e-38, %v2761
    %v2763 = vsel %vm2760, %v2762, %v2758
    %v2764 = vmul.f32 1.0, %v2763
    %v2765 = vrcp.pop %v2749
    %v2766 = vmul.f32 %v2749, %v2765
    %v2767 = vsub.f32 1.0, %v2766
    %v2768 = vmul.f32 %v2765, %v2767
    %v2769 = vadd.f32 %v2765, %v2768
    %vm2770 = vweird.f32 %v2749
    %vm2771 = vweird.f32 %v2765
    %vm2772 = vmor %vm2770, %vm2771
    %v2773 = vsel %vm2772, %v2765, %v2769
    %v2774 = vand.u32 2147483647, %v2749
    %vm2775 = vcmp.eq.f32.partialorder %v2774, 8.507059e+37
    %v2776 = vand.u32 %v2749, 2147483648
    %v2777 = vor.u32 1.1754944e-38, %v2776
    %v2778 = vsel %vm2775, %v2777, %v2773
    %v2779 = vmul.f32 1.0, %v2778
    %2782 = vrot.lane.b32.xlu0 %v2740, 106
    %v2783 = vpop.permute.xlu0 %2782
    %2784 = vrot.lane.b32.xlu0 %v2741, 106
    %v2785 = vpop.permute.xlu0 %2784
    %v2786 = vrot.slane %v2783, 2
    %v2787 = vrot.slane %v2785, 2
    %v2790 = vtanh.pop %v2786
    %v2791 = vtanh.pop %v2787
    %v2794 = vrot.slane %v2252, 7
    %v2795 = vrot.slane %v2794, 2
    %v2796 = vrot.slane %v2253, 7
    %v2797 = vrot.slane %v2796, 2
    %v2800 = vmul.f32 %v2764, %v2795
    %v2801 = vmul.f32 %v2779, %v2797
    %v2802 = vmul.f32 %v2764, %v2790
    %v2803 = vmul.f32 %v2779, %v2791
    %2806 = vrot.lane.b32.xlu0 %v2802, 50
    %v2807 = vpop.permute.xlu0 %2806
    %2808 = vrot.lane.b32.xlu0 %v2803, 50
    %v2809 = vpop.permute.xlu0 %2808
    %v2812 = vadd.f32 %v2800, %v2807
    %v2813 = vadd.f32 %v2801, %v2809
    %v2814 = vtanh.pop %v2812
    %v2815 = vtanh.pop %v2813
    %2818 = vrot.lane.b32.xlu0 %v2814, 50
    %v2819 = vpop.permute.xlu0 %2818
    %2820 = vrot.lane.b32.xlu0 %v2815, 50
    %v2821 = vpop.permute.xlu0 %2820
    %v2822 = vrot.slane %v2819, 6
    %v2823 = vrot.slane %v2821, 6
    %v2824 = vsel %vm1163, %v2822, %v2819
    %v2825 = vsel %vm1163, %v2823, %v2821
    %v2828 = vmul.f32 %v2764, %v2824
    %v2829 = vmul.f32 %v2779, %v2825
    %v2832 = vperm.slane %v2828, 0
    %v2833 = vperm.slane %v2828, 2
    %v2834 = vperm.slane %v2829, 0
    %v2835 = vperm.slane %v2829, 2
    %v2836 = vsel %vm1716, %v2834, %v2832
    %v2837 = vsel %vm1716, %v2835, %v2833
    %2838 = vrot.lane.b32.xlu0 %v2836, 28
    %v2839 = vpop.permute.xlu0 %2838
    %2840 = vrot.lane.b32.xlu0 %v2837, 28
    %v2841 = vpop.permute.xlu0 %2840
    %v2842 = vsel %vm1723, %v2839, %v2841
    %v2843 = vsel %vm1163, %v2842, 0
    %2845 = vmatpush.msra.mxu0 0.0
    %2846 = vmatpush.msra.mxu0 0.0
    %2847 = vmatpush.msra.mxu0 0.0
    %2848 = vmatpush.msra.mxu0 0.0
    %2849 = vmatpush.msra.mxu0 0.0
    %2850 = vmatpush.msra.mxu0 0.0
    %2851 = vmatpush.msra.mxu0 0.0
    %2852 = vmatpush.msra.mxu0 0.0
    %2853 = vmatpush.msra.mxu0 0.0
    %v2854 = vand.u32 %v1168, 4294901760
    %2855 = vmatpush.msra.mxu0 %v2854
    %v2856 = vand.u32 %v1159, 4294901760
    %2857 = vmatpush.msra.mxu0 %v2856
    %v2858 = vand.u32 %v1157, 4294901760
    %2859 = vmatpush.msra.mxu0 %v2858
    %v2860 = vand.u32 %v1155, 4294901760
    %2861 = vmatpush.msra.mxu0 %v2860
    %v2862 = vand.u32 %v1153, 4294901760
    %2863 = vmatpush.msra.mxu0 %v2862
    %v2864 = vand.u32 %v1151, 4294901760
    %2865 = vmatpush.msra.mxu0 %v2864
    %v2866 = vand.u32 %v1149, 4294901760
    %2867 = vmatpush.msra.mxu0 %v2866
    %v2868 = vand.u32 %v2843, 4294901760
    %v2869 = vsub.f32 %v2843, %v2868
    %v2870 = vand.u32 %v2869, 4294901760
    %v2871 = vsub.f32 %v2869, %v2870
    %v2872 = vand.u32 %v2871, 4294901760
    %2873 = vmatmul.f32.gmra.mxu0 %v2872
    %v2874 = vpop.f32.mrf.mxu0
    %v2875 = vadd.f32 0.0, %v2874
    %2876 = vdwg.mxu0
    %2877 = vmatpush.msra.mxu0 0.0
    %2878 = vmatpush.msra.mxu0 0.0
    %2879 = vmatpush.msra.mxu0 0.0
    %2880 = vmatpush.msra.mxu0 0.0
    %2881 = vmatpush.msra.mxu0 0.0
    %2882 = vmatpush.msra.mxu0 0.0
    %2883 = vmatpush.msra.mxu0 0.0
    %2884 = vmatpush.msra.mxu0 0.0
    %2885 = vmatpush.msra.mxu0 0.0
    %v2886 = vand.u32 %v1168, 4294901760
    %v2887 = vsub.f32 %v1168, %v2886
    %v2888 = vand.u32 %v2887, 4294901760
    %v2889 = vsub.f32 %v2887, %v2888
    %v2890 = vand.u32 %v2889, 4294901760
    %2891 = vmatpush.msra.mxu0 %v2890
    %v2892 = vand.u32 %v1159, 4294901760
    %v2893 = vsub.f32 %v1159, %v2892
    %v2894 = vand.u32 %v2893, 4294901760
    %v2895 = vsub.f32 %v2893, %v2894
    %v2896 = vand.u32 %v2895, 4294901760
    %2897 = vmatpush.msra.mxu0 %v2896
    %v2898 = vand.u32 %v1157, 4294901760
    %v2899 = vsub.f32 %v1157, %v2898
    %v2900 = vand.u32 %v2899, 4294901760
    %v2901 = vsub.f32 %v2899, %v2900
    %v2902 = vand.u32 %v2901, 4294901760
    %2903 = vmatpush.msra.mxu0 %v2902
    %v2904 = vand.u32 %v1155, 4294901760
    %v2905 = vsub.f32 %v1155, %v2904
    %v2906 = vand.u32 %v2905, 4294901760
    %v2907 = vsub.f32 %v2905, %v2906
    %v2908 = vand.u32 %v2907, 4294901760
    %2909 = vmatpush.msra.mxu0 %v2908
    %v2910 = vand.u32 %v1153, 4294901760
    %v2911 = vsub.f32 %v1153, %v2910
    %v2912 = vand.u32 %v2911, 4294901760
    %v2913 = vsub.f32 %v2911, %v2912
    %v2914 = vand.u32 %v2913, 4294901760
    %2915 = vmatpush.msra.mxu0 %v2914
    %v2916 = vand.u32 %v1151, 4294901760
    %v2917 = vsub.f32 %v1151, %v2916
    %v2918 = vand.u32 %v2917, 4294901760
    %v2919 = vsub.f32 %v2917, %v2918
    %v2920 = vand.u32 %v2919, 4294901760
    %2921 = vmatpush.msra.mxu0 %v2920
    %v2922 = vand.u32 %v1149, 4294901760
    %v2923 = vsub.f32 %v1149, %v2922
    %v2924 = vand.u32 %v2923, 4294901760
    %v2925 = vsub.f32 %v2923, %v2924
    %v2926 = vand.u32 %v2925, 4294901760
    %2927 = vmatpush.msra.mxu0 %v2926
    %v2928 = vand.u32 %v2843, 4294901760
    %2929 = vmatmul.f32.gmra.mxu0 %v2928
    %v2930 = vpop.f32.mrf.mxu0
    %v2931 = vadd.f32 %v2875, %v2930
    %2932 = vdwg.mxu0
    %2933 = vmatpush.msra.mxu0 0.0
    %2934 = vmatpush.msra.mxu0 0.0
    %2935 = vmatpush.msra.mxu0 0.0
    %2936 = vmatpush.msra.mxu0 0.0
    %2937 = vmatpush.msra.mxu0 0.0
    %2938 = vmatpush.msra.mxu0 0.0
    %2939 = vmatpush.msra.mxu0 0.0
    %2940 = vmatpush.msra.mxu0 0.0
    %2941 = vmatpush.msra.mxu0 0.0
    %v2942 = vand.u32 %v1168, 4294901760
    %v2943 = vsub.f32 %v1168, %v2942
    %2944 = vmatpush.msra.mxu0 %v2943
    %v2945 = vand.u32 %v1159, 4294901760
    %v2946 = vsub.f32 %v1159, %v2945
    %2947 = vmatpush.msra.mxu0 %v2946
    %v2948 = vand.u32 %v1157, 4294901760
    %v2949 = vsub.f32 %v1157, %v2948
    %2950 = vmatpush.msra.mxu0 %v2949
    %v2951 = vand.u32 %v1155, 4294901760
    %v2952 = vsub.f32 %v1155, %v2951
    %2953 = vmatpush.msra.mxu0 %v2952
    %v2954 = vand.u32 %v1153, 4294901760
    %v2955 = vsub.f32 %v1153, %v2954
    %2956 = vmatpush.msra.mxu0 %v2955
    %v2957 = vand.u32 %v1151, 4294901760
    %v2958 = vsub.f32 %v1151, %v2957
    %2959 = vmatpush.msra.mxu0 %v2958
    %v2960 = vand.u32 %v1149, 4294901760
    %v2961 = vsub.f32 %v1149, %v2960
    %2962 = vmatpush.msra.mxu0 %v2961
    %v2963 = vand.u32 %v2843, 4294901760
    %v2964 = vsub.f32 %v2843, %v2963
    %2965 = vmatmul.f32.gmra.mxu0 %v2964
    %v2966 = vpop.f32.mrf.mxu0
    %v2967 = vadd.f32 %v2931, %v2966
    %2968 = vdwg.mxu0
    %2969 = vmatpush.msra.mxu0 0.0
    %2970 = vmatpush.msra.mxu0 0.0
    %2971 = vmatpush.msra.mxu0 0.0
    %2972 = vmatpush.msra.mxu0 0.0
    %2973 = vmatpush.msra.mxu0 0.0
    %2974 = vmatpush.msra.mxu0 0.0
    %2975 = vmatpush.msra.mxu0 0.0
    %2976 = vmatpush.msra.mxu0 0.0
    %2977 = vmatpush.msra.mxu0 0.0
    %v2978 = vand.u32 %v1168, 4294901760
    %2979 = vmatpush.msra.mxu0 %v2978
    %v2980 = vand.u32 %v1159, 4294901760
    %2981 = vmatpush.msra.mxu0 %v2980
    %v2982 = vand.u32 %v1157, 4294901760
    %2983 = vmatpush.msra.mxu0 %v2982
    %v2984 = vand.u32 %v1155, 4294901760
    %2985 = vmatpush.msra.mxu0 %v2984
    %v2986 = vand.u32 %v1153, 4294901760
    %2987 = vmatpush.msra.mxu0 %v2986
    %v2988 = vand.u32 %v1151, 4294901760
    %2989 = vmatpush.msra.mxu0 %v2988
    %v2990 = vand.u32 %v1149, 4294901760
    %2991 = vmatpush.msra.mxu0 %v2990
    %v2992 = vand.u32 %v2843, 4294901760
    %v2993 = vsub.f32 %v2843, %v2992
    %v2994 = vand.u32 %v2993, 4294901760
    %2995 = vmatmul.f32.gmra.mxu0 %v2994
    %v2996 = vpop.f32.mrf.mxu0
    %v2997 = vadd.f32 %v2967, %v2996
    %2998 = vdwg.mxu0
    %2999 = vmatpush.msra.mxu0 0.0
    %3000 = vmatpush.msra.mxu0 0.0
    %3001 = vmatpush.msra.mxu0 0.0
    %3002 = vmatpush.msra.mxu0 0.0
    %3003 = vmatpush.msra.mxu0 0.0
    %3004 = vmatpush.msra.mxu0 0.0
    %3005 = vmatpush.msra.mxu0 0.0
    %3006 = vmatpush.msra.mxu0 0.0
    %3007 = vmatpush.msra.mxu0 0.0
    %v3008 = vand.u32 %v1168, 4294901760
    %v3009 = vsub.f32 %v1168, %v3008
    %v3010 = vand.u32 %v3009, 4294901760
    %3011 = vmatpush.msra.mxu0 %v3010
    %v3012 = vand.u32 %v1159, 4294901760
    %v3013 = vsub.f32 %v1159, %v3012
    %v3014 = vand.u32 %v3013, 4294901760
    %3015 = vmatpush.msra.mxu0 %v3014
    %v3016 = vand.u32 %v1157, 4294901760
    %v3017 = vsub.f32 %v1157, %v3016
    %v3018 = vand.u32 %v3017, 4294901760
    %3019 = vmatpush.msra.mxu0 %v3018
    %v3020 = vand.u32 %v1155, 4294901760
    %v3021 = vsub.f32 %v1155, %v3020
    %v3022 = vand.u32 %v3021, 4294901760
    %3023 = vmatpush.msra.mxu0 %v3022
    %v3024 = vand.u32 %v1153, 4294901760
    %v3025 = vsub.f32 %v1153, %v3024
    %v3026 = vand.u32 %v3025, 4294901760
    %3027 = vmatpush.msra.mxu0 %v3026
    %v3028 = vand.u32 %v1151, 4294901760
    %v3029 = vsub.f32 %v1151, %v3028
    %v3030 = vand.u32 %v3029, 4294901760
    %3031 = vmatpush.msra.mxu0 %v3030
    %v3032 = vand.u32 %v1149, 4294901760
    %v3033 = vsub.f32 %v1149, %v3032
    %v3034 = vand.u32 %v3033, 4294901760
    %3035 = vmatpush.msra.mxu0 %v3034
    %v3036 = vand.u32 %v2843, 4294901760
    %3037 = vmatmul.f32.gmra.mxu0 %v3036
    %v3038 = vpop.f32.mrf.mxu0
    %v3039 = vadd.f32 %v2997, %v3038
    %3040 = vdwg.mxu0
    %3041 = vmatpush.msra.mxu0 0.0
    %3042 = vmatpush.msra.mxu0 0.0
    %3043 = vmatpush.msra.mxu0 0.0
    %3044 = vmatpush.msra.mxu0 0.0
    %3045 = vmatpush.msra.mxu0 0.0
    %3046 = vmatpush.msra.mxu0 0.0
    %3047 = vmatpush.msra.mxu0 0.0
    %3048 = vmatpush.msra.mxu0 0.0
    %3049 = vmatpush.msra.mxu0 0.0
    %v3050 = vand.u32 %v1168, 4294901760
    %3051 = vmatpush.msra.mxu0 %v3050
    %v3052 = vand.u32 %v1159, 4294901760
    %3053 = vmatpush.msra.mxu0 %v3052
    %v3054 = vand.u32 %v1157, 4294901760
    %3055 = vmatpush.msra.mxu0 %v3054
    %v3056 = vand.u32 %v1155, 4294901760
    %3057 = vmatpush.msra.mxu0 %v3056
    %v3058 = vand.u32 %v1153, 4294901760
    %3059 = vmatpush.msra.mxu0 %v3058
    %v3060 = vand.u32 %v1151, 4294901760
    %3061 = vmatpush.msra.mxu0 %v3060
    %v3062 = vand.u32 %v1149, 4294901760
    %3063 = vmatpush.msra.mxu0 %v3062
    %v3064 = vand.u32 %v2843, 4294901760
    %3065 = vmatmul.f32.gmra.mxu0 %v3064
    %v3066 = vpop.f32.mrf.mxu0
    %v3067 = vadd.f32 %v3039, %v3066
    %3068 = vdwg.mxu0
    %3069 = vmatpush.msra.mxu0 0.0
    %3070 = vmatpush.msra.mxu0 0.0
    %3071 = vmatpush.msra.mxu0 0.0
    %3072 = vmatpush.msra.mxu0 0.0
    %3073 = vmatpush.msra.mxu0 0.0
    %3074 = vmatpush.msra.mxu0 0.0
    %3075 = vmatpush.msra.mxu0 0.0
    %3076 = vmatpush.msra.mxu0 0.0
    %3077 = vmatpush.msra.mxu0 0.0
    %v3078 = vand.u32 %v1171, 4294901760
    %3079 = vmatpush.msra.mxu0 %v3078
    %v3080 = vand.u32 %v1160, 4294901760
    %3081 = vmatpush.msra.mxu0 %v3080
    %v3082 = vand.u32 %v1158, 4294901760
    %3083 = vmatpush.msra.mxu0 %v3082
    %v3084 = vand.u32 %v1156, 4294901760
    %3085 = vmatpush.msra.mxu0 %v3084
    %v3086 = vand.u32 %v1154, 4294901760
    %3087 = vmatpush.msra.mxu0 %v3086
    %v3088 = vand.u32 %v1152, 4294901760
    %3089 = vmatpush.msra.mxu0 %v3088
    %v3090 = vand.u32 %v1150, 4294901760
    %3091 = vmatpush.msra.mxu0 %v3090
    %v3092 = vand.u32 %v2843, 4294901760
    %v3093 = vsub.f32 %v2843, %v3092
    %v3094 = vand.u32 %v3093, 4294901760
    %v3095 = vsub.f32 %v3093, %v3094
    %v3096 = vand.u32 %v3095, 4294901760
    %3097 = vmatmul.f32.gmra.mxu0 %v3096
    %v3098 = vpop.f32.mrf.mxu0
    %v3099 = vadd.f32 0.0, %v3098
    %3100 = vdwg.mxu0
    %3101 = vmatpush.msra.mxu0 0.0
    %3102 = vmatpush.msra.mxu0 0.0
    %3103 = vmatpush.msra.mxu0 0.0
    %3104 = vmatpush.msra.mxu0 0.0
    %3105 = vmatpush.msra.mxu0 0.0
    %3106 = vmatpush.msra.mxu0 0.0
    %3107 = vmatpush.msra.mxu0 0.0
    %3108 = vmatpush.msra.mxu0 0.0
    %3109 = vmatpush.msra.mxu0 0.0
    %v3110 = vand.u32 %v1171, 4294901760
    %v3111 = vsub.f32 %v1171, %v3110
    %v3112 = vand.u32 %v3111, 4294901760
    %v3113 = vsub.f32 %v3111, %v3112
    %v3114 = vand.u32 %v3113, 4294901760
    %3115 = vmatpush.msra.mxu0 %v3114
    %v3116 = vand.u32 %v1160, 4294901760
    %v3117 = vsub.f32 %v1160, %v3116
    %v3118 = vand.u32 %v3117, 4294901760
    %v3119 = vsub.f32 %v3117, %v3118
    %v3120 = vand.u32 %v3119, 4294901760
    %3121 = vmatpush.msra.mxu0 %v3120
    %v3122 = vand.u32 %v1158, 4294901760
    %v3123 = vsub.f32 %v1158, %v3122
    %v3124 = vand.u32 %v3123, 4294901760
    %v3125 = vsub.f32 %v3123, %v3124
    %v3126 = vand.u32 %v3125, 4294901760
    %3127 = vmatpush.msra.mxu0 %v3126
    %v3128 = vand.u32 %v1156, 4294901760
    %v3129 = vsub.f32 %v1156, %v3128
    %v3130 = vand.u32 %v3129, 4294901760
    %v3131 = vsub.f32 %v3129, %v3130
    %v3132 = vand.u32 %v3131, 4294901760
    %3133 = vmatpush.msra.mxu0 %v3132
    %v3134 = vand.u32 %v1154, 4294901760
    %v3135 = vsub.f32 %v1154, %v3134
    %v3136 = vand.u32 %v3135, 4294901760
    %v3137 = vsub.f32 %v3135, %v3136
    %v3138 = vand.u32 %v3137, 4294901760
    %3139 = vmatpush.msra.mxu0 %v3138
    %v3140 = vand.u32 %v1152, 4294901760
    %v3141 = vsub.f32 %v1152, %v3140
    %v3142 = vand.u32 %v3141, 4294901760
    %v3143 = vsub.f32 %v3141, %v3142
    %v3144 = vand.u32 %v3143, 4294901760
    %3145 = vmatpush.msra.mxu0 %v3144
    %v3146 = vand.u32 %v1150, 4294901760
    %v3147 = vsub.f32 %v1150, %v3146
    %v3148 = vand.u32 %v3147, 4294901760
    %v3149 = vsub.f32 %v3147, %v3148
    %v3150 = vand.u32 %v3149, 4294901760
    %3151 = vmatpush.msra.mxu0 %v3150
    %v3152 = vand.u32 %v2843, 4294901760
    %3153 = vmatmul.f32.gmra.mxu0 %v3152
    %v3154 = vpop.f32.mrf.mxu0
    %v3155 = vadd.f32 %v3099, %v3154
    %3156 = vdwg.mxu0
    %3157 = vmatpush.msra.mxu0 0.0
    %3158 = vmatpush.msra.mxu0 0.0
    %3159 = vmatpush.msra.mxu0 0.0
    %3160 = vmatpush.msra.mxu0 0.0
    %3161 = vmatpush.msra.mxu0 0.0
    %3162 = vmatpush.msra.mxu0 0.0
    %3163 = vmatpush.msra.mxu0 0.0
    %3164 = vmatpush.msra.mxu0 0.0
    %3165 = vmatpush.msra.mxu0 0.0
    %v3166 = vand.u32 %v1171, 4294901760
    %v3167 = vsub.f32 %v1171, %v3166
    %3168 = vmatpush.msra.mxu0 %v3167
    %v3169 = vand.u32 %v1160, 4294901760
    %v3170 = vsub.f32 %v1160, %v3169
    %3171 = vmatpush.msra.mxu0 %v3170
    %v3172 = vand.u32 %v1158, 4294901760
    %v3173 = vsub.f32 %v1158, %v3172
    %3174 = vmatpush.msra.mxu0 %v3173
    %v3175 = vand.u32 %v1156, 4294901760
    %v3176 = vsub.f32 %v1156, %v3175
    %3177 = vmatpush.msra.mxu0 %v3176
    %v3178 = vand.u32 %v1154, 4294901760
    %v3179 = vsub.f32 %v1154, %v3178
    %3180 = vmatpush.msra.mxu0 %v3179
    %v3181 = vand.u32 %v1152, 4294901760
    %v3182 = vsub.f32 %v1152, %v3181
    %3183 = vmatpush.msra.mxu0 %v3182
    %v3184 = vand.u32 %v1150, 4294901760
    %v3185 = vsub.f32 %v1150, %v3184
    %3186 = vmatpush.msra.mxu0 %v3185
    %v3187 = vand.u32 %v2843, 4294901760
    %v3188 = vsub.f32 %v2843, %v3187
    %3189 = vmatmul.f32.gmra.mxu0 %v3188
    %v3190 = vpop.f32.mrf.mxu0
    %v3191 = vadd.f32 %v3155, %v3190
    %3192 = vdwg.mxu0
    %3193 = vmatpush.msra.mxu0 0.0
    %3194 = vmatpush.msra.mxu0 0.0
    %3195 = vmatpush.msra.mxu0 0.0
    %3196 = vmatpush.msra.mxu0 0.0
    %3197 = vmatpush.msra.mxu0 0.0
    %3198 = vmatpush.msra.mxu0 0.0
    %3199 = vmatpush.msra.mxu0 0.0
    %3200 = vmatpush.msra.mxu0 0.0
    %3201 = vmatpush.msra.mxu0 0.0
    %v3202 = vand.u32 %v1171, 4294901760
    %3203 = vmatpush.msra.mxu0 %v3202
    %v3204 = vand.u32 %v1160, 4294901760
    %3205 = vmatpush.msra.mxu0 %v3204
    %v3206 = vand.u32 %v1158, 4294901760
    %3207 = vmatpush.msra.mxu0 %v3206
    %v3208 = vand.u32 %v1156, 4294901760
    %3209 = vmatpush.msra.mxu0 %v3208
    %v3210 = vand.u32 %v1154, 4294901760
    %3211 = vmatpush.msra.mxu0 %v3210
    %v3212 = vand.u32 %v1152, 4294901760
    %3213 = vmatpush.msra.mxu0 %v3212
    %v3214 = vand.u32 %v1150, 4294901760
    %3215 = vmatpush.msra.mxu0 %v3214
    %v3216 = vand.u32 %v2843, 4294901760
    %v3217 = vsub.f32 %v2843, %v3216
    %v3218 = vand.u32 %v3217, 4294901760
    %3219 = vmatmul.f32.gmra.mxu0 %v3218
    %v3220 = vpop.f32.mrf.mxu0
    %v3221 = vadd.f32 %v3191, %v3220
    %3222 = vdwg.mxu0
    %3223 = vmatpush.msra.mxu0 0.0
    %3224 = vmatpush.msra.mxu0 0.0
    %3225 = vmatpush.msra.mxu0 0.0
    %3226 = vmatpush.msra.mxu0 0.0
    %3227 = vmatpush.msra.mxu0 0.0
    %3228 = vmatpush.msra.mxu0 0.0
    %3229 = vmatpush.msra.mxu0 0.0
    %3230 = vmatpush.msra.mxu0 0.0
    %3231 = vmatpush.msra.mxu0 0.0
    %v3232 = vand.u32 %v1171, 4294901760
    %v3233 = vsub.f32 %v1171, %v3232
    %v3234 = vand.u32 %v3233, 4294901760
    %3235 = vmatpush.msra.mxu0 %v3234
    %v3236 = vand.u32 %v1160, 4294901760
    %v3237 = vsub.f32 %v1160, %v3236
    %v3238 = vand.u32 %v3237, 4294901760
    %3239 = vmatpush.msra.mxu0 %v3238
    %v3240 = vand.u32 %v1158, 4294901760
    %v3241 = vsub.f32 %v1158, %v3240
    %v3242 = vand.u32 %v3241, 4294901760
    %3243 = vmatpush.msra.mxu0 %v3242
    %v3244 = vand.u32 %v1156, 4294901760
    %v3245 = vsub.f32 %v1156, %v3244
    %v3246 = vand.u32 %v3245, 4294901760
    %3247 = vmatpush.msra.mxu0 %v3246
    %v3248 = vand.u32 %v1154, 4294901760
    %v3249 = vsub.f32 %v1154, %v3248
    %v3250 = vand.u32 %v3249, 4294901760
    %3251 = vmatpush.msra.mxu0 %v3250
    %v3252 = vand.u32 %v1152, 4294901760
    %v3253 = vsub.f32 %v1152, %v3252
    %v3254 = vand.u32 %v3253, 4294901760
    %3255 = vmatpush.msra.mxu0 %v3254
    %v3256 = vand.u32 %v1150, 4294901760
    %v3257 = vsub.f32 %v1150, %v3256
    %v3258 = vand.u32 %v3257, 4294901760
    %3259 = vmatpush.msra.mxu0 %v3258
    %v3260 = vand.u32 %v2843, 4294901760
    %3261 = vmatmul.f32.gmra.mxu0 %v3260
    %v3262 = vpop.f32.mrf.mxu0
    %v3263 = vadd.f32 %v3221, %v3262
    %3264 = vdwg.mxu0
    %3265 = vmatpush.msra.mxu0 0.0
    %3266 = vmatpush.msra.mxu0 0.0
    %3267 = vmatpush.msra.mxu0 0.0
    %3268 = vmatpush.msra.mxu0 0.0
    %3269 = vmatpush.msra.mxu0 0.0
    %3270 = vmatpush.msra.mxu0 0.0
    %3271 = vmatpush.msra.mxu0 0.0
    %3272 = vmatpush.msra.mxu0 0.0
    %3273 = vmatpush.msra.mxu0 0.0
    %v3274 = vand.u32 %v1171, 4294901760
    %3275 = vmatpush.msra.mxu0 %v3274
    %v3276 = vand.u32 %v1160, 4294901760
    %3277 = vmatpush.msra.mxu0 %v3276
    %v3278 = vand.u32 %v1158, 4294901760
    %3279 = vmatpush.msra.mxu0 %v3278
    %v3280 = vand.u32 %v1156, 4294901760
    %3281 = vmatpush.msra.mxu0 %v3280
    %v3282 = vand.u32 %v1154, 4294901760
    %3283 = vmatpush.msra.mxu0 %v3282
    %v3284 = vand.u32 %v1152, 4294901760
    %3285 = vmatpush.msra.mxu0 %v3284
    %v3286 = vand.u32 %v1150, 4294901760
    %3287 = vmatpush.msra.mxu0 %v3286
    %v3288 = vand.u32 %v2843, 4294901760
    %3289 = vmatmul.f32.gmra.mxu0 %v3288
    %v3290 = vpop.f32.mrf.mxu0
    %v3291 = vadd.f32 %v3263, %v3290
    %3292 = vdwg.mxu0
    %v3295 = vrot.slane %v3291, 6
    %v3296 = vsel %vm1107, %v3067, %v3295
    %v3297 = vrot.slane %v3296, 7
    %v3300 = vadd.f32 %v1111, %v3297
    %v3301 = vadd.f32 %v1125, %v3296
    %v3302 = vxor.u32 %v3300, 2147483648
    %v3303 = vxor.u32 %v3301, 2147483648
    %v3304 = vmul.f32 %v3302, 1.442695
    %v3305 = vpow.pop %v3304
    %v3306 = vmul.f32 %v3303, 1.442695
    %v3307 = vpow.pop %v3306
    %v3308 = vadd.f32 %v3305, 1.0
    %v3309 = vadd.f32 %v3307, 1.0
    %v3310 = vrcp.pop %v3308
    %v3311 = vmul.f32 %v3308, %v3310
    %v3312 = vsub.f32 1.0, %v3311
    %v3313 = vmul.f32 %v3310, %v3312
    %v3314 = vadd.f32 %v3310, %v3313
    %vm3315 = vweird.f32 %v3308
    %vm3316 = vweird.f32 %v3310
    %vm3317 = vmor %vm3315, %vm3316
    %v3318 = vsel %vm3317, %v3310, %v3314
    %v3319 = vand.u32 2147483647, %v3308
    %vm3320 = vcmp.eq.f32.partialorder %v3319, 8.507059e+37
    %v3321 = vand.u32 %v3308, 2147483648
    %v3322 = vor.u32 1.1754944e-38, %v3321
    %v3323 = vsel %vm3320, %v3322, %v3318
    %v3324 = vmul.f32 1.0, %v3323
    %v3325 = vrcp.pop %v3309
    %v3326 = vmul.f32 %v3309, %v3325
    %v3327 = vsub.f32 1.0, %v3326
    %v3328 = vmul.f32 %v3325, %v3327
    %v3329 = vadd.f32 %v3325, %v3328
    %vm3330 = vweird.f32 %v3309
    %vm3331 = vweird.f32 %v3325
    %vm3332 = vmor %vm3330, %vm3331
    %v3333 = vsel %vm3332, %v3325, %v3329
    %v3334 = vand.u32 2147483647, %v3309
    %vm3335 = vcmp.eq.f32.partialorder %v3334, 8.507059e+37
    %v3336 = vand.u32 %v3309, 2147483648
    %v3337 = vor.u32 1.1754944e-38, %v3336
    %v3338 = vsel %vm3335, %v3337, %v3333
    %v3339 = vmul.f32 1.0, %v3338
    %3342 = vrot.lane.b32.xlu0 %v3300, 106
    %v3343 = vpop.permute.xlu0 %3342
    %3344 = vrot.lane.b32.xlu0 %v3301, 106
    %v3345 = vpop.permute.xlu0 %3344
    %v3346 = vrot.slane %v3343, 2
    %v3347 = vrot.slane %v3345, 2
    %v3350 = vtanh.pop %v3346
    %v3351 = vtanh.pop %v3347
    %v3354 = vrot.slane %v2812, 7
    %v3355 = vrot.slane %v2813, 7
    %v3358 = vmul.f32 %v3324, %v3354
    %v3359 = vmul.f32 %v3339, %v3355
    %v3360 = vmul.f32 %v3324, %v3350
    %v3361 = vmul.f32 %v3339, %v3351
    %3364 = vrot.lane.b32.xlu0 %v3360, 50
    %v3365 = vpop.permute.xlu0 %3364
    %3366 = vrot.lane.b32.xlu0 %v3361, 50
    %v3367 = vpop.permute.xlu0 %3366
    %v3370 = vadd.f32 %v3358, %v3365
    %v3371 = vadd.f32 %v3359, %v3367
    %v3372 = vtanh.pop %v3370
    %v3373 = vtanh.pop %v3371
    %3376 = vrot.lane.b32.xlu0 %v3372, 50
    %v3377 = vpop.permute.xlu0 %3376
    %3378 = vrot.lane.b32.xlu0 %v3373, 50
    %v3379 = vpop.permute.xlu0 %3378
    %v3380 = vrot.slane %v3377, 6
    %v3381 = vrot.slane %v3379, 6
    %v3382 = vsel %vm1163, %v3380, %v3377
    %v3383 = vsel %vm1163, %v3381, %v3379
    %v3386 = vmul.f32 %v3324, %v3382
    %v3387 = vmul.f32 %v3339, %v3383
    %v3390 = vperm.slane %v3386, 1
    %v3391 = vperm.slane %v3386, 3
    %v3392 = vperm.slane %v3387, 1
    %v3393 = vperm.slane %v3387, 3
    %v3394 = vsel %vm1716, %v3392, %v3390
    %v3395 = vsel %vm1716, %v3393, %v3391
    %3396 = vrot.lane.b32.xlu0 %v3394, 28
    %v3397 = vpop.permute.xlu0 %3396
    %3398 = vrot.lane.b32.xlu0 %v3395, 28
    %v3399 = vpop.permute.xlu0 %3398
    %v3400 = vsel %vm1723, %v3397, %v3399
    %v3401 = vsel %vm1163, %v3400, 0
    %3403 = vmatpush.msra.mxu0 0.0
    %3404 = vmatpush.msra.mxu0 0.0
    %3405 = vmatpush.msra.mxu0 0.0
    %3406 = vmatpush.msra.mxu0 0.0
    %3407 = vmatpush.msra.mxu0 0.0
    %3408 = vmatpush.msra.mxu0 0.0
    %3409 = vmatpush.msra.mxu0 0.0
    %3410 = vmatpush.msra.mxu0 0.0
    %3411 = vmatpush.msra.mxu0 0.0
    %v3412 = vand.u32 %v1168, 4294901760
    %3413 = vmatpush.msra.mxu0 %v3412
    %v3414 = vand.u32 %v1159, 4294901760
    %3415 = vmatpush.msra.mxu0 %v3414
    %v3416 = vand.u32 %v1157, 4294901760
    %3417 = vmatpush.msra.mxu0 %v3416
    %v3418 = vand.u32 %v1155, 4294901760
    %3419 = vmatpush.msra.mxu0 %v3418
    %v3420 = vand.u32 %v1153, 4294901760
    %3421 = vmatpush.msra.mxu0 %v3420
    %v3422 = vand.u32 %v1151, 4294901760
    %3423 = vmatpush.msra.mxu0 %v3422
    %v3424 = vand.u32 %v1149, 4294901760
    %3425 = vmatpush.msra.mxu0 %v3424
    %v3426 = vand.u32 %v3401, 4294901760
    %v3427 = vsub.f32 %v3401, %v3426
    %v3428 = vand.u32 %v3427, 4294901760
    %v3429 = vsub.f32 %v3427, %v3428
    %v3430 = vand.u32 %v3429, 4294901760
    %3431 = vmatmul.f32.gmra.mxu0 %v3430
    %v3432 = vpop.f32.mrf.mxu0
    %v3433 = vadd.f32 0.0, %v3432
    %3434 = vdwg.mxu0
    %3435 = vmatpush.msra.mxu0 0.0
    %3436 = vmatpush.msra.mxu0 0.0
    %3437 = vmatpush.msra.mxu0 0.0
    %3438 = vmatpush.msra.mxu0 0.0
    %3439 = vmatpush.msra.mxu0 0.0
    %3440 = vmatpush.msra.mxu0 0.0
    %3441 = vmatpush.msra.mxu0 0.0
    %3442 = vmatpush.msra.mxu0 0.0
    %3443 = vmatpush.msra.mxu0 0.0
    %v3444 = vand.u32 %v1168, 4294901760
    %v3445 = vsub.f32 %v1168, %v3444
    %v3446 = vand.u32 %v3445, 4294901760
    %v3447 = vsub.f32 %v3445, %v3446
    %v3448 = vand.u32 %v3447, 4294901760
    %3449 = vmatpush.msra.mxu0 %v3448
    %v3450 = vand.u32 %v1159, 4294901760
    %v3451 = vsub.f32 %v1159, %v3450
    %v3452 = vand.u32 %v3451, 4294901760
    %v3453 = vsub.f32 %v3451, %v3452
    %v3454 = vand.u32 %v3453, 4294901760
    %3455 = vmatpush.msra.mxu0 %v3454
    %v3456 = vand.u32 %v1157, 4294901760
    %v3457 = vsub.f32 %v1157, %v3456
    %v3458 = vand.u32 %v3457, 4294901760
    %v3459 = vsub.f32 %v3457, %v3458
    %v3460 = vand.u32 %v3459, 4294901760
    %3461 = vmatpush.msra.mxu0 %v3460
    %v3462 = vand.u32 %v1155, 4294901760
    %v3463 = vsub.f32 %v1155, %v3462
    %v3464 = vand.u32 %v3463, 4294901760
    %v3465 = vsub.f32 %v3463, %v3464
    %v3466 = vand.u32 %v3465, 4294901760
    %3467 = vmatpush.msra.mxu0 %v3466
    %v3468 = vand.u32 %v1153, 4294901760
    %v3469 = vsub.f32 %v1153, %v3468
    %v3470 = vand.u32 %v3469, 4294901760
    %v3471 = vsub.f32 %v3469, %v3470
    %v3472 = vand.u32 %v3471, 4294901760
    %3473 = vmatpush.msra.mxu0 %v3472
    %v3474 = vand.u32 %v1151, 4294901760
    %v3475 = vsub.f32 %v1151, %v3474
    %v3476 = vand.u32 %v3475, 4294901760
    %v3477 = vsub.f32 %v3475, %v3476
    %v3478 = vand.u32 %v3477, 4294901760
    %3479 = vmatpush.msra.mxu0 %v3478
    %v3480 = vand.u32 %v1149, 4294901760
    %v3481 = vsub.f32 %v1149, %v3480
    %v3482 = vand.u32 %v3481, 4294901760
    %v3483 = vsub.f32 %v3481, %v3482
    %v3484 = vand.u32 %v3483, 4294901760
    %3485 = vmatpush.msra.mxu0 %v3484
    %v3486 = vand.u32 %v3401, 4294901760
    %3487 = vmatmul.f32.gmra.mxu0 %v3486
    %v3488 = vpop.f32.mrf.mxu0
    %v3489 = vadd.f32 %v3433, %v3488
    %3490 = vdwg.mxu0
    %3491 = vmatpush.msra.mxu0 0.0
    %3492 = vmatpush.msra.mxu0 0.0
    %3493 = vmatpush.msra.mxu0 0.0
    %3494 = vmatpush.msra.mxu0 0.0
    %3495 = vmatpush.msra.mxu0 0.0
    %3496 = vmatpush.msra.mxu0 0.0
    %3497 = vmatpush.msra.mxu0 0.0
    %3498 = vmatpush.msra.mxu0 0.0
    %3499 = vmatpush.msra.mxu0 0.0
    %v3500 = vand.u32 %v1168, 4294901760
    %v3501 = vsub.f32 %v1168, %v3500
    %3502 = vmatpush.msra.mxu0 %v3501
    %v3503 = vand.u32 %v1159, 4294901760
    %v3504 = vsub.f32 %v1159, %v3503
    %3505 = vmatpush.msra.mxu0 %v3504
    %v3506 = vand.u32 %v1157, 4294901760
    %v3507 = vsub.f32 %v1157, %v3506
    %3508 = vmatpush.msra.mxu0 %v3507
    %v3509 = vand.u32 %v1155, 4294901760
    %v3510 = vsub.f32 %v1155, %v3509
    %3511 = vmatpush.msra.mxu0 %v3510
    %v3512 = vand.u32 %v1153, 4294901760
    %v3513 = vsub.f32 %v1153, %v3512
    %3514 = vmatpush.msra.mxu0 %v3513
    %v3515 = vand.u32 %v1151, 4294901760
    %v3516 = vsub.f32 %v1151, %v3515
    %3517 = vmatpush.msra.mxu0 %v3516
    %v3518 = vand.u32 %v1149, 4294901760
    %v3519 = vsub.f32 %v1149, %v3518
    %3520 = vmatpush.msra.mxu0 %v3519
    %v3521 = vand.u32 %v3401, 4294901760
    %v3522 = vsub.f32 %v3401, %v3521
    %3523 = vmatmul.f32.gmra.mxu0 %v3522
    %v3524 = vpop.f32.mrf.mxu0
    %v3525 = vadd.f32 %v3489, %v3524
    %3526 = vdwg.mxu0
    %3527 = vmatpush.msra.mxu0 0.0
    %3528 = vmatpush.msra.mxu0 0.0
    %3529 = vmatpush.msra.mxu0 0.0
    %3530 = vmatpush.msra.mxu0 0.0
    %3531 = vmatpush.msra.mxu0 0.0
    %3532 = vmatpush.msra.mxu0 0.0
    %3533 = vmatpush.msra.mxu0 0.0
    %3534 = vmatpush.msra.mxu0 0.0
    %3535 = vmatpush.msra.mxu0 0.0
    %v3536 = vand.u32 %v1168, 4294901760
    %3537 = vmatpush.msra.mxu0 %v3536
    %v3538 = vand.u32 %v1159, 4294901760
    %3539 = vmatpush.msra.mxu0 %v3538
    %v3540 = vand.u32 %v1157, 4294901760
    %3541 = vmatpush.msra.mxu0 %v3540
    %v3542 = vand.u32 %v1155, 4294901760
    %3543 = vmatpush.msra.mxu0 %v3542
    %v3544 = vand.u32 %v1153, 4294901760
    %3545 = vmatpush.msra.mxu0 %v3544
    %v3546 = vand.u32 %v1151, 4294901760
    %3547 = vmatpush.msra.mxu0 %v3546
    %v3548 = vand.u32 %v1149, 4294901760
    %3549 = vmatpush.msra.mxu0 %v3548
    %v3550 = vand.u32 %v3401, 4294901760
    %v3551 = vsub.f32 %v3401, %v3550
    %v3552 = vand.u32 %v3551, 4294901760
    %3553 = vmatmul.f32.gmra.mxu0 %v3552
    %v3554 = vpop.f32.mrf.mxu0
    %v3555 = vadd.f32 %v3525, %v3554
    %3556 = vdwg.mxu0
    %3557 = vmatpush.msra.mxu0 0.0
    %3558 = vmatpush.msra.mxu0 0.0
    %3559 = vmatpush.msra.mxu0 0.0
    %3560 = vmatpush.msra.mxu0 0.0
    %3561 = vmatpush.msra.mxu0 0.0
    %3562 = vmatpush.msra.mxu0 0.0
    %3563 = vmatpush.msra.mxu0 0.0
    %3564 = vmatpush.msra.mxu0 0.0
    %3565 = vmatpush.msra.mxu0 0.0
    %v3566 = vand.u32 %v1168, 4294901760
    %v3567 = vsub.f32 %v1168, %v3566
    %v3568 = vand.u32 %v3567, 4294901760
    %3569 = vmatpush.msra.mxu0 %v3568
    %v3570 = vand.u32 %v1159, 4294901760
    %v3571 = vsub.f32 %v1159, %v3570
    %v3572 = vand.u32 %v3571, 4294901760
    %3573 = vmatpush.msra.mxu0 %v3572
    %v3574 = vand.u32 %v1157, 4294901760
    %v3575 = vsub.f32 %v1157, %v3574
    %v3576 = vand.u32 %v3575, 4294901760
    %3577 = vmatpush.msra.mxu0 %v3576
    %v3578 = vand.u32 %v1155, 4294901760
    %v3579 = vsub.f32 %v1155, %v3578
    %v3580 = vand.u32 %v3579, 4294901760
    %3581 = vmatpush.msra.mxu0 %v3580
    %v3582 = vand.u32 %v1153, 4294901760
    %v3583 = vsub.f32 %v1153, %v3582
    %v3584 = vand.u32 %v3583, 4294901760
    %3585 = vmatpush.msra.mxu0 %v3584
    %v3586 = vand.u32 %v1151, 4294901760
    %v3587 = vsub.f32 %v1151, %v3586
    %v3588 = vand.u32 %v3587, 4294901760
    %3589 = vmatpush.msra.mxu0 %v3588
    %v3590 = vand.u32 %v1149, 4294901760
    %v3591 = vsub.f32 %v1149, %v3590
    %v3592 = vand.u32 %v3591, 4294901760
    %3593 = vmatpush.msra.mxu0 %v3592
    %v3594 = vand.u32 %v3401, 4294901760
    %3595 = vmatmul.f32.gmra.mxu0 %v3594
    %v3596 = vpop.f32.mrf.mxu0
    %v3597 = vadd.f32 %v3555, %v3596
    %3598 = vdwg.mxu0
    %3599 = vmatpush.msra.mxu0 0.0
    %3600 = vmatpush.msra.mxu0 0.0
    %3601 = vmatpush.msra.mxu0 0.0
    %3602 = vmatpush.msra.mxu0 0.0
    %3603 = vmatpush.msra.mxu0 0.0
    %3604 = vmatpush.msra.mxu0 0.0
    %3605 = vmatpush.msra.mxu0 0.0
    %3606 = vmatpush.msra.mxu0 0.0
    %3607 = vmatpush.msra.mxu0 0.0
    %v3608 = vand.u32 %v1168, 4294901760
    %3609 = vmatpush.msra.mxu0 %v3608
    %v3610 = vand.u32 %v1159, 4294901760
    %3611 = vmatpush.msra.mxu0 %v3610
    %v3612 = vand.u32 %v1157, 4294901760
    %3613 = vmatpush.msra.mxu0 %v3612
    %v3614 = vand.u32 %v1155, 4294901760
    %3615 = vmatpush.msra.mxu0 %v3614
    %v3616 = vand.u32 %v1153, 4294901760
    %3617 = vmatpush.msra.mxu0 %v3616
    %v3618 = vand.u32 %v1151, 4294901760
    %3619 = vmatpush.msra.mxu0 %v3618
    %v3620 = vand.u32 %v1149, 4294901760
    %3621 = vmatpush.msra.mxu0 %v3620
    %v3622 = vand.u32 %v3401, 4294901760
    %3623 = vmatmul.f32.gmra.mxu0 %v3622
    %v3624 = vpop.f32.mrf.mxu0
    %v3625 = vadd.f32 %v3597, %v3624
    %3626 = vdwg.mxu0
    %3627 = vmatpush.msra.mxu0 0.0
    %3628 = vmatpush.msra.mxu0 0.0
    %3629 = vmatpush.msra.mxu0 0.0
    %3630 = vmatpush.msra.mxu0 0.0
    %3631 = vmatpush.msra.mxu0 0.0
    %3632 = vmatpush.msra.mxu0 0.0
    %3633 = vmatpush.msra.mxu0 0.0
    %3634 = vmatpush.msra.mxu0 0.0
    %3635 = vmatpush.msra.mxu0 0.0
    %v3636 = vand.u32 %v1171, 4294901760
    %3637 = vmatpush.msra.mxu0 %v3636
    %v3638 = vand.u32 %v1160, 4294901760
    %3639 = vmatpush.msra.mxu0 %v3638
    %v3640 = vand.u32 %v1158, 4294901760
    %3641 = vmatpush.msra.mxu0 %v3640
    %v3642 = vand.u32 %v1156, 4294901760
    %3643 = vmatpush.msra.mxu0 %v3642
    %v3644 = vand.u32 %v1154, 4294901760
    %3645 = vmatpush.msra.mxu0 %v3644
    %v3646 = vand.u32 %v1152, 4294901760
    %3647 = vmatpush.msra.mxu0 %v3646
    %v3648 = vand.u32 %v1150, 4294901760
    %3649 = vmatpush.msra.mxu0 %v3648
    %v3650 = vand.u32 %v3401, 4294901760
    %v3651 = vsub.f32 %v3401, %v3650
    %v3652 = vand.u32 %v3651, 4294901760
    %v3653 = vsub.f32 %v3651, %v3652
    %v3654 = vand.u32 %v3653, 4294901760
    %3655 = vmatmul.f32.gmra.mxu0 %v3654
    %v3656 = vpop.f32.mrf.mxu0
    %v3657 = vadd.f32 0.0, %v3656
    %3658 = vdwg.mxu0
    %3659 = vmatpush.msra.mxu0 0.0
    %3660 = vmatpush.msra.mxu0 0.0
    %3661 = vmatpush.msra.mxu0 0.0
    %3662 = vmatpush.msra.mxu0 0.0
    %3663 = vmatpush.msra.mxu0 0.0
    %3664 = vmatpush.msra.mxu0 0.0
    %3665 = vmatpush.msra.mxu0 0.0
    %3666 = vmatpush.msra.mxu0 0.0
    %3667 = vmatpush.msra.mxu0 0.0
    %v3668 = vand.u32 %v1171, 4294901760
    %v3669 = vsub.f32 %v1171, %v3668
    %v3670 = vand.u32 %v3669, 4294901760
    %v3671 = vsub.f32 %v3669, %v3670
    %v3672 = vand.u32 %v3671, 4294901760
    %3673 = vmatpush.msra.mxu0 %v3672
    %v3674 = vand.u32 %v1160, 4294901760
    %v3675 = vsub.f32 %v1160, %v3674
    %v3676 = vand.u32 %v3675, 4294901760
    %v3677 = vsub.f32 %v3675, %v3676
    %v3678 = vand.u32 %v3677, 4294901760
    %3679 = vmatpush.msra.mxu0 %v3678
    %v3680 = vand.u32 %v1158, 4294901760
    %v3681 = vsub.f32 %v1158, %v3680
    %v3682 = vand.u32 %v3681, 4294901760
    %v3683 = vsub.f32 %v3681, %v3682
    %v3684 = vand.u32 %v3683, 4294901760
    %3685 = vmatpush.msra.mxu0 %v3684
    %v3686 = vand.u32 %v1156, 4294901760
    %v3687 = vsub.f32 %v1156, %v3686
    %v3688 = vand.u32 %v3687, 4294901760
    %v3689 = vsub.f32 %v3687, %v3688
    %v3690 = vand.u32 %v3689, 4294901760
    %3691 = vmatpush.msra.mxu0 %v3690
    %v3692 = vand.u32 %v1154, 4294901760
    %v3693 = vsub.f32 %v1154, %v3692
    %v3694 = vand.u32 %v3693, 4294901760
    %v3695 = vsub.f32 %v3693, %v3694
    %v3696 = vand.u32 %v3695, 4294901760
    %3697 = vmatpush.msra.mxu0 %v3696
    %v3698 = vand.u32 %v1152, 4294901760
    %v3699 = vsub.f32 %v1152, %v3698
    %v3700 = vand.u32 %v3699, 4294901760
    %v3701 = vsub.f32 %v3699, %v3700
    %v3702 = vand.u32 %v3701, 4294901760
    %3703 = vmatpush.msra.mxu0 %v3702
    %v3704 = vand.u32 %v1150, 4294901760
    %v3705 = vsub.f32 %v1150, %v3704
    %v3706 = vand.u32 %v3705, 4294901760
    %v3707 = vsub.f32 %v3705, %v3706
    %v3708 = vand.u32 %v3707, 4294901760
    %3709 = vmatpush.msra.mxu0 %v3708
    %v3710 = vand.u32 %v3401, 4294901760
    %3711 = vmatmul.f32.gmra.mxu0 %v3710
    %v3712 = vpop.f32.mrf.mxu0
    %v3713 = vadd.f32 %v3657, %v3712
    %3714 = vdwg.mxu0
    %3715 = vmatpush.msra.mxu0 0.0
    %3716 = vmatpush.msra.mxu0 0.0
    %3717 = vmatpush.msra.mxu0 0.0
    %3718 = vmatpush.msra.mxu0 0.0
    %3719 = vmatpush.msra.mxu0 0.0
    %3720 = vmatpush.msra.mxu0 0.0
    %3721 = vmatpush.msra.mxu0 0.0
    %3722 = vmatpush.msra.mxu0 0.0
    %3723 = vmatpush.msra.mxu0 0.0
    %v3724 = vand.u32 %v1171, 4294901760
    %v3725 = vsub.f32 %v1171, %v3724
    %3726 = vmatpush.msra.mxu0 %v3725
    %v3727 = vand.u32 %v1160, 4294901760
    %v3728 = vsub.f32 %v1160, %v3727
    %3729 = vmatpush.msra.mxu0 %v3728
    %v3730 = vand.u32 %v1158, 4294901760
    %v3731 = vsub.f32 %v1158, %v3730
    %3732 = vmatpush.msra.mxu0 %v3731
    %v3733 = vand.u32 %v1156, 4294901760
    %v3734 = vsub.f32 %v1156, %v3733
    %3735 = vmatpush.msra.mxu0 %v3734
    %v3736 = vand.u32 %v1154, 4294901760
    %v3737 = vsub.f32 %v1154, %v3736
    %3738 = vmatpush.msra.mxu0 %v3737
    %v3739 = vand.u32 %v1152, 4294901760
    %v3740 = vsub.f32 %v1152, %v3739
    %3741 = vmatpush.msra.mxu0 %v3740
    %v3742 = vand.u32 %v1150, 4294901760
    %v3743 = vsub.f32 %v1150, %v3742
    %3744 = vmatpush.msra.mxu0 %v3743
    %v3745 = vand.u32 %v3401, 4294901760
    %v3746 = vsub.f32 %v3401, %v3745
    %3747 = vmatmul.f32.gmra.mxu0 %v3746
    %v3748 = vpop.f32.mrf.mxu0
    %v3749 = vadd.f32 %v3713, %v3748
    %3750 = vdwg.mxu0
    %3751 = vmatpush.msra.mxu0 0.0
    %3752 = vmatpush.msra.mxu0 0.0
    %3753 = vmatpush.msra.mxu0 0.0
    %3754 = vmatpush.msra.mxu0 0.0
    %3755 = vmatpush.msra.mxu0 0.0
    %3756 = vmatpush.msra.mxu0 0.0
    %3757 = vmatpush.msra.mxu0 0.0
    %3758 = vmatpush.msra.mxu0 0.0
    %3759 = vmatpush.msra.mxu0 0.0
    %v3760 = vand.u32 %v1171, 4294901760
    %3761 = vmatpush.msra.mxu0 %v3760
    %v3762 = vand.u32 %v1160, 4294901760
    %3763 = vmatpush.msra.mxu0 %v3762
    %v3764 = vand.u32 %v1158, 4294901760
    %3765 = vmatpush.msra.mxu0 %v3764
    %v3766 = vand.u32 %v1156, 4294901760
    %3767 = vmatpush.msra.mxu0 %v3766
    %v3768 = vand.u32 %v1154, 4294901760
    %3769 = vmatpush.msra.mxu0 %v3768
    %v3770 = vand.u32 %v1152, 4294901760
    %3771 = vmatpush.msra.mxu0 %v3770
    %v3772 = vand.u32 %v1150, 4294901760
    %3773 = vmatpush.msra.mxu0 %v3772
    %v3774 = vand.u32 %v3401, 4294901760
    %v3775 = vsub.f32 %v3401, %v3774
    %v3776 = vand.u32 %v3775, 4294901760
    %3777 = vmatmul.f32.gmra.mxu0 %v3776
    %v3778 = vpop.f32.mrf.mxu0
    %v3779 = vadd.f32 %v3749, %v3778
    %3780 = vdwg.mxu0
    %3781 = vmatpush.msra.mxu0 0.0
    %3782 = vmatpush.msra.mxu0 0.0
    %3783 = vmatpush.msra.mxu0 0.0
    %3784 = vmatpush.msra.mxu0 0.0
    %3785 = vmatpush.msra.mxu0 0.0
    %3786 = vmatpush.msra.mxu0 0.0
    %3787 = vmatpush.msra.mxu0 0.0
    %3788 = vmatpush.msra.mxu0 0.0
    %3789 = vmatpush.msra.mxu0 0.0
    %v3790 = vand.u32 %v1171, 4294901760
    %v3791 = vsub.f32 %v1171, %v3790
    %v3792 = vand.u32 %v3791, 4294901760
    %3793 = vmatpush.msra.mxu0 %v3792
    %v3794 = vand.u32 %v1160, 4294901760
    %v3795 = vsub.f32 %v1160, %v3794
    %v3796 = vand.u32 %v3795, 4294901760
    %3797 = vmatpush.msra.mxu0 %v3796
    %v3798 = vand.u32 %v1158, 4294901760
    %v3799 = vsub.f32 %v1158, %v3798
    %v3800 = vand.u32 %v3799, 4294901760
    %3801 = vmatpush.msra.mxu0 %v3800
    %v3802 = vand.u32 %v1156, 4294901760
    %v3803 = vsub.f32 %v1156, %v3802
    %v3804 = vand.u32 %v3803, 4294901760
    %3805 = vmatpush.msra.mxu0 %v3804
    %v3806 = vand.u32 %v1154, 4294901760
    %v3807 = vsub.f32 %v1154, %v3806
    %v3808 = vand.u32 %v3807, 4294901760
    %3809 = vmatpush.msra.mxu0 %v3808
    %v3810 = vand.u32 %v1152, 4294901760
    %v3811 = vsub.f32 %v1152, %v3810
    %v3812 = vand.u32 %v3811, 4294901760
    %3813 = vmatpush.msra.mxu0 %v3812
    %v3814 = vand.u32 %v1150, 4294901760
    %v3815 = vsub.f32 %v1150, %v3814
    %v3816 = vand.u32 %v3815, 4294901760
    %3817 = vmatpush.msra.mxu0 %v3816
    %v3818 = vand.u32 %v3401, 4294901760
    %3819 = vmatmul.f32.gmra.mxu0 %v3818
    %v3820 = vpop.f32.mrf.mxu0
    %v3821 = vadd.f32 %v3779, %v3820
    %3822 = vdwg.mxu0
    %3823 = vmatpush.msra.mxu0 0.0
    %3824 = vmatpush.msra.mxu0 0.0
    %3825 = vmatpush.msra.mxu0 0.0
    %3826 = vmatpush.msra.mxu0 0.0
    %3827 = vmatpush.msra.mxu0 0.0
    %3828 = vmatpush.msra.mxu0 0.0
    %3829 = vmatpush.msra.mxu0 0.0
    %3830 = vmatpush.msra.mxu0 0.0
    %3831 = vmatpush.msra.mxu0 0.0
    %v3832 = vand.u32 %v1171, 4294901760
    %3833 = vmatpush.msra.mxu0 %v3832
    %v3834 = vand.u32 %v1160, 4294901760
    %3835 = vmatpush.msra.mxu0 %v3834
    %v3836 = vand.u32 %v1158, 4294901760
    %3837 = vmatpush.msra.mxu0 %v3836
    %v3838 = vand.u32 %v1156, 4294901760
    %3839 = vmatpush.msra.mxu0 %v3838
    %v3840 = vand.u32 %v1154, 4294901760
    %3841 = vmatpush.msra.mxu0 %v3840
    %v3842 = vand.u32 %v1152, 4294901760
    %3843 = vmatpush.msra.mxu0 %v3842
    %v3844 = vand.u32 %v1150, 4294901760
    %3845 = vmatpush.msra.mxu0 %v3844
    %v3846 = vand.u32 %v3401, 4294901760
    %3847 = vmatmul.f32.gmra.mxu0 %v3846
    %v3848 = vpop.f32.mrf.mxu0
    %v3849 = vadd.f32 %v3821, %v3848
    %3850 = vdwg.mxu0
    %v3853 = vrot.slane %v3849, 6
    %v3854 = vsel %vm1107, %v3625, %v3853
    %v3855 = vrot.slane %v3854, 1
    %v3858 = vadd.f32 %v1114, %v3854
    %v3859 = vadd.f32 %v1127, %v3855
    %v3860 = vxor.u32 %v3858, 2147483648
    %v3861 = vxor.u32 %v3859, 2147483648
    %v3862 = vmul.f32 %v3860, 1.442695
    %v3863 = vpow.pop %v3862
    %v3864 = vmul.f32 %v3861, 1.442695
    %v3865 = vpow.pop %v3864
    %v3866 = vadd.f32 %v3863, 1.0
    %v3867 = vadd.f32 %v3865, 1.0
    %v3868 = vrcp.pop %v3866
    %v3869 = vmul.f32 %v3866, %v3868
    %v3870 = vsub.f32 1.0, %v3869
    %v3871 = vmul.f32 %v3868, %v3870
    %v3872 = vadd.f32 %v3868, %v3871
    %vm3873 = vweird.f32 %v3866
    %vm3874 = vweird.f32 %v3868
    %vm3875 = vmor %vm3873, %vm3874
    %v3876 = vsel %vm3875, %v3868, %v3872
    %v3877 = vand.u32 2147483647, %v3866
    %vm3878 = vcmp.eq.f32.partialorder %v3877, 8.507059e+37
    %v3879 = vand.u32 %v3866, 2147483648
    %v3880 = vor.u32 1.1754944e-38, %v3879
    %v3881 = vsel %vm3878, %v3880, %v3876
    %v3882 = vmul.f32 1.0, %v3881
    %v3883 = vrcp.pop %v3867
    %v3884 = vmul.f32 %v3867, %v3883
    %v3885 = vsub.f32 1.0, %v3884
    %v3886 = vmul.f32 %v3883, %v3885
    %v3887 = vadd.f32 %v3883, %v3886
    %vm3888 = vweird.f32 %v3867
    %vm3889 = vweird.f32 %v3883
    %vm3890 = vmor %vm3888, %vm3889
    %v3891 = vsel %vm3890, %v3883, %v3887
    %v3892 = vand.u32 2147483647, %v3867
    %vm3893 = vcmp.eq.f32.partialorder %v3892, 8.507059e+37
    %v3894 = vand.u32 %v3867, 2147483648
    %v3895 = vor.u32 1.1754944e-38, %v3894
    %v3896 = vsel %vm3893, %v3895, %v3891
    %v3897 = vmul.f32 1.0, %v3896
    %3900 = vrot.lane.b32.xlu0 %v3858, 106
    %v3901 = vpop.permute.xlu0 %3900
    %3902 = vrot.lane.b32.xlu0 %v3859, 106
    %v3903 = vpop.permute.xlu0 %3902
    %v3904 = vrot.slane %v3901, 2
    %v3905 = vrot.slane %v3903, 2
    %v3908 = vtanh.pop %v3904
    %v3909 = vtanh.pop %v3905
    %v3912 = vrot.slane %v3370, 7
    %v3913 = vrot.slane %v3912, 2
    %v3914 = vrot.slane %v3371, 7
    %v3915 = vrot.slane %v3914, 2
    %v3918 = vmul.f32 %v3882, %v3913
    %v3919 = vmul.f32 %v3897, %v3915
    %v3920 = vmul.f32 %v3882, %v3908
    %v3921 = vmul.f32 %v3897, %v3909
    %3924 = vrot.lane.b32.xlu0 %v3920, 50
    %v3925 = vpop.permute.xlu0 %3924
    %3926 = vrot.lane.b32.xlu0 %v3921, 50
    %v3927 = vpop.permute.xlu0 %3926
    %v3930 = vadd.f32 %v3918, %v3925
    %v3931 = vadd.f32 %v3919, %v3927
    %v3932 = vtanh.pop %v3930
    %v3933 = vtanh.pop %v3931
    %3936 = vrot.lane.b32.xlu0 %v3932, 50
    %v3937 = vpop.permute.xlu0 %3936
    %3938 = vrot.lane.b32.xlu0 %v3933, 50
    %v3939 = vpop.permute.xlu0 %3938
    %v3940 = vrot.slane %v3937, 6
    %v3941 = vrot.slane %v3939, 6
    %v3942 = vsel %vm1163, %v3940, %v3937
    %v3943 = vsel %vm1163, %v3941, %v3939
    %v3946 = vmul.f32 %v3882, %v3942
    %v3947 = vmul.f32 %v3897, %v3943
    %v3950 = vperm.slane %v3946, 0
    %v3951 = vperm.slane %v3946, 2
    %v3952 = vperm.slane %v3947, 0
    %v3953 = vperm.slane %v3947, 2
    %v3954 = vsel %vm1716, %v3952, %v3950
    %v3955 = vsel %vm1716, %v3953, %v3951
    %3956 = vrot.lane.b32.xlu0 %v3954, 28
    %v3957 = vpop.permute.xlu0 %3956
    %3958 = vrot.lane.b32.xlu0 %v3955, 28
    %v3959 = vpop.permute.xlu0 %3958
    %v3960 = vsel %vm1723, %v3957, %v3959
    %v3961 = vsel %vm1163, %v3960, 0
    %3963 = vmatpush.msra.mxu0 0.0
    %3964 = vmatpush.msra.mxu0 0.0
    %3965 = vmatpush.msra.mxu0 0.0
    %3966 = vmatpush.msra.mxu0 0.0
    %3967 = vmatpush.msra.mxu0 0.0
    %3968 = vmatpush.msra.mxu0 0.0
    %3969 = vmatpush.msra.mxu0 0.0
    %3970 = vmatpush.msra.mxu0 0.0
    %3971 = vmatpush.msra.mxu0 0.0
    %v3972 = vand.u32 %v1168, 4294901760
    %3973 = vmatpush.msra.mxu0 %v3972
    %v3974 = vand.u32 %v1159, 4294901760
    %3975 = vmatpush.msra.mxu0 %v3974
    %v3976 = vand.u32 %v1157, 4294901760
    %3977 = vmatpush.msra.mxu0 %v3976
    %v3978 = vand.u32 %v1155, 4294901760
    %3979 = vmatpush.msra.mxu0 %v3978
    %v3980 = vand.u32 %v1153, 4294901760
    %3981 = vmatpush.msra.mxu0 %v3980
    %v3982 = vand.u32 %v1151, 4294901760
    %3983 = vmatpush.msra.mxu0 %v3982
    %v3984 = vand.u32 %v1149, 4294901760
    %3985 = vmatpush.msra.mxu0 %v3984
    %v3986 = vand.u32 %v3961, 4294901760
    %v3987 = vsub.f32 %v3961, %v3986
    %v3988 = vand.u32 %v3987, 4294901760
    %v3989 = vsub.f32 %v3987, %v3988
    %v3990 = vand.u32 %v3989, 4294901760
    %3991 = vmatmul.f32.gmra.mxu0 %v3990
    %v3992 = vpop.f32.mrf.mxu0
    %v3993 = vadd.f32 0.0, %v3992
    %3994 = vdwg.mxu0
    %3995 = vmatpush.msra.mxu0 0.0
    %3996 = vmatpush.msra.mxu0 0.0
    %3997 = vmatpush.msra.mxu0 0.0
    %3998 = vmatpush.msra.mxu0 0.0
    %3999 = vmatpush.msra.mxu0 0.0
    %4000 = vmatpush.msra.mxu0 0.0
    %4001 = vmatpush.msra.mxu0 0.0
    %4002 = vmatpush.msra.mxu0 0.0
    %4003 = vmatpush.msra.mxu0 0.0
    %v4004 = vand.u32 %v1168, 4294901760
    %v4005 = vsub.f32 %v1168, %v4004
    %v4006 = vand.u32 %v4005, 4294901760
    %v4007 = vsub.f32 %v4005, %v4006
    %v4008 = vand.u32 %v4007, 4294901760
    %4009 = vmatpush.msra.mxu0 %v4008
    %v4010 = vand.u32 %v1159, 4294901760
    %v4011 = vsub.f32 %v1159, %v4010
    %v4012 = vand.u32 %v4011, 4294901760
    %v4013 = vsub.f32 %v4011, %v4012
    %v4014 = vand.u32 %v4013, 4294901760
    %4015 = vmatpush.msra.mxu0 %v4014
    %v4016 = vand.u32 %v1157, 4294901760
    %v4017 = vsub.f32 %v1157, %v4016
    %v4018 = vand.u32 %v4017, 4294901760
    %v4019 = vsub.f32 %v4017, %v4018
    %v4020 = vand.u32 %v4019, 4294901760
    %4021 = vmatpush.msra.mxu0 %v4020
    %v4022 = vand.u32 %v1155, 4294901760
    %v4023 = vsub.f32 %v1155, %v4022
    %v4024 = vand.u32 %v4023, 4294901760
    %v4025 = vsub.f32 %v4023, %v4024
    %v4026 = vand.u32 %v4025, 4294901760
    %4027 = vmatpush.msra.mxu0 %v4026
    %v4028 = vand.u32 %v1153, 4294901760
    %v4029 = vsub.f32 %v1153, %v4028
    %v4030 = vand.u32 %v4029, 4294901760
    %v4031 = vsub.f32 %v4029, %v4030
    %v4032 = vand.u32 %v4031, 4294901760
    %4033 = vmatpush.msra.mxu0 %v4032
    %v4034 = vand.u32 %v1151, 4294901760
    %v4035 = vsub.f32 %v1151, %v4034
    %v4036 = vand.u32 %v4035, 4294901760
    %v4037 = vsub.f32 %v4035, %v4036
    %v4038 = vand.u32 %v4037, 4294901760
    %4039 = vmatpush.msra.mxu0 %v4038
    %v4040 = vand.u32 %v1149, 4294901760
    %v4041 = vsub.f32 %v1149, %v4040
    %v4042 = vand.u32 %v4041, 4294901760
    %v4043 = vsub.f32 %v4041, %v4042
    %v4044 = vand.u32 %v4043, 4294901760
    %4045 = vmatpush.msra.mxu0 %v4044
    %v4046 = vand.u32 %v3961, 4294901760
    %4047 = vmatmul.f32.gmra.mxu0 %v4046
    %v4048 = vpop.f32.mrf.mxu0
    %v4049 = vadd.f32 %v3993, %v4048
    %4050 = vdwg.mxu0
    %4051 = vmatpush.msra.mxu0 0.0
    %4052 = vmatpush.msra.mxu0 0.0
    %4053 = vmatpush.msra.mxu0 0.0
    %4054 = vmatpush.msra.mxu0 0.0
    %4055 = vmatpush.msra.mxu0 0.0
    %4056 = vmatpush.msra.mxu0 0.0
    %4057 = vmatpush.msra.mxu0 0.0
    %4058 = vmatpush.msra.mxu0 0.0
    %4059 = vmatpush.msra.mxu0 0.0
    %v4060 = vand.u32 %v1168, 4294901760
    %v4061 = vsub.f32 %v1168, %v4060
    %4062 = vmatpush.msra.mxu0 %v4061
    %v4063 = vand.u32 %v1159, 4294901760
    %v4064 = vsub.f32 %v1159, %v4063
    %4065 = vmatpush.msra.mxu0 %v4064
    %v4066 = vand.u32 %v1157, 4294901760
    %v4067 = vsub.f32 %v1157, %v4066
    %4068 = vmatpush.msra.mxu0 %v4067
    %v4069 = vand.u32 %v1155, 4294901760
    %v4070 = vsub.f32 %v1155, %v4069
    %4071 = vmatpush.msra.mxu0 %v4070
    %v4072 = vand.u32 %v1153, 4294901760
    %v4073 = vsub.f32 %v1153, %v4072
    %4074 = vmatpush.msra.mxu0 %v4073
    %v4075 = vand.u32 %v1151, 4294901760
    %v4076 = vsub.f32 %v1151, %v4075
    %4077 = vmatpush.msra.mxu0 %v4076
    %v4078 = vand.u32 %v1149, 4294901760
    %v4079 = vsub.f32 %v1149, %v4078
    %4080 = vmatpush.msra.mxu0 %v4079
    %v4081 = vand.u32 %v3961, 4294901760
    %v4082 = vsub.f32 %v3961, %v4081
    %4083 = vmatmul.f32.gmra.mxu0 %v4082
    %v4084 = vpop.f32.mrf.mxu0
    %v4085 = vadd.f32 %v4049, %v4084
    %4086 = vdwg.mxu0
    %4087 = vmatpush.msra.mxu0 0.0
    %4088 = vmatpush.msra.mxu0 0.0
    %4089 = vmatpush.msra.mxu0 0.0
    %4090 = vmatpush.msra.mxu0 0.0
    %4091 = vmatpush.msra.mxu0 0.0
    %4092 = vmatpush.msra.mxu0 0.0
    %4093 = vmatpush.msra.mxu0 0.0
    %4094 = vmatpush.msra.mxu0 0.0
    %4095 = vmatpush.msra.mxu0 0.0
    %v4096 = vand.u32 %v1168, 4294901760
    %4097 = vmatpush.msra.mxu0 %v4096
    %v4098 = vand.u32 %v1159, 4294901760
    %4099 = vmatpush.msra.mxu0 %v4098
    %v4100 = vand.u32 %v1157, 4294901760
    %4101 = vmatpush.msra.mxu0 %v4100
    %v4102 = vand.u32 %v1155, 4294901760
    %4103 = vmatpush.msra.mxu0 %v4102
    %v4104 = vand.u32 %v1153, 4294901760
    %4105 = vmatpush.msra.mxu0 %v4104
    %v4106 = vand.u32 %v1151, 4294901760
    %4107 = vmatpush.msra.mxu0 %v4106
    %v4108 = vand.u32 %v1149, 4294901760
    %4109 = vmatpush.msra.mxu0 %v4108
    %v4110 = vand.u32 %v3961, 4294901760
    %v4111 = vsub.f32 %v3961, %v4110
    %v4112 = vand.u32 %v4111, 4294901760
    %4113 = vmatmul.f32.gmra.mxu0 %v4112
    %v4114 = vpop.f32.mrf.mxu0
    %v4115 = vadd.f32 %v4085, %v4114
    %4116 = vdwg.mxu0
    %4117 = vmatpush.msra.mxu0 0.0
    %4118 = vmatpush.msra.mxu0 0.0
    %4119 = vmatpush.msra.mxu0 0.0
    %4120 = vmatpush.msra.mxu0 0.0
    %4121 = vmatpush.msra.mxu0 0.0
    %4122 = vmatpush.msra.mxu0 0.0
    %4123 = vmatpush.msra.mxu0 0.0
    %4124 = vmatpush.msra.mxu0 0.0
    %4125 = vmatpush.msra.mxu0 0.0
    %v4126 = vand.u32 %v1168, 4294901760
    %v4127 = vsub.f32 %v1168, %v4126
    %v4128 = vand.u32 %v4127, 4294901760
    %4129 = vmatpush.msra.mxu0 %v4128
    %v4130 = vand.u32 %v1159, 4294901760
    %v4131 = vsub.f32 %v1159, %v4130
    %v4132 = vand.u32 %v4131, 4294901760
    %4133 = vmatpush.msra.mxu0 %v4132
    %v4134 = vand.u32 %v1157, 4294901760
    %v4135 = vsub.f32 %v1157, %v4134
    %v4136 = vand.u32 %v4135, 4294901760
    %4137 = vmatpush.msra.mxu0 %v4136
    %v4138 = vand.u32 %v1155, 4294901760
    %v4139 = vsub.f32 %v1155, %v4138
    %v4140 = vand.u32 %v4139, 4294901760
    %4141 = vmatpush.msra.mxu0 %v4140
    %v4142 = vand.u32 %v1153, 4294901760
    %v4143 = vsub.f32 %v1153, %v4142
    %v4144 = vand.u32 %v4143, 4294901760
    %4145 = vmatpush.msra.mxu0 %v4144
    %v4146 = vand.u32 %v1151, 4294901760
    %v4147 = vsub.f32 %v1151, %v4146
    %v4148 = vand.u32 %v4147, 4294901760
    %4149 = vmatpush.msra.mxu0 %v4148
    %v4150 = vand.u32 %v1149, 4294901760
    %v4151 = vsub.f32 %v1149, %v4150
    %v4152 = vand.u32 %v4151, 4294901760
    %4153 = vmatpush.msra.mxu0 %v4152
    %v4154 = vand.u32 %v3961, 4294901760
    %4155 = vmatmul.f32.gmra.mxu0 %v4154
    %v4156 = vpop.f32.mrf.mxu0
    %v4157 = vadd.f32 %v4115, %v4156
    %4158 = vdwg.mxu0
    %4159 = vmatpush.msra.mxu0 0.0
    %4160 = vmatpush.msra.mxu0 0.0
    %4161 = vmatpush.msra.mxu0 0.0
    %4162 = vmatpush.msra.mxu0 0.0
    %4163 = vmatpush.msra.mxu0 0.0
    %4164 = vmatpush.msra.mxu0 0.0
    %4165 = vmatpush.msra.mxu0 0.0
    %4166 = vmatpush.msra.mxu0 0.0
    %4167 = vmatpush.msra.mxu0 0.0
    %v4168 = vand.u32 %v1168, 4294901760
    %4169 = vmatpush.msra.mxu0 %v4168
    %v4170 = vand.u32 %v1159, 4294901760
    %4171 = vmatpush.msra.mxu0 %v4170
    %v4172 = vand.u32 %v1157, 4294901760
    %4173 = vmatpush.msra.mxu0 %v4172
    %v4174 = vand.u32 %v1155, 4294901760
    %4175 = vmatpush.msra.mxu0 %v4174
    %v4176 = vand.u32 %v1153, 4294901760
    %4177 = vmatpush.msra.mxu0 %v4176
    %v4178 = vand.u32 %v1151, 4294901760
    %4179 = vmatpush.msra.mxu0 %v4178
    %v4180 = vand.u32 %v1149, 4294901760
    %4181 = vmatpush.msra.mxu0 %v4180
    %v4182 = vand.u32 %v3961, 4294901760
    %4183 = vmatmul.f32.gmra.mxu0 %v4182
    %v4184 = vpop.f32.mrf.mxu0
    %v4185 = vadd.f32 %v4157, %v4184
    %4186 = vdwg.mxu0
    %4187 = vmatpush.msra.mxu0 0.0
    %4188 = vmatpush.msra.mxu0 0.0
    %4189 = vmatpush.msra.mxu0 0.0
    %4190 = vmatpush.msra.mxu0 0.0
    %4191 = vmatpush.msra.mxu0 0.0
    %4192 = vmatpush.msra.mxu0 0.0
    %4193 = vmatpush.msra.mxu0 0.0
    %4194 = vmatpush.msra.mxu0 0.0
    %4195 = vmatpush.msra.mxu0 0.0
    %v4196 = vand.u32 %v1171, 4294901760
    %4197 = vmatpush.msra.mxu0 %v4196
    %v4198 = vand.u32 %v1160, 4294901760
    %4199 = vmatpush.msra.mxu0 %v4198
    %v4200 = vand.u32 %v1158, 4294901760
    %4201 = vmatpush.msra.mxu0 %v4200
    %v4202 = vand.u32 %v1156, 4294901760
    %4203 = vmatpush.msra.mxu0 %v4202
    %v4204 = vand.u32 %v1154, 4294901760
    %4205 = vmatpush.msra.mxu0 %v4204
    %v4206 = vand.u32 %v1152, 4294901760
    %4207 = vmatpush.msra.mxu0 %v4206
    %v4208 = vand.u32 %v1150, 4294901760
    %4209 = vmatpush.msra.mxu0 %v4208
    %v4210 = vand.u32 %v3961, 4294901760
    %v4211 = vsub.f32 %v3961, %v4210
    %v4212 = vand.u32 %v4211, 4294901760
    %v4213 = vsub.f32 %v4211, %v4212
    %v4214 = vand.u32 %v4213, 4294901760
    %4215 = vmatmul.f32.gmra.mxu0 %v4214
    %v4216 = vpop.f32.mrf.mxu0
    %v4217 = vadd.f32 0.0, %v4216
    %4218 = vdwg.mxu0
    %4219 = vmatpush.msra.mxu0 0.0
    %4220 = vmatpush.msra.mxu0 0.0
    %4221 = vmatpush.msra.mxu0 0.0
    %4222 = vmatpush.msra.mxu0 0.0
    %4223 = vmatpush.msra.mxu0 0.0
    %4224 = vmatpush.msra.mxu0 0.0
    %4225 = vmatpush.msra.mxu0 0.0
    %4226 = vmatpush.msra.mxu0 0.0
    %4227 = vmatpush.msra.mxu0 0.0
    %v4228 = vand.u32 %v1171, 4294901760
    %v4229 = vsub.f32 %v1171, %v4228
    %v4230 = vand.u32 %v4229, 4294901760
    %v4231 = vsub.f32 %v4229, %v4230
    %v4232 = vand.u32 %v4231, 4294901760
    %4233 = vmatpush.msra.mxu0 %v4232
    %v4234 = vand.u32 %v1160, 4294901760
    %v4235 = vsub.f32 %v1160, %v4234
    %v4236 = vand.u32 %v4235, 4294901760
    %v4237 = vsub.f32 %v4235, %v4236
    %v4238 = vand.u32 %v4237, 4294901760
    %4239 = vmatpush.msra.mxu0 %v4238
    %v4240 = vand.u32 %v1158, 4294901760
    %v4241 = vsub.f32 %v1158, %v4240
    %v4242 = vand.u32 %v4241, 4294901760
    %v4243 = vsub.f32 %v4241, %v4242
    %v4244 = vand.u32 %v4243, 4294901760
    %4245 = vmatpush.msra.mxu0 %v4244
    %v4246 = vand.u32 %v1156, 4294901760
    %v4247 = vsub.f32 %v1156, %v4246
    %v4248 = vand.u32 %v4247, 4294901760
    %v4249 = vsub.f32 %v4247, %v4248
    %v4250 = vand.u32 %v4249, 4294901760
    %4251 = vmatpush.msra.mxu0 %v4250
    %v4252 = vand.u32 %v1154, 4294901760
    %v4253 = vsub.f32 %v1154, %v4252
    %v4254 = vand.u32 %v4253, 4294901760
    %v4255 = vsub.f32 %v4253, %v4254
    %v4256 = vand.u32 %v4255, 4294901760
    %4257 = vmatpush.msra.mxu0 %v4256
    %v4258 = vand.u32 %v1152, 4294901760
    %v4259 = vsub.f32 %v1152, %v4258
    %v4260 = vand.u32 %v4259, 4294901760
    %v4261 = vsub.f32 %v4259, %v4260
    %v4262 = vand.u32 %v4261, 4294901760
    %4263 = vmatpush.msra.mxu0 %v4262
    %v4264 = vand.u32 %v1150, 4294901760
    %v4265 = vsub.f32 %v1150, %v4264
    %v4266 = vand.u32 %v4265, 4294901760
    %v4267 = vsub.f32 %v4265, %v4266
    %v4268 = vand.u32 %v4267, 4294901760
    %4269 = vmatpush.msra.mxu0 %v4268
    %v4270 = vand.u32 %v3961, 4294901760
    %4271 = vmatmul.f32.gmra.mxu0 %v4270
    %v4272 = vpop.f32.mrf.mxu0
    %v4273 = vadd.f32 %v4217, %v4272
    %4274 = vdwg.mxu0
    %4275 = vmatpush.msra.mxu0 0.0
    %4276 = vmatpush.msra.mxu0 0.0
    %4277 = vmatpush.msra.mxu0 0.0
    %4278 = vmatpush.msra.mxu0 0.0
    %4279 = vmatpush.msra.mxu0 0.0
    %4280 = vmatpush.msra.mxu0 0.0
    %4281 = vmatpush.msra.mxu0 0.0
    %4282 = vmatpush.msra.mxu0 0.0
    %4283 = vmatpush.msra.mxu0 0.0
    %v4284 = vand.u32 %v1171, 4294901760
    %v4285 = vsub.f32 %v1171, %v4284
    %4286 = vmatpush.msra.mxu0 %v4285
    %v4287 = vand.u32 %v1160, 4294901760
    %v4288 = vsub.f32 %v1160, %v4287
    %4289 = vmatpush.msra.mxu0 %v4288
    %v4290 = vand.u32 %v1158, 4294901760
    %v4291 = vsub.f32 %v1158, %v4290
    %4292 = vmatpush.msra.mxu0 %v4291
    %v4293 = vand.u32 %v1156, 4294901760
    %v4294 = vsub.f32 %v1156, %v4293
    %4295 = vmatpush.msra.mxu0 %v4294
    %v4296 = vand.u32 %v1154, 4294901760
    %v4297 = vsub.f32 %v1154, %v4296
    %4298 = vmatpush.msra.mxu0 %v4297
    %v4299 = vand.u32 %v1152, 4294901760
    %v4300 = vsub.f32 %v1152, %v4299
    %4301 = vmatpush.msra.mxu0 %v4300
    %v4302 = vand.u32 %v1150, 4294901760
    %v4303 = vsub.f32 %v1150, %v4302
    %4304 = vmatpush.msra.mxu0 %v4303
    %v4305 = vand.u32 %v3961, 4294901760
    %v4306 = vsub.f32 %v3961, %v4305
    %4307 = vmatmul.f32.gmra.mxu0 %v4306
    %v4308 = vpop.f32.mrf.mxu0
    %v4309 = vadd.f32 %v4273, %v4308
    %4310 = vdwg.mxu0
    %4311 = vmatpush.msra.mxu0 0.0
    %4312 = vmatpush.msra.mxu0 0.0
    %4313 = vmatpush.msra.mxu0 0.0
    %4314 = vmatpush.msra.mxu0 0.0
    %4315 = vmatpush.msra.mxu0 0.0
    %4316 = vmatpush.msra.mxu0 0.0
    %4317 = vmatpush.msra.mxu0 0.0
    %4318 = vmatpush.msra.mxu0 0.0
    %4319 = vmatpush.msra.mxu0 0.0
    %v4320 = vand.u32 %v1171, 4294901760
    %4321 = vmatpush.msra.mxu0 %v4320
    %v4322 = vand.u32 %v1160, 4294901760
    %4323 = vmatpush.msra.mxu0 %v4322
    %v4324 = vand.u32 %v1158, 4294901760
    %4325 = vmatpush.msra.mxu0 %v4324
    %v4326 = vand.u32 %v1156, 4294901760
    %4327 = vmatpush.msra.mxu0 %v4326
    %v4328 = vand.u32 %v1154, 4294901760
    %4329 = vmatpush.msra.mxu0 %v4328
    %v4330 = vand.u32 %v1152, 4294901760
    %4331 = vmatpush.msra.mxu0 %v4330
    %v4332 = vand.u32 %v1150, 4294901760
    %4333 = vmatpush.msra.mxu0 %v4332
    %v4334 = vand.u32 %v3961, 4294901760
    %v4335 = vsub.f32 %v3961, %v4334
    %v4336 = vand.u32 %v4335, 4294901760
    %4337 = vmatmul.f32.gmra.mxu0 %v4336
    %v4338 = vpop.f32.mrf.mxu0
    %v4339 = vadd.f32 %v4309, %v4338
    %4340 = vdwg.mxu0
    %4341 = vmatpush.msra.mxu0 0.0
    %4342 = vmatpush.msra.mxu0 0.0
    %4343 = vmatpush.msra.mxu0 0.0
    %4344 = vmatpush.msra.mxu0 0.0
    %4345 = vmatpush.msra.mxu0 0.0
    %4346 = vmatpush.msra.mxu0 0.0
    %4347 = vmatpush.msra.mxu0 0.0
    %4348 = vmatpush.msra.mxu0 0.0
    %4349 = vmatpush.msra.mxu0 0.0
    %v4350 = vand.u32 %v1171, 4294901760
    %v4351 = vsub.f32 %v1171, %v4350
    %v4352 = vand.u32 %v4351, 4294901760
    %4353 = vmatpush.msra.mxu0 %v4352
    %v4354 = vand.u32 %v1160, 4294901760
    %v4355 = vsub.f32 %v1160, %v4354
    %v4356 = vand.u32 %v4355, 4294901760
    %4357 = vmatpush.msra.mxu0 %v4356
    %v4358 = vand.u32 %v1158, 4294901760
    %v4359 = vsub.f32 %v1158, %v4358
    %v4360 = vand.u32 %v4359, 4294901760
    %4361 = vmatpush.msra.mxu0 %v4360
    %v4362 = vand.u32 %v1156, 4294901760
    %v4363 = vsub.f32 %v1156, %v4362
    %v4364 = vand.u32 %v4363, 4294901760
    %4365 = vmatpush.msra.mxu0 %v4364
    %v4366 = vand.u32 %v1154, 4294901760
    %v4367 = vsub.f32 %v1154, %v4366
    %v4368 = vand.u32 %v4367, 4294901760
    %4369 = vmatpush.msra.mxu0 %v4368
    %v4370 = vand.u32 %v1152, 4294901760
    %v4371 = vsub.f32 %v1152, %v4370
    %v4372 = vand.u32 %v4371, 4294901760
    %4373 = vmatpush.msra.mxu0 %v4372
    %v4374 = vand.u32 %v1150, 4294901760
    %v4375 = vsub.f32 %v1150, %v4374
    %v4376 = vand.u32 %v4375, 4294901760
    %4377 = vmatpush.msra.mxu0 %v4376
    %v4378 = vand.u32 %v3961, 4294901760
    %4379 = vmatmul.f32.gmra.mxu0 %v4378
    %v4380 = vpop.f32.mrf.mxu0
    %v4381 = vadd.f32 %v4339, %v4380
    %4382 = vdwg.mxu0
    %4383 = vmatpush.msra.mxu0 0.0
    %4384 = vmatpush.msra.mxu0 0.0
    %4385 = vmatpush.msra.mxu0 0.0
    %4386 = vmatpush.msra.mxu0 0.0
    %4387 = vmatpush.msra.mxu0 0.0
    %4388 = vmatpush.msra.mxu0 0.0
    %4389 = vmatpush.msra.mxu0 0.0
    %4390 = vmatpush.msra.mxu0 0.0
    %4391 = vmatpush.msra.mxu0 0.0
    %v4392 = vand.u32 %v1171, 4294901760
    %4393 = vmatpush.msra.mxu0 %v4392
    %v4394 = vand.u32 %v1160, 4294901760
    %4395 = vmatpush.msra.mxu0 %v4394
    %v4396 = vand.u32 %v1158, 4294901760
    %4397 = vmatpush.msra.mxu0 %v4396
    %v4398 = vand.u32 %v1156, 4294901760
    %4399 = vmatpush.msra.mxu0 %v4398
    %v4400 = vand.u32 %v1154, 4294901760
    %4401 = vmatpush.msra.mxu0 %v4400
    %v4402 = vand.u32 %v1152, 4294901760
    %4403 = vmatpush.msra.mxu0 %v4402
    %v4404 = vand.u32 %v1150, 4294901760
    %4405 = vmatpush.msra.mxu0 %v4404
    %v4406 = vand.u32 %v3961, 4294901760
    %4407 = vmatmul.f32.gmra.mxu0 %v4406
    %v4408 = vpop.f32.mrf.mxu0
    %v4409 = vadd.f32 %v4381, %v4408
    %4410 = vdwg.mxu0
    %v4413 = vrot.slane %v4409, 6
    %v4414 = vsel %vm1107, %v4185, %v4413
    %v4415 = vrot.slane %v4414, 7
    %v4418 = vadd.f32 %v1114, %v4415
    %v4419 = vadd.f32 %v1127, %v4414
    %v4420 = vxor.u32 %v4418, 2147483648
    %v4421 = vxor.u32 %v4419, 2147483648
    %v4422 = vmul.f32 %v4420, 1.442695
    %v4423 = vpow.pop %v4422
    %v4424 = vmul.f32 %v4421, 1.442695
    %v4425 = vpow.pop %v4424
    %v4426 = vadd.f32 %v4423, 1.0
    %v4427 = vadd.f32 %v4425, 1.0
    %v4428 = vrcp.pop %v4426
    %v4429 = vmul.f32 %v4426, %v4428
    %v4430 = vsub.f32 1.0, %v4429
    %v4431 = vmul.f32 %v4428, %v4430
    %v4432 = vadd.f32 %v4428, %v4431
    %vm4433 = vweird.f32 %v4426
    %vm4434 = vweird.f32 %v4428
    %vm4435 = vmor %vm4433, %vm4434
    %v4436 = vsel %vm4435, %v4428, %v4432
    %v4437 = vand.u32 2147483647, %v4426
    %vm4438 = vcmp.eq.f32.partialorder %v4437, 8.507059e+37
    %v4439 = vand.u32 %v4426, 2147483648
    %v4440 = vor.u32 1.1754944e-38, %v4439
    %v4441 = vsel %vm4438, %v4440, %v4436
    %v4442 = vmul.f32 1.0, %v4441
    %v4443 = vrcp.pop %v4427
    %v4444 = vmul.f32 %v4427, %v4443
    %v4445 = vsub.f32 1.0, %v4444
    %v4446 = vmul.f32 %v4443, %v4445
    %v4447 = vadd.f32 %v4443, %v4446
    %vm4448 = vweird.f32 %v4427
    %vm4449 = vweird.f32 %v4443
    %vm4450 = vmor %vm4448, %vm4449
    %v4451 = vsel %vm4450, %v4443, %v4447
    %v4452 = vand.u32 2147483647, %v4427
    %vm4453 = vcmp.eq.f32.partialorder %v4452, 8.507059e+37
    %v4454 = vand.u32 %v4427, 2147483648
    %v4455 = vor.u32 1.1754944e-38, %v4454
    %v4456 = vsel %vm4453, %v4455, %v4451
    %v4457 = vmul.f32 1.0, %v4456
    %4460 = vrot.lane.b32.xlu0 %v4418, 106
    %v4461 = vpop.permute.xlu0 %4460
    %4462 = vrot.lane.b32.xlu0 %v4419, 106
    %v4463 = vpop.permute.xlu0 %4462
    %v4464 = vrot.slane %v4461, 2
    %v4465 = vrot.slane %v4463, 2
    %v4468 = vtanh.pop %v4464
    %v4469 = vtanh.pop %v4465
    %v4472 = vrot.slane %v3930, 7
    %v4473 = vrot.slane %v3931, 7
    %v4476 = vmul.f32 %v4442, %v4472
    %v4477 = vmul.f32 %v4457, %v4473
    %v4478 = vmul.f32 %v4442, %v4468
    %v4479 = vmul.f32 %v4457, %v4469
    %4482 = vrot.lane.b32.xlu0 %v4478, 50
    %v4483 = vpop.permute.xlu0 %4482
    %4484 = vrot.lane.b32.xlu0 %v4479, 50
    %v4485 = vpop.permute.xlu0 %4484
    %v4488 = vadd.f32 %v4476, %v4483
    %v4489 = vadd.f32 %v4477, %v4485
    %v4490 = vtanh.pop %v4488
    %v4491 = vtanh.pop %v4489
    %4494 = vrot.lane.b32.xlu0 %v4490, 50
    %v4495 = vpop.permute.xlu0 %4494
    %4496 = vrot.lane.b32.xlu0 %v4491, 50
    %v4497 = vpop.permute.xlu0 %4496
    %v4498 = vrot.slane %v4495, 6
    %v4499 = vrot.slane %v4497, 6
    %v4500 = vsel %vm1163, %v4498, %v4495
    %v4501 = vsel %vm1163, %v4499, %v4497
    %v4504 = vmul.f32 %v4442, %v4500
    %v4505 = vmul.f32 %v4457, %v4501
    %v4508 = vperm.slane %v4504, 1
    %v4509 = vperm.slane %v4504, 3
    %v4510 = vperm.slane %v4505, 1
    %v4511 = vperm.slane %v4505, 3
    %v4512 = vsel %vm1716, %v4510, %v4508
    %v4513 = vsel %vm1716, %v4511, %v4509
    %4514 = vrot.lane.b32.xlu0 %v4512, 28
    %v4515 = vpop.permute.xlu0 %4514
    %4516 = vrot.lane.b32.xlu0 %v4513, 28
    %v4517 = vpop.permute.xlu0 %4516
    %v4518 = vsel %vm1723, %v4515, %v4517
    %v4519 = vsel %vm1163, %v4518, 0
    %4521 = vmatpush.msra.mxu0 0.0
    %4522 = vmatpush.msra.mxu0 0.0
    %4523 = vmatpush.msra.mxu0 0.0
    %4524 = vmatpush.msra.mxu0 0.0
    %4525 = vmatpush.msra.mxu0 0.0
    %4526 = vmatpush.msra.mxu0 0.0
    %4527 = vmatpush.msra.mxu0 0.0
    %4528 = vmatpush.msra.mxu0 0.0
    %4529 = vmatpush.msra.mxu0 0.0
    %v4530 = vand.u32 %v1168, 4294901760
    %4531 = vmatpush.msra.mxu0 %v4530
    %v4532 = vand.u32 %v1159, 4294901760
    %4533 = vmatpush.msra.mxu0 %v4532
    %v4534 = vand.u32 %v1157, 4294901760
    %4535 = vmatpush.msra.mxu0 %v4534
    %v4536 = vand.u32 %v1155, 4294901760
    %4537 = vmatpush.msra.mxu0 %v4536
    %v4538 = vand.u32 %v1153, 4294901760
    %4539 = vmatpush.msra.mxu0 %v4538
    %v4540 = vand.u32 %v1151, 4294901760
    %4541 = vmatpush.msra.mxu0 %v4540
    %v4542 = vand.u32 %v1149, 4294901760
    %4543 = vmatpush.msra.mxu0 %v4542
    %v4544 = vand.u32 %v4519, 4294901760
    %v4545 = vsub.f32 %v4519, %v4544
    %v4546 = vand.u32 %v4545, 4294901760
    %v4547 = vsub.f32 %v4545, %v4546
    %v4548 = vand.u32 %v4547, 4294901760
    %4549 = vmatmul.f32.gmra.mxu0 %v4548
    %v4550 = vpop.f32.mrf.mxu0
    %v4551 = vadd.f32 0.0, %v4550
    %4552 = vdwg.mxu0
    %4553 = vmatpush.msra.mxu0 0.0
    %4554 = vmatpush.msra.mxu0 0.0
    %4555 = vmatpush.msra.mxu0 0.0
    %4556 = vmatpush.msra.mxu0 0.0
    %4557 = vmatpush.msra.mxu0 0.0
    %4558 = vmatpush.msra.mxu0 0.0
    %4559 = vmatpush.msra.mxu0 0.0
    %4560 = vmatpush.msra.mxu0 0.0
    %4561 = vmatpush.msra.mxu0 0.0
    %v4562 = vand.u32 %v1168, 4294901760
    %v4563 = vsub.f32 %v1168, %v4562
    %v4564 = vand.u32 %v4563, 4294901760
    %v4565 = vsub.f32 %v4563, %v4564
    %v4566 = vand.u32 %v4565, 4294901760
    %4567 = vmatpush.msra.mxu0 %v4566
    %v4568 = vand.u32 %v1159, 4294901760
    %v4569 = vsub.f32 %v1159, %v4568
    %v4570 = vand.u32 %v4569, 4294901760
    %v4571 = vsub.f32 %v4569, %v4570
    %v4572 = vand.u32 %v4571, 4294901760
    %4573 = vmatpush.msra.mxu0 %v4572
    %v4574 = vand.u32 %v1157, 4294901760
    %v4575 = vsub.f32 %v1157, %v4574
    %v4576 = vand.u32 %v4575, 4294901760
    %v4577 = vsub.f32 %v4575, %v4576
    %v4578 = vand.u32 %v4577, 4294901760
    %4579 = vmatpush.msra.mxu0 %v4578
    %v4580 = vand.u32 %v1155, 4294901760
    %v4581 = vsub.f32 %v1155, %v4580
    %v4582 = vand.u32 %v4581, 4294901760
    %v4583 = vsub.f32 %v4581, %v4582
    %v4584 = vand.u32 %v4583, 4294901760
    %4585 = vmatpush.msra.mxu0 %v4584
    %v4586 = vand.u32 %v1153, 4294901760
    %v4587 = vsub.f32 %v1153, %v4586
    %v4588 = vand.u32 %v4587, 4294901760
    %v4589 = vsub.f32 %v4587, %v4588
    %v4590 = vand.u32 %v4589, 4294901760
    %4591 = vmatpush.msra.mxu0 %v4590
    %v4592 = vand.u32 %v1151, 4294901760
    %v4593 = vsub.f32 %v1151, %v4592
    %v4594 = vand.u32 %v4593, 4294901760
    %v4595 = vsub.f32 %v4593, %v4594
    %v4596 = vand.u32 %v4595, 4294901760
    %4597 = vmatpush.msra.mxu0 %v4596
    %v4598 = vand.u32 %v1149, 4294901760
    %v4599 = vsub.f32 %v1149, %v4598
    %v4600 = vand.u32 %v4599, 4294901760
    %v4601 = vsub.f32 %v4599, %v4600
    %v4602 = vand.u32 %v4601, 4294901760
    %4603 = vmatpush.msra.mxu0 %v4602
    %v4604 = vand.u32 %v4519, 4294901760
    %4605 = vmatmul.f32.gmra.mxu0 %v4604
    %v4606 = vpop.f32.mrf.mxu0
    %v4607 = vadd.f32 %v4551, %v4606
    %4608 = vdwg.mxu0
    %4609 = vmatpush.msra.mxu0 0.0
    %4610 = vmatpush.msra.mxu0 0.0
    %4611 = vmatpush.msra.mxu0 0.0
    %4612 = vmatpush.msra.mxu0 0.0
    %4613 = vmatpush.msra.mxu0 0.0
    %4614 = vmatpush.msra.mxu0 0.0
    %4615 = vmatpush.msra.mxu0 0.0
    %4616 = vmatpush.msra.mxu0 0.0
    %4617 = vmatpush.msra.mxu0 0.0
    %v4618 = vand.u32 %v1168, 4294901760
    %v4619 = vsub.f32 %v1168, %v4618
    %4620 = vmatpush.msra.mxu0 %v4619
    %v4621 = vand.u32 %v1159, 4294901760
    %v4622 = vsub.f32 %v1159, %v4621
    %4623 = vmatpush.msra.mxu0 %v4622
    %v4624 = vand.u32 %v1157, 4294901760
    %v4625 = vsub.f32 %v1157, %v4624
    %4626 = vmatpush.msra.mxu0 %v4625
    %v4627 = vand.u32 %v1155, 4294901760
    %v4628 = vsub.f32 %v1155, %v4627
    %4629 = vmatpush.msra.mxu0 %v4628
    %v4630 = vand.u32 %v1153, 4294901760
    %v4631 = vsub.f32 %v1153, %v4630
    %4632 = vmatpush.msra.mxu0 %v4631
    %v4633 = vand.u32 %v1151, 4294901760
    %v4634 = vsub.f32 %v1151, %v4633
    %4635 = vmatpush.msra.mxu0 %v4634
    %v4636 = vand.u32 %v1149, 4294901760
    %v4637 = vsub.f32 %v1149, %v4636
    %4638 = vmatpush.msra.mxu0 %v4637
    %v4639 = vand.u32 %v4519, 4294901760
    %v4640 = vsub.f32 %v4519, %v4639
    %4641 = vmatmul.f32.gmra.mxu0 %v4640
    %v4642 = vpop.f32.mrf.mxu0
    %v4643 = vadd.f32 %v4607, %v4642
    %4644 = vdwg.mxu0
    %4645 = vmatpush.msra.mxu0 0.0
    %4646 = vmatpush.msra.mxu0 0.0
    %4647 = vmatpush.msra.mxu0 0.0
    %4648 = vmatpush.msra.mxu0 0.0
    %4649 = vmatpush.msra.mxu0 0.0
    %4650 = vmatpush.msra.mxu0 0.0
    %4651 = vmatpush.msra.mxu0 0.0
    %4652 = vmatpush.msra.mxu0 0.0
    %4653 = vmatpush.msra.mxu0 0.0
    %v4654 = vand.u32 %v1168, 4294901760
    %4655 = vmatpush.msra.mxu0 %v4654
    %v4656 = vand.u32 %v1159, 4294901760
    %4657 = vmatpush.msra.mxu0 %v4656
    %v4658 = vand.u32 %v1157, 4294901760
    %4659 = vmatpush.msra.mxu0 %v4658
    %v4660 = vand.u32 %v1155, 4294901760
    %4661 = vmatpush.msra.mxu0 %v4660
    %v4662 = vand.u32 %v1153, 4294901760
    %4663 = vmatpush.msra.mxu0 %v4662
    %v4664 = vand.u32 %v1151, 4294901760
    %4665 = vmatpush.msra.mxu0 %v4664
    %v4666 = vand.u32 %v1149, 4294901760
    %4667 = vmatpush.msra.mxu0 %v4666
    %v4668 = vand.u32 %v4519, 4294901760
    %v4669 = vsub.f32 %v4519, %v4668
    %v4670 = vand.u32 %v4669, 4294901760
    %4671 = vmatmul.f32.gmra.mxu0 %v4670
    %v4672 = vpop.f32.mrf.mxu0
    %v4673 = vadd.f32 %v4643, %v4672
    %4674 = vdwg.mxu0
    %4675 = vmatpush.msra.mxu0 0.0
    %4676 = vmatpush.msra.mxu0 0.0
    %4677 = vmatpush.msra.mxu0 0.0
    %4678 = vmatpush.msra.mxu0 0.0
    %4679 = vmatpush.msra.mxu0 0.0
    %4680 = vmatpush.msra.mxu0 0.0
    %4681 = vmatpush.msra.mxu0 0.0
    %4682 = vmatpush.msra.mxu0 0.0
    %4683 = vmatpush.msra.mxu0 0.0
    %v4684 = vand.u32 %v1168, 4294901760
    %v4685 = vsub.f32 %v1168, %v4684
    %v4686 = vand.u32 %v4685, 4294901760
    %4687 = vmatpush.msra.mxu0 %v4686
    %v4688 = vand.u32 %v1159, 4294901760
    %v4689 = vsub.f32 %v1159, %v4688
    %v4690 = vand.u32 %v4689, 4294901760
    %4691 = vmatpush.msra.mxu0 %v4690
    %v4692 = vand.u32 %v1157, 4294901760
    %v4693 = vsub.f32 %v1157, %v4692
    %v4694 = vand.u32 %v4693, 4294901760
    %4695 = vmatpush.msra.mxu0 %v4694
    %v4696 = vand.u32 %v1155, 4294901760
    %v4697 = vsub.f32 %v1155, %v4696
    %v4698 = vand.u32 %v4697, 4294901760
    %4699 = vmatpush.msra.mxu0 %v4698
    %v4700 = vand.u32 %v1153, 4294901760
    %v4701 = vsub.f32 %v1153, %v4700
    %v4702 = vand.u32 %v4701, 4294901760
    %4703 = vmatpush.msra.mxu0 %v4702
    %v4704 = vand.u32 %v1151, 4294901760
    %v4705 = vsub.f32 %v1151, %v4704
    %v4706 = vand.u32 %v4705, 4294901760
    %4707 = vmatpush.msra.mxu0 %v4706
    %v4708 = vand.u32 %v1149, 4294901760
    %v4709 = vsub.f32 %v1149, %v4708
    %v4710 = vand.u32 %v4709, 4294901760
    %4711 = vmatpush.msra.mxu0 %v4710
    %v4712 = vand.u32 %v4519, 4294901760
    %4713 = vmatmul.f32.gmra.mxu0 %v4712
    %v4714 = vpop.f32.mrf.mxu0
    %v4715 = vadd.f32 %v4673, %v4714
    %4716 = vdwg.mxu0
    %4717 = vmatpush.msra.mxu0 0.0
    %4718 = vmatpush.msra.mxu0 0.0
    %4719 = vmatpush.msra.mxu0 0.0
    %4720 = vmatpush.msra.mxu0 0.0
    %4721 = vmatpush.msra.mxu0 0.0
    %4722 = vmatpush.msra.mxu0 0.0
    %4723 = vmatpush.msra.mxu0 0.0
    %4724 = vmatpush.msra.mxu0 0.0
    %4725 = vmatpush.msra.mxu0 0.0
    %v4726 = vand.u32 %v1168, 4294901760
    %4727 = vmatpush.msra.mxu0 %v4726
    %v4728 = vand.u32 %v1159, 4294901760
    %4729 = vmatpush.msra.mxu0 %v4728
    %v4730 = vand.u32 %v1157, 4294901760
    %4731 = vmatpush.msra.mxu0 %v4730
    %v4732 = vand.u32 %v1155, 4294901760
    %4733 = vmatpush.msra.mxu0 %v4732
    %v4734 = vand.u32 %v1153, 4294901760
    %4735 = vmatpush.msra.mxu0 %v4734
    %v4736 = vand.u32 %v1151, 4294901760
    %4737 = vmatpush.msra.mxu0 %v4736
    %v4738 = vand.u32 %v1149, 4294901760
    %4739 = vmatpush.msra.mxu0 %v4738
    %v4740 = vand.u32 %v4519, 4294901760
    %4741 = vmatmul.f32.gmra.mxu0 %v4740
    %v4742 = vpop.f32.mrf.mxu0
    %v4743 = vadd.f32 %v4715, %v4742
    %4744 = vdwg.mxu0
    %4745 = vmatpush.msra.mxu0 0.0
    %4746 = vmatpush.msra.mxu0 0.0
    %4747 = vmatpush.msra.mxu0 0.0
    %4748 = vmatpush.msra.mxu0 0.0
    %4749 = vmatpush.msra.mxu0 0.0
    %4750 = vmatpush.msra.mxu0 0.0
    %4751 = vmatpush.msra.mxu0 0.0
    %4752 = vmatpush.msra.mxu0 0.0
    %4753 = vmatpush.msra.mxu0 0.0
    %v4754 = vand.u32 %v1171, 4294901760
    %4755 = vmatpush.msra.mxu0 %v4754
    %v4756 = vand.u32 %v1160, 4294901760
    %4757 = vmatpush.msra.mxu0 %v4756
    %v4758 = vand.u32 %v1158, 4294901760
    %4759 = vmatpush.msra.mxu0 %v4758
    %v4760 = vand.u32 %v1156, 4294901760
    %4761 = vmatpush.msra.mxu0 %v4760
    %v4762 = vand.u32 %v1154, 4294901760
    %4763 = vmatpush.msra.mxu0 %v4762
    %v4764 = vand.u32 %v1152, 4294901760
    %4765 = vmatpush.msra.mxu0 %v4764
    %v4766 = vand.u32 %v1150, 4294901760
    %4767 = vmatpush.msra.mxu0 %v4766
    %v4768 = vand.u32 %v4519, 4294901760
    %v4769 = vsub.f32 %v4519, %v4768
    %v4770 = vand.u32 %v4769, 4294901760
    %v4771 = vsub.f32 %v4769, %v4770
    %v4772 = vand.u32 %v4771, 4294901760
    %4773 = vmatmul.f32.gmra.mxu0 %v4772
    %v4774 = vpop.f32.mrf.mxu0
    %v4775 = vadd.f32 0.0, %v4774
    %4776 = vdwg.mxu0
    %4777 = vmatpush.msra.mxu0 0.0
    %4778 = vmatpush.msra.mxu0 0.0
    %4779 = vmatpush.msra.mxu0 0.0
    %4780 = vmatpush.msra.mxu0 0.0
    %4781 = vmatpush.msra.mxu0 0.0
    %4782 = vmatpush.msra.mxu0 0.0
    %4783 = vmatpush.msra.mxu0 0.0
    %4784 = vmatpush.msra.mxu0 0.0
    %4785 = vmatpush.msra.mxu0 0.0
    %v4786 = vand.u32 %v1171, 4294901760
    %v4787 = vsub.f32 %v1171, %v4786
    %v4788 = vand.u32 %v4787, 4294901760
    %v4789 = vsub.f32 %v4787, %v4788
    %v4790 = vand.u32 %v4789, 4294901760
    %4791 = vmatpush.msra.mxu0 %v4790
    %v4792 = vand.u32 %v1160, 4294901760
    %v4793 = vsub.f32 %v1160, %v4792
    %v4794 = vand.u32 %v4793, 4294901760
    %v4795 = vsub.f32 %v4793, %v4794
    %v4796 = vand.u32 %v4795, 4294901760
    %4797 = vmatpush.msra.mxu0 %v4796
    %v4798 = vand.u32 %v1158, 4294901760
    %v4799 = vsub.f32 %v1158, %v4798
    %v4800 = vand.u32 %v4799, 4294901760
    %v4801 = vsub.f32 %v4799, %v4800
    %v4802 = vand.u32 %v4801, 4294901760
    %4803 = vmatpush.msra.mxu0 %v4802
    %v4804 = vand.u32 %v1156, 4294901760
    %v4805 = vsub.f32 %v1156, %v4804
    %v4806 = vand.u32 %v4805, 4294901760
    %v4807 = vsub.f32 %v4805, %v4806
    %v4808 = vand.u32 %v4807, 4294901760
    %4809 = vmatpush.msra.mxu0 %v4808
    %v4810 = vand.u32 %v1154, 4294901760
    %v4811 = vsub.f32 %v1154, %v4810
    %v4812 = vand.u32 %v4811, 4294901760
    %v4813 = vsub.f32 %v4811, %v4812
    %v4814 = vand.u32 %v4813, 4294901760
    %4815 = vmatpush.msra.mxu0 %v4814
    %v4816 = vand.u32 %v1152, 4294901760
    %v4817 = vsub.f32 %v1152, %v4816
    %v4818 = vand.u32 %v4817, 4294901760
    %v4819 = vsub.f32 %v4817, %v4818
    %v4820 = vand.u32 %v4819, 4294901760
    %4821 = vmatpush.msra.mxu0 %v4820
    %v4822 = vand.u32 %v1150, 4294901760
    %v4823 = vsub.f32 %v1150, %v4822
    %v4824 = vand.u32 %v4823, 4294901760
    %v4825 = vsub.f32 %v4823, %v4824
    %v4826 = vand.u32 %v4825, 4294901760
    %4827 = vmatpush.msra.mxu0 %v4826
    %v4828 = vand.u32 %v4519, 4294901760
    %4829 = vmatmul.f32.gmra.mxu0 %v4828
    %v4830 = vpop.f32.mrf.mxu0
    %v4831 = vadd.f32 %v4775, %v4830
    %4832 = vdwg.mxu0
    %4833 = vmatpush.msra.mxu0 0.0
    %4834 = vmatpush.msra.mxu0 0.0
    %4835 = vmatpush.msra.mxu0 0.0
    %4836 = vmatpush.msra.mxu0 0.0
    %4837 = vmatpush.msra.mxu0 0.0
    %4838 = vmatpush.msra.mxu0 0.0
    %4839 = vmatpush.msra.mxu0 0.0
    %4840 = vmatpush.msra.mxu0 0.0
    %4841 = vmatpush.msra.mxu0 0.0
    %v4842 = vand.u32 %v1171, 4294901760
    %v4843 = vsub.f32 %v1171, %v4842
    %4844 = vmatpush.msra.mxu0 %v4843
    %v4845 = vand.u32 %v1160, 4294901760
    %v4846 = vsub.f32 %v1160, %v4845
    %4847 = vmatpush.msra.mxu0 %v4846
    %v4848 = vand.u32 %v1158, 4294901760
    %v4849 = vsub.f32 %v1158, %v4848
    %4850 = vmatpush.msra.mxu0 %v4849
    %v4851 = vand.u32 %v1156, 4294901760
    %v4852 = vsub.f32 %v1156, %v4851
    %4853 = vmatpush.msra.mxu0 %v4852
    %v4854 = vand.u32 %v1154, 4294901760
    %v4855 = vsub.f32 %v1154, %v4854
    %4856 = vmatpush.msra.mxu0 %v4855
    %v4857 = vand.u32 %v1152, 4294901760
    %v4858 = vsub.f32 %v1152, %v4857
    %4859 = vmatpush.msra.mxu0 %v4858
    %v4860 = vand.u32 %v1150, 4294901760
    %v4861 = vsub.f32 %v1150, %v4860
    %4862 = vmatpush.msra.mxu0 %v4861
    %v4863 = vand.u32 %v4519, 4294901760
    %v4864 = vsub.f32 %v4519, %v4863
    %4865 = vmatmul.f32.gmra.mxu0 %v4864
    %v4866 = vpop.f32.mrf.mxu0
    %v4867 = vadd.f32 %v4831, %v4866
    %4868 = vdwg.mxu0
    %4869 = vmatpush.msra.mxu0 0.0
    %4870 = vmatpush.msra.mxu0 0.0
    %4871 = vmatpush.msra.mxu0 0.0
    %4872 = vmatpush.msra.mxu0 0.0
    %4873 = vmatpush.msra.mxu0 0.0
    %4874 = vmatpush.msra.mxu0 0.0
    %4875 = vmatpush.msra.mxu0 0.0
    %4876 = vmatpush.msra.mxu0 0.0
    %4877 = vmatpush.msra.mxu0 0.0
    %v4878 = vand.u32 %v1171, 4294901760
    %4879 = vmatpush.msra.mxu0 %v4878
    %v4880 = vand.u32 %v1160, 4294901760
    %4881 = vmatpush.msra.mxu0 %v4880
    %v4882 = vand.u32 %v1158, 4294901760
    %4883 = vmatpush.msra.mxu0 %v4882
    %v4884 = vand.u32 %v1156, 4294901760
    %4885 = vmatpush.msra.mxu0 %v4884
    %v4886 = vand.u32 %v1154, 4294901760
    %4887 = vmatpush.msra.mxu0 %v4886
    %v4888 = vand.u32 %v1152, 4294901760
    %4889 = vmatpush.msra.mxu0 %v4888
    %v4890 = vand.u32 %v1150, 4294901760
    %4891 = vmatpush.msra.mxu0 %v4890
    %v4892 = vand.u32 %v4519, 4294901760
    %v4893 = vsub.f32 %v4519, %v4892
    %v4894 = vand.u32 %v4893, 4294901760
    %4895 = vmatmul.f32.gmra.mxu0 %v4894
    %v4896 = vpop.f32.mrf.mxu0
    %v4897 = vadd.f32 %v4867, %v4896
    %4898 = vdwg.mxu0
    %4899 = vmatpush.msra.mxu0 0.0
    %4900 = vmatpush.msra.mxu0 0.0
    %4901 = vmatpush.msra.mxu0 0.0
    %4902 = vmatpush.msra.mxu0 0.0
    %4903 = vmatpush.msra.mxu0 0.0
    %4904 = vmatpush.msra.mxu0 0.0
    %4905 = vmatpush.msra.mxu0 0.0
    %4906 = vmatpush.msra.mxu0 0.0
    %4907 = vmatpush.msra.mxu0 0.0
    %v4908 = vand.u32 %v1171, 4294901760
    %v4909 = vsub.f32 %v1171, %v4908
    %v4910 = vand.u32 %v4909, 4294901760
    %4911 = vmatpush.msra.mxu0 %v4910
    %v4912 = vand.u32 %v1160, 4294901760
    %v4913 = vsub.f32 %v1160, %v4912
    %v4914 = vand.u32 %v4913, 4294901760
    %4915 = vmatpush.msra.mxu0 %v4914
    %v4916 = vand.u32 %v1158, 4294901760
    %v4917 = vsub.f32 %v1158, %v4916
    %v4918 = vand.u32 %v4917, 4294901760
    %4919 = vmatpush.msra.mxu0 %v4918
    %v4920 = vand.u32 %v1156, 4294901760
    %v4921 = vsub.f32 %v1156, %v4920
    %v4922 = vand.u32 %v4921, 4294901760
    %4923 = vmatpush.msra.mxu0 %v4922
    %v4924 = vand.u32 %v1154, 4294901760
    %v4925 = vsub.f32 %v1154, %v4924
    %v4926 = vand.u32 %v4925, 4294901760
    %4927 = vmatpush.msra.mxu0 %v4926
    %v4928 = vand.u32 %v1152, 4294901760
    %v4929 = vsub.f32 %v1152, %v4928
    %v4930 = vand.u32 %v4929, 4294901760
    %4931 = vmatpush.msra.mxu0 %v4930
    %v4932 = vand.u32 %v1150, 4294901760
    %v4933 = vsub.f32 %v1150, %v4932
    %v4934 = vand.u32 %v4933, 4294901760
    %4935 = vmatpush.msra.mxu0 %v4934
    %v4936 = vand.u32 %v4519, 4294901760
    %4937 = vmatmul.f32.gmra.mxu0 %v4936
    %v4938 = vpop.f32.mrf.mxu0
    %v4939 = vadd.f32 %v4897, %v4938
    %4940 = vdwg.mxu0
    %4941 = vmatpush.msra.mxu0 0.0
    %4942 = vmatpush.msra.mxu0 0.0
    %4943 = vmatpush.msra.mxu0 0.0
    %4944 = vmatpush.msra.mxu0 0.0
    %4945 = vmatpush.msra.mxu0 0.0
    %4946 = vmatpush.msra.mxu0 0.0
    %4947 = vmatpush.msra.mxu0 0.0
    %4948 = vmatpush.msra.mxu0 0.0
    %4949 = vmatpush.msra.mxu0 0.0
    %v4950 = vand.u32 %v1171, 4294901760
    %4951 = vmatpush.msra.mxu0 %v4950
    %v4952 = vand.u32 %v1160, 4294901760
    %4953 = vmatpush.msra.mxu0 %v4952
    %v4954 = vand.u32 %v1158, 4294901760
    %4955 = vmatpush.msra.mxu0 %v4954
    %v4956 = vand.u32 %v1156, 4294901760
    %4957 = vmatpush.msra.mxu0 %v4956
    %v4958 = vand.u32 %v1154, 4294901760
    %4959 = vmatpush.msra.mxu0 %v4958
    %v4960 = vand.u32 %v1152, 4294901760
    %4961 = vmatpush.msra.mxu0 %v4960
    %v4962 = vand.u32 %v1150, 4294901760
    %4963 = vmatpush.msra.mxu0 %v4962
    %v4964 = vand.u32 %v4519, 4294901760
    %4965 = vmatmul.f32.gmra.mxu0 %v4964
    %v4966 = vpop.f32.mrf.mxu0
    %v4967 = vadd.f32 %v4939, %v4966
    %4968 = vdwg.mxu0
    %v4971 = vrot.slane %v4967, 6
    %v4972 = vsel %vm1107, %v4743, %v4971
    %v4973 = vrot.slane %v4972, 1
    %v4976 = vadd.f32 %v1117, %v4972
    %v4977 = vadd.f32 %v1129, %v4973
    %v4978 = vxor.u32 %v4976, 2147483648
    %v4979 = vxor.u32 %v4977, 2147483648
    %v4980 = vmul.f32 %v4978, 1.442695
    %v4981 = vpow.pop %v4980
    %v4982 = vmul.f32 %v4979, 1.442695
    %v4983 = vpow.pop %v4982
    %v4984 = vadd.f32 %v4981, 1.0
    %v4985 = vadd.f32 %v4983, 1.0
    %v4986 = vrcp.pop %v4984
    %v4987 = vmul.f32 %v4984, %v4986
    %v4988 = vsub.f32 1.0, %v4987
    %v4989 = vmul.f32 %v4986, %v4988
    %v4990 = vadd.f32 %v4986, %v4989
    %vm4991 = vweird.f32 %v4984
    %vm4992 = vweird.f32 %v4986
    %vm4993 = vmor %vm4991, %vm4992
    %v4994 = vsel %vm4993, %v4986, %v4990
    %v4995 = vand.u32 2147483647, %v4984
    %vm4996 = vcmp.eq.f32.partialorder %v4995, 8.507059e+37
    %v4997 = vand.u32 %v4984, 2147483648
    %v4998 = vor.u32 1.1754944e-38, %v4997
    %v4999 = vsel %vm4996, %v4998, %v4994
    %v5000 = vmul.f32 1.0, %v4999
    %v5001 = vrcp.pop %v4985
    %v5002 = vmul.f32 %v4985, %v5001
    %v5003 = vsub.f32 1.0, %v5002
    %v5004 = vmul.f32 %v5001, %v5003
    %v5005 = vadd.f32 %v5001, %v5004
    %vm5006 = vweird.f32 %v4985
    %vm5007 = vweird.f32 %v5001
    %vm5008 = vmor %vm5006, %vm5007
    %v5009 = vsel %vm5008, %v5001, %v5005
    %v5010 = vand.u32 2147483647, %v4985
    %vm5011 = vcmp.eq.f32.partialorder %v5010, 8.507059e+37
    %v5012 = vand.u32 %v4985, 2147483648
    %v5013 = vor.u32 1.1754944e-38, %v5012
    %v5014 = vsel %vm5011, %v5013, %v5009
    %v5015 = vmul.f32 1.0, %v5014
    %5018 = vrot.lane.b32.xlu0 %v4976, 106
    %v5019 = vpop.permute.xlu0 %5018
    %5020 = vrot.lane.b32.xlu0 %v4977, 106
    %v5021 = vpop.permute.xlu0 %5020
    %v5022 = vrot.slane %v5019, 2
    %v5023 = vrot.slane %v5021, 2
    %v5026 = vtanh.pop %v5022
    %v5027 = vtanh.pop %v5023
    %v5030 = vrot.slane %v4488, 7
    %v5031 = vrot.slane %v5030, 2
    %v5032 = vrot.slane %v4489, 7
    %v5033 = vrot.slane %v5032, 2
    %v5036 = vmul.f32 %v5000, %v5031
    %v5037 = vmul.f32 %v5015, %v5033
    %v5038 = vmul.f32 %v5000, %v5026
    %v5039 = vmul.f32 %v5015, %v5027
    %5042 = vrot.lane.b32.xlu0 %v5038, 50
    %v5043 = vpop.permute.xlu0 %5042
    %5044 = vrot.lane.b32.xlu0 %v5039, 50
    %v5045 = vpop.permute.xlu0 %5044
    %v5048 = vadd.f32 %v5036, %v5043
    %v5049 = vadd.f32 %v5037, %v5045
    %v5050 = vtanh.pop %v5048
    %v5051 = vtanh.pop %v5049
    %5054 = vrot.lane.b32.xlu0 %v5050, 50
    %v5055 = vpop.permute.xlu0 %5054
    %5056 = vrot.lane.b32.xlu0 %v5051, 50
    %v5057 = vpop.permute.xlu0 %5056
    %v5058 = vrot.slane %v5055, 6
    %v5059 = vrot.slane %v5057, 6
    %v5060 = vsel %vm1163, %v5058, %v5055
    %v5061 = vsel %vm1163, %v5059, %v5057
    %v5064 = vmul.f32 %v5000, %v5060
    %v5065 = vmul.f32 %v5015, %v5061
    %v5068 = vperm.slane %v5064, 0
    %v5069 = vperm.slane %v5064, 2
    %v5070 = vperm.slane %v5065, 0
    %v5071 = vperm.slane %v5065, 2
    %v5072 = vsel %vm1716, %v5070, %v5068
    %v5073 = vsel %vm1716, %v5071, %v5069
    %5074 = vrot.lane.b32.xlu0 %v5072, 28
    %v5075 = vpop.permute.xlu0 %5074
    %5076 = vrot.lane.b32.xlu0 %v5073, 28
    %v5077 = vpop.permute.xlu0 %5076
    %v5078 = vsel %vm1723, %v5075, %v5077
    %v5079 = vsel %vm1163, %v5078, 0
    %5081 = vmatpush.msra.mxu0 0.0
    %5082 = vmatpush.msra.mxu0 0.0
    %5083 = vmatpush.msra.mxu0 0.0
    %5084 = vmatpush.msra.mxu0 0.0
    %5085 = vmatpush.msra.mxu0 0.0
    %5086 = vmatpush.msra.mxu0 0.0
    %5087 = vmatpush.msra.mxu0 0.0
    %5088 = vmatpush.msra.mxu0 0.0
    %5089 = vmatpush.msra.mxu0 0.0
    %v5090 = vand.u32 %v1168, 4294901760
    %5091 = vmatpush.msra.mxu0 %v5090
    %v5092 = vand.u32 %v1159, 4294901760
    %5093 = vmatpush.msra.mxu0 %v5092
    %v5094 = vand.u32 %v1157, 4294901760
    %5095 = vmatpush.msra.mxu0 %v5094
    %v5096 = vand.u32 %v1155, 4294901760
    %5097 = vmatpush.msra.mxu0 %v5096
    %v5098 = vand.u32 %v1153, 4294901760
    %5099 = vmatpush.msra.mxu0 %v5098
    %v5100 = vand.u32 %v1151, 4294901760
    %5101 = vmatpush.msra.mxu0 %v5100
    %v5102 = vand.u32 %v1149, 4294901760
    %5103 = vmatpush.msra.mxu0 %v5102
    %v5104 = vand.u32 %v5079, 4294901760
    %v5105 = vsub.f32 %v5079, %v5104
    %v5106 = vand.u32 %v5105, 4294901760
    %v5107 = vsub.f32 %v5105, %v5106
    %v5108 = vand.u32 %v5107, 4294901760
    %5109 = vmatmul.f32.gmra.mxu0 %v5108
    %v5110 = vpop.f32.mrf.mxu0
    %v5111 = vadd.f32 0.0, %v5110
    %5112 = vdwg.mxu0
    %5113 = vmatpush.msra.mxu0 0.0
    %5114 = vmatpush.msra.mxu0 0.0
    %5115 = vmatpush.msra.mxu0 0.0
    %5116 = vmatpush.msra.mxu0 0.0
    %5117 = vmatpush.msra.mxu0 0.0
    %5118 = vmatpush.msra.mxu0 0.0
    %5119 = vmatpush.msra.mxu0 0.0
    %5120 = vmatpush.msra.mxu0 0.0
    %5121 = vmatpush.msra.mxu0 0.0
    %v5122 = vand.u32 %v1168, 4294901760
    %v5123 = vsub.f32 %v1168, %v5122
    %v5124 = vand.u32 %v5123, 4294901760
    %v5125 = vsub.f32 %v5123, %v5124
    %v5126 = vand.u32 %v5125, 4294901760
    %5127 = vmatpush.msra.mxu0 %v5126
    %v5128 = vand.u32 %v1159, 4294901760
    %v5129 = vsub.f32 %v1159, %v5128
    %v5130 = vand.u32 %v5129, 4294901760
    %v5131 = vsub.f32 %v5129, %v5130
    %v5132 = vand.u32 %v5131, 4294901760
    %5133 = vmatpush.msra.mxu0 %v5132
    %v5134 = vand.u32 %v1157, 4294901760
    %v5135 = vsub.f32 %v1157, %v5134
    %v5136 = vand.u32 %v5135, 4294901760
    %v5137 = vsub.f32 %v5135, %v5136
    %v5138 = vand.u32 %v5137, 4294901760
    %5139 = vmatpush.msra.mxu0 %v5138
    %v5140 = vand.u32 %v1155, 4294901760
    %v5141 = vsub.f32 %v1155, %v5140
    %v5142 = vand.u32 %v5141, 4294901760
    %v5143 = vsub.f32 %v5141, %v5142
    %v5144 = vand.u32 %v5143, 4294901760
    %5145 = vmatpush.msra.mxu0 %v5144
    %v5146 = vand.u32 %v1153, 4294901760
    %v5147 = vsub.f32 %v1153, %v5146
    %v5148 = vand.u32 %v5147, 4294901760
    %v5149 = vsub.f32 %v5147, %v5148
    %v5150 = vand.u32 %v5149, 4294901760
    %5151 = vmatpush.msra.mxu0 %v5150
    %v5152 = vand.u32 %v1151, 4294901760
    %v5153 = vsub.f32 %v1151, %v5152
    %v5154 = vand.u32 %v5153, 4294901760
    %v5155 = vsub.f32 %v5153, %v5154
    %v5156 = vand.u32 %v5155, 4294901760
    %5157 = vmatpush.msra.mxu0 %v5156
    %v5158 = vand.u32 %v1149, 4294901760
    %v5159 = vsub.f32 %v1149, %v5158
    %v5160 = vand.u32 %v5159, 4294901760
    %v5161 = vsub.f32 %v5159, %v5160
    %v5162 = vand.u32 %v5161, 4294901760
    %5163 = vmatpush.msra.mxu0 %v5162
    %v5164 = vand.u32 %v5079, 4294901760
    %5165 = vmatmul.f32.gmra.mxu0 %v5164
    %v5166 = vpop.f32.mrf.mxu0
    %v5167 = vadd.f32 %v5111, %v5166
    %5168 = vdwg.mxu0
    %5169 = vmatpush.msra.mxu0 0.0
    %5170 = vmatpush.msra.mxu0 0.0
    %5171 = vmatpush.msra.mxu0 0.0
    %5172 = vmatpush.msra.mxu0 0.0
    %5173 = vmatpush.msra.mxu0 0.0
    %5174 = vmatpush.msra.mxu0 0.0
    %5175 = vmatpush.msra.mxu0 0.0
    %5176 = vmatpush.msra.mxu0 0.0
    %5177 = vmatpush.msra.mxu0 0.0
    %v5178 = vand.u32 %v1168, 4294901760
    %v5179 = vsub.f32 %v1168, %v5178
    %5180 = vmatpush.msra.mxu0 %v5179
    %v5181 = vand.u32 %v1159, 4294901760
    %v5182 = vsub.f32 %v1159, %v5181
    %5183 = vmatpush.msra.mxu0 %v5182
    %v5184 = vand.u32 %v1157, 4294901760
    %v5185 = vsub.f32 %v1157, %v5184
    %5186 = vmatpush.msra.mxu0 %v5185
    %v5187 = vand.u32 %v1155, 4294901760
    %v5188 = vsub.f32 %v1155, %v5187
    %5189 = vmatpush.msra.mxu0 %v5188
    %v5190 = vand.u32 %v1153, 4294901760
    %v5191 = vsub.f32 %v1153, %v5190
    %5192 = vmatpush.msra.mxu0 %v5191
    %v5193 = vand.u32 %v1151, 4294901760
    %v5194 = vsub.f32 %v1151, %v5193
    %5195 = vmatpush.msra.mxu0 %v5194
    %v5196 = vand.u32 %v1149, 4294901760
    %v5197 = vsub.f32 %v1149, %v5196
    %5198 = vmatpush.msra.mxu0 %v5197
    %v5199 = vand.u32 %v5079, 4294901760
    %v5200 = vsub.f32 %v5079, %v5199
    %5201 = vmatmul.f32.gmra.mxu0 %v5200
    %v5202 = vpop.f32.mrf.mxu0
    %v5203 = vadd.f32 %v5167, %v5202
    %5204 = vdwg.mxu0
    %5205 = vmatpush.msra.mxu0 0.0
    %5206 = vmatpush.msra.mxu0 0.0
    %5207 = vmatpush.msra.mxu0 0.0
    %5208 = vmatpush.msra.mxu0 0.0
    %5209 = vmatpush.msra.mxu0 0.0
    %5210 = vmatpush.msra.mxu0 0.0
    %5211 = vmatpush.msra.mxu0 0.0
    %5212 = vmatpush.msra.mxu0 0.0
    %5213 = vmatpush.msra.mxu0 0.0
    %v5214 = vand.u32 %v1168, 4294901760
    %5215 = vmatpush.msra.mxu0 %v5214
    %v5216 = vand.u32 %v1159, 4294901760
    %5217 = vmatpush.msra.mxu0 %v5216
    %v5218 = vand.u32 %v1157, 4294901760
    %5219 = vmatpush.msra.mxu0 %v5218
    %v5220 = vand.u32 %v1155, 4294901760
    %5221 = vmatpush.msra.mxu0 %v5220
    %v5222 = vand.u32 %v1153, 4294901760
    %5223 = vmatpush.msra.mxu0 %v5222
    %v5224 = vand.u32 %v1151, 4294901760
    %5225 = vmatpush.msra.mxu0 %v5224
    %v5226 = vand.u32 %v1149, 4294901760
    %5227 = vmatpush.msra.mxu0 %v5226
    %v5228 = vand.u32 %v5079, 4294901760
    %v5229 = vsub.f32 %v5079, %v5228
    %v5230 = vand.u32 %v5229, 4294901760
    %5231 = vmatmul.f32.gmra.mxu0 %v5230
    %v5232 = vpop.f32.mrf.mxu0
    %v5233 = vadd.f32 %v5203, %v5232
    %5234 = vdwg.mxu0
    %5235 = vmatpush.msra.mxu0 0.0
    %5236 = vmatpush.msra.mxu0 0.0
    %5237 = vmatpush.msra.mxu0 0.0
    %5238 = vmatpush.msra.mxu0 0.0
    %5239 = vmatpush.msra.mxu0 0.0
    %5240 = vmatpush.msra.mxu0 0.0
    %5241 = vmatpush.msra.mxu0 0.0
    %5242 = vmatpush.msra.mxu0 0.0
    %5243 = vmatpush.msra.mxu0 0.0
    %v5244 = vand.u32 %v1168, 4294901760
    %v5245 = vsub.f32 %v1168, %v5244
    %v5246 = vand.u32 %v5245, 4294901760
    %5247 = vmatpush.msra.mxu0 %v5246
    %v5248 = vand.u32 %v1159, 4294901760
    %v5249 = vsub.f32 %v1159, %v5248
    %v5250 = vand.u32 %v5249, 4294901760
    %5251 = vmatpush.msra.mxu0 %v5250
    %v5252 = vand.u32 %v1157, 4294901760
    %v5253 = vsub.f32 %v1157, %v5252
    %v5254 = vand.u32 %v5253, 4294901760
    %5255 = vmatpush.msra.mxu0 %v5254
    %v5256 = vand.u32 %v1155, 4294901760
    %v5257 = vsub.f32 %v1155, %v5256
    %v5258 = vand.u32 %v5257, 4294901760
    %5259 = vmatpush.msra.mxu0 %v5258
    %v5260 = vand.u32 %v1153, 4294901760
    %v5261 = vsub.f32 %v1153, %v5260
    %v5262 = vand.u32 %v5261, 4294901760
    %5263 = vmatpush.msra.mxu0 %v5262
    %v5264 = vand.u32 %v1151, 4294901760
    %v5265 = vsub.f32 %v1151, %v5264
    %v5266 = vand.u32 %v5265, 4294901760
    %5267 = vmatpush.msra.mxu0 %v5266
    %v5268 = vand.u32 %v1149, 4294901760
    %v5269 = vsub.f32 %v1149, %v5268
    %v5270 = vand.u32 %v5269, 4294901760
    %5271 = vmatpush.msra.mxu0 %v5270
    %v5272 = vand.u32 %v5079, 4294901760
    %5273 = vmatmul.f32.gmra.mxu0 %v5272
    %v5274 = vpop.f32.mrf.mxu0
    %v5275 = vadd.f32 %v5233, %v5274
    %5276 = vdwg.mxu0
    %5277 = vmatpush.msra.mxu0 0.0
    %5278 = vmatpush.msra.mxu0 0.0
    %5279 = vmatpush.msra.mxu0 0.0
    %5280 = vmatpush.msra.mxu0 0.0
    %5281 = vmatpush.msra.mxu0 0.0
    %5282 = vmatpush.msra.mxu0 0.0
    %5283 = vmatpush.msra.mxu0 0.0
    %5284 = vmatpush.msra.mxu0 0.0
    %5285 = vmatpush.msra.mxu0 0.0
    %v5286 = vand.u32 %v1168, 4294901760
    %5287 = vmatpush.msra.mxu0 %v5286
    %v5288 = vand.u32 %v1159, 4294901760
    %5289 = vmatpush.msra.mxu0 %v5288
    %v5290 = vand.u32 %v1157, 4294901760
    %5291 = vmatpush.msra.mxu0 %v5290
    %v5292 = vand.u32 %v1155, 4294901760
    %5293 = vmatpush.msra.mxu0 %v5292
    %v5294 = vand.u32 %v1153, 4294901760
    %5295 = vmatpush.msra.mxu0 %v5294
    %v5296 = vand.u32 %v1151, 4294901760
    %5297 = vmatpush.msra.mxu0 %v5296
    %v5298 = vand.u32 %v1149, 4294901760
    %5299 = vmatpush.msra.mxu0 %v5298
    %v5300 = vand.u32 %v5079, 4294901760
    %5301 = vmatmul.f32.gmra.mxu0 %v5300
    %v5302 = vpop.f32.mrf.mxu0
    %v5303 = vadd.f32 %v5275, %v5302
    %5304 = vdwg.mxu0
    %5305 = vmatpush.msra.mxu0 0.0
    %5306 = vmatpush.msra.mxu0 0.0
    %5307 = vmatpush.msra.mxu0 0.0
    %5308 = vmatpush.msra.mxu0 0.0
    %5309 = vmatpush.msra.mxu0 0.0
    %5310 = vmatpush.msra.mxu0 0.0
    %5311 = vmatpush.msra.mxu0 0.0
    %5312 = vmatpush.msra.mxu0 0.0
    %5313 = vmatpush.msra.mxu0 0.0
    %v5314 = vand.u32 %v1171, 4294901760
    %5315 = vmatpush.msra.mxu0 %v5314
    %v5316 = vand.u32 %v1160, 4294901760
    %5317 = vmatpush.msra.mxu0 %v5316
    %v5318 = vand.u32 %v1158, 4294901760
    %5319 = vmatpush.msra.mxu0 %v5318
    %v5320 = vand.u32 %v1156, 4294901760
    %5321 = vmatpush.msra.mxu0 %v5320
    %v5322 = vand.u32 %v1154, 4294901760
    %5323 = vmatpush.msra.mxu0 %v5322
    %v5324 = vand.u32 %v1152, 4294901760
    %5325 = vmatpush.msra.mxu0 %v5324
    %v5326 = vand.u32 %v1150, 4294901760
    %5327 = vmatpush.msra.mxu0 %v5326
    %v5328 = vand.u32 %v5079, 4294901760
    %v5329 = vsub.f32 %v5079, %v5328
    %v5330 = vand.u32 %v5329, 4294901760
    %v5331 = vsub.f32 %v5329, %v5330
    %v5332 = vand.u32 %v5331, 4294901760
    %5333 = vmatmul.f32.gmra.mxu0 %v5332
    %v5334 = vpop.f32.mrf.mxu0
    %v5335 = vadd.f32 0.0, %v5334
    %5336 = vdwg.mxu0
    %5337 = vmatpush.msra.mxu0 0.0
    %5338 = vmatpush.msra.mxu0 0.0
    %5339 = vmatpush.msra.mxu0 0.0
    %5340 = vmatpush.msra.mxu0 0.0
    %5341 = vmatpush.msra.mxu0 0.0
    %5342 = vmatpush.msra.mxu0 0.0
    %5343 = vmatpush.msra.mxu0 0.0
    %5344 = vmatpush.msra.mxu0 0.0
    %5345 = vmatpush.msra.mxu0 0.0
    %v5346 = vand.u32 %v1171, 4294901760
    %v5347 = vsub.f32 %v1171, %v5346
    %v5348 = vand.u32 %v5347, 4294901760
    %v5349 = vsub.f32 %v5347, %v5348
    %v5350 = vand.u32 %v5349, 4294901760
    %5351 = vmatpush.msra.mxu0 %v5350
    %v5352 = vand.u32 %v1160, 4294901760
    %v5353 = vsub.f32 %v1160, %v5352
    %v5354 = vand.u32 %v5353, 4294901760
    %v5355 = vsub.f32 %v5353, %v5354
    %v5356 = vand.u32 %v5355, 4294901760
    %5357 = vmatpush.msra.mxu0 %v5356
    %v5358 = vand.u32 %v1158, 4294901760
    %v5359 = vsub.f32 %v1158, %v5358
    %v5360 = vand.u32 %v5359, 4294901760
    %v5361 = vsub.f32 %v5359, %v5360
    %v5362 = vand.u32 %v5361, 4294901760
    %5363 = vmatpush.msra.mxu0 %v5362
    %v5364 = vand.u32 %v1156, 4294901760
    %v5365 = vsub.f32 %v1156, %v5364
    %v5366 = vand.u32 %v5365, 4294901760
    %v5367 = vsub.f32 %v5365, %v5366
    %v5368 = vand.u32 %v5367, 4294901760
    %5369 = vmatpush.msra.mxu0 %v5368
    %v5370 = vand.u32 %v1154, 4294901760
    %v5371 = vsub.f32 %v1154, %v5370
    %v5372 = vand.u32 %v5371, 4294901760
    %v5373 = vsub.f32 %v5371, %v5372
    %v5374 = vand.u32 %v5373, 4294901760
    %5375 = vmatpush.msra.mxu0 %v5374
    %v5376 = vand.u32 %v1152, 4294901760
    %v5377 = vsub.f32 %v1152, %v5376
    %v5378 = vand.u32 %v5377, 4294901760
    %v5379 = vsub.f32 %v5377, %v5378
    %v5380 = vand.u32 %v5379, 4294901760
    %5381 = vmatpush.msra.mxu0 %v5380
    %v5382 = vand.u32 %v1150, 4294901760
    %v5383 = vsub.f32 %v1150, %v5382
    %v5384 = vand.u32 %v5383, 4294901760
    %v5385 = vsub.f32 %v5383, %v5384
    %v5386 = vand.u32 %v5385, 4294901760
    %5387 = vmatpush.msra.mxu0 %v5386
    %v5388 = vand.u32 %v5079, 4294901760
    %5389 = vmatmul.f32.gmra.mxu0 %v5388
    %v5390 = vpop.f32.mrf.mxu0
    %v5391 = vadd.f32 %v5335, %v5390
    %5392 = vdwg.mxu0
    %5393 = vmatpush.msra.mxu0 0.0
    %5394 = vmatpush.msra.mxu0 0.0
    %5395 = vmatpush.msra.mxu0 0.0
    %5396 = vmatpush.msra.mxu0 0.0
    %5397 = vmatpush.msra.mxu0 0.0
    %5398 = vmatpush.msra.mxu0 0.0
    %5399 = vmatpush.msra.mxu0 0.0
    %5400 = vmatpush.msra.mxu0 0.0
    %5401 = vmatpush.msra.mxu0 0.0
    %v5402 = vand.u32 %v1171, 4294901760
    %v5403 = vsub.f32 %v1171, %v5402
    %5404 = vmatpush.msra.mxu0 %v5403
    %v5405 = vand.u32 %v1160, 4294901760
    %v5406 = vsub.f32 %v1160, %v5405
    %5407 = vmatpush.msra.mxu0 %v5406
    %v5408 = vand.u32 %v1158, 4294901760
    %v5409 = vsub.f32 %v1158, %v5408
    %5410 = vmatpush.msra.mxu0 %v5409
    %v5411 = vand.u32 %v1156, 4294901760
    %v5412 = vsub.f32 %v1156, %v5411
    %5413 = vmatpush.msra.mxu0 %v5412
    %v5414 = vand.u32 %v1154, 4294901760
    %v5415 = vsub.f32 %v1154, %v5414
    %5416 = vmatpush.msra.mxu0 %v5415
    %v5417 = vand.u32 %v1152, 4294901760
    %v5418 = vsub.f32 %v1152, %v5417
    %5419 = vmatpush.msra.mxu0 %v5418
    %v5420 = vand.u32 %v1150, 4294901760
    %v5421 = vsub.f32 %v1150, %v5420
    %5422 = vmatpush.msra.mxu0 %v5421
    %v5423 = vand.u32 %v5079, 4294901760
    %v5424 = vsub.f32 %v5079, %v5423
    %5425 = vmatmul.f32.gmra.mxu0 %v5424
    %v5426 = vpop.f32.mrf.mxu0
    %v5427 = vadd.f32 %v5391, %v5426
    %5428 = vdwg.mxu0
    %5429 = vmatpush.msra.mxu0 0.0
    %5430 = vmatpush.msra.mxu0 0.0
    %5431 = vmatpush.msra.mxu0 0.0
    %5432 = vmatpush.msra.mxu0 0.0
    %5433 = vmatpush.msra.mxu0 0.0
    %5434 = vmatpush.msra.mxu0 0.0
    %5435 = vmatpush.msra.mxu0 0.0
    %5436 = vmatpush.msra.mxu0 0.0
    %5437 = vmatpush.msra.mxu0 0.0
    %v5438 = vand.u32 %v1171, 4294901760
    %5439 = vmatpush.msra.mxu0 %v5438
    %v5440 = vand.u32 %v1160, 4294901760
    %5441 = vmatpush.msra.mxu0 %v5440
    %v5442 = vand.u32 %v1158, 4294901760
    %5443 = vmatpush.msra.mxu0 %v5442
    %v5444 = vand.u32 %v1156, 4294901760
    %5445 = vmatpush.msra.mxu0 %v5444
    %v5446 = vand.u32 %v1154, 4294901760
    %5447 = vmatpush.msra.mxu0 %v5446
    %v5448 = vand.u32 %v1152, 4294901760
    %5449 = vmatpush.msra.mxu0 %v5448
    %v5450 = vand.u32 %v1150, 4294901760
    %5451 = vmatpush.msra.mxu0 %v5450
    %v5452 = vand.u32 %v5079, 4294901760
    %v5453 = vsub.f32 %v5079, %v5452
    %v5454 = vand.u32 %v5453, 4294901760
    %5455 = vmatmul.f32.gmra.mxu0 %v5454
    %v5456 = vpop.f32.mrf.mxu0
    %v5457 = vadd.f32 %v5427, %v5456
    %5458 = vdwg.mxu0
    %5459 = vmatpush.msra.mxu0 0.0
    %5460 = vmatpush.msra.mxu0 0.0
    %5461 = vmatpush.msra.mxu0 0.0
    %5462 = vmatpush.msra.mxu0 0.0
    %5463 = vmatpush.msra.mxu0 0.0
    %5464 = vmatpush.msra.mxu0 0.0
    %5465 = vmatpush.msra.mxu0 0.0
    %5466 = vmatpush.msra.mxu0 0.0
    %5467 = vmatpush.msra.mxu0 0.0
    %v5468 = vand.u32 %v1171, 4294901760
    %v5469 = vsub.f32 %v1171, %v5468
    %v5470 = vand.u32 %v5469, 4294901760
    %5471 = vmatpush.msra.mxu0 %v5470
    %v5472 = vand.u32 %v1160, 4294901760
    %v5473 = vsub.f32 %v1160, %v5472
    %v5474 = vand.u32 %v5473, 4294901760
    %5475 = vmatpush.msra.mxu0 %v5474
    %v5476 = vand.u32 %v1158, 4294901760
    %v5477 = vsub.f32 %v1158, %v5476
    %v5478 = vand.u32 %v5477, 4294901760
    %5479 = vmatpush.msra.mxu0 %v5478
    %v5480 = vand.u32 %v1156, 4294901760
    %v5481 = vsub.f32 %v1156, %v5480
    %v5482 = vand.u32 %v5481, 4294901760
    %5483 = vmatpush.msra.mxu0 %v5482
    %v5484 = vand.u32 %v1154, 4294901760
    %v5485 = vsub.f32 %v1154, %v5484
    %v5486 = vand.u32 %v5485, 4294901760
    %5487 = vmatpush.msra.mxu0 %v5486
    %v5488 = vand.u32 %v1152, 4294901760
    %v5489 = vsub.f32 %v1152, %v5488
    %v5490 = vand.u32 %v5489, 4294901760
    %5491 = vmatpush.msra.mxu0 %v5490
    %v5492 = vand.u32 %v1150, 4294901760
    %v5493 = vsub.f32 %v1150, %v5492
    %v5494 = vand.u32 %v5493, 4294901760
    %5495 = vmatpush.msra.mxu0 %v5494
    %v5496 = vand.u32 %v5079, 4294901760
    %5497 = vmatmul.f32.gmra.mxu0 %v5496
    %v5498 = vpop.f32.mrf.mxu0
    %v5499 = vadd.f32 %v5457, %v5498
    %5500 = vdwg.mxu0
    %5501 = vmatpush.msra.mxu0 0.0
    %5502 = vmatpush.msra.mxu0 0.0
    %5503 = vmatpush.msra.mxu0 0.0
    %5504 = vmatpush.msra.mxu0 0.0
    %5505 = vmatpush.msra.mxu0 0.0
    %5506 = vmatpush.msra.mxu0 0.0
    %5507 = vmatpush.msra.mxu0 0.0
    %5508 = vmatpush.msra.mxu0 0.0
    %5509 = vmatpush.msra.mxu0 0.0
    %v5510 = vand.u32 %v1171, 4294901760
    %5511 = vmatpush.msra.mxu0 %v5510
    %v5512 = vand.u32 %v1160, 4294901760
    %5513 = vmatpush.msra.mxu0 %v5512
    %v5514 = vand.u32 %v1158, 4294901760
    %5515 = vmatpush.msra.mxu0 %v5514
    %v5516 = vand.u32 %v1156, 4294901760
    %5517 = vmatpush.msra.mxu0 %v5516
    %v5518 = vand.u32 %v1154, 4294901760
    %5519 = vmatpush.msra.mxu0 %v5518
    %v5520 = vand.u32 %v1152, 4294901760
    %5521 = vmatpush.msra.mxu0 %v5520
    %v5522 = vand.u32 %v1150, 4294901760
    %5523 = vmatpush.msra.mxu0 %v5522
    %v5524 = vand.u32 %v5079, 4294901760
    %5525 = vmatmul.f32.gmra.mxu0 %v5524
    %v5526 = vpop.f32.mrf.mxu0
    %v5527 = vadd.f32 %v5499, %v5526
    %5528 = vdwg.mxu0
    %v5531 = vrot.slane %v5527, 6
    %v5532 = vsel %vm1107, %v5303, %v5531
    %v5533 = vrot.slane %v5532, 7
    %v5536 = vadd.f32 %v1117, %v5533
    %v5537 = vadd.f32 %v1129, %v5532
    %v5538 = vxor.u32 %v5536, 2147483648
    %v5539 = vxor.u32 %v5537, 2147483648
    %v5540 = vmul.f32 %v5538, 1.442695
    %v5541 = vpow.pop %v5540
    %v5542 = vmul.f32 %v5539, 1.442695
    %v5543 = vpow.pop %v5542
    %v5544 = vadd.f32 %v5541, 1.0
    %v5545 = vadd.f32 %v5543, 1.0
    %v5546 = vrcp.pop %v5544
    %v5547 = vmul.f32 %v5544, %v5546
    %v5548 = vsub.f32 1.0, %v5547
    %v5549 = vmul.f32 %v5546, %v5548
    %v5550 = vadd.f32 %v5546, %v5549
    %vm5551 = vweird.f32 %v5544
    %vm5552 = vweird.f32 %v5546
    %vm5553 = vmor %vm5551, %vm5552
    %v5554 = vsel %vm5553, %v5546, %v5550
    %v5555 = vand.u32 2147483647, %v5544
    %vm5556 = vcmp.eq.f32.partialorder %v5555, 8.507059e+37
    %v5557 = vand.u32 %v5544, 2147483648
    %v5558 = vor.u32 1.1754944e-38, %v5557
    %v5559 = vsel %vm5556, %v5558, %v5554
    %v5560 = vmul.f32 1.0, %v5559
    %v5561 = vrcp.pop %v5545
    %v5562 = vmul.f32 %v5545, %v5561
    %v5563 = vsub.f32 1.0, %v5562
    %v5564 = vmul.f32 %v5561, %v5563
    %v5565 = vadd.f32 %v5561, %v5564
    %vm5566 = vweird.f32 %v5545
    %vm5567 = vweird.f32 %v5561
    %vm5568 = vmor %vm5566, %vm5567
    %v5569 = vsel %vm5568, %v5561, %v5565
    %v5570 = vand.u32 2147483647, %v5545
    %vm5571 = vcmp.eq.f32.partialorder %v5570, 8.507059e+37
    %v5572 = vand.u32 %v5545, 2147483648
    %v5573 = vor.u32 1.1754944e-38, %v5572
    %v5574 = vsel %vm5571, %v5573, %v5569
    %v5575 = vmul.f32 1.0, %v5574
    %5578 = vrot.lane.b32.xlu0 %v5536, 106
    %v5579 = vpop.permute.xlu0 %5578
    %5580 = vrot.lane.b32.xlu0 %v5537, 106
    %v5581 = vpop.permute.xlu0 %5580
    %v5582 = vrot.slane %v5579, 2
    %v5583 = vrot.slane %v5581, 2
    %v5586 = vtanh.pop %v5582
    %v5587 = vtanh.pop %v5583
    %v5590 = vrot.slane %v5048, 7
    %v5591 = vrot.slane %v5049, 7
    %v5594 = vmul.f32 %v5560, %v5590
    %v5595 = vmul.f32 %v5575, %v5591
    %v5596 = vmul.f32 %v5560, %v5586
    %v5597 = vmul.f32 %v5575, %v5587
    %5600 = vrot.lane.b32.xlu0 %v5596, 50
    %v5601 = vpop.permute.xlu0 %5600
    %5602 = vrot.lane.b32.xlu0 %v5597, 50
    %v5603 = vpop.permute.xlu0 %5602
    %v5606 = vadd.f32 %v5594, %v5601
    %v5607 = vadd.f32 %v5595, %v5603
    %v5608 = vtanh.pop %v5606
    %v5609 = vtanh.pop %v5607
    %5612 = vrot.lane.b32.xlu0 %v5608, 50
    %v5613 = vpop.permute.xlu0 %5612
    %5614 = vrot.lane.b32.xlu0 %v5609, 50
    %v5615 = vpop.permute.xlu0 %5614
    %v5616 = vrot.slane %v5613, 6
    %v5617 = vrot.slane %v5615, 6
    %v5618 = vsel %vm1163, %v5616, %v5613
    %v5619 = vsel %vm1163, %v5617, %v5615
    %v5622 = vmul.f32 %v5560, %v5618
    %v5623 = vmul.f32 %v5575, %v5619
    %v5626 = vperm.slane %v5622, 1
    %v5627 = vperm.slane %v5622, 3
    %v5628 = vperm.slane %v5623, 1
    %v5629 = vperm.slane %v5623, 3
    %v5630 = vsel %vm1716, %v5628, %v5626
    %v5631 = vsel %vm1716, %v5629, %v5627
    %5632 = vrot.lane.b32.xlu0 %v5630, 28
    %v5633 = vpop.permute.xlu0 %5632
    %5634 = vrot.lane.b32.xlu0 %v5631, 28
    %v5635 = vpop.permute.xlu0 %5634
    %v5636 = vsel %vm1723, %v5633, %v5635
    %v5637 = vsel %vm1163, %v5636, 0
    %5639 = vmatpush.msra.mxu0 0.0
    %5640 = vmatpush.msra.mxu0 0.0
    %5641 = vmatpush.msra.mxu0 0.0
    %5642 = vmatpush.msra.mxu0 0.0
    %5643 = vmatpush.msra.mxu0 0.0
    %5644 = vmatpush.msra.mxu0 0.0
    %5645 = vmatpush.msra.mxu0 0.0
    %5646 = vmatpush.msra.mxu0 0.0
    %5647 = vmatpush.msra.mxu0 0.0
    %v5648 = vand.u32 %v1168, 4294901760
    %5649 = vmatpush.msra.mxu0 %v5648
    %v5650 = vand.u32 %v1159, 4294901760
    %5651 = vmatpush.msra.mxu0 %v5650
    %v5652 = vand.u32 %v1157, 4294901760
    %5653 = vmatpush.msra.mxu0 %v5652
    %v5654 = vand.u32 %v1155, 4294901760
    %5655 = vmatpush.msra.mxu0 %v5654
    %v5656 = vand.u32 %v1153, 4294901760
    %5657 = vmatpush.msra.mxu0 %v5656
    %v5658 = vand.u32 %v1151, 4294901760
    %5659 = vmatpush.msra.mxu0 %v5658
    %v5660 = vand.u32 %v1149, 4294901760
    %5661 = vmatpush.msra.mxu0 %v5660
    %v5662 = vand.u32 %v5637, 4294901760
    %v5663 = vsub.f32 %v5637, %v5662
    %v5664 = vand.u32 %v5663, 4294901760
    %v5665 = vsub.f32 %v5663, %v5664
    %v5666 = vand.u32 %v5665, 4294901760
    %5667 = vmatmul.f32.gmra.mxu0 %v5666
    %v5668 = vpop.f32.mrf.mxu0
    %v5669 = vadd.f32 0.0, %v5668
    %5670 = vdwg.mxu0
    %5671 = vmatpush.msra.mxu0 0.0
    %5672 = vmatpush.msra.mxu0 0.0
    %5673 = vmatpush.msra.mxu0 0.0
    %5674 = vmatpush.msra.mxu0 0.0
    %5675 = vmatpush.msra.mxu0 0.0
    %5676 = vmatpush.msra.mxu0 0.0
    %5677 = vmatpush.msra.mxu0 0.0
    %5678 = vmatpush.msra.mxu0 0.0
    %5679 = vmatpush.msra.mxu0 0.0
    %v5680 = vand.u32 %v1168, 4294901760
    %v5681 = vsub.f32 %v1168, %v5680
    %v5682 = vand.u32 %v5681, 4294901760
    %v5683 = vsub.f32 %v5681, %v5682
    %v5684 = vand.u32 %v5683, 4294901760
    %5685 = vmatpush.msra.mxu0 %v5684
    %v5686 = vand.u32 %v1159, 4294901760
    %v5687 = vsub.f32 %v1159, %v5686
    %v5688 = vand.u32 %v5687, 4294901760
    %v5689 = vsub.f32 %v5687, %v5688
    %v5690 = vand.u32 %v5689, 4294901760
    %5691 = vmatpush.msra.mxu0 %v5690
    %v5692 = vand.u32 %v1157, 4294901760
    %v5693 = vsub.f32 %v1157, %v5692
    %v5694 = vand.u32 %v5693, 4294901760
    %v5695 = vsub.f32 %v5693, %v5694
    %v5696 = vand.u32 %v5695, 4294901760
    %5697 = vmatpush.msra.mxu0 %v5696
    %v5698 = vand.u32 %v1155, 4294901760
    %v5699 = vsub.f32 %v1155, %v5698
    %v5700 = vand.u32 %v5699, 4294901760
    %v5701 = vsub.f32 %v5699, %v5700
    %v5702 = vand.u32 %v5701, 4294901760
    %5703 = vmatpush.msra.mxu0 %v5702
    %v5704 = vand.u32 %v1153, 4294901760
    %v5705 = vsub.f32 %v1153, %v5704
    %v5706 = vand.u32 %v5705, 4294901760
    %v5707 = vsub.f32 %v5705, %v5706
    %v5708 = vand.u32 %v5707, 4294901760
    %5709 = vmatpush.msra.mxu0 %v5708
    %v5710 = vand.u32 %v1151, 4294901760
    %v5711 = vsub.f32 %v1151, %v5710
    %v5712 = vand.u32 %v5711, 4294901760
    %v5713 = vsub.f32 %v5711, %v5712
    %v5714 = vand.u32 %v5713, 4294901760
    %5715 = vmatpush.msra.mxu0 %v5714
    %v5716 = vand.u32 %v1149, 4294901760
    %v5717 = vsub.f32 %v1149, %v5716
    %v5718 = vand.u32 %v5717, 4294901760
    %v5719 = vsub.f32 %v5717, %v5718
    %v5720 = vand.u32 %v5719, 4294901760
    %5721 = vmatpush.msra.mxu0 %v5720
    %v5722 = vand.u32 %v5637, 4294901760
    %5723 = vmatmul.f32.gmra.mxu0 %v5722
    %v5724 = vpop.f32.mrf.mxu0
    %v5725 = vadd.f32 %v5669, %v5724
    %5726 = vdwg.mxu0
    %5727 = vmatpush.msra.mxu0 0.0
    %5728 = vmatpush.msra.mxu0 0.0
    %5729 = vmatpush.msra.mxu0 0.0
    %5730 = vmatpush.msra.mxu0 0.0
    %5731 = vmatpush.msra.mxu0 0.0
    %5732 = vmatpush.msra.mxu0 0.0
    %5733 = vmatpush.msra.mxu0 0.0
    %5734 = vmatpush.msra.mxu0 0.0
    %5735 = vmatpush.msra.mxu0 0.0
    %v5736 = vand.u32 %v1168, 4294901760
    %v5737 = vsub.f32 %v1168, %v5736
    %5738 = vmatpush.msra.mxu0 %v5737
    %v5739 = vand.u32 %v1159, 4294901760
    %v5740 = vsub.f32 %v1159, %v5739
    %5741 = vmatpush.msra.mxu0 %v5740
    %v5742 = vand.u32 %v1157, 4294901760
    %v5743 = vsub.f32 %v1157, %v5742
    %5744 = vmatpush.msra.mxu0 %v5743
    %v5745 = vand.u32 %v1155, 4294901760
    %v5746 = vsub.f32 %v1155, %v5745
    %5747 = vmatpush.msra.mxu0 %v5746
    %v5748 = vand.u32 %v1153, 4294901760
    %v5749 = vsub.f32 %v1153, %v5748
    %5750 = vmatpush.msra.mxu0 %v5749
    %v5751 = vand.u32 %v1151, 4294901760
    %v5752 = vsub.f32 %v1151, %v5751
    %5753 = vmatpush.msra.mxu0 %v5752
    %v5754 = vand.u32 %v1149, 4294901760
    %v5755 = vsub.f32 %v1149, %v5754
    %5756 = vmatpush.msra.mxu0 %v5755
    %v5757 = vand.u32 %v5637, 4294901760
    %v5758 = vsub.f32 %v5637, %v5757
    %5759 = vmatmul.f32.gmra.mxu0 %v5758
    %v5760 = vpop.f32.mrf.mxu0
    %v5761 = vadd.f32 %v5725, %v5760
    %5762 = vdwg.mxu0
    %5763 = vmatpush.msra.mxu0 0.0
    %5764 = vmatpush.msra.mxu0 0.0
    %5765 = vmatpush.msra.mxu0 0.0
    %5766 = vmatpush.msra.mxu0 0.0
    %5767 = vmatpush.msra.mxu0 0.0
    %5768 = vmatpush.msra.mxu0 0.0
    %5769 = vmatpush.msra.mxu0 0.0
    %5770 = vmatpush.msra.mxu0 0.0
    %5771 = vmatpush.msra.mxu0 0.0
    %v5772 = vand.u32 %v1168, 4294901760
    %5773 = vmatpush.msra.mxu0 %v5772
    %v5774 = vand.u32 %v1159, 4294901760
    %5775 = vmatpush.msra.mxu0 %v5774
    %v5776 = vand.u32 %v1157, 4294901760
    %5777 = vmatpush.msra.mxu0 %v5776
    %v5778 = vand.u32 %v1155, 4294901760
    %5779 = vmatpush.msra.mxu0 %v5778
    %v5780 = vand.u32 %v1153, 4294901760
    %5781 = vmatpush.msra.mxu0 %v5780
    %v5782 = vand.u32 %v1151, 4294901760
    %5783 = vmatpush.msra.mxu0 %v5782
    %v5784 = vand.u32 %v1149, 4294901760
    %5785 = vmatpush.msra.mxu0 %v5784
    %v5786 = vand.u32 %v5637, 4294901760
    %v5787 = vsub.f32 %v5637, %v5786
    %v5788 = vand.u32 %v5787, 4294901760
    %5789 = vmatmul.f32.gmra.mxu0 %v5788
    %v5790 = vpop.f32.mrf.mxu0
    %v5791 = vadd.f32 %v5761, %v5790
    %5792 = vdwg.mxu0
    %5793 = vmatpush.msra.mxu0 0.0
    %5794 = vmatpush.msra.mxu0 0.0
    %5795 = vmatpush.msra.mxu0 0.0
    %5796 = vmatpush.msra.mxu0 0.0
    %5797 = vmatpush.msra.mxu0 0.0
    %5798 = vmatpush.msra.mxu0 0.0
    %5799 = vmatpush.msra.mxu0 0.0
    %5800 = vmatpush.msra.mxu0 0.0
    %5801 = vmatpush.msra.mxu0 0.0
    %v5802 = vand.u32 %v1168, 4294901760
    %v5803 = vsub.f32 %v1168, %v5802
    %v5804 = vand.u32 %v5803, 4294901760
    %5805 = vmatpush.msra.mxu0 %v5804
    %v5806 = vand.u32 %v1159, 4294901760
    %v5807 = vsub.f32 %v1159, %v5806
    %v5808 = vand.u32 %v5807, 4294901760
    %5809 = vmatpush.msra.mxu0 %v5808
    %v5810 = vand.u32 %v1157, 4294901760
    %v5811 = vsub.f32 %v1157, %v5810
    %v5812 = vand.u32 %v5811, 4294901760
    %5813 = vmatpush.msra.mxu0 %v5812
    %v5814 = vand.u32 %v1155, 4294901760
    %v5815 = vsub.f32 %v1155, %v5814
    %v5816 = vand.u32 %v5815, 4294901760
    %5817 = vmatpush.msra.mxu0 %v5816
    %v5818 = vand.u32 %v1153, 4294901760
    %v5819 = vsub.f32 %v1153, %v5818
    %v5820 = vand.u32 %v5819, 4294901760
    %5821 = vmatpush.msra.mxu0 %v5820
    %v5822 = vand.u32 %v1151, 4294901760
    %v5823 = vsub.f32 %v1151, %v5822
    %v5824 = vand.u32 %v5823, 4294901760
    %5825 = vmatpush.msra.mxu0 %v5824
    %v5826 = vand.u32 %v1149, 4294901760
    %v5827 = vsub.f32 %v1149, %v5826
    %v5828 = vand.u32 %v5827, 4294901760
    %5829 = vmatpush.msra.mxu0 %v5828
    %v5830 = vand.u32 %v5637, 4294901760
    %5831 = vmatmul.f32.gmra.mxu0 %v5830
    %v5832 = vpop.f32.mrf.mxu0
    %v5833 = vadd.f32 %v5791, %v5832
    %5834 = vdwg.mxu0
    %5835 = vmatpush.msra.mxu0 0.0
    %5836 = vmatpush.msra.mxu0 0.0
    %5837 = vmatpush.msra.mxu0 0.0
    %5838 = vmatpush.msra.mxu0 0.0
    %5839 = vmatpush.msra.mxu0 0.0
    %5840 = vmatpush.msra.mxu0 0.0
    %5841 = vmatpush.msra.mxu0 0.0
    %5842 = vmatpush.msra.mxu0 0.0
    %5843 = vmatpush.msra.mxu0 0.0
    %v5844 = vand.u32 %v1168, 4294901760
    %5845 = vmatpush.msra.mxu0 %v5844
    %v5846 = vand.u32 %v1159, 4294901760
    %5847 = vmatpush.msra.mxu0 %v5846
    %v5848 = vand.u32 %v1157, 4294901760
    %5849 = vmatpush.msra.mxu0 %v5848
    %v5850 = vand.u32 %v1155, 4294901760
    %5851 = vmatpush.msra.mxu0 %v5850
    %v5852 = vand.u32 %v1153, 4294901760
    %5853 = vmatpush.msra.mxu0 %v5852
    %v5854 = vand.u32 %v1151, 4294901760
    %5855 = vmatpush.msra.mxu0 %v5854
    %v5856 = vand.u32 %v1149, 4294901760
    %5857 = vmatpush.msra.mxu0 %v5856
    %v5858 = vand.u32 %v5637, 4294901760
    %5859 = vmatmul.f32.gmra.mxu0 %v5858
    %v5860 = vpop.f32.mrf.mxu0
    %v5861 = vadd.f32 %v5833, %v5860
    %5862 = vdwg.mxu0
    %5863 = vmatpush.msra.mxu0 0.0
    %5864 = vmatpush.msra.mxu0 0.0
    %5865 = vmatpush.msra.mxu0 0.0
    %5866 = vmatpush.msra.mxu0 0.0
    %5867 = vmatpush.msra.mxu0 0.0
    %5868 = vmatpush.msra.mxu0 0.0
    %5869 = vmatpush.msra.mxu0 0.0
    %5870 = vmatpush.msra.mxu0 0.0
    %5871 = vmatpush.msra.mxu0 0.0
    %v5872 = vand.u32 %v1171, 4294901760
    %5873 = vmatpush.msra.mxu0 %v5872
    %v5874 = vand.u32 %v1160, 4294901760
    %5875 = vmatpush.msra.mxu0 %v5874
    %v5876 = vand.u32 %v1158, 4294901760
    %5877 = vmatpush.msra.mxu0 %v5876
    %v5878 = vand.u32 %v1156, 4294901760
    %5879 = vmatpush.msra.mxu0 %v5878
    %v5880 = vand.u32 %v1154, 4294901760
    %5881 = vmatpush.msra.mxu0 %v5880
    %v5882 = vand.u32 %v1152, 4294901760
    %5883 = vmatpush.msra.mxu0 %v5882
    %v5884 = vand.u32 %v1150, 4294901760
    %5885 = vmatpush.msra.mxu0 %v5884
    %v5886 = vand.u32 %v5637, 4294901760
    %v5887 = vsub.f32 %v5637, %v5886
    %v5888 = vand.u32 %v5887, 4294901760
    %v5889 = vsub.f32 %v5887, %v5888
    %v5890 = vand.u32 %v5889, 4294901760
    %5891 = vmatmul.f32.gmra.mxu0 %v5890
    %v5892 = vpop.f32.mrf.mxu0
    %v5893 = vadd.f32 0.0, %v5892
    %5894 = vdwg.mxu0
    %5895 = vmatpush.msra.mxu0 0.0
    %5896 = vmatpush.msra.mxu0 0.0
    %5897 = vmatpush.msra.mxu0 0.0
    %5898 = vmatpush.msra.mxu0 0.0
    %5899 = vmatpush.msra.mxu0 0.0
    %5900 = vmatpush.msra.mxu0 0.0
    %5901 = vmatpush.msra.mxu0 0.0
    %5902 = vmatpush.msra.mxu0 0.0
    %5903 = vmatpush.msra.mxu0 0.0
    %v5904 = vand.u32 %v1171, 4294901760
    %v5905 = vsub.f32 %v1171, %v5904
    %v5906 = vand.u32 %v5905, 4294901760
    %v5907 = vsub.f32 %v5905, %v5906
    %v5908 = vand.u32 %v5907, 4294901760
    %5909 = vmatpush.msra.mxu0 %v5908
    %v5910 = vand.u32 %v1160, 4294901760
    %v5911 = vsub.f32 %v1160, %v5910
    %v5912 = vand.u32 %v5911, 4294901760
    %v5913 = vsub.f32 %v5911, %v5912
    %v5914 = vand.u32 %v5913, 4294901760
    %5915 = vmatpush.msra.mxu0 %v5914
    %v5916 = vand.u32 %v1158, 4294901760
    %v5917 = vsub.f32 %v1158, %v5916
    %v5918 = vand.u32 %v5917, 4294901760
    %v5919 = vsub.f32 %v5917, %v5918
    %v5920 = vand.u32 %v5919, 4294901760
    %5921 = vmatpush.msra.mxu0 %v5920
    %v5922 = vand.u32 %v1156, 4294901760
    %v5923 = vsub.f32 %v1156, %v5922
    %v5924 = vand.u32 %v5923, 4294901760
    %v5925 = vsub.f32 %v5923, %v5924
    %v5926 = vand.u32 %v5925, 4294901760
    %5927 = vmatpush.msra.mxu0 %v5926
    %v5928 = vand.u32 %v1154, 4294901760
    %v5929 = vsub.f32 %v1154, %v5928
    %v5930 = vand.u32 %v5929, 4294901760
    %v5931 = vsub.f32 %v5929, %v5930
    %v5932 = vand.u32 %v5931, 4294901760
    %5933 = vmatpush.msra.mxu0 %v5932
    %v5934 = vand.u32 %v1152, 4294901760
    %v5935 = vsub.f32 %v1152, %v5934
    %v5936 = vand.u32 %v5935, 4294901760
    %v5937 = vsub.f32 %v5935, %v5936
    %v5938 = vand.u32 %v5937, 4294901760
    %5939 = vmatpush.msra.mxu0 %v5938
    %v5940 = vand.u32 %v1150, 4294901760
    %v5941 = vsub.f32 %v1150, %v5940
    %v5942 = vand.u32 %v5941, 4294901760
    %v5943 = vsub.f32 %v5941, %v5942
    %v5944 = vand.u32 %v5943, 4294901760
    %5945 = vmatpush.msra.mxu0 %v5944
    %v5946 = vand.u32 %v5637, 4294901760
    %5947 = vmatmul.f32.gmra.mxu0 %v5946
    %v5948 = vpop.f32.mrf.mxu0
    %v5949 = vadd.f32 %v5893, %v5948
    %5950 = vdwg.mxu0
    %5951 = vmatpush.msra.mxu0 0.0
    %5952 = vmatpush.msra.mxu0 0.0
    %5953 = vmatpush.msra.mxu0 0.0
    %5954 = vmatpush.msra.mxu0 0.0
    %5955 = vmatpush.msra.mxu0 0.0
    %5956 = vmatpush.msra.mxu0 0.0
    %5957 = vmatpush.msra.mxu0 0.0
    %5958 = vmatpush.msra.mxu0 0.0
    %5959 = vmatpush.msra.mxu0 0.0
    %v5960 = vand.u32 %v1171, 4294901760
    %v5961 = vsub.f32 %v1171, %v5960
    %5962 = vmatpush.msra.mxu0 %v5961
    %v5963 = vand.u32 %v1160, 4294901760
    %v5964 = vsub.f32 %v1160, %v5963
    %5965 = vmatpush.msra.mxu0 %v5964
    %v5966 = vand.u32 %v1158, 4294901760
    %v5967 = vsub.f32 %v1158, %v5966
    %5968 = vmatpush.msra.mxu0 %v5967
    %v5969 = vand.u32 %v1156, 4294901760
    %v5970 = vsub.f32 %v1156, %v5969
    %5971 = vmatpush.msra.mxu0 %v5970
    %v5972 = vand.u32 %v1154, 4294901760
    %v5973 = vsub.f32 %v1154, %v5972
    %5974 = vmatpush.msra.mxu0 %v5973
    %v5975 = vand.u32 %v1152, 4294901760
    %v5976 = vsub.f32 %v1152, %v5975
    %5977 = vmatpush.msra.mxu0 %v5976
    %v5978 = vand.u32 %v1150, 4294901760
    %v5979 = vsub.f32 %v1150, %v5978
    %5980 = vmatpush.msra.mxu0 %v5979
    %v5981 = vand.u32 %v5637, 4294901760
    %v5982 = vsub.f32 %v5637, %v5981
    %5983 = vmatmul.f32.gmra.mxu0 %v5982
    %v5984 = vpop.f32.mrf.mxu0
    %v5985 = vadd.f32 %v5949, %v5984
    %5986 = vdwg.mxu0
    %5987 = vmatpush.msra.mxu0 0.0
    %5988 = vmatpush.msra.mxu0 0.0
    %5989 = vmatpush.msra.mxu0 0.0
    %5990 = vmatpush.msra.mxu0 0.0
    %5991 = vmatpush.msra.mxu0 0.0
    %5992 = vmatpush.msra.mxu0 0.0
    %5993 = vmatpush.msra.mxu0 0.0
    %5994 = vmatpush.msra.mxu0 0.0
    %5995 = vmatpush.msra.mxu0 0.0
    %v5996 = vand.u32 %v1171, 4294901760
    %5997 = vmatpush.msra.mxu0 %v5996
    %v5998 = vand.u32 %v1160, 4294901760
    %5999 = vmatpush.msra.mxu0 %v5998
    %v6000 = vand.u32 %v1158, 4294901760
    %6001 = vmatpush.msra.mxu0 %v6000
    %v6002 = vand.u32 %v1156, 4294901760
    %6003 = vmatpush.msra.mxu0 %v6002
    %v6004 = vand.u32 %v1154, 4294901760
    %6005 = vmatpush.msra.mxu0 %v6004
    %v6006 = vand.u32 %v1152, 4294901760
    %6007 = vmatpush.msra.mxu0 %v6006
    %v6008 = vand.u32 %v1150, 4294901760
    %6009 = vmatpush.msra.mxu0 %v6008
    %v6010 = vand.u32 %v5637, 4294901760
    %v6011 = vsub.f32 %v5637, %v6010
    %v6012 = vand.u32 %v6011, 4294901760
    %6013 = vmatmul.f32.gmra.mxu0 %v6012
    %v6014 = vpop.f32.mrf.mxu0
    %v6015 = vadd.f32 %v5985, %v6014
    %6016 = vdwg.mxu0
    %6017 = vmatpush.msra.mxu0 0.0
    %6018 = vmatpush.msra.mxu0 0.0
    %6019 = vmatpush.msra.mxu0 0.0
    %6020 = vmatpush.msra.mxu0 0.0
    %6021 = vmatpush.msra.mxu0 0.0
    %6022 = vmatpush.msra.mxu0 0.0
    %6023 = vmatpush.msra.mxu0 0.0
    %6024 = vmatpush.msra.mxu0 0.0
    %6025 = vmatpush.msra.mxu0 0.0
    %v6026 = vand.u32 %v1171, 4294901760
    %v6027 = vsub.f32 %v1171, %v6026
    %v6028 = vand.u32 %v6027, 4294901760
    %6029 = vmatpush.msra.mxu0 %v6028
    %v6030 = vand.u32 %v1160, 4294901760
    %v6031 = vsub.f32 %v1160, %v6030
    %v6032 = vand.u32 %v6031, 4294901760
    %6033 = vmatpush.msra.mxu0 %v6032
    %v6034 = vand.u32 %v1158, 4294901760
    %v6035 = vsub.f32 %v1158, %v6034
    %v6036 = vand.u32 %v6035, 4294901760
    %6037 = vmatpush.msra.mxu0 %v6036
    %v6038 = vand.u32 %v1156, 4294901760
    %v6039 = vsub.f32 %v1156, %v6038
    %v6040 = vand.u32 %v6039, 4294901760
    %6041 = vmatpush.msra.mxu0 %v6040
    %v6042 = vand.u32 %v1154, 4294901760
    %v6043 = vsub.f32 %v1154, %v6042
    %v6044 = vand.u32 %v6043, 4294901760
    %6045 = vmatpush.msra.mxu0 %v6044
    %v6046 = vand.u32 %v1152, 4294901760
    %v6047 = vsub.f32 %v1152, %v6046
    %v6048 = vand.u32 %v6047, 4294901760
    %6049 = vmatpush.msra.mxu0 %v6048
    %v6050 = vand.u32 %v1150, 4294901760
    %v6051 = vsub.f32 %v1150, %v6050
    %v6052 = vand.u32 %v6051, 4294901760
    %6053 = vmatpush.msra.mxu0 %v6052
    %v6054 = vand.u32 %v5637, 4294901760
    %6055 = vmatmul.f32.gmra.mxu0 %v6054
    %v6056 = vpop.f32.mrf.mxu0
    %v6057 = vadd.f32 %v6015, %v6056
    %6058 = vdwg.mxu0
    %6059 = vmatpush.msra.mxu0 0.0
    %6060 = vmatpush.msra.mxu0 0.0
    %6061 = vmatpush.msra.mxu0 0.0
    %6062 = vmatpush.msra.mxu0 0.0
    %6063 = vmatpush.msra.mxu0 0.0
    %6064 = vmatpush.msra.mxu0 0.0
    %6065 = vmatpush.msra.mxu0 0.0
    %6066 = vmatpush.msra.mxu0 0.0
    %6067 = vmatpush.msra.mxu0 0.0
    %v6068 = vand.u32 %v1171, 4294901760
    %6069 = vmatpush.msra.mxu0 %v6068
    %v6070 = vand.u32 %v1160, 4294901760
    %6071 = vmatpush.msra.mxu0 %v6070
    %v6072 = vand.u32 %v1158, 4294901760
    %6073 = vmatpush.msra.mxu0 %v6072
    %v6074 = vand.u32 %v1156, 4294901760
    %6075 = vmatpush.msra.mxu0 %v6074
    %v6076 = vand.u32 %v1154, 4294901760
    %6077 = vmatpush.msra.mxu0 %v6076
    %v6078 = vand.u32 %v1152, 4294901760
    %6079 = vmatpush.msra.mxu0 %v6078
    %v6080 = vand.u32 %v1150, 4294901760
    %6081 = vmatpush.msra.mxu0 %v6080
    %v6082 = vand.u32 %v5637, 4294901760
    %6083 = vmatmul.f32.gmra.mxu0 %v6082
    %v6084 = vpop.f32.mrf.mxu0
    %v6085 = vadd.f32 %v6057, %v6084
    %6086 = vdwg.mxu0
    %v6089 = vrot.slane %v6085, 6
    %v6090 = vsel %vm1107, %v5861, %v6089
    %v6091 = vrot.slane %v6090, 1
    %v6094 = vadd.f32 %v1118, %v6090
    %v6095 = vadd.f32 %v1131, %v6091
    %v6096 = vxor.u32 %v6094, 2147483648
    %v6097 = vxor.u32 %v6095, 2147483648
    %v6098 = vmul.f32 %v6096, 1.442695
    %v6099 = vpow.pop %v6098
    %v6100 = vmul.f32 %v6097, 1.442695
    %v6101 = vpow.pop %v6100
    %v6102 = vadd.f32 %v6099, 1.0
    %v6103 = vadd.f32 %v6101, 1.0
    %v6104 = vrcp.pop %v6102
    %v6105 = vmul.f32 %v6102, %v6104
    %v6106 = vsub.f32 1.0, %v6105
    %v6107 = vmul.f32 %v6104, %v6106
    %v6108 = vadd.f32 %v6104, %v6107
    %vm6109 = vweird.f32 %v6102
    %vm6110 = vweird.f32 %v6104
    %vm6111 = vmor %vm6109, %vm6110
    %v6112 = vsel %vm6111, %v6104, %v6108
    %v6113 = vand.u32 2147483647, %v6102
    %vm6114 = vcmp.eq.f32.partialorder %v6113, 8.507059e+37
    %v6115 = vand.u32 %v6102, 2147483648
    %v6116 = vor.u32 1.1754944e-38, %v6115
    %v6117 = vsel %vm6114, %v6116, %v6112
    %v6118 = vmul.f32 1.0, %v6117
    %v6119 = vrcp.pop %v6103
    %v6120 = vmul.f32 %v6103, %v6119
    %v6121 = vsub.f32 1.0, %v6120
    %v6122 = vmul.f32 %v6119, %v6121
    %v6123 = vadd.f32 %v6119, %v6122
    %vm6124 = vweird.f32 %v6103
    %vm6125 = vweird.f32 %v6119
    %vm6126 = vmor %vm6124, %vm6125
    %v6127 = vsel %vm6126, %v6119, %v6123
    %v6128 = vand.u32 2147483647, %v6103
    %vm6129 = vcmp.eq.f32.partialorder %v6128, 8.507059e+37
    %v6130 = vand.u32 %v6103, 2147483648
    %v6131 = vor.u32 1.1754944e-38, %v6130
    %v6132 = vsel %vm6129, %v6131, %v6127
    %v6133 = vmul.f32 1.0, %v6132
    %6136 = vrot.lane.b32.xlu0 %v6094, 106
    %v6137 = vpop.permute.xlu0 %6136
    %6138 = vrot.lane.b32.xlu0 %v6095, 106
    %v6139 = vpop.permute.xlu0 %6138
    %v6140 = vrot.slane %v6137, 2
    %v6141 = vrot.slane %v6139, 2
    %v6144 = vtanh.pop %v6140
    %v6145 = vtanh.pop %v6141
    %v6148 = vrot.slane %v5606, 7
    %v6149 = vrot.slane %v6148, 2
    %v6150 = vrot.slane %v5607, 7
    %v6151 = vrot.slane %v6150, 2
    %v6154 = vmul.f32 %v6118, %v6149
    %v6155 = vmul.f32 %v6133, %v6151
    %v6156 = vmul.f32 %v6118, %v6144
    %v6157 = vmul.f32 %v6133, %v6145
    %6160 = vrot.lane.b32.xlu0 %v6156, 50
    %v6161 = vpop.permute.xlu0 %6160
    %6162 = vrot.lane.b32.xlu0 %v6157, 50
    %v6163 = vpop.permute.xlu0 %6162
    %v6166 = vadd.f32 %v6154, %v6161
    %v6167 = vadd.f32 %v6155, %v6163
    %v6168 = vtanh.pop %v6166
    %v6169 = vtanh.pop %v6167
    %6172 = vrot.lane.b32.xlu0 %v6168, 50
    %v6173 = vpop.permute.xlu0 %6172
    %6174 = vrot.lane.b32.xlu0 %v6169, 50
    %v6175 = vpop.permute.xlu0 %6174
    %v6176 = vrot.slane %v6173, 6
    %v6177 = vrot.slane %v6175, 6
    %v6178 = vsel %vm1163, %v6176, %v6173
    %v6179 = vsel %vm1163, %v6177, %v6175
    %v6182 = vmul.f32 %v6118, %v6178
    %v6183 = vmul.f32 %v6133, %v6179
    %v6186 = vperm.slane %v6182, 0
    %v6187 = vperm.slane %v6182, 2
    %v6188 = vperm.slane %v6183, 0
    %v6189 = vperm.slane %v6183, 2
    %v6190 = vsel %vm1716, %v6188, %v6186
    %v6191 = vsel %vm1716, %v6189, %v6187
    %6192 = vrot.lane.b32.xlu0 %v6190, 28
    %v6193 = vpop.permute.xlu0 %6192
    %6194 = vrot.lane.b32.xlu0 %v6191, 28
    %v6195 = vpop.permute.xlu0 %6194
    %v6196 = vsel %vm1723, %v6193, %v6195
    %v6197 = vsel %vm1163, %v6196, 0
    %6199 = vmatpush.msra.mxu0 0.0
    %6200 = vmatpush.msra.mxu0 0.0
    %6201 = vmatpush.msra.mxu0 0.0
    %6202 = vmatpush.msra.mxu0 0.0
    %6203 = vmatpush.msra.mxu0 0.0
    %6204 = vmatpush.msra.mxu0 0.0
    %6205 = vmatpush.msra.mxu0 0.0
    %6206 = vmatpush.msra.mxu0 0.0
    %6207 = vmatpush.msra.mxu0 0.0
    %v6208 = vand.u32 %v1168, 4294901760
    %6209 = vmatpush.msra.mxu0 %v6208
    %v6210 = vand.u32 %v1159, 4294901760
    %6211 = vmatpush.msra.mxu0 %v6210
    %v6212 = vand.u32 %v1157, 4294901760
    %6213 = vmatpush.msra.mxu0 %v6212
    %v6214 = vand.u32 %v1155, 4294901760
    %6215 = vmatpush.msra.mxu0 %v6214
    %v6216 = vand.u32 %v1153, 4294901760
    %6217 = vmatpush.msra.mxu0 %v6216
    %v6218 = vand.u32 %v1151, 4294901760
    %6219 = vmatpush.msra.mxu0 %v6218
    %v6220 = vand.u32 %v1149, 4294901760
    %6221 = vmatpush.msra.mxu0 %v6220
    %v6222 = vand.u32 %v6197, 4294901760
    %v6223 = vsub.f32 %v6197, %v6222
    %v6224 = vand.u32 %v6223, 4294901760
    %v6225 = vsub.f32 %v6223, %v6224
    %v6226 = vand.u32 %v6225, 4294901760
    %6227 = vmatmul.f32.gmra.mxu0 %v6226
    %v6228 = vpop.f32.mrf.mxu0
    %v6229 = vadd.f32 0.0, %v6228
    %6230 = vdwg.mxu0
    %6231 = vmatpush.msra.mxu0 0.0
    %6232 = vmatpush.msra.mxu0 0.0
    %6233 = vmatpush.msra.mxu0 0.0
    %6234 = vmatpush.msra.mxu0 0.0
    %6235 = vmatpush.msra.mxu0 0.0
    %6236 = vmatpush.msra.mxu0 0.0
    %6237 = vmatpush.msra.mxu0 0.0
    %6238 = vmatpush.msra.mxu0 0.0
    %6239 = vmatpush.msra.mxu0 0.0
    %v6240 = vand.u32 %v1168, 4294901760
    %v6241 = vsub.f32 %v1168, %v6240
    %v6242 = vand.u32 %v6241, 4294901760
    %v6243 = vsub.f32 %v6241, %v6242
    %v6244 = vand.u32 %v6243, 4294901760
    %6245 = vmatpush.msra.mxu0 %v6244
    %v6246 = vand.u32 %v1159, 4294901760
    %v6247 = vsub.f32 %v1159, %v6246
    %v6248 = vand.u32 %v6247, 4294901760
    %v6249 = vsub.f32 %v6247, %v6248
    %v6250 = vand.u32 %v6249, 4294901760
    %6251 = vmatpush.msra.mxu0 %v6250
    %v6252 = vand.u32 %v1157, 4294901760
    %v6253 = vsub.f32 %v1157, %v6252
    %v6254 = vand.u32 %v6253, 4294901760
    %v6255 = vsub.f32 %v6253, %v6254
    %v6256 = vand.u32 %v6255, 4294901760
    %6257 = vmatpush.msra.mxu0 %v6256
    %v6258 = vand.u32 %v1155, 4294901760
    %v6259 = vsub.f32 %v1155, %v6258
    %v6260 = vand.u32 %v6259, 4294901760
    %v6261 = vsub.f32 %v6259, %v6260
    %v6262 = vand.u32 %v6261, 4294901760
    %6263 = vmatpush.msra.mxu0 %v6262
    %v6264 = vand.u32 %v1153, 4294901760
    %v6265 = vsub.f32 %v1153, %v6264
    %v6266 = vand.u32 %v6265, 4294901760
    %v6267 = vsub.f32 %v6265, %v6266
    %v6268 = vand.u32 %v6267, 4294901760
    %6269 = vmatpush.msra.mxu0 %v6268
    %v6270 = vand.u32 %v1151, 4294901760
    %v6271 = vsub.f32 %v1151, %v6270
    %v6272 = vand.u32 %v6271, 4294901760
    %v6273 = vsub.f32 %v6271, %v6272
    %v6274 = vand.u32 %v6273, 4294901760
    %6275 = vmatpush.msra.mxu0 %v6274
    %v6276 = vand.u32 %v1149, 4294901760
    %v6277 = vsub.f32 %v1149, %v6276
    %v6278 = vand.u32 %v6277, 4294901760
    %v6279 = vsub.f32 %v6277, %v6278
    %v6280 = vand.u32 %v6279, 4294901760
    %6281 = vmatpush.msra.mxu0 %v6280
    %v6282 = vand.u32 %v6197, 4294901760
    %6283 = vmatmul.f32.gmra.mxu0 %v6282
    %v6284 = vpop.f32.mrf.mxu0
    %v6285 = vadd.f32 %v6229, %v6284
    %6286 = vdwg.mxu0
    %6287 = vmatpush.msra.mxu0 0.0
    %6288 = vmatpush.msra.mxu0 0.0
    %6289 = vmatpush.msra.mxu0 0.0
    %6290 = vmatpush.msra.mxu0 0.0
    %6291 = vmatpush.msra.mxu0 0.0
    %6292 = vmatpush.msra.mxu0 0.0
    %6293 = vmatpush.msra.mxu0 0.0
    %6294 = vmatpush.msra.mxu0 0.0
    %6295 = vmatpush.msra.mxu0 0.0
    %v6296 = vand.u32 %v1168, 4294901760
    %v6297 = vsub.f32 %v1168, %v6296
    %6298 = vmatpush.msra.mxu0 %v6297
    %v6299 = vand.u32 %v1159, 4294901760
    %v6300 = vsub.f32 %v1159, %v6299
    %6301 = vmatpush.msra.mxu0 %v6300
    %v6302 = vand.u32 %v1157, 4294901760
    %v6303 = vsub.f32 %v1157, %v6302
    %6304 = vmatpush.msra.mxu0 %v6303
    %v6305 = vand.u32 %v1155, 4294901760
    %v6306 = vsub.f32 %v1155, %v6305
    %6307 = vmatpush.msra.mxu0 %v6306
    %v6308 = vand.u32 %v1153, 4294901760
    %v6309 = vsub.f32 %v1153, %v6308
    %6310 = vmatpush.msra.mxu0 %v6309
    %v6311 = vand.u32 %v1151, 4294901760
    %v6312 = vsub.f32 %v1151, %v6311
    %6313 = vmatpush.msra.mxu0 %v6312
    %v6314 = vand.u32 %v1149, 4294901760
    %v6315 = vsub.f32 %v1149, %v6314
    %6316 = vmatpush.msra.mxu0 %v6315
    %v6317 = vand.u32 %v6197, 4294901760
    %v6318 = vsub.f32 %v6197, %v6317
    %6319 = vmatmul.f32.gmra.mxu0 %v6318
    %v6320 = vpop.f32.mrf.mxu0
    %v6321 = vadd.f32 %v6285, %v6320
    %6322 = vdwg.mxu0
    %6323 = vmatpush.msra.mxu0 0.0
    %6324 = vmatpush.msra.mxu0 0.0
    %6325 = vmatpush.msra.mxu0 0.0
    %6326 = vmatpush.msra.mxu0 0.0
    %6327 = vmatpush.msra.mxu0 0.0
    %6328 = vmatpush.msra.mxu0 0.0
    %6329 = vmatpush.msra.mxu0 0.0
    %6330 = vmatpush.msra.mxu0 0.0
    %6331 = vmatpush.msra.mxu0 0.0
    %v6332 = vand.u32 %v1168, 4294901760
    %6333 = vmatpush.msra.mxu0 %v6332
    %v6334 = vand.u32 %v1159, 4294901760
    %6335 = vmatpush.msra.mxu0 %v6334
    %v6336 = vand.u32 %v1157, 4294901760
    %6337 = vmatpush.msra.mxu0 %v6336
    %v6338 = vand.u32 %v1155, 4294901760
    %6339 = vmatpush.msra.mxu0 %v6338
    %v6340 = vand.u32 %v1153, 4294901760
    %6341 = vmatpush.msra.mxu0 %v6340
    %v6342 = vand.u32 %v1151, 4294901760
    %6343 = vmatpush.msra.mxu0 %v6342
    %v6344 = vand.u32 %v1149, 4294901760
    %6345 = vmatpush.msra.mxu0 %v6344
    %v6346 = vand.u32 %v6197, 4294901760
    %v6347 = vsub.f32 %v6197, %v6346
    %v6348 = vand.u32 %v6347, 4294901760
    %6349 = vmatmul.f32.gmra.mxu0 %v6348
    %v6350 = vpop.f32.mrf.mxu0
    %v6351 = vadd.f32 %v6321, %v6350
    %6352 = vdwg.mxu0
    %6353 = vmatpush.msra.mxu0 0.0
    %6354 = vmatpush.msra.mxu0 0.0
    %6355 = vmatpush.msra.mxu0 0.0
    %6356 = vmatpush.msra.mxu0 0.0
    %6357 = vmatpush.msra.mxu0 0.0
    %6358 = vmatpush.msra.mxu0 0.0
    %6359 = vmatpush.msra.mxu0 0.0
    %6360 = vmatpush.msra.mxu0 0.0
    %6361 = vmatpush.msra.mxu0 0.0
    %v6362 = vand.u32 %v1168, 4294901760
    %v6363 = vsub.f32 %v1168, %v6362
    %v6364 = vand.u32 %v6363, 4294901760
    %6365 = vmatpush.msra.mxu0 %v6364
    %v6366 = vand.u32 %v1159, 4294901760
    %v6367 = vsub.f32 %v1159, %v6366
    %v6368 = vand.u32 %v6367, 4294901760
    %6369 = vmatpush.msra.mxu0 %v6368
    %v6370 = vand.u32 %v1157, 4294901760
    %v6371 = vsub.f32 %v1157, %v6370
    %v6372 = vand.u32 %v6371, 4294901760
    %6373 = vmatpush.msra.mxu0 %v6372
    %v6374 = vand.u32 %v1155, 4294901760
    %v6375 = vsub.f32 %v1155, %v6374
    %v6376 = vand.u32 %v6375, 4294901760
    %6377 = vmatpush.msra.mxu0 %v6376
    %v6378 = vand.u32 %v1153, 4294901760
    %v6379 = vsub.f32 %v1153, %v6378
    %v6380 = vand.u32 %v6379, 4294901760
    %6381 = vmatpush.msra.mxu0 %v6380
    %v6382 = vand.u32 %v1151, 4294901760
    %v6383 = vsub.f32 %v1151, %v6382
    %v6384 = vand.u32 %v6383, 4294901760
    %6385 = vmatpush.msra.mxu0 %v6384
    %v6386 = vand.u32 %v1149, 4294901760
    %v6387 = vsub.f32 %v1149, %v6386
    %v6388 = vand.u32 %v6387, 4294901760
    %6389 = vmatpush.msra.mxu0 %v6388
    %v6390 = vand.u32 %v6197, 4294901760
    %6391 = vmatmul.f32.gmra.mxu0 %v6390
    %v6392 = vpop.f32.mrf.mxu0
    %v6393 = vadd.f32 %v6351, %v6392
    %6394 = vdwg.mxu0
    %6395 = vmatpush.msra.mxu0 0.0
    %6396 = vmatpush.msra.mxu0 0.0
    %6397 = vmatpush.msra.mxu0 0.0
    %6398 = vmatpush.msra.mxu0 0.0
    %6399 = vmatpush.msra.mxu0 0.0
    %6400 = vmatpush.msra.mxu0 0.0
    %6401 = vmatpush.msra.mxu0 0.0
    %6402 = vmatpush.msra.mxu0 0.0
    %6403 = vmatpush.msra.mxu0 0.0
    %v6404 = vand.u32 %v1168, 4294901760
    %6405 = vmatpush.msra.mxu0 %v6404
    %v6406 = vand.u32 %v1159, 4294901760
    %6407 = vmatpush.msra.mxu0 %v6406
    %v6408 = vand.u32 %v1157, 4294901760
    %6409 = vmatpush.msra.mxu0 %v6408
    %v6410 = vand.u32 %v1155, 4294901760
    %6411 = vmatpush.msra.mxu0 %v6410
    %v6412 = vand.u32 %v1153, 4294901760
    %6413 = vmatpush.msra.mxu0 %v6412
    %v6414 = vand.u32 %v1151, 4294901760
    %6415 = vmatpush.msra.mxu0 %v6414
    %v6416 = vand.u32 %v1149, 4294901760
    %6417 = vmatpush.msra.mxu0 %v6416
    %v6418 = vand.u32 %v6197, 4294901760
    %6419 = vmatmul.f32.gmra.mxu0 %v6418
    %v6420 = vpop.f32.mrf.mxu0
    %v6421 = vadd.f32 %v6393, %v6420
    %6422 = vdwg.mxu0
    %6423 = vmatpush.msra.mxu0 0.0
    %6424 = vmatpush.msra.mxu0 0.0
    %6425 = vmatpush.msra.mxu0 0.0
    %6426 = vmatpush.msra.mxu0 0.0
    %6427 = vmatpush.msra.mxu0 0.0
    %6428 = vmatpush.msra.mxu0 0.0
    %6429 = vmatpush.msra.mxu0 0.0
    %6430 = vmatpush.msra.mxu0 0.0
    %6431 = vmatpush.msra.mxu0 0.0
    %v6432 = vand.u32 %v1171, 4294901760
    %6433 = vmatpush.msra.mxu0 %v6432
    %v6434 = vand.u32 %v1160, 4294901760
    %6435 = vmatpush.msra.mxu0 %v6434
    %v6436 = vand.u32 %v1158, 4294901760
    %6437 = vmatpush.msra.mxu0 %v6436
    %v6438 = vand.u32 %v1156, 4294901760
    %6439 = vmatpush.msra.mxu0 %v6438
    %v6440 = vand.u32 %v1154, 4294901760
    %6441 = vmatpush.msra.mxu0 %v6440
    %v6442 = vand.u32 %v1152, 4294901760
    %6443 = vmatpush.msra.mxu0 %v6442
    %v6444 = vand.u32 %v1150, 4294901760
    %6445 = vmatpush.msra.mxu0 %v6444
    %v6446 = vand.u32 %v6197, 4294901760
    %v6447 = vsub.f32 %v6197, %v6446
    %v6448 = vand.u32 %v6447, 4294901760
    %v6449 = vsub.f32 %v6447, %v6448
    %v6450 = vand.u32 %v6449, 4294901760
    %6451 = vmatmul.f32.gmra.mxu0 %v6450
    %v6452 = vpop.f32.mrf.mxu0
    %v6453 = vadd.f32 0.0, %v6452
    %6454 = vdwg.mxu0
    %6455 = vmatpush.msra.mxu0 0.0
    %6456 = vmatpush.msra.mxu0 0.0
    %6457 = vmatpush.msra.mxu0 0.0
    %6458 = vmatpush.msra.mxu0 0.0
    %6459 = vmatpush.msra.mxu0 0.0
    %6460 = vmatpush.msra.mxu0 0.0
    %6461 = vmatpush.msra.mxu0 0.0
    %6462 = vmatpush.msra.mxu0 0.0
    %6463 = vmatpush.msra.mxu0 0.0
    %v6464 = vand.u32 %v1171, 4294901760
    %v6465 = vsub.f32 %v1171, %v6464
    %v6466 = vand.u32 %v6465, 4294901760
    %v6467 = vsub.f32 %v6465, %v6466
    %v6468 = vand.u32 %v6467, 4294901760
    %6469 = vmatpush.msra.mxu0 %v6468
    %v6470 = vand.u32 %v1160, 4294901760
    %v6471 = vsub.f32 %v1160, %v6470
    %v6472 = vand.u32 %v6471, 4294901760
    %v6473 = vsub.f32 %v6471, %v6472
    %v6474 = vand.u32 %v6473, 4294901760
    %6475 = vmatpush.msra.mxu0 %v6474
    %v6476 = vand.u32 %v1158, 4294901760
    %v6477 = vsub.f32 %v1158, %v6476
    %v6478 = vand.u32 %v6477, 4294901760
    %v6479 = vsub.f32 %v6477, %v6478
    %v6480 = vand.u32 %v6479, 4294901760
    %6481 = vmatpush.msra.mxu0 %v6480
    %v6482 = vand.u32 %v1156, 4294901760
    %v6483 = vsub.f32 %v1156, %v6482
    %v6484 = vand.u32 %v6483, 4294901760
    %v6485 = vsub.f32 %v6483, %v6484
    %v6486 = vand.u32 %v6485, 4294901760
    %6487 = vmatpush.msra.mxu0 %v6486
    %v6488 = vand.u32 %v1154, 4294901760
    %v6489 = vsub.f32 %v1154, %v6488
    %v6490 = vand.u32 %v6489, 4294901760
    %v6491 = vsub.f32 %v6489, %v6490
    %v6492 = vand.u32 %v6491, 4294901760
    %6493 = vmatpush.msra.mxu0 %v6492
    %v6494 = vand.u32 %v1152, 4294901760
    %v6495 = vsub.f32 %v1152, %v6494
    %v6496 = vand.u32 %v6495, 4294901760
    %v6497 = vsub.f32 %v6495, %v6496
    %v6498 = vand.u32 %v6497, 4294901760
    %6499 = vmatpush.msra.mxu0 %v6498
    %v6500 = vand.u32 %v1150, 4294901760
    %v6501 = vsub.f32 %v1150, %v6500
    %v6502 = vand.u32 %v6501, 4294901760
    %v6503 = vsub.f32 %v6501, %v6502
    %v6504 = vand.u32 %v6503, 4294901760
    %6505 = vmatpush.msra.mxu0 %v6504
    %v6506 = vand.u32 %v6197, 4294901760
    %6507 = vmatmul.f32.gmra.mxu0 %v6506
    %v6508 = vpop.f32.mrf.mxu0
    %v6509 = vadd.f32 %v6453, %v6508
    %6510 = vdwg.mxu0
    %6511 = vmatpush.msra.mxu0 0.0
    %6512 = vmatpush.msra.mxu0 0.0
    %6513 = vmatpush.msra.mxu0 0.0
    %6514 = vmatpush.msra.mxu0 0.0
    %6515 = vmatpush.msra.mxu0 0.0
    %6516 = vmatpush.msra.mxu0 0.0
    %6517 = vmatpush.msra.mxu0 0.0
    %6518 = vmatpush.msra.mxu0 0.0
    %6519 = vmatpush.msra.mxu0 0.0
    %v6520 = vand.u32 %v1171, 4294901760
    %v6521 = vsub.f32 %v1171, %v6520
    %6522 = vmatpush.msra.mxu0 %v6521
    %v6523 = vand.u32 %v1160, 4294901760
    %v6524 = vsub.f32 %v1160, %v6523
    %6525 = vmatpush.msra.mxu0 %v6524
    %v6526 = vand.u32 %v1158, 4294901760
    %v6527 = vsub.f32 %v1158, %v6526
    %6528 = vmatpush.msra.mxu0 %v6527
    %v6529 = vand.u32 %v1156, 4294901760
    %v6530 = vsub.f32 %v1156, %v6529
    %6531 = vmatpush.msra.mxu0 %v6530
    %v6532 = vand.u32 %v1154, 4294901760
    %v6533 = vsub.f32 %v1154, %v6532
    %6534 = vmatpush.msra.mxu0 %v6533
    %v6535 = vand.u32 %v1152, 4294901760
    %v6536 = vsub.f32 %v1152, %v6535
    %6537 = vmatpush.msra.mxu0 %v6536
    %v6538 = vand.u32 %v1150, 4294901760
    %v6539 = vsub.f32 %v1150, %v6538
    %6540 = vmatpush.msra.mxu0 %v6539
    %v6541 = vand.u32 %v6197, 4294901760
    %v6542 = vsub.f32 %v6197, %v6541
    %6543 = vmatmul.f32.gmra.mxu0 %v6542
    %v6544 = vpop.f32.mrf.mxu0
    %v6545 = vadd.f32 %v6509, %v6544
    %6546 = vdwg.mxu0
    %6547 = vmatpush.msra.mxu0 0.0
    %6548 = vmatpush.msra.mxu0 0.0
    %6549 = vmatpush.msra.mxu0 0.0
    %6550 = vmatpush.msra.mxu0 0.0
    %6551 = vmatpush.msra.mxu0 0.0
    %6552 = vmatpush.msra.mxu0 0.0
    %6553 = vmatpush.msra.mxu0 0.0
    %6554 = vmatpush.msra.mxu0 0.0
    %6555 = vmatpush.msra.mxu0 0.0
    %v6556 = vand.u32 %v1171, 4294901760
    %6557 = vmatpush.msra.mxu0 %v6556
    %v6558 = vand.u32 %v1160, 4294901760
    %6559 = vmatpush.msra.mxu0 %v6558
    %v6560 = vand.u32 %v1158, 4294901760
    %6561 = vmatpush.msra.mxu0 %v6560
    %v6562 = vand.u32 %v1156, 4294901760
    %6563 = vmatpush.msra.mxu0 %v6562
    %v6564 = vand.u32 %v1154, 4294901760
    %6565 = vmatpush.msra.mxu0 %v6564
    %v6566 = vand.u32 %v1152, 4294901760
    %6567 = vmatpush.msra.mxu0 %v6566
    %v6568 = vand.u32 %v1150, 4294901760
    %6569 = vmatpush.msra.mxu0 %v6568
    %v6570 = vand.u32 %v6197, 4294901760
    %v6571 = vsub.f32 %v6197, %v6570
    %v6572 = vand.u32 %v6571, 4294901760
    %6573 = vmatmul.f32.gmra.mxu0 %v6572
    %v6574 = vpop.f32.mrf.mxu0
    %v6575 = vadd.f32 %v6545, %v6574
    %6576 = vdwg.mxu0
    %6577 = vmatpush.msra.mxu0 0.0
    %6578 = vmatpush.msra.mxu0 0.0
    %6579 = vmatpush.msra.mxu0 0.0
    %6580 = vmatpush.msra.mxu0 0.0
    %6581 = vmatpush.msra.mxu0 0.0
    %6582 = vmatpush.msra.mxu0 0.0
    %6583 = vmatpush.msra.mxu0 0.0
    %6584 = vmatpush.msra.mxu0 0.0
    %6585 = vmatpush.msra.mxu0 0.0
    %v6586 = vand.u32 %v1171, 4294901760
    %v6587 = vsub.f32 %v1171, %v6586
    %v6588 = vand.u32 %v6587, 4294901760
    %6589 = vmatpush.msra.mxu0 %v6588
    %v6590 = vand.u32 %v1160, 4294901760
    %v6591 = vsub.f32 %v1160, %v6590
    %v6592 = vand.u32 %v6591, 4294901760
    %6593 = vmatpush.msra.mxu0 %v6592
    %v6594 = vand.u32 %v1158, 4294901760
    %v6595 = vsub.f32 %v1158, %v6594
    %v6596 = vand.u32 %v6595, 4294901760
    %6597 = vmatpush.msra.mxu0 %v6596
    %v6598 = vand.u32 %v1156, 4294901760
    %v6599 = vsub.f32 %v1156, %v6598
    %v6600 = vand.u32 %v6599, 4294901760
    %6601 = vmatpush.msra.mxu0 %v6600
    %v6602 = vand.u32 %v1154, 4294901760
    %v6603 = vsub.f32 %v1154, %v6602
    %v6604 = vand.u32 %v6603, 4294901760
    %6605 = vmatpush.msra.mxu0 %v6604
    %v6606 = vand.u32 %v1152, 4294901760
    %v6607 = vsub.f32 %v1152, %v6606
    %v6608 = vand.u32 %v6607, 4294901760
    %6609 = vmatpush.msra.mxu0 %v6608
    %v6610 = vand.u32 %v1150, 4294901760
    %v6611 = vsub.f32 %v1150, %v6610
    %v6612 = vand.u32 %v6611, 4294901760
    %6613 = vmatpush.msra.mxu0 %v6612
    %v6614 = vand.u32 %v6197, 4294901760
    %6615 = vmatmul.f32.gmra.mxu0 %v6614
    %v6616 = vpop.f32.mrf.mxu0
    %v6617 = vadd.f32 %v6575, %v6616
    %6618 = vdwg.mxu0
    %6619 = vmatpush.msra.mxu0 0.0
    %6620 = vmatpush.msra.mxu0 0.0
    %6621 = vmatpush.msra.mxu0 0.0
    %6622 = vmatpush.msra.mxu0 0.0
    %6623 = vmatpush.msra.mxu0 0.0
    %6624 = vmatpush.msra.mxu0 0.0
    %6625 = vmatpush.msra.mxu0 0.0
    %6626 = vmatpush.msra.mxu0 0.0
    %6627 = vmatpush.msra.mxu0 0.0
    %v6628 = vand.u32 %v1171, 4294901760
    %6629 = vmatpush.msra.mxu0 %v6628
    %v6630 = vand.u32 %v1160, 4294901760
    %6631 = vmatpush.msra.mxu0 %v6630
    %v6632 = vand.u32 %v1158, 4294901760
    %6633 = vmatpush.msra.mxu0 %v6632
    %v6634 = vand.u32 %v1156, 4294901760
    %6635 = vmatpush.msra.mxu0 %v6634
    %v6636 = vand.u32 %v1154, 4294901760
    %6637 = vmatpush.msra.mxu0 %v6636
    %v6638 = vand.u32 %v1152, 4294901760
    %6639 = vmatpush.msra.mxu0 %v6638
    %v6640 = vand.u32 %v1150, 4294901760
    %6641 = vmatpush.msra.mxu0 %v6640
    %v6642 = vand.u32 %v6197, 4294901760
    %6643 = vmatmul.f32.gmra.mxu0 %v6642
    %v6644 = vpop.f32.mrf.mxu0
    %v6645 = vadd.f32 %v6617, %v6644
    %6646 = vdwg.mxu0
    %v6649 = vrot.slane %v6645, 6
    %v6650 = vsel %vm1107, %v6421, %v6649
    %v6651 = vrot.slane %v6650, 7
    %v6654 = vadd.f32 %v1118, %v6651
    %v6655 = vadd.f32 %v1131, %v6650
    %v6656 = vxor.u32 %v6654, 2147483648
    %v6657 = vxor.u32 %v6655, 2147483648
    %v6658 = vmul.f32 %v6656, 1.442695
    %v6659 = vpow.pop %v6658
    %v6660 = vmul.f32 %v6657, 1.442695
    %v6661 = vpow.pop %v6660
    %v6662 = vadd.f32 %v6659, 1.0
    %v6663 = vadd.f32 %v6661, 1.0
    %v6664 = vrcp.pop %v6662
    %v6665 = vmul.f32 %v6662, %v6664
    %v6666 = vsub.f32 1.0, %v6665
    %v6667 = vmul.f32 %v6664, %v6666
    %v6668 = vadd.f32 %v6664, %v6667
    %vm6669 = vweird.f32 %v6662
    %vm6670 = vweird.f32 %v6664
    %vm6671 = vmor %vm6669, %vm6670
    %v6672 = vsel %vm6671, %v6664, %v6668
    %v6673 = vand.u32 2147483647, %v6662
    %vm6674 = vcmp.eq.f32.partialorder %v6673, 8.507059e+37
    %v6675 = vand.u32 %v6662, 2147483648
    %v6676 = vor.u32 1.1754944e-38, %v6675
    %v6677 = vsel %vm6674, %v6676, %v6672
    %v6678 = vmul.f32 1.0, %v6677
    %v6679 = vrcp.pop %v6663
    %v6680 = vmul.f32 %v6663, %v6679
    %v6681 = vsub.f32 1.0, %v6680
    %v6682 = vmul.f32 %v6679, %v6681
    %v6683 = vadd.f32 %v6679, %v6682
    %vm6684 = vweird.f32 %v6663
    %vm6685 = vweird.f32 %v6679
    %vm6686 = vmor %vm6684, %vm6685
    %v6687 = vsel %vm6686, %v6679, %v6683
    %v6688 = vand.u32 2147483647, %v6663
    %vm6689 = vcmp.eq.f32.partialorder %v6688, 8.507059e+37
    %v6690 = vand.u32 %v6663, 2147483648
    %v6691 = vor.u32 1.1754944e-38, %v6690
    %v6692 = vsel %vm6689, %v6691, %v6687
    %v6693 = vmul.f32 1.0, %v6692
    %6696 = vrot.lane.b32.xlu0 %v6654, 106
    %v6697 = vpop.permute.xlu0 %6696
    %6698 = vrot.lane.b32.xlu0 %v6655, 106
    %v6699 = vpop.permute.xlu0 %6698
    %v6700 = vrot.slane %v6697, 2
    %v6701 = vrot.slane %v6699, 2
    %v6704 = vtanh.pop %v6700
    %v6705 = vtanh.pop %v6701
    %v6708 = vrot.slane %v6166, 7
    %v6709 = vrot.slane %v6167, 7
    %v6712 = vmul.f32 %v6678, %v6708
    %v6713 = vmul.f32 %v6693, %v6709
    %v6714 = vmul.f32 %v6678, %v6704
    %v6715 = vmul.f32 %v6693, %v6705
    %6718 = vrot.lane.b32.xlu0 %v6714, 50
    %v6719 = vpop.permute.xlu0 %6718
    %6720 = vrot.lane.b32.xlu0 %v6715, 50
    %v6721 = vpop.permute.xlu0 %6720
    %v6724 = vadd.f32 %v6712, %v6719
    %v6725 = vadd.f32 %v6713, %v6721
    %v6726 = vtanh.pop %v6724
    %v6727 = vtanh.pop %v6725
    %6730 = vrot.lane.b32.xlu0 %v6726, 50
    %v6731 = vpop.permute.xlu0 %6730
    %6732 = vrot.lane.b32.xlu0 %v6727, 50
    %v6733 = vpop.permute.xlu0 %6732
    %v6734 = vrot.slane %v6731, 6
    %v6735 = vrot.slane %v6733, 6
    %v6736 = vsel %vm1163, %v6734, %v6731
    %v6737 = vsel %vm1163, %v6735, %v6733
    %v6740 = vmul.f32 %v6678, %v6736
    %v6741 = vmul.f32 %v6693, %v6737
    %v6744 = vperm.slane %v6740, 1
    %v6745 = vperm.slane %v6740, 3
    %v6746 = vperm.slane %v6741, 1
    %v6747 = vperm.slane %v6741, 3
    %v6748 = vsel %vm1716, %v6746, %v6744
    %v6749 = vsel %vm1716, %v6747, %v6745
    %6750 = vrot.lane.b32.xlu0 %v6748, 28
    %v6751 = vpop.permute.xlu0 %6750
    %6752 = vrot.lane.b32.xlu0 %v6749, 28
    %v6753 = vpop.permute.xlu0 %6752
    %v6754 = vsel %vm1723, %v6751, %v6753
    %v6755 = vsel %vm1163, %v6754, 0
    %6757 = vmatpush.msra.mxu0 0.0
    %6758 = vmatpush.msra.mxu0 0.0
    %6759 = vmatpush.msra.mxu0 0.0
    %6760 = vmatpush.msra.mxu0 0.0
    %6761 = vmatpush.msra.mxu0 0.0
    %6762 = vmatpush.msra.mxu0 0.0
    %6763 = vmatpush.msra.mxu0 0.0
    %6764 = vmatpush.msra.mxu0 0.0
    %6765 = vmatpush.msra.mxu0 0.0
    %v6766 = vand.u32 %v1168, 4294901760
    %6767 = vmatpush.msra.mxu0 %v6766
    %v6768 = vand.u32 %v1159, 4294901760
    %6769 = vmatpush.msra.mxu0 %v6768
    %v6770 = vand.u32 %v1157, 4294901760
    %6771 = vmatpush.msra.mxu0 %v6770
    %v6772 = vand.u32 %v1155, 4294901760
    %6773 = vmatpush.msra.mxu0 %v6772
    %v6774 = vand.u32 %v1153, 4294901760
    %6775 = vmatpush.msra.mxu0 %v6774
    %v6776 = vand.u32 %v1151, 4294901760
    %6777 = vmatpush.msra.mxu0 %v6776
    %v6778 = vand.u32 %v1149, 4294901760
    %6779 = vmatpush.msra.mxu0 %v6778
    %v6780 = vand.u32 %v6755, 4294901760
    %v6781 = vsub.f32 %v6755, %v6780
    %v6782 = vand.u32 %v6781, 4294901760
    %v6783 = vsub.f32 %v6781, %v6782
    %v6784 = vand.u32 %v6783, 4294901760
    %6785 = vmatmul.f32.gmra.mxu0 %v6784
    %v6786 = vpop.f32.mrf.mxu0
    %v6787 = vadd.f32 0.0, %v6786
    %6788 = vdwg.mxu0
    %6789 = vmatpush.msra.mxu0 0.0
    %6790 = vmatpush.msra.mxu0 0.0
    %6791 = vmatpush.msra.mxu0 0.0
    %6792 = vmatpush.msra.mxu0 0.0
    %6793 = vmatpush.msra.mxu0 0.0
    %6794 = vmatpush.msra.mxu0 0.0
    %6795 = vmatpush.msra.mxu0 0.0
    %6796 = vmatpush.msra.mxu0 0.0
    %6797 = vmatpush.msra.mxu0 0.0
    %v6798 = vand.u32 %v1168, 4294901760
    %v6799 = vsub.f32 %v1168, %v6798
    %v6800 = vand.u32 %v6799, 4294901760
    %v6801 = vsub.f32 %v6799, %v6800
    %v6802 = vand.u32 %v6801, 4294901760
    %6803 = vmatpush.msra.mxu0 %v6802
    %v6804 = vand.u32 %v1159, 4294901760
    %v6805 = vsub.f32 %v1159, %v6804
    %v6806 = vand.u32 %v6805, 4294901760
    %v6807 = vsub.f32 %v6805, %v6806
    %v6808 = vand.u32 %v6807, 4294901760
    %6809 = vmatpush.msra.mxu0 %v6808
    %v6810 = vand.u32 %v1157, 4294901760
    %v6811 = vsub.f32 %v1157, %v6810
    %v6812 = vand.u32 %v6811, 4294901760
    %v6813 = vsub.f32 %v6811, %v6812
    %v6814 = vand.u32 %v6813, 4294901760
    %6815 = vmatpush.msra.mxu0 %v6814
    %v6816 = vand.u32 %v1155, 4294901760
    %v6817 = vsub.f32 %v1155, %v6816
    %v6818 = vand.u32 %v6817, 4294901760
    %v6819 = vsub.f32 %v6817, %v6818
    %v6820 = vand.u32 %v6819, 4294901760
    %6821 = vmatpush.msra.mxu0 %v6820
    %v6822 = vand.u32 %v1153, 4294901760
    %v6823 = vsub.f32 %v1153, %v6822
    %v6824 = vand.u32 %v6823, 4294901760
    %v6825 = vsub.f32 %v6823, %v6824
    %v6826 = vand.u32 %v6825, 4294901760
    %6827 = vmatpush.msra.mxu0 %v6826
    %v6828 = vand.u32 %v1151, 4294901760
    %v6829 = vsub.f32 %v1151, %v6828
    %v6830 = vand.u32 %v6829, 4294901760
    %v6831 = vsub.f32 %v6829, %v6830
    %v6832 = vand.u32 %v6831, 4294901760
    %6833 = vmatpush.msra.mxu0 %v6832
    %v6834 = vand.u32 %v1149, 4294901760
    %v6835 = vsub.f32 %v1149, %v6834
    %v6836 = vand.u32 %v6835, 4294901760
    %v6837 = vsub.f32 %v6835, %v6836
    %v6838 = vand.u32 %v6837, 4294901760
    %6839 = vmatpush.msra.mxu0 %v6838
    %v6840 = vand.u32 %v6755, 4294901760
    %6841 = vmatmul.f32.gmra.mxu0 %v6840
    %v6842 = vpop.f32.mrf.mxu0
    %v6843 = vadd.f32 %v6787, %v6842
    %6844 = vdwg.mxu0
    %6845 = vmatpush.msra.mxu0 0.0
    %6846 = vmatpush.msra.mxu0 0.0
    %6847 = vmatpush.msra.mxu0 0.0
    %6848 = vmatpush.msra.mxu0 0.0
    %6849 = vmatpush.msra.mxu0 0.0
    %6850 = vmatpush.msra.mxu0 0.0
    %6851 = vmatpush.msra.mxu0 0.0
    %6852 = vmatpush.msra.mxu0 0.0
    %6853 = vmatpush.msra.mxu0 0.0
    %v6854 = vand.u32 %v1168, 4294901760
    %v6855 = vsub.f32 %v1168, %v6854
    %6856 = vmatpush.msra.mxu0 %v6855
    %v6857 = vand.u32 %v1159, 4294901760
    %v6858 = vsub.f32 %v1159, %v6857
    %6859 = vmatpush.msra.mxu0 %v6858
    %v6860 = vand.u32 %v1157, 4294901760
    %v6861 = vsub.f32 %v1157, %v6860
    %6862 = vmatpush.msra.mxu0 %v6861
    %v6863 = vand.u32 %v1155, 4294901760
    %v6864 = vsub.f32 %v1155, %v6863
    %6865 = vmatpush.msra.mxu0 %v6864
    %v6866 = vand.u32 %v1153, 4294901760
    %v6867 = vsub.f32 %v1153, %v6866
    %6868 = vmatpush.msra.mxu0 %v6867
    %v6869 = vand.u32 %v1151, 4294901760
    %v6870 = vsub.f32 %v1151, %v6869
    %6871 = vmatpush.msra.mxu0 %v6870
    %v6872 = vand.u32 %v1149, 4294901760
    %v6873 = vsub.f32 %v1149, %v6872
    %6874 = vmatpush.msra.mxu0 %v6873
    %v6875 = vand.u32 %v6755, 4294901760
    %v6876 = vsub.f32 %v6755, %v6875
    %6877 = vmatmul.f32.gmra.mxu0 %v6876
    %v6878 = vpop.f32.mrf.mxu0
    %v6879 = vadd.f32 %v6843, %v6878
    %6880 = vdwg.mxu0
    %6881 = vmatpush.msra.mxu0 0.0
    %6882 = vmatpush.msra.mxu0 0.0
    %6883 = vmatpush.msra.mxu0 0.0
    %6884 = vmatpush.msra.mxu0 0.0
    %6885 = vmatpush.msra.mxu0 0.0
    %6886 = vmatpush.msra.mxu0 0.0
    %6887 = vmatpush.msra.mxu0 0.0
    %6888 = vmatpush.msra.mxu0 0.0
    %6889 = vmatpush.msra.mxu0 0.0
    %v6890 = vand.u32 %v1168, 4294901760
    %6891 = vmatpush.msra.mxu0 %v6890
    %v6892 = vand.u32 %v1159, 4294901760
    %6893 = vmatpush.msra.mxu0 %v6892
    %v6894 = vand.u32 %v1157, 4294901760
    %6895 = vmatpush.msra.mxu0 %v6894
    %v6896 = vand.u32 %v1155, 4294901760
    %6897 = vmatpush.msra.mxu0 %v6896
    %v6898 = vand.u32 %v1153, 4294901760
    %6899 = vmatpush.msra.mxu0 %v6898
    %v6900 = vand.u32 %v1151, 4294901760
    %6901 = vmatpush.msra.mxu0 %v6900
    %v6902 = vand.u32 %v1149, 4294901760
    %6903 = vmatpush.msra.mxu0 %v6902
    %v6904 = vand.u32 %v6755, 4294901760
    %v6905 = vsub.f32 %v6755, %v6904
    %v6906 = vand.u32 %v6905, 4294901760
    %6907 = vmatmul.f32.gmra.mxu0 %v6906
    %v6908 = vpop.f32.mrf.mxu0
    %v6909 = vadd.f32 %v6879, %v6908
    %6910 = vdwg.mxu0
    %6911 = vmatpush.msra.mxu0 0.0
    %6912 = vmatpush.msra.mxu0 0.0
    %6913 = vmatpush.msra.mxu0 0.0
    %6914 = vmatpush.msra.mxu0 0.0
    %6915 = vmatpush.msra.mxu0 0.0
    %6916 = vmatpush.msra.mxu0 0.0
    %6917 = vmatpush.msra.mxu0 0.0
    %6918 = vmatpush.msra.mxu0 0.0
    %6919 = vmatpush.msra.mxu0 0.0
    %v6920 = vand.u32 %v1168, 4294901760
    %v6921 = vsub.f32 %v1168, %v6920
    %v6922 = vand.u32 %v6921, 4294901760
    %6923 = vmatpush.msra.mxu0 %v6922
    %v6924 = vand.u32 %v1159, 4294901760
    %v6925 = vsub.f32 %v1159, %v6924
    %v6926 = vand.u32 %v6925, 4294901760
    %6927 = vmatpush.msra.mxu0 %v6926
    %v6928 = vand.u32 %v1157, 4294901760
    %v6929 = vsub.f32 %v1157, %v6928
    %v6930 = vand.u32 %v6929, 4294901760
    %6931 = vmatpush.msra.mxu0 %v6930
    %v6932 = vand.u32 %v1155, 4294901760
    %v6933 = vsub.f32 %v1155, %v6932
    %v6934 = vand.u32 %v6933, 4294901760
    %6935 = vmatpush.msra.mxu0 %v6934
    %v6936 = vand.u32 %v1153, 4294901760
    %v6937 = vsub.f32 %v1153, %v6936
    %v6938 = vand.u32 %v6937, 4294901760
    %6939 = vmatpush.msra.mxu0 %v6938
    %v6940 = vand.u32 %v1151, 4294901760
    %v6941 = vsub.f32 %v1151, %v6940
    %v6942 = vand.u32 %v6941, 4294901760
    %6943 = vmatpush.msra.mxu0 %v6942
    %v6944 = vand.u32 %v1149, 4294901760
    %v6945 = vsub.f32 %v1149, %v6944
    %v6946 = vand.u32 %v6945, 4294901760
    %6947 = vmatpush.msra.mxu0 %v6946
    %v6948 = vand.u32 %v6755, 4294901760
    %6949 = vmatmul.f32.gmra.mxu0 %v6948
    %v6950 = vpop.f32.mrf.mxu0
    %v6951 = vadd.f32 %v6909, %v6950
    %6952 = vdwg.mxu0
    %6953 = vmatpush.msra.mxu0 0.0
    %6954 = vmatpush.msra.mxu0 0.0
    %6955 = vmatpush.msra.mxu0 0.0
    %6956 = vmatpush.msra.mxu0 0.0
    %6957 = vmatpush.msra.mxu0 0.0
    %6958 = vmatpush.msra.mxu0 0.0
    %6959 = vmatpush.msra.mxu0 0.0
    %6960 = vmatpush.msra.mxu0 0.0
    %6961 = vmatpush.msra.mxu0 0.0
    %v6962 = vand.u32 %v1168, 4294901760
    %6963 = vmatpush.msra.mxu0 %v6962
    %v6964 = vand.u32 %v1159, 4294901760
    %6965 = vmatpush.msra.mxu0 %v6964
    %v6966 = vand.u32 %v1157, 4294901760
    %6967 = vmatpush.msra.mxu0 %v6966
    %v6968 = vand.u32 %v1155, 4294901760
    %6969 = vmatpush.msra.mxu0 %v6968
    %v6970 = vand.u32 %v1153, 4294901760
    %6971 = vmatpush.msra.mxu0 %v6970
    %v6972 = vand.u32 %v1151, 4294901760
    %6973 = vmatpush.msra.mxu0 %v6972
    %v6974 = vand.u32 %v1149, 4294901760
    %6975 = vmatpush.msra.mxu0 %v6974
    %v6976 = vand.u32 %v6755, 4294901760
    %6977 = vmatmul.f32.gmra.mxu0 %v6976
    %v6978 = vpop.f32.mrf.mxu0
    %v6979 = vadd.f32 %v6951, %v6978
    %6980 = vdwg.mxu0
    %6981 = vmatpush.msra.mxu0 0.0
    %6982 = vmatpush.msra.mxu0 0.0
    %6983 = vmatpush.msra.mxu0 0.0
    %6984 = vmatpush.msra.mxu0 0.0
    %6985 = vmatpush.msra.mxu0 0.0
    %6986 = vmatpush.msra.mxu0 0.0
    %6987 = vmatpush.msra.mxu0 0.0
    %6988 = vmatpush.msra.mxu0 0.0
    %6989 = vmatpush.msra.mxu0 0.0
    %v6990 = vand.u32 %v1171, 4294901760
    %6991 = vmatpush.msra.mxu0 %v6990
    %v6992 = vand.u32 %v1160, 4294901760
    %6993 = vmatpush.msra.mxu0 %v6992
    %v6994 = vand.u32 %v1158, 4294901760
    %6995 = vmatpush.msra.mxu0 %v6994
    %v6996 = vand.u32 %v1156, 4294901760
    %6997 = vmatpush.msra.mxu0 %v6996
    %v6998 = vand.u32 %v1154, 4294901760
    %6999 = vmatpush.msra.mxu0 %v6998
    %v7000 = vand.u32 %v1152, 4294901760
    %7001 = vmatpush.msra.mxu0 %v7000
    %v7002 = vand.u32 %v1150, 4294901760
    %7003 = vmatpush.msra.mxu0 %v7002
    %v7004 = vand.u32 %v6755, 4294901760
    %v7005 = vsub.f32 %v6755, %v7004
    %v7006 = vand.u32 %v7005, 4294901760
    %v7007 = vsub.f32 %v7005, %v7006
    %v7008 = vand.u32 %v7007, 4294901760
    %7009 = vmatmul.f32.gmra.mxu0 %v7008
    %v7010 = vpop.f32.mrf.mxu0
    %v7011 = vadd.f32 0.0, %v7010
    %7012 = vdwg.mxu0
    %7013 = vmatpush.msra.mxu0 0.0
    %7014 = vmatpush.msra.mxu0 0.0
    %7015 = vmatpush.msra.mxu0 0.0
    %7016 = vmatpush.msra.mxu0 0.0
    %7017 = vmatpush.msra.mxu0 0.0
    %7018 = vmatpush.msra.mxu0 0.0
    %7019 = vmatpush.msra.mxu0 0.0
    %7020 = vmatpush.msra.mxu0 0.0
    %7021 = vmatpush.msra.mxu0 0.0
    %v7022 = vand.u32 %v1171, 4294901760
    %v7023 = vsub.f32 %v1171, %v7022
    %v7024 = vand.u32 %v7023, 4294901760
    %v7025 = vsub.f32 %v7023, %v7024
    %v7026 = vand.u32 %v7025, 4294901760
    %7027 = vmatpush.msra.mxu0 %v7026
    %v7028 = vand.u32 %v1160, 4294901760
    %v7029 = vsub.f32 %v1160, %v7028
    %v7030 = vand.u32 %v7029, 4294901760
    %v7031 = vsub.f32 %v7029, %v7030
    %v7032 = vand.u32 %v7031, 4294901760
    %7033 = vmatpush.msra.mxu0 %v7032
    %v7034 = vand.u32 %v1158, 4294901760
    %v7035 = vsub.f32 %v1158, %v7034
    %v7036 = vand.u32 %v7035, 4294901760
    %v7037 = vsub.f32 %v7035, %v7036
    %v7038 = vand.u32 %v7037, 4294901760
    %7039 = vmatpush.msra.mxu0 %v7038
    %v7040 = vand.u32 %v1156, 4294901760
    %v7041 = vsub.f32 %v1156, %v7040
    %v7042 = vand.u32 %v7041, 4294901760
    %v7043 = vsub.f32 %v7041, %v7042
    %v7044 = vand.u32 %v7043, 4294901760
    %7045 = vmatpush.msra.mxu0 %v7044
    %v7046 = vand.u32 %v1154, 4294901760
    %v7047 = vsub.f32 %v1154, %v7046
    %v7048 = vand.u32 %v7047, 4294901760
    %v7049 = vsub.f32 %v7047, %v7048
    %v7050 = vand.u32 %v7049, 4294901760
    %7051 = vmatpush.msra.mxu0 %v7050
    %v7052 = vand.u32 %v1152, 4294901760
    %v7053 = vsub.f32 %v1152, %v7052
    %v7054 = vand.u32 %v7053, 4294901760
    %v7055 = vsub.f32 %v7053, %v7054
    %v7056 = vand.u32 %v7055, 4294901760
    %7057 = vmatpush.msra.mxu0 %v7056
    %v7058 = vand.u32 %v1150, 4294901760
    %v7059 = vsub.f32 %v1150, %v7058
    %v7060 = vand.u32 %v7059, 4294901760
    %v7061 = vsub.f32 %v7059, %v7060
    %v7062 = vand.u32 %v7061, 4294901760
    %7063 = vmatpush.msra.mxu0 %v7062
    %v7064 = vand.u32 %v6755, 4294901760
    %7065 = vmatmul.f32.gmra.mxu0 %v7064
    %v7066 = vpop.f32.mrf.mxu0
    %v7067 = vadd.f32 %v7011, %v7066
    %7068 = vdwg.mxu0
    %7069 = vmatpush.msra.mxu0 0.0
    %7070 = vmatpush.msra.mxu0 0.0
    %7071 = vmatpush.msra.mxu0 0.0
    %7072 = vmatpush.msra.mxu0 0.0
    %7073 = vmatpush.msra.mxu0 0.0
    %7074 = vmatpush.msra.mxu0 0.0
    %7075 = vmatpush.msra.mxu0 0.0
    %7076 = vmatpush.msra.mxu0 0.0
    %7077 = vmatpush.msra.mxu0 0.0
    %v7078 = vand.u32 %v1171, 4294901760
    %v7079 = vsub.f32 %v1171, %v7078
    %7080 = vmatpush.msra.mxu0 %v7079
    %v7081 = vand.u32 %v1160, 4294901760
    %v7082 = vsub.f32 %v1160, %v7081
    %7083 = vmatpush.msra.mxu0 %v7082
    %v7084 = vand.u32 %v1158, 4294901760
    %v7085 = vsub.f32 %v1158, %v7084
    %7086 = vmatpush.msra.mxu0 %v7085
    %v7087 = vand.u32 %v1156, 4294901760
    %v7088 = vsub.f32 %v1156, %v7087
    %7089 = vmatpush.msra.mxu0 %v7088
    %v7090 = vand.u32 %v1154, 4294901760
    %v7091 = vsub.f32 %v1154, %v7090
    %7092 = vmatpush.msra.mxu0 %v7091
    %v7093 = vand.u32 %v1152, 4294901760
    %v7094 = vsub.f32 %v1152, %v7093
    %7095 = vmatpush.msra.mxu0 %v7094
    %v7096 = vand.u32 %v1150, 4294901760
    %v7097 = vsub.f32 %v1150, %v7096
    %7098 = vmatpush.msra.mxu0 %v7097
    %v7099 = vand.u32 %v6755, 4294901760
    %v7100 = vsub.f32 %v6755, %v7099
    %7101 = vmatmul.f32.gmra.mxu0 %v7100
    %v7102 = vpop.f32.mrf.mxu0
    %v7103 = vadd.f32 %v7067, %v7102
    %7104 = vdwg.mxu0
    %7105 = vmatpush.msra.mxu0 0.0
    %7106 = vmatpush.msra.mxu0 0.0
    %7107 = vmatpush.msra.mxu0 0.0
    %7108 = vmatpush.msra.mxu0 0.0
    %7109 = vmatpush.msra.mxu0 0.0
    %7110 = vmatpush.msra.mxu0 0.0
    %7111 = vmatpush.msra.mxu0 0.0
    %7112 = vmatpush.msra.mxu0 0.0
    %7113 = vmatpush.msra.mxu0 0.0
    %v7114 = vand.u32 %v1171, 4294901760
    %7115 = vmatpush.msra.mxu0 %v7114
    %v7116 = vand.u32 %v1160, 4294901760
    %7117 = vmatpush.msra.mxu0 %v7116
    %v7118 = vand.u32 %v1158, 4294901760
    %7119 = vmatpush.msra.mxu0 %v7118
    %v7120 = vand.u32 %v1156, 4294901760
    %7121 = vmatpush.msra.mxu0 %v7120
    %v7122 = vand.u32 %v1154, 4294901760
    %7123 = vmatpush.msra.mxu0 %v7122
    %v7124 = vand.u32 %v1152, 4294901760
    %7125 = vmatpush.msra.mxu0 %v7124
    %v7126 = vand.u32 %v1150, 4294901760
    %7127 = vmatpush.msra.mxu0 %v7126
    %v7128 = vand.u32 %v6755, 4294901760
    %v7129 = vsub.f32 %v6755, %v7128
    %v7130 = vand.u32 %v7129, 4294901760
    %7131 = vmatmul.f32.gmra.mxu0 %v7130
    %v7132 = vpop.f32.mrf.mxu0
    %v7133 = vadd.f32 %v7103, %v7132
    %7134 = vdwg.mxu0
    %7135 = vmatpush.msra.mxu0 0.0
    %7136 = vmatpush.msra.mxu0 0.0
    %7137 = vmatpush.msra.mxu0 0.0
    %7138 = vmatpush.msra.mxu0 0.0
    %7139 = vmatpush.msra.mxu0 0.0
    %7140 = vmatpush.msra.mxu0 0.0
    %7141 = vmatpush.msra.mxu0 0.0
    %7142 = vmatpush.msra.mxu0 0.0
    %7143 = vmatpush.msra.mxu0 0.0
    %v7144 = vand.u32 %v1171, 4294901760
    %v7145 = vsub.f32 %v1171, %v7144
    %v7146 = vand.u32 %v7145, 4294901760
    %7147 = vmatpush.msra.mxu0 %v7146
    %v7148 = vand.u32 %v1160, 4294901760
    %v7149 = vsub.f32 %v1160, %v7148
    %v7150 = vand.u32 %v7149, 4294901760
    %7151 = vmatpush.msra.mxu0 %v7150
    %v7152 = vand.u32 %v1158, 4294901760
    %v7153 = vsub.f32 %v1158, %v7152
    %v7154 = vand.u32 %v7153, 4294901760
    %7155 = vmatpush.msra.mxu0 %v7154
    %v7156 = vand.u32 %v1156, 4294901760
    %v7157 = vsub.f32 %v1156, %v7156
    %v7158 = vand.u32 %v7157, 4294901760
    %7159 = vmatpush.msra.mxu0 %v7158
    %v7160 = vand.u32 %v1154, 4294901760
    %v7161 = vsub.f32 %v1154, %v7160
    %v7162 = vand.u32 %v7161, 4294901760
    %7163 = vmatpush.msra.mxu0 %v7162
    %v7164 = vand.u32 %v1152, 4294901760
    %v7165 = vsub.f32 %v1152, %v7164
    %v7166 = vand.u32 %v7165, 4294901760
    %7167 = vmatpush.msra.mxu0 %v7166
    %v7168 = vand.u32 %v1150, 4294901760
    %v7169 = vsub.f32 %v1150, %v7168
    %v7170 = vand.u32 %v7169, 4294901760
    %7171 = vmatpush.msra.mxu0 %v7170
    %v7172 = vand.u32 %v6755, 4294901760
    %7173 = vmatmul.f32.gmra.mxu0 %v7172
    %v7174 = vpop.f32.mrf.mxu0
    %v7175 = vadd.f32 %v7133, %v7174
    %7176 = vdwg.mxu0
    %7177 = vmatpush.msra.mxu0 0.0
    %7178 = vmatpush.msra.mxu0 0.0
    %7179 = vmatpush.msra.mxu0 0.0
    %7180 = vmatpush.msra.mxu0 0.0
    %7181 = vmatpush.msra.mxu0 0.0
    %7182 = vmatpush.msra.mxu0 0.0
    %7183 = vmatpush.msra.mxu0 0.0
    %7184 = vmatpush.msra.mxu0 0.0
    %7185 = vmatpush.msra.mxu0 0.0
    %v7186 = vand.u32 %v1171, 4294901760
    %7187 = vmatpush.msra.mxu0 %v7186
    %v7188 = vand.u32 %v1160, 4294901760
    %7189 = vmatpush.msra.mxu0 %v7188
    %v7190 = vand.u32 %v1158, 4294901760
    %7191 = vmatpush.msra.mxu0 %v7190
    %v7192 = vand.u32 %v1156, 4294901760
    %7193 = vmatpush.msra.mxu0 %v7192
    %v7194 = vand.u32 %v1154, 4294901760
    %7195 = vmatpush.msra.mxu0 %v7194
    %v7196 = vand.u32 %v1152, 4294901760
    %7197 = vmatpush.msra.mxu0 %v7196
    %v7198 = vand.u32 %v1150, 4294901760
    %7199 = vmatpush.msra.mxu0 %v7198
    %v7200 = vand.u32 %v6755, 4294901760
    %7201 = vmatmul.f32.gmra.mxu0 %v7200
    %v7202 = vpop.f32.mrf.mxu0
    %v7203 = vadd.f32 %v7175, %v7202
    %7204 = vdwg.mxu0
    %v7207 = vrot.slane %v7203, 6
    %v7208 = vsel %vm1107, %v6979, %v7207
    %v7209 = vrot.slane %v7208, 1
    %v7212 = vadd.f32 %v1120, %v7208
    %v7213 = vadd.f32 %v1132, %v7209
    %v7214 = vxor.u32 %v7212, 2147483648
    %v7215 = vxor.u32 %v7213, 2147483648
    %v7216 = vmul.f32 %v7214, 1.442695
    %v7217 = vpow.pop %v7216
    %v7218 = vmul.f32 %v7215, 1.442695
    %v7219 = vpow.pop %v7218
    %v7220 = vadd.f32 %v7217, 1.0
    %v7221 = vadd.f32 %v7219, 1.0
    %v7222 = vrcp.pop %v7220
    %v7223 = vmul.f32 %v7220, %v7222
    %v7224 = vsub.f32 1.0, %v7223
    %v7225 = vmul.f32 %v7222, %v7224
    %v7226 = vadd.f32 %v7222, %v7225
    %vm7227 = vweird.f32 %v7220
    %vm7228 = vweird.f32 %v7222
    %vm7229 = vmor %vm7227, %vm7228
    %v7230 = vsel %vm7229, %v7222, %v7226
    %v7231 = vand.u32 2147483647, %v7220
    %vm7232 = vcmp.eq.f32.partialorder %v7231, 8.507059e+37
    %v7233 = vand.u32 %v7220, 2147483648
    %v7234 = vor.u32 1.1754944e-38, %v7233
    %v7235 = vsel %vm7232, %v7234, %v7230
    %v7236 = vmul.f32 1.0, %v7235
    %v7237 = vrcp.pop %v7221
    %v7238 = vmul.f32 %v7221, %v7237
    %v7239 = vsub.f32 1.0, %v7238
    %v7240 = vmul.f32 %v7237, %v7239
    %v7241 = vadd.f32 %v7237, %v7240
    %vm7242 = vweird.f32 %v7221
    %vm7243 = vweird.f32 %v7237
    %vm7244 = vmor %vm7242, %vm7243
    %v7245 = vsel %vm7244, %v7237, %v7241
    %v7246 = vand.u32 2147483647, %v7221
    %vm7247 = vcmp.eq.f32.partialorder %v7246, 8.507059e+37
    %v7248 = vand.u32 %v7221, 2147483648
    %v7249 = vor.u32 1.1754944e-38, %v7248
    %v7250 = vsel %vm7247, %v7249, %v7245
    %v7251 = vmul.f32 1.0, %v7250
    %7254 = vrot.lane.b32.xlu0 %v7212, 106
    %v7255 = vpop.permute.xlu0 %7254
    %7256 = vrot.lane.b32.xlu0 %v7213, 106
    %v7257 = vpop.permute.xlu0 %7256
    %v7258 = vrot.slane %v7255, 2
    %v7259 = vrot.slane %v7257, 2
    %v7262 = vtanh.pop %v7258
    %v7263 = vtanh.pop %v7259
    %v7266 = vrot.slane %v6724, 7
    %v7267 = vrot.slane %v7266, 2
    %v7268 = vrot.slane %v6725, 7
    %v7269 = vrot.slane %v7268, 2
    %v7272 = vmul.f32 %v7236, %v7267
    %v7273 = vmul.f32 %v7251, %v7269
    %v7274 = vmul.f32 %v7236, %v7262
    %v7275 = vmul.f32 %v7251, %v7263
    %7278 = vrot.lane.b32.xlu0 %v7274, 50
    %v7279 = vpop.permute.xlu0 %7278
    %7280 = vrot.lane.b32.xlu0 %v7275, 50
    %v7281 = vpop.permute.xlu0 %7280
    %v7284 = vadd.f32 %v7272, %v7279
    %v7285 = vadd.f32 %v7273, %v7281
    %v7286 = vtanh.pop %v7284
    %v7287 = vtanh.pop %v7285
    %7290 = vrot.lane.b32.xlu0 %v7286, 50
    %v7291 = vpop.permute.xlu0 %7290
    %7292 = vrot.lane.b32.xlu0 %v7287, 50
    %v7293 = vpop.permute.xlu0 %7292
    %v7294 = vrot.slane %v7291, 6
    %v7295 = vrot.slane %v7293, 6
    %v7296 = vsel %vm1163, %v7294, %v7291
    %v7297 = vsel %vm1163, %v7295, %v7293
    %v7300 = vmul.f32 %v7236, %v7296
    %v7301 = vmul.f32 %v7251, %v7297
    %v7304 = vperm.slane %v7300, 0
    %v7305 = vperm.slane %v7300, 2
    %v7306 = vperm.slane %v7301, 0
    %v7307 = vperm.slane %v7301, 2
    %v7308 = vsel %vm1716, %v7306, %v7304
    %v7309 = vsel %vm1716, %v7307, %v7305
    %7310 = vrot.lane.b32.xlu0 %v7308, 28
    %v7311 = vpop.permute.xlu0 %7310
    %7312 = vrot.lane.b32.xlu0 %v7309, 28
    %v7313 = vpop.permute.xlu0 %7312
    %v7314 = vsel %vm1723, %v7311, %v7313
    %v7315 = vsel %vm1163, %v7314, 0
    %7317 = vmatpush.msra.mxu0 0.0
    %7318 = vmatpush.msra.mxu0 0.0
    %7319 = vmatpush.msra.mxu0 0.0
    %7320 = vmatpush.msra.mxu0 0.0
    %7321 = vmatpush.msra.mxu0 0.0
    %7322 = vmatpush.msra.mxu0 0.0
    %7323 = vmatpush.msra.mxu0 0.0
    %7324 = vmatpush.msra.mxu0 0.0
    %7325 = vmatpush.msra.mxu0 0.0
    %v7326 = vand.u32 %v1168, 4294901760
    %7327 = vmatpush.msra.mxu0 %v7326
    %v7328 = vand.u32 %v1159, 4294901760
    %7329 = vmatpush.msra.mxu0 %v7328
    %v7330 = vand.u32 %v1157, 4294901760
    %7331 = vmatpush.msra.mxu0 %v7330
    %v7332 = vand.u32 %v1155, 4294901760
    %7333 = vmatpush.msra.mxu0 %v7332
    %v7334 = vand.u32 %v1153, 4294901760
    %7335 = vmatpush.msra.mxu0 %v7334
    %v7336 = vand.u32 %v1151, 4294901760
    %7337 = vmatpush.msra.mxu0 %v7336
    %v7338 = vand.u32 %v1149, 4294901760
    %7339 = vmatpush.msra.mxu0 %v7338
    %v7340 = vand.u32 %v7315, 4294901760
    %v7341 = vsub.f32 %v7315, %v7340
    %v7342 = vand.u32 %v7341, 4294901760
    %v7343 = vsub.f32 %v7341, %v7342
    %v7344 = vand.u32 %v7343, 4294901760
    %7345 = vmatmul.f32.gmra.mxu0 %v7344
    %v7346 = vpop.f32.mrf.mxu0
    %v7347 = vadd.f32 0.0, %v7346
    %7348 = vdwg.mxu0
    %7349 = vmatpush.msra.mxu0 0.0
    %7350 = vmatpush.msra.mxu0 0.0
    %7351 = vmatpush.msra.mxu0 0.0
    %7352 = vmatpush.msra.mxu0 0.0
    %7353 = vmatpush.msra.mxu0 0.0
    %7354 = vmatpush.msra.mxu0 0.0
    %7355 = vmatpush.msra.mxu0 0.0
    %7356 = vmatpush.msra.mxu0 0.0
    %7357 = vmatpush.msra.mxu0 0.0
    %v7358 = vand.u32 %v1168, 4294901760
    %v7359 = vsub.f32 %v1168, %v7358
    %v7360 = vand.u32 %v7359, 4294901760
    %v7361 = vsub.f32 %v7359, %v7360
    %v7362 = vand.u32 %v7361, 4294901760
    %7363 = vmatpush.msra.mxu0 %v7362
    %v7364 = vand.u32 %v1159, 4294901760
    %v7365 = vsub.f32 %v1159, %v7364
    %v7366 = vand.u32 %v7365, 4294901760
    %v7367 = vsub.f32 %v7365, %v7366
    %v7368 = vand.u32 %v7367, 4294901760
    %7369 = vmatpush.msra.mxu0 %v7368
    %v7370 = vand.u32 %v1157, 4294901760
    %v7371 = vsub.f32 %v1157, %v7370
    %v7372 = vand.u32 %v7371, 4294901760
    %v7373 = vsub.f32 %v7371, %v7372
    %v7374 = vand.u32 %v7373, 4294901760
    %7375 = vmatpush.msra.mxu0 %v7374
    %v7376 = vand.u32 %v1155, 4294901760
    %v7377 = vsub.f32 %v1155, %v7376
    %v7378 = vand.u32 %v7377, 4294901760
    %v7379 = vsub.f32 %v7377, %v7378
    %v7380 = vand.u32 %v7379, 4294901760
    %7381 = vmatpush.msra.mxu0 %v7380
    %v7382 = vand.u32 %v1153, 4294901760
    %v7383 = vsub.f32 %v1153, %v7382
    %v7384 = vand.u32 %v7383, 4294901760
    %v7385 = vsub.f32 %v7383, %v7384
    %v7386 = vand.u32 %v7385, 4294901760
    %7387 = vmatpush.msra.mxu0 %v7386
    %v7388 = vand.u32 %v1151, 4294901760
    %v7389 = vsub.f32 %v1151, %v7388
    %v7390 = vand.u32 %v7389, 4294901760
    %v7391 = vsub.f32 %v7389, %v7390
    %v7392 = vand.u32 %v7391, 4294901760
    %7393 = vmatpush.msra.mxu0 %v7392
    %v7394 = vand.u32 %v1149, 4294901760
    %v7395 = vsub.f32 %v1149, %v7394
    %v7396 = vand.u32 %v7395, 4294901760
    %v7397 = vsub.f32 %v7395, %v7396
    %v7398 = vand.u32 %v7397, 4294901760
    %7399 = vmatpush.msra.mxu0 %v7398
    %v7400 = vand.u32 %v7315, 4294901760
    %7401 = vmatmul.f32.gmra.mxu0 %v7400
    %v7402 = vpop.f32.mrf.mxu0
    %v7403 = vadd.f32 %v7347, %v7402
    %7404 = vdwg.mxu0
    %7405 = vmatpush.msra.mxu0 0.0
    %7406 = vmatpush.msra.mxu0 0.0
    %7407 = vmatpush.msra.mxu0 0.0
    %7408 = vmatpush.msra.mxu0 0.0
    %7409 = vmatpush.msra.mxu0 0.0
    %7410 = vmatpush.msra.mxu0 0.0
    %7411 = vmatpush.msra.mxu0 0.0
    %7412 = vmatpush.msra.mxu0 0.0
    %7413 = vmatpush.msra.mxu0 0.0
    %v7414 = vand.u32 %v1168, 4294901760
    %v7415 = vsub.f32 %v1168, %v7414
    %7416 = vmatpush.msra.mxu0 %v7415
    %v7417 = vand.u32 %v1159, 4294901760
    %v7418 = vsub.f32 %v1159, %v7417
    %7419 = vmatpush.msra.mxu0 %v7418
    %v7420 = vand.u32 %v1157, 4294901760
    %v7421 = vsub.f32 %v1157, %v7420
    %7422 = vmatpush.msra.mxu0 %v7421
    %v7423 = vand.u32 %v1155, 4294901760
    %v7424 = vsub.f32 %v1155, %v7423
    %7425 = vmatpush.msra.mxu0 %v7424
    %v7426 = vand.u32 %v1153, 4294901760
    %v7427 = vsub.f32 %v1153, %v7426
    %7428 = vmatpush.msra.mxu0 %v7427
    %v7429 = vand.u32 %v1151, 4294901760
    %v7430 = vsub.f32 %v1151, %v7429
    %7431 = vmatpush.msra.mxu0 %v7430
    %v7432 = vand.u32 %v1149, 4294901760
    %v7433 = vsub.f32 %v1149, %v7432
    %7434 = vmatpush.msra.mxu0 %v7433
    %v7435 = vand.u32 %v7315, 4294901760
    %v7436 = vsub.f32 %v7315, %v7435
    %7437 = vmatmul.f32.gmra.mxu0 %v7436
    %v7438 = vpop.f32.mrf.mxu0
    %v7439 = vadd.f32 %v7403, %v7438
    %7440 = vdwg.mxu0
    %7441 = vmatpush.msra.mxu0 0.0
    %7442 = vmatpush.msra.mxu0 0.0
    %7443 = vmatpush.msra.mxu0 0.0
    %7444 = vmatpush.msra.mxu0 0.0
    %7445 = vmatpush.msra.mxu0 0.0
    %7446 = vmatpush.msra.mxu0 0.0
    %7447 = vmatpush.msra.mxu0 0.0
    %7448 = vmatpush.msra.mxu0 0.0
    %7449 = vmatpush.msra.mxu0 0.0
    %v7450 = vand.u32 %v1168, 4294901760
    %7451 = vmatpush.msra.mxu0 %v7450
    %v7452 = vand.u32 %v1159, 4294901760
    %7453 = vmatpush.msra.mxu0 %v7452
    %v7454 = vand.u32 %v1157, 4294901760
    %7455 = vmatpush.msra.mxu0 %v7454
    %v7456 = vand.u32 %v1155, 4294901760
    %7457 = vmatpush.msra.mxu0 %v7456
    %v7458 = vand.u32 %v1153, 4294901760
    %7459 = vmatpush.msra.mxu0 %v7458
    %v7460 = vand.u32 %v1151, 4294901760
    %7461 = vmatpush.msra.mxu0 %v7460
    %v7462 = vand.u32 %v1149, 4294901760
    %7463 = vmatpush.msra.mxu0 %v7462
    %v7464 = vand.u32 %v7315, 4294901760
    %v7465 = vsub.f32 %v7315, %v7464
    %v7466 = vand.u32 %v7465, 4294901760
    %7467 = vmatmul.f32.gmra.mxu0 %v7466
    %v7468 = vpop.f32.mrf.mxu0
    %v7469 = vadd.f32 %v7439, %v7468
    %7470 = vdwg.mxu0
    %7471 = vmatpush.msra.mxu0 0.0
    %7472 = vmatpush.msra.mxu0 0.0
    %7473 = vmatpush.msra.mxu0 0.0
    %7474 = vmatpush.msra.mxu0 0.0
    %7475 = vmatpush.msra.mxu0 0.0
    %7476 = vmatpush.msra.mxu0 0.0
    %7477 = vmatpush.msra.mxu0 0.0
    %7478 = vmatpush.msra.mxu0 0.0
    %7479 = vmatpush.msra.mxu0 0.0
    %v7480 = vand.u32 %v1168, 4294901760
    %v7481 = vsub.f32 %v1168, %v7480
    %v7482 = vand.u32 %v7481, 4294901760
    %7483 = vmatpush.msra.mxu0 %v7482
    %v7484 = vand.u32 %v1159, 4294901760
    %v7485 = vsub.f32 %v1159, %v7484
    %v7486 = vand.u32 %v7485, 4294901760
    %7487 = vmatpush.msra.mxu0 %v7486
    %v7488 = vand.u32 %v1157, 4294901760
    %v7489 = vsub.f32 %v1157, %v7488
    %v7490 = vand.u32 %v7489, 4294901760
    %7491 = vmatpush.msra.mxu0 %v7490
    %v7492 = vand.u32 %v1155, 4294901760
    %v7493 = vsub.f32 %v1155, %v7492
    %v7494 = vand.u32 %v7493, 4294901760
    %7495 = vmatpush.msra.mxu0 %v7494
    %v7496 = vand.u32 %v1153, 4294901760
    %v7497 = vsub.f32 %v1153, %v7496
    %v7498 = vand.u32 %v7497, 4294901760
    %7499 = vmatpush.msra.mxu0 %v7498
    %v7500 = vand.u32 %v1151, 4294901760
    %v7501 = vsub.f32 %v1151, %v7500
    %v7502 = vand.u32 %v7501, 4294901760
    %7503 = vmatpush.msra.mxu0 %v7502
    %v7504 = vand.u32 %v1149, 4294901760
    %v7505 = vsub.f32 %v1149, %v7504
    %v7506 = vand.u32 %v7505, 4294901760
    %7507 = vmatpush.msra.mxu0 %v7506
    %v7508 = vand.u32 %v7315, 4294901760
    %7509 = vmatmul.f32.gmra.mxu0 %v7508
    %v7510 = vpop.f32.mrf.mxu0
    %v7511 = vadd.f32 %v7469, %v7510
    %7512 = vdwg.mxu0
    %7513 = vmatpush.msra.mxu0 0.0
    %7514 = vmatpush.msra.mxu0 0.0
    %7515 = vmatpush.msra.mxu0 0.0
    %7516 = vmatpush.msra.mxu0 0.0
    %7517 = vmatpush.msra.mxu0 0.0
    %7518 = vmatpush.msra.mxu0 0.0
    %7519 = vmatpush.msra.mxu0 0.0
    %7520 = vmatpush.msra.mxu0 0.0
    %7521 = vmatpush.msra.mxu0 0.0
    %v7522 = vand.u32 %v1168, 4294901760
    %7523 = vmatpush.msra.mxu0 %v7522
    %v7524 = vand.u32 %v1159, 4294901760
    %7525 = vmatpush.msra.mxu0 %v7524
    %v7526 = vand.u32 %v1157, 4294901760
    %7527 = vmatpush.msra.mxu0 %v7526
    %v7528 = vand.u32 %v1155, 4294901760
    %7529 = vmatpush.msra.mxu0 %v7528
    %v7530 = vand.u32 %v1153, 4294901760
    %7531 = vmatpush.msra.mxu0 %v7530
    %v7532 = vand.u32 %v1151, 4294901760
    %7533 = vmatpush.msra.mxu0 %v7532
    %v7534 = vand.u32 %v1149, 4294901760
    %7535 = vmatpush.msra.mxu0 %v7534
    %v7536 = vand.u32 %v7315, 4294901760
    %7537 = vmatmul.f32.gmra.mxu0 %v7536
    %v7538 = vpop.f32.mrf.mxu0
    %v7539 = vadd.f32 %v7511, %v7538
    %7540 = vdwg.mxu0
    %7541 = vmatpush.msra.mxu0 0.0
    %7542 = vmatpush.msra.mxu0 0.0
    %7543 = vmatpush.msra.mxu0 0.0
    %7544 = vmatpush.msra.mxu0 0.0
    %7545 = vmatpush.msra.mxu0 0.0
    %7546 = vmatpush.msra.mxu0 0.0
    %7547 = vmatpush.msra.mxu0 0.0
    %7548 = vmatpush.msra.mxu0 0.0
    %7549 = vmatpush.msra.mxu0 0.0
    %v7550 = vand.u32 %v1171, 4294901760
    %7551 = vmatpush.msra.mxu0 %v7550
    %v7552 = vand.u32 %v1160, 4294901760
    %7553 = vmatpush.msra.mxu0 %v7552
    %v7554 = vand.u32 %v1158, 4294901760
    %7555 = vmatpush.msra.mxu0 %v7554
    %v7556 = vand.u32 %v1156, 4294901760
    %7557 = vmatpush.msra.mxu0 %v7556
    %v7558 = vand.u32 %v1154, 4294901760
    %7559 = vmatpush.msra.mxu0 %v7558
    %v7560 = vand.u32 %v1152, 4294901760
    %7561 = vmatpush.msra.mxu0 %v7560
    %v7562 = vand.u32 %v1150, 4294901760
    %7563 = vmatpush.msra.mxu0 %v7562
    %v7564 = vand.u32 %v7315, 4294901760
    %v7565 = vsub.f32 %v7315, %v7564
    %v7566 = vand.u32 %v7565, 4294901760
    %v7567 = vsub.f32 %v7565, %v7566
    %v7568 = vand.u32 %v7567, 4294901760
    %7569 = vmatmul.f32.gmra.mxu0 %v7568
    %v7570 = vpop.f32.mrf.mxu0
    %v7571 = vadd.f32 0.0, %v7570
    %7572 = vdwg.mxu0
    %7573 = vmatpush.msra.mxu0 0.0
    %7574 = vmatpush.msra.mxu0 0.0
    %7575 = vmatpush.msra.mxu0 0.0
    %7576 = vmatpush.msra.mxu0 0.0
    %7577 = vmatpush.msra.mxu0 0.0
    %7578 = vmatpush.msra.mxu0 0.0
    %7579 = vmatpush.msra.mxu0 0.0
    %7580 = vmatpush.msra.mxu0 0.0
    %7581 = vmatpush.msra.mxu0 0.0
    %v7582 = vand.u32 %v1171, 4294901760
    %v7583 = vsub.f32 %v1171, %v7582
    %v7584 = vand.u32 %v7583, 4294901760
    %v7585 = vsub.f32 %v7583, %v7584
    %v7586 = vand.u32 %v7585, 4294901760
    %7587 = vmatpush.msra.mxu0 %v7586
    %v7588 = vand.u32 %v1160, 4294901760
    %v7589 = vsub.f32 %v1160, %v7588
    %v7590 = vand.u32 %v7589, 4294901760
    %v7591 = vsub.f32 %v7589, %v7590
    %v7592 = vand.u32 %v7591, 4294901760
    %7593 = vmatpush.msra.mxu0 %v7592
    %v7594 = vand.u32 %v1158, 4294901760
    %v7595 = vsub.f32 %v1158, %v7594
    %v7596 = vand.u32 %v7595, 4294901760
    %v7597 = vsub.f32 %v7595, %v7596
    %v7598 = vand.u32 %v7597, 4294901760
    %7599 = vmatpush.msra.mxu0 %v7598
    %v7600 = vand.u32 %v1156, 4294901760
    %v7601 = vsub.f32 %v1156, %v7600
    %v7602 = vand.u32 %v7601, 4294901760
    %v7603 = vsub.f32 %v7601, %v7602
    %v7604 = vand.u32 %v7603, 4294901760
    %7605 = vmatpush.msra.mxu0 %v7604
    %v7606 = vand.u32 %v1154, 4294901760
    %v7607 = vsub.f32 %v1154, %v7606
    %v7608 = vand.u32 %v7607, 4294901760
    %v7609 = vsub.f32 %v7607, %v7608
    %v7610 = vand.u32 %v7609, 4294901760
    %7611 = vmatpush.msra.mxu0 %v7610
    %v7612 = vand.u32 %v1152, 4294901760
    %v7613 = vsub.f32 %v1152, %v7612
    %v7614 = vand.u32 %v7613, 4294901760
    %v7615 = vsub.f32 %v7613, %v7614
    %v7616 = vand.u32 %v7615, 4294901760
    %7617 = vmatpush.msra.mxu0 %v7616
    %v7618 = vand.u32 %v1150, 4294901760
    %v7619 = vsub.f32 %v1150, %v7618
    %v7620 = vand.u32 %v7619, 4294901760
    %v7621 = vsub.f32 %v7619, %v7620
    %v7622 = vand.u32 %v7621, 4294901760
    %7623 = vmatpush.msra.mxu0 %v7622
    %v7624 = vand.u32 %v7315, 4294901760
    %7625 = vmatmul.f32.gmra.mxu0 %v7624
    %v7626 = vpop.f32.mrf.mxu0
    %v7627 = vadd.f32 %v7571, %v7626
    %7628 = vdwg.mxu0
    %7629 = vmatpush.msra.mxu0 0.0
    %7630 = vmatpush.msra.mxu0 0.0
    %7631 = vmatpush.msra.mxu0 0.0
    %7632 = vmatpush.msra.mxu0 0.0
    %7633 = vmatpush.msra.mxu0 0.0
    %7634 = vmatpush.msra.mxu0 0.0
    %7635 = vmatpush.msra.mxu0 0.0
    %7636 = vmatpush.msra.mxu0 0.0
    %7637 = vmatpush.msra.mxu0 0.0
    %v7638 = vand.u32 %v1171, 4294901760
    %v7639 = vsub.f32 %v1171, %v7638
    %7640 = vmatpush.msra.mxu0 %v7639
    %v7641 = vand.u32 %v1160, 4294901760
    %v7642 = vsub.f32 %v1160, %v7641
    %7643 = vmatpush.msra.mxu0 %v7642
    %v7644 = vand.u32 %v1158, 4294901760
    %v7645 = vsub.f32 %v1158, %v7644
    %7646 = vmatpush.msra.mxu0 %v7645
    %v7647 = vand.u32 %v1156, 4294901760
    %v7648 = vsub.f32 %v1156, %v7647
    %7649 = vmatpush.msra.mxu0 %v7648
    %v7650 = vand.u32 %v1154, 4294901760
    %v7651 = vsub.f32 %v1154, %v7650
    %7652 = vmatpush.msra.mxu0 %v7651
    %v7653 = vand.u32 %v1152, 4294901760
    %v7654 = vsub.f32 %v1152, %v7653
    %7655 = vmatpush.msra.mxu0 %v7654
    %v7656 = vand.u32 %v1150, 4294901760
    %v7657 = vsub.f32 %v1150, %v7656
    %7658 = vmatpush.msra.mxu0 %v7657
    %v7659 = vand.u32 %v7315, 4294901760
    %v7660 = vsub.f32 %v7315, %v7659
    %7661 = vmatmul.f32.gmra.mxu0 %v7660
    %v7662 = vpop.f32.mrf.mxu0
    %v7663 = vadd.f32 %v7627, %v7662
    %7664 = vdwg.mxu0
    %7665 = vmatpush.msra.mxu0 0.0
    %7666 = vmatpush.msra.mxu0 0.0
    %7667 = vmatpush.msra.mxu0 0.0
    %7668 = vmatpush.msra.mxu0 0.0
    %7669 = vmatpush.msra.mxu0 0.0
    %7670 = vmatpush.msra.mxu0 0.0
    %7671 = vmatpush.msra.mxu0 0.0
    %7672 = vmatpush.msra.mxu0 0.0
    %7673 = vmatpush.msra.mxu0 0.0
    %v7674 = vand.u32 %v1171, 4294901760
    %7675 = vmatpush.msra.mxu0 %v7674
    %v7676 = vand.u32 %v1160, 4294901760
    %7677 = vmatpush.msra.mxu0 %v7676
    %v7678 = vand.u32 %v1158, 4294901760
    %7679 = vmatpush.msra.mxu0 %v7678
    %v7680 = vand.u32 %v1156, 4294901760
    %7681 = vmatpush.msra.mxu0 %v7680
    %v7682 = vand.u32 %v1154, 4294901760
    %7683 = vmatpush.msra.mxu0 %v7682
    %v7684 = vand.u32 %v1152, 4294901760
    %7685 = vmatpush.msra.mxu0 %v7684
    %v7686 = vand.u32 %v1150, 4294901760
    %7687 = vmatpush.msra.mxu0 %v7686
    %v7688 = vand.u32 %v7315, 4294901760
    %v7689 = vsub.f32 %v7315, %v7688
    %v7690 = vand.u32 %v7689, 4294901760
    %7691 = vmatmul.f32.gmra.mxu0 %v7690
    %v7692 = vpop.f32.mrf.mxu0
    %v7693 = vadd.f32 %v7663, %v7692
    %7694 = vdwg.mxu0
    %7695 = vmatpush.msra.mxu0 0.0
    %7696 = vmatpush.msra.mxu0 0.0
    %7697 = vmatpush.msra.mxu0 0.0
    %7698 = vmatpush.msra.mxu0 0.0
    %7699 = vmatpush.msra.mxu0 0.0
    %7700 = vmatpush.msra.mxu0 0.0
    %7701 = vmatpush.msra.mxu0 0.0
    %7702 = vmatpush.msra.mxu0 0.0
    %7703 = vmatpush.msra.mxu0 0.0
    %v7704 = vand.u32 %v1171, 4294901760
    %v7705 = vsub.f32 %v1171, %v7704
    %v7706 = vand.u32 %v7705, 4294901760
    %7707 = vmatpush.msra.mxu0 %v7706
    %v7708 = vand.u32 %v1160, 4294901760
    %v7709 = vsub.f32 %v1160, %v7708
    %v7710 = vand.u32 %v7709, 4294901760
    %7711 = vmatpush.msra.mxu0 %v7710
    %v7712 = vand.u32 %v1158, 4294901760
    %v7713 = vsub.f32 %v1158, %v7712
    %v7714 = vand.u32 %v7713, 4294901760
    %7715 = vmatpush.msra.mxu0 %v7714
    %v7716 = vand.u32 %v1156, 4294901760
    %v7717 = vsub.f32 %v1156, %v7716
    %v7718 = vand.u32 %v7717, 4294901760
    %7719 = vmatpush.msra.mxu0 %v7718
    %v7720 = vand.u32 %v1154, 4294901760
    %v7721 = vsub.f32 %v1154, %v7720
    %v7722 = vand.u32 %v7721, 4294901760
    %7723 = vmatpush.msra.mxu0 %v7722
    %v7724 = vand.u32 %v1152, 4294901760
    %v7725 = vsub.f32 %v1152, %v7724
    %v7726 = vand.u32 %v7725, 4294901760
    %7727 = vmatpush.msra.mxu0 %v7726
    %v7728 = vand.u32 %v1150, 4294901760
    %v7729 = vsub.f32 %v1150, %v7728
    %v7730 = vand.u32 %v7729, 4294901760
    %7731 = vmatpush.msra.mxu0 %v7730
    %v7732 = vand.u32 %v7315, 4294901760
    %7733 = vmatmul.f32.gmra.mxu0 %v7732
    %v7734 = vpop.f32.mrf.mxu0
    %v7735 = vadd.f32 %v7693, %v7734
    %7736 = vdwg.mxu0
    %7737 = vmatpush.msra.mxu0 0.0
    %7738 = vmatpush.msra.mxu0 0.0
    %7739 = vmatpush.msra.mxu0 0.0
    %7740 = vmatpush.msra.mxu0 0.0
    %7741 = vmatpush.msra.mxu0 0.0
    %7742 = vmatpush.msra.mxu0 0.0
    %7743 = vmatpush.msra.mxu0 0.0
    %7744 = vmatpush.msra.mxu0 0.0
    %7745 = vmatpush.msra.mxu0 0.0
    %v7746 = vand.u32 %v1171, 4294901760
    %7747 = vmatpush.msra.mxu0 %v7746
    %v7748 = vand.u32 %v1160, 4294901760
    %7749 = vmatpush.msra.mxu0 %v7748
    %v7750 = vand.u32 %v1158, 4294901760
    %7751 = vmatpush.msra.mxu0 %v7750
    %v7752 = vand.u32 %v1156, 4294901760
    %7753 = vmatpush.msra.mxu0 %v7752
    %v7754 = vand.u32 %v1154, 4294901760
    %7755 = vmatpush.msra.mxu0 %v7754
    %v7756 = vand.u32 %v1152, 4294901760
    %7757 = vmatpush.msra.mxu0 %v7756
    %v7758 = vand.u32 %v1150, 4294901760
    %7759 = vmatpush.msra.mxu0 %v7758
    %v7760 = vand.u32 %v7315, 4294901760
    %7761 = vmatmul.f32.gmra.mxu0 %v7760
    %v7762 = vpop.f32.mrf.mxu0
    %v7763 = vadd.f32 %v7735, %v7762
    %7764 = vdwg.mxu0
    %v7767 = vrot.slane %v7763, 6
    %v7768 = vsel %vm1107, %v7539, %v7767
    %v7769 = vrot.slane %v7768, 7
    %v7772 = vadd.f32 %v1120, %v7769
    %v7773 = vadd.f32 %v1132, %v7768
    %v7774 = vxor.u32 %v7772, 2147483648
    %v7775 = vxor.u32 %v7773, 2147483648
    %v7776 = vmul.f32 %v7774, 1.442695
    %v7777 = vpow.pop %v7776
    %v7778 = vmul.f32 %v7775, 1.442695
    %v7779 = vpow.pop %v7778
    %v7780 = vadd.f32 %v7777, 1.0
    %v7781 = vadd.f32 %v7779, 1.0
    %v7782 = vrcp.pop %v7780
    %v7783 = vmul.f32 %v7780, %v7782
    %v7784 = vsub.f32 1.0, %v7783
    %v7785 = vmul.f32 %v7782, %v7784
    %v7786 = vadd.f32 %v7782, %v7785
    %vm7787 = vweird.f32 %v7780
    %vm7788 = vweird.f32 %v7782
    %vm7789 = vmor %vm7787, %vm7788
    %v7790 = vsel %vm7789, %v7782, %v7786
    %v7791 = vand.u32 2147483647, %v7780
    %vm7792 = vcmp.eq.f32.partialorder %v7791, 8.507059e+37
    %v7793 = vand.u32 %v7780, 2147483648
    %v7794 = vor.u32 1.1754944e-38, %v7793
    %v7795 = vsel %vm7792, %v7794, %v7790
    %v7796 = vmul.f32 1.0, %v7795
    %v7797 = vrcp.pop %v7781
    %v7798 = vmul.f32 %v7781, %v7797
    %v7799 = vsub.f32 1.0, %v7798
    %v7800 = vmul.f32 %v7797, %v7799
    %v7801 = vadd.f32 %v7797, %v7800
    %vm7802 = vweird.f32 %v7781
    %vm7803 = vweird.f32 %v7797
    %vm7804 = vmor %vm7802, %vm7803
    %v7805 = vsel %vm7804, %v7797, %v7801
    %v7806 = vand.u32 2147483647, %v7781
    %vm7807 = vcmp.eq.f32.partialorder %v7806, 8.507059e+37
    %v7808 = vand.u32 %v7781, 2147483648
    %v7809 = vor.u32 1.1754944e-38, %v7808
    %v7810 = vsel %vm7807, %v7809, %v7805
    %v7811 = vmul.f32 1.0, %v7810
    %7814 = vrot.lane.b32.xlu0 %v7772, 106
    %v7815 = vpop.permute.xlu0 %7814
    %7816 = vrot.lane.b32.xlu0 %v7773, 106
    %v7817 = vpop.permute.xlu0 %7816
    %v7818 = vrot.slane %v7815, 2
    %v7819 = vrot.slane %v7817, 2
    %v7822 = vtanh.pop %v7818
    %v7823 = vtanh.pop %v7819
    %v7826 = vrot.slane %v7284, 7
    %v7827 = vrot.slane %v7285, 7
    %v7830 = vmul.f32 %v7796, %v7826
    %v7831 = vmul.f32 %v7811, %v7827
    %v7832 = vmul.f32 %v7796, %v7822
    %v7833 = vmul.f32 %v7811, %v7823
    %7836 = vrot.lane.b32.xlu0 %v7832, 50
    %v7837 = vpop.permute.xlu0 %7836
    %7838 = vrot.lane.b32.xlu0 %v7833, 50
    %v7839 = vpop.permute.xlu0 %7838
    %v7842 = vadd.f32 %v7830, %v7837
    %v7843 = vadd.f32 %v7831, %v7839
    %v7844 = vtanh.pop %v7842
    %v7845 = vtanh.pop %v7843
    %7848 = vrot.lane.b32.xlu0 %v7844, 50
    %v7849 = vpop.permute.xlu0 %7848
    %7850 = vrot.lane.b32.xlu0 %v7845, 50
    %v7851 = vpop.permute.xlu0 %7850
    %v7852 = vrot.slane %v7849, 6
    %v7853 = vrot.slane %v7851, 6
    %v7854 = vsel %vm1163, %v7852, %v7849
    %v7855 = vsel %vm1163, %v7853, %v7851
    %v7858 = vmul.f32 %v7796, %v7854
    %v7859 = vmul.f32 %v7811, %v7855
    %v7862 = vperm.slane %v7858, 1
    %v7863 = vperm.slane %v7858, 3
    %v7864 = vperm.slane %v7859, 1
    %v7865 = vperm.slane %v7859, 3
    %v7866 = vsel %vm1716, %v7864, %v7862
    %v7867 = vsel %vm1716, %v7865, %v7863
    %7868 = vrot.lane.b32.xlu0 %v7866, 28
    %v7869 = vpop.permute.xlu0 %7868
    %7870 = vrot.lane.b32.xlu0 %v7867, 28
    %v7871 = vpop.permute.xlu0 %7870
    %v7872 = vsel %vm1723, %v7869, %v7871
    %v7873 = vsel %vm1163, %v7872, 0
    %7875 = vmatpush.msra.mxu0 0.0
    %7876 = vmatpush.msra.mxu0 0.0
    %7877 = vmatpush.msra.mxu0 0.0
    %7878 = vmatpush.msra.mxu0 0.0
    %7879 = vmatpush.msra.mxu0 0.0
    %7880 = vmatpush.msra.mxu0 0.0
    %7881 = vmatpush.msra.mxu0 0.0
    %7882 = vmatpush.msra.mxu0 0.0
    %7883 = vmatpush.msra.mxu0 0.0
    %v7884 = vand.u32 %v1168, 4294901760
    %7885 = vmatpush.msra.mxu0 %v7884
    %v7886 = vand.u32 %v1159, 4294901760
    %7887 = vmatpush.msra.mxu0 %v7886
    %v7888 = vand.u32 %v1157, 4294901760
    %7889 = vmatpush.msra.mxu0 %v7888
    %v7890 = vand.u32 %v1155, 4294901760
    %7891 = vmatpush.msra.mxu0 %v7890
    %v7892 = vand.u32 %v1153, 4294901760
    %7893 = vmatpush.msra.mxu0 %v7892
    %v7894 = vand.u32 %v1151, 4294901760
    %7895 = vmatpush.msra.mxu0 %v7894
    %v7896 = vand.u32 %v1149, 4294901760
    %7897 = vmatpush.msra.mxu0 %v7896
    %v7898 = vand.u32 %v7873, 4294901760
    %v7899 = vsub.f32 %v7873, %v7898
    %v7900 = vand.u32 %v7899, 4294901760
    %v7901 = vsub.f32 %v7899, %v7900
    %v7902 = vand.u32 %v7901, 4294901760
    %7903 = vmatmul.f32.gmra.mxu0 %v7902
    %v7904 = vpop.f32.mrf.mxu0
    %v7905 = vadd.f32 0.0, %v7904
    %7906 = vdwg.mxu0
    %7907 = vmatpush.msra.mxu0 0.0
    %7908 = vmatpush.msra.mxu0 0.0
    %7909 = vmatpush.msra.mxu0 0.0
    %7910 = vmatpush.msra.mxu0 0.0
    %7911 = vmatpush.msra.mxu0 0.0
    %7912 = vmatpush.msra.mxu0 0.0
    %7913 = vmatpush.msra.mxu0 0.0
    %7914 = vmatpush.msra.mxu0 0.0
    %7915 = vmatpush.msra.mxu0 0.0
    %v7916 = vand.u32 %v1168, 4294901760
    %v7917 = vsub.f32 %v1168, %v7916
    %v7918 = vand.u32 %v7917, 4294901760
    %v7919 = vsub.f32 %v7917, %v7918
    %v7920 = vand.u32 %v7919, 4294901760
    %7921 = vmatpush.msra.mxu0 %v7920
    %v7922 = vand.u32 %v1159, 4294901760
    %v7923 = vsub.f32 %v1159, %v7922
    %v7924 = vand.u32 %v7923, 4294901760
    %v7925 = vsub.f32 %v7923, %v7924
    %v7926 = vand.u32 %v7925, 4294901760
    %7927 = vmatpush.msra.mxu0 %v7926
    %v7928 = vand.u32 %v1157, 4294901760
    %v7929 = vsub.f32 %v1157, %v7928
    %v7930 = vand.u32 %v7929, 4294901760
    %v7931 = vsub.f32 %v7929, %v7930
    %v7932 = vand.u32 %v7931, 4294901760
    %7933 = vmatpush.msra.mxu0 %v7932
    %v7934 = vand.u32 %v1155, 4294901760
    %v7935 = vsub.f32 %v1155, %v7934
    %v7936 = vand.u32 %v7935, 4294901760
    %v7937 = vsub.f32 %v7935, %v7936
    %v7938 = vand.u32 %v7937, 4294901760
    %7939 = vmatpush.msra.mxu0 %v7938
    %v7940 = vand.u32 %v1153, 4294901760
    %v7941 = vsub.f32 %v1153, %v7940
    %v7942 = vand.u32 %v7941, 4294901760
    %v7943 = vsub.f32 %v7941, %v7942
    %v7944 = vand.u32 %v7943, 4294901760
    %7945 = vmatpush.msra.mxu0 %v7944
    %v7946 = vand.u32 %v1151, 4294901760
    %v7947 = vsub.f32 %v1151, %v7946
    %v7948 = vand.u32 %v7947, 4294901760
    %v7949 = vsub.f32 %v7947, %v7948
    %v7950 = vand.u32 %v7949, 4294901760
    %7951 = vmatpush.msra.mxu0 %v7950
    %v7952 = vand.u32 %v1149, 4294901760
    %v7953 = vsub.f32 %v1149, %v7952
    %v7954 = vand.u32 %v7953, 4294901760
    %v7955 = vsub.f32 %v7953, %v7954
    %v7956 = vand.u32 %v7955, 4294901760
    %7957 = vmatpush.msra.mxu0 %v7956
    %v7958 = vand.u32 %v7873, 4294901760
    %7959 = vmatmul.f32.gmra.mxu0 %v7958
    %v7960 = vpop.f32.mrf.mxu0
    %v7961 = vadd.f32 %v7905, %v7960
    %7962 = vdwg.mxu0
    %7963 = vmatpush.msra.mxu0 0.0
    %7964 = vmatpush.msra.mxu0 0.0
    %7965 = vmatpush.msra.mxu0 0.0
    %7966 = vmatpush.msra.mxu0 0.0
    %7967 = vmatpush.msra.mxu0 0.0
    %7968 = vmatpush.msra.mxu0 0.0
    %7969 = vmatpush.msra.mxu0 0.0
    %7970 = vmatpush.msra.mxu0 0.0
    %7971 = vmatpush.msra.mxu0 0.0
    %v7972 = vand.u32 %v1168, 4294901760
    %v7973 = vsub.f32 %v1168, %v7972
    %7974 = vmatpush.msra.mxu0 %v7973
    %v7975 = vand.u32 %v1159, 4294901760
    %v7976 = vsub.f32 %v1159, %v7975
    %7977 = vmatpush.msra.mxu0 %v7976
    %v7978 = vand.u32 %v1157, 4294901760
    %v7979 = vsub.f32 %v1157, %v7978
    %7980 = vmatpush.msra.mxu0 %v7979
    %v7981 = vand.u32 %v1155, 4294901760
    %v7982 = vsub.f32 %v1155, %v7981
    %7983 = vmatpush.msra.mxu0 %v7982
    %v7984 = vand.u32 %v1153, 4294901760
    %v7985 = vsub.f32 %v1153, %v7984
    %7986 = vmatpush.msra.mxu0 %v7985
    %v7987 = vand.u32 %v1151, 4294901760
    %v7988 = vsub.f32 %v1151, %v7987
    %7989 = vmatpush.msra.mxu0 %v7988
    %v7990 = vand.u32 %v1149, 4294901760
    %v7991 = vsub.f32 %v1149, %v7990
    %7992 = vmatpush.msra.mxu0 %v7991
    %v7993 = vand.u32 %v7873, 4294901760
    %v7994 = vsub.f32 %v7873, %v7993
    %7995 = vmatmul.f32.gmra.mxu0 %v7994
    %v7996 = vpop.f32.mrf.mxu0
    %v7997 = vadd.f32 %v7961, %v7996
    %7998 = vdwg.mxu0
    %7999 = vmatpush.msra.mxu0 0.0
    %8000 = vmatpush.msra.mxu0 0.0
    %8001 = vmatpush.msra.mxu0 0.0
    %8002 = vmatpush.msra.mxu0 0.0
    %8003 = vmatpush.msra.mxu0 0.0
    %8004 = vmatpush.msra.mxu0 0.0
    %8005 = vmatpush.msra.mxu0 0.0
    %8006 = vmatpush.msra.mxu0 0.0
    %8007 = vmatpush.msra.mxu0 0.0
    %v8008 = vand.u32 %v1168, 4294901760
    %8009 = vmatpush.msra.mxu0 %v8008
    %v8010 = vand.u32 %v1159, 4294901760
    %8011 = vmatpush.msra.mxu0 %v8010
    %v8012 = vand.u32 %v1157, 4294901760
    %8013 = vmatpush.msra.mxu0 %v8012
    %v8014 = vand.u32 %v1155, 4294901760
    %8015 = vmatpush.msra.mxu0 %v8014
    %v8016 = vand.u32 %v1153, 4294901760
    %8017 = vmatpush.msra.mxu0 %v8016
    %v8018 = vand.u32 %v1151, 4294901760
    %8019 = vmatpush.msra.mxu0 %v8018
    %v8020 = vand.u32 %v1149, 4294901760
    %8021 = vmatpush.msra.mxu0 %v8020
    %v8022 = vand.u32 %v7873, 4294901760
    %v8023 = vsub.f32 %v7873, %v8022
    %v8024 = vand.u32 %v8023, 4294901760
    %8025 = vmatmul.f32.gmra.mxu0 %v8024
    %v8026 = vpop.f32.mrf.mxu0
    %v8027 = vadd.f32 %v7997, %v8026
    %8028 = vdwg.mxu0
    %8029 = vmatpush.msra.mxu0 0.0
    %8030 = vmatpush.msra.mxu0 0.0
    %8031 = vmatpush.msra.mxu0 0.0
    %8032 = vmatpush.msra.mxu0 0.0
    %8033 = vmatpush.msra.mxu0 0.0
    %8034 = vmatpush.msra.mxu0 0.0
    %8035 = vmatpush.msra.mxu0 0.0
    %8036 = vmatpush.msra.mxu0 0.0
    %8037 = vmatpush.msra.mxu0 0.0
    %v8038 = vand.u32 %v1168, 4294901760
    %v8039 = vsub.f32 %v1168, %v8038
    %v8040 = vand.u32 %v8039, 4294901760
    %8041 = vmatpush.msra.mxu0 %v8040
    %v8042 = vand.u32 %v1159, 4294901760
    %v8043 = vsub.f32 %v1159, %v8042
    %v8044 = vand.u32 %v8043, 4294901760
    %8045 = vmatpush.msra.mxu0 %v8044
    %v8046 = vand.u32 %v1157, 4294901760
    %v8047 = vsub.f32 %v1157, %v8046
    %v8048 = vand.u32 %v8047, 4294901760
    %8049 = vmatpush.msra.mxu0 %v8048
    %v8050 = vand.u32 %v1155, 4294901760
    %v8051 = vsub.f32 %v1155, %v8050
    %v8052 = vand.u32 %v8051, 4294901760
    %8053 = vmatpush.msra.mxu0 %v8052
    %v8054 = vand.u32 %v1153, 4294901760
    %v8055 = vsub.f32 %v1153, %v8054
    %v8056 = vand.u32 %v8055, 4294901760
    %8057 = vmatpush.msra.mxu0 %v8056
    %v8058 = vand.u32 %v1151, 4294901760
    %v8059 = vsub.f32 %v1151, %v8058
    %v8060 = vand.u32 %v8059, 4294901760
    %8061 = vmatpush.msra.mxu0 %v8060
    %v8062 = vand.u32 %v1149, 4294901760
    %v8063 = vsub.f32 %v1149, %v8062
    %v8064 = vand.u32 %v8063, 4294901760
    %8065 = vmatpush.msra.mxu0 %v8064
    %v8066 = vand.u32 %v7873, 4294901760
    %8067 = vmatmul.f32.gmra.mxu0 %v8066
    %v8068 = vpop.f32.mrf.mxu0
    %v8069 = vadd.f32 %v8027, %v8068
    %8070 = vdwg.mxu0
    %8071 = vmatpush.msra.mxu0 0.0
    %8072 = vmatpush.msra.mxu0 0.0
    %8073 = vmatpush.msra.mxu0 0.0
    %8074 = vmatpush.msra.mxu0 0.0
    %8075 = vmatpush.msra.mxu0 0.0
    %8076 = vmatpush.msra.mxu0 0.0
    %8077 = vmatpush.msra.mxu0 0.0
    %8078 = vmatpush.msra.mxu0 0.0
    %8079 = vmatpush.msra.mxu0 0.0
    %v8080 = vand.u32 %v1168, 4294901760
    %8081 = vmatpush.msra.mxu0 %v8080
    %v8082 = vand.u32 %v1159, 4294901760
    %8083 = vmatpush.msra.mxu0 %v8082
    %v8084 = vand.u32 %v1157, 4294901760
    %8085 = vmatpush.msra.mxu0 %v8084
    %v8086 = vand.u32 %v1155, 4294901760
    %8087 = vmatpush.msra.mxu0 %v8086
    %v8088 = vand.u32 %v1153, 4294901760
    %8089 = vmatpush.msra.mxu0 %v8088
    %v8090 = vand.u32 %v1151, 4294901760
    %8091 = vmatpush.msra.mxu0 %v8090
    %v8092 = vand.u32 %v1149, 4294901760
    %8093 = vmatpush.msra.mxu0 %v8092
    %v8094 = vand.u32 %v7873, 4294901760
    %8095 = vmatmul.f32.gmra.mxu0 %v8094
    %v8096 = vpop.f32.mrf.mxu0
    %v8097 = vadd.f32 %v8069, %v8096
    %8098 = vdwg.mxu0
    %8099 = vmatpush.msra.mxu0 0.0
    %8100 = vmatpush.msra.mxu0 0.0
    %8101 = vmatpush.msra.mxu0 0.0
    %8102 = vmatpush.msra.mxu0 0.0
    %8103 = vmatpush.msra.mxu0 0.0
    %8104 = vmatpush.msra.mxu0 0.0
    %8105 = vmatpush.msra.mxu0 0.0
    %8106 = vmatpush.msra.mxu0 0.0
    %8107 = vmatpush.msra.mxu0 0.0
    %v8108 = vand.u32 %v1171, 4294901760
    %8109 = vmatpush.msra.mxu0 %v8108
    %v8110 = vand.u32 %v1160, 4294901760
    %8111 = vmatpush.msra.mxu0 %v8110
    %v8112 = vand.u32 %v1158, 4294901760
    %8113 = vmatpush.msra.mxu0 %v8112
    %v8114 = vand.u32 %v1156, 4294901760
    %8115 = vmatpush.msra.mxu0 %v8114
    %v8116 = vand.u32 %v1154, 4294901760
    %8117 = vmatpush.msra.mxu0 %v8116
    %v8118 = vand.u32 %v1152, 4294901760
    %8119 = vmatpush.msra.mxu0 %v8118
    %v8120 = vand.u32 %v1150, 4294901760
    %8121 = vmatpush.msra.mxu0 %v8120
    %v8122 = vand.u32 %v7873, 4294901760
    %v8123 = vsub.f32 %v7873, %v8122
    %v8124 = vand.u32 %v8123, 4294901760
    %v8125 = vsub.f32 %v8123, %v8124
    %v8126 = vand.u32 %v8125, 4294901760
    %8127 = vmatmul.f32.gmra.mxu0 %v8126
    %v8128 = vpop.f32.mrf.mxu0
    %v8129 = vadd.f32 0.0, %v8128
    %8130 = vdwg.mxu0
    %8131 = vmatpush.msra.mxu0 0.0
    %8132 = vmatpush.msra.mxu0 0.0
    %8133 = vmatpush.msra.mxu0 0.0
    %8134 = vmatpush.msra.mxu0 0.0
    %8135 = vmatpush.msra.mxu0 0.0
    %8136 = vmatpush.msra.mxu0 0.0
    %8137 = vmatpush.msra.mxu0 0.0
    %8138 = vmatpush.msra.mxu0 0.0
    %8139 = vmatpush.msra.mxu0 0.0
    %v8140 = vand.u32 %v1171, 4294901760
    %v8141 = vsub.f32 %v1171, %v8140
    %v8142 = vand.u32 %v8141, 4294901760
    %v8143 = vsub.f32 %v8141, %v8142
    %v8144 = vand.u32 %v8143, 4294901760
    %8145 = vmatpush.msra.mxu0 %v8144
    %v8146 = vand.u32 %v1160, 4294901760
    %v8147 = vsub.f32 %v1160, %v8146
    %v8148 = vand.u32 %v8147, 4294901760
    %v8149 = vsub.f32 %v8147, %v8148
    %v8150 = vand.u32 %v8149, 4294901760
    %8151 = vmatpush.msra.mxu0 %v8150
    %v8152 = vand.u32 %v1158, 4294901760
    %v8153 = vsub.f32 %v1158, %v8152
    %v8154 = vand.u32 %v8153, 4294901760
    %v8155 = vsub.f32 %v8153, %v8154
    %v8156 = vand.u32 %v8155, 4294901760
    %8157 = vmatpush.msra.mxu0 %v8156
    %v8158 = vand.u32 %v1156, 4294901760
    %v8159 = vsub.f32 %v1156, %v8158
    %v8160 = vand.u32 %v8159, 4294901760
    %v8161 = vsub.f32 %v8159, %v8160
    %v8162 = vand.u32 %v8161, 4294901760
    %8163 = vmatpush.msra.mxu0 %v8162
    %v8164 = vand.u32 %v1154, 4294901760
    %v8165 = vsub.f32 %v1154, %v8164
    %v8166 = vand.u32 %v8165, 4294901760
    %v8167 = vsub.f32 %v8165, %v8166
    %v8168 = vand.u32 %v8167, 4294901760
    %8169 = vmatpush.msra.mxu0 %v8168
    %v8170 = vand.u32 %v1152, 4294901760
    %v8171 = vsub.f32 %v1152, %v8170
    %v8172 = vand.u32 %v8171, 4294901760
    %v8173 = vsub.f32 %v8171, %v8172
    %v8174 = vand.u32 %v8173, 4294901760
    %8175 = vmatpush.msra.mxu0 %v8174
    %v8176 = vand.u32 %v1150, 4294901760
    %v8177 = vsub.f32 %v1150, %v8176
    %v8178 = vand.u32 %v8177, 4294901760
    %v8179 = vsub.f32 %v8177, %v8178
    %v8180 = vand.u32 %v8179, 4294901760
    %8181 = vmatpush.msra.mxu0 %v8180
    %v8182 = vand.u32 %v7873, 4294901760
    %8183 = vmatmul.f32.gmra.mxu0 %v8182
    %v8184 = vpop.f32.mrf.mxu0
    %v8185 = vadd.f32 %v8129, %v8184
    %8186 = vdwg.mxu0
    %8187 = vmatpush.msra.mxu0 0.0
    %8188 = vmatpush.msra.mxu0 0.0
    %8189 = vmatpush.msra.mxu0 0.0
    %8190 = vmatpush.msra.mxu0 0.0
    %8191 = vmatpush.msra.mxu0 0.0
    %8192 = vmatpush.msra.mxu0 0.0
    %8193 = vmatpush.msra.mxu0 0.0
    %8194 = vmatpush.msra.mxu0 0.0
    %8195 = vmatpush.msra.mxu0 0.0
    %v8196 = vand.u32 %v1171, 4294901760
    %v8197 = vsub.f32 %v1171, %v8196
    %8198 = vmatpush.msra.mxu0 %v8197
    %v8199 = vand.u32 %v1160, 4294901760
    %v8200 = vsub.f32 %v1160, %v8199
    %8201 = vmatpush.msra.mxu0 %v8200
    %v8202 = vand.u32 %v1158, 4294901760
    %v8203 = vsub.f32 %v1158, %v8202
    %8204 = vmatpush.msra.mxu0 %v8203
    %v8205 = vand.u32 %v1156, 4294901760
    %v8206 = vsub.f32 %v1156, %v8205
    %8207 = vmatpush.msra.mxu0 %v8206
    %v8208 = vand.u32 %v1154, 4294901760
    %v8209 = vsub.f32 %v1154, %v8208
    %8210 = vmatpush.msra.mxu0 %v8209
    %v8211 = vand.u32 %v1152, 4294901760
    %v8212 = vsub.f32 %v1152, %v8211
    %8213 = vmatpush.msra.mxu0 %v8212
    %v8214 = vand.u32 %v1150, 4294901760
    %v8215 = vsub.f32 %v1150, %v8214
    %8216 = vmatpush.msra.mxu0 %v8215
    %v8217 = vand.u32 %v7873, 4294901760
    %v8218 = vsub.f32 %v7873, %v8217
    %8219 = vmatmul.f32.gmra.mxu0 %v8218
    %v8220 = vpop.f32.mrf.mxu0
    %v8221 = vadd.f32 %v8185, %v8220
    %8222 = vdwg.mxu0
    %8223 = vmatpush.msra.mxu0 0.0
    %8224 = vmatpush.msra.mxu0 0.0
    %8225 = vmatpush.msra.mxu0 0.0
    %8226 = vmatpush.msra.mxu0 0.0
    %8227 = vmatpush.msra.mxu0 0.0
    %8228 = vmatpush.msra.mxu0 0.0
    %8229 = vmatpush.msra.mxu0 0.0
    %8230 = vmatpush.msra.mxu0 0.0
    %8231 = vmatpush.msra.mxu0 0.0
    %v8232 = vand.u32 %v1171, 4294901760
    %8233 = vmatpush.msra.mxu0 %v8232
    %v8234 = vand.u32 %v1160, 4294901760
    %8235 = vmatpush.msra.mxu0 %v8234
    %v8236 = vand.u32 %v1158, 4294901760
    %8237 = vmatpush.msra.mxu0 %v8236
    %v8238 = vand.u32 %v1156, 4294901760
    %8239 = vmatpush.msra.mxu0 %v8238
    %v8240 = vand.u32 %v1154, 4294901760
    %8241 = vmatpush.msra.mxu0 %v8240
    %v8242 = vand.u32 %v1152, 4294901760
    %8243 = vmatpush.msra.mxu0 %v8242
    %v8244 = vand.u32 %v1150, 4294901760
    %8245 = vmatpush.msra.mxu0 %v8244
    %v8246 = vand.u32 %v7873, 4294901760
    %v8247 = vsub.f32 %v7873, %v8246
    %v8248 = vand.u32 %v8247, 4294901760
    %8249 = vmatmul.f32.gmra.mxu0 %v8248
    %v8250 = vpop.f32.mrf.mxu0
    %v8251 = vadd.f32 %v8221, %v8250
    %8252 = vdwg.mxu0
    %8253 = vmatpush.msra.mxu0 0.0
    %8254 = vmatpush.msra.mxu0 0.0
    %8255 = vmatpush.msra.mxu0 0.0
    %8256 = vmatpush.msra.mxu0 0.0
    %8257 = vmatpush.msra.mxu0 0.0
    %8258 = vmatpush.msra.mxu0 0.0
    %8259 = vmatpush.msra.mxu0 0.0
    %8260 = vmatpush.msra.mxu0 0.0
    %8261 = vmatpush.msra.mxu0 0.0
    %v8262 = vand.u32 %v1171, 4294901760
    %v8263 = vsub.f32 %v1171, %v8262
    %v8264 = vand.u32 %v8263, 4294901760
    %8265 = vmatpush.msra.mxu0 %v8264
    %v8266 = vand.u32 %v1160, 4294901760
    %v8267 = vsub.f32 %v1160, %v8266
    %v8268 = vand.u32 %v8267, 4294901760
    %8269 = vmatpush.msra.mxu0 %v8268
    %v8270 = vand.u32 %v1158, 4294901760
    %v8271 = vsub.f32 %v1158, %v8270
    %v8272 = vand.u32 %v8271, 4294901760
    %8273 = vmatpush.msra.mxu0 %v8272
    %v8274 = vand.u32 %v1156, 4294901760
    %v8275 = vsub.f32 %v1156, %v8274
    %v8276 = vand.u32 %v8275, 4294901760
    %8277 = vmatpush.msra.mxu0 %v8276
    %v8278 = vand.u32 %v1154, 4294901760
    %v8279 = vsub.f32 %v1154, %v8278
    %v8280 = vand.u32 %v8279, 4294901760
    %8281 = vmatpush.msra.mxu0 %v8280
    %v8282 = vand.u32 %v1152, 4294901760
    %v8283 = vsub.f32 %v1152, %v8282
    %v8284 = vand.u32 %v8283, 4294901760
    %8285 = vmatpush.msra.mxu0 %v8284
    %v8286 = vand.u32 %v1150, 4294901760
    %v8287 = vsub.f32 %v1150, %v8286
    %v8288 = vand.u32 %v8287, 4294901760
    %8289 = vmatpush.msra.mxu0 %v8288
    %v8290 = vand.u32 %v7873, 4294901760
    %8291 = vmatmul.f32.gmra.mxu0 %v8290
    %v8292 = vpop.f32.mrf.mxu0
    %v8293 = vadd.f32 %v8251, %v8292
    %8294 = vdwg.mxu0
    %8295 = vmatpush.msra.mxu0 0.0
    %8296 = vmatpush.msra.mxu0 0.0
    %8297 = vmatpush.msra.mxu0 0.0
    %8298 = vmatpush.msra.mxu0 0.0
    %8299 = vmatpush.msra.mxu0 0.0
    %8300 = vmatpush.msra.mxu0 0.0
    %8301 = vmatpush.msra.mxu0 0.0
    %8302 = vmatpush.msra.mxu0 0.0
    %8303 = vmatpush.msra.mxu0 0.0
    %v8304 = vand.u32 %v1171, 4294901760
    %8305 = vmatpush.msra.mxu0 %v8304
    %v8306 = vand.u32 %v1160, 4294901760
    %8307 = vmatpush.msra.mxu0 %v8306
    %v8308 = vand.u32 %v1158, 4294901760
    %8309 = vmatpush.msra.mxu0 %v8308
    %v8310 = vand.u32 %v1156, 4294901760
    %8311 = vmatpush.msra.mxu0 %v8310
    %v8312 = vand.u32 %v1154, 4294901760
    %8313 = vmatpush.msra.mxu0 %v8312
    %v8314 = vand.u32 %v1152, 4294901760
    %8315 = vmatpush.msra.mxu0 %v8314
    %v8316 = vand.u32 %v1150, 4294901760
    %8317 = vmatpush.msra.mxu0 %v8316
    %v8318 = vand.u32 %v7873, 4294901760
    %8319 = vmatmul.f32.gmra.mxu0 %v8318
    %v8320 = vpop.f32.mrf.mxu0
    %v8321 = vadd.f32 %v8293, %v8320
    %8322 = vdwg.mxu0
    %v8325 = vrot.slane %v8321, 6
    %v8326 = vsel %vm1107, %v8097, %v8325
    %v8327 = vrot.slane %v8326, 1
    %v8330 = vadd.f32 %v1122, %v8326
    %v8331 = vadd.f32 %v1134, %v8327
    %v8332 = vxor.u32 %v8330, 2147483648
    %v8333 = vxor.u32 %v8331, 2147483648
    %v8334 = vmul.f32 %v8332, 1.442695
    %v8335 = vpow.pop %v8334
    %v8336 = vmul.f32 %v8333, 1.442695
    %v8337 = vpow.pop %v8336
    %v8338 = vadd.f32 %v8335, 1.0
    %v8339 = vadd.f32 %v8337, 1.0
    %v8340 = vrcp.pop %v8338
    %v8341 = vmul.f32 %v8338, %v8340
    %v8342 = vsub.f32 1.0, %v8341
    %v8343 = vmul.f32 %v8340, %v8342
    %v8344 = vadd.f32 %v8340, %v8343
    %vm8345 = vweird.f32 %v8338
    %vm8346 = vweird.f32 %v8340
    %vm8347 = vmor %vm8345, %vm8346
    %v8348 = vsel %vm8347, %v8340, %v8344
    %v8349 = vand.u32 2147483647, %v8338
    %vm8350 = vcmp.eq.f32.partialorder %v8349, 8.507059e+37
    %v8351 = vand.u32 %v8338, 2147483648
    %v8352 = vor.u32 1.1754944e-38, %v8351
    %v8353 = vsel %vm8350, %v8352, %v8348
    %v8354 = vmul.f32 1.0, %v8353
    %v8355 = vrcp.pop %v8339
    %v8356 = vmul.f32 %v8339, %v8355
    %v8357 = vsub.f32 1.0, %v8356
    %v8358 = vmul.f32 %v8355, %v8357
    %v8359 = vadd.f32 %v8355, %v8358
    %vm8360 = vweird.f32 %v8339
    %vm8361 = vweird.f32 %v8355
    %vm8362 = vmor %vm8360, %vm8361
    %v8363 = vsel %vm8362, %v8355, %v8359
    %v8364 = vand.u32 2147483647, %v8339
    %vm8365 = vcmp.eq.f32.partialorder %v8364, 8.507059e+37
    %v8366 = vand.u32 %v8339, 2147483648
    %v8367 = vor.u32 1.1754944e-38, %v8366
    %v8368 = vsel %vm8365, %v8367, %v8363
    %v8369 = vmul.f32 1.0, %v8368
    %8372 = vrot.lane.b32.xlu0 %v8330, 106
    %v8373 = vpop.permute.xlu0 %8372
    %8374 = vrot.lane.b32.xlu0 %v8331, 106
    %v8375 = vpop.permute.xlu0 %8374
    %v8376 = vrot.slane %v8373, 2
    %v8377 = vrot.slane %v8375, 2
    %v8380 = vtanh.pop %v8376
    %v8381 = vtanh.pop %v8377
    %v8384 = vrot.slane %v7842, 7
    %v8385 = vrot.slane %v8384, 2
    %v8386 = vrot.slane %v7843, 7
    %v8387 = vrot.slane %v8386, 2
    %v8390 = vmul.f32 %v8354, %v8385
    %v8391 = vmul.f32 %v8369, %v8387
    %v8392 = vmul.f32 %v8354, %v8380
    %v8393 = vmul.f32 %v8369, %v8381
    %8396 = vrot.lane.b32.xlu0 %v8392, 50
    %v8397 = vpop.permute.xlu0 %8396
    %8398 = vrot.lane.b32.xlu0 %v8393, 50
    %v8399 = vpop.permute.xlu0 %8398
    %v8402 = vadd.f32 %v8390, %v8397
    %v8403 = vadd.f32 %v8391, %v8399
    %v8404 = vtanh.pop %v8402
    %v8405 = vtanh.pop %v8403
    %8408 = vrot.lane.b32.xlu0 %v8404, 50
    %v8409 = vpop.permute.xlu0 %8408
    %8410 = vrot.lane.b32.xlu0 %v8405, 50
    %v8411 = vpop.permute.xlu0 %8410
    %v8412 = vrot.slane %v8409, 6
    %v8413 = vrot.slane %v8411, 6
    %v8414 = vsel %vm1163, %v8412, %v8409
    %v8415 = vsel %vm1163, %v8413, %v8411
    %v8418 = vmul.f32 %v8354, %v8414
    %v8419 = vmul.f32 %v8369, %v8415
    %v8422 = vperm.slane %v8418, 0
    %v8423 = vperm.slane %v8418, 2
    %v8424 = vperm.slane %v8419, 0
    %v8425 = vperm.slane %v8419, 2
    %v8426 = vsel %vm1716, %v8424, %v8422
    %v8427 = vsel %vm1716, %v8425, %v8423
    %8428 = vrot.lane.b32.xlu0 %v8426, 28
    %v8429 = vpop.permute.xlu0 %8428
    %8430 = vrot.lane.b32.xlu0 %v8427, 28
    %v8431 = vpop.permute.xlu0 %8430
    %v8432 = vsel %vm1723, %v8429, %v8431
    %v8433 = vsel %vm1163, %v8432, 0
    %8435 = vmatpush.msra.mxu0 0.0
    %8436 = vmatpush.msra.mxu0 0.0
    %8437 = vmatpush.msra.mxu0 0.0
    %8438 = vmatpush.msra.mxu0 0.0
    %8439 = vmatpush.msra.mxu0 0.0
    %8440 = vmatpush.msra.mxu0 0.0
    %8441 = vmatpush.msra.mxu0 0.0
    %8442 = vmatpush.msra.mxu0 0.0
    %8443 = vmatpush.msra.mxu0 0.0
    %v8444 = vand.u32 %v1168, 4294901760
    %8445 = vmatpush.msra.mxu0 %v8444
    %v8446 = vand.u32 %v1159, 4294901760
    %8447 = vmatpush.msra.mxu0 %v8446
    %v8448 = vand.u32 %v1157, 4294901760
    %8449 = vmatpush.msra.mxu0 %v8448
    %v8450 = vand.u32 %v1155, 4294901760
    %8451 = vmatpush.msra.mxu0 %v8450
    %v8452 = vand.u32 %v1153, 4294901760
    %8453 = vmatpush.msra.mxu0 %v8452
    %v8454 = vand.u32 %v1151, 4294901760
    %8455 = vmatpush.msra.mxu0 %v8454
    %v8456 = vand.u32 %v1149, 4294901760
    %8457 = vmatpush.msra.mxu0 %v8456
    %v8458 = vand.u32 %v8433, 4294901760
    %v8459 = vsub.f32 %v8433, %v8458
    %v8460 = vand.u32 %v8459, 4294901760
    %v8461 = vsub.f32 %v8459, %v8460
    %v8462 = vand.u32 %v8461, 4294901760
    %8463 = vmatmul.f32.gmra.mxu0 %v8462
    %v8464 = vpop.f32.mrf.mxu0
    %v8465 = vadd.f32 0.0, %v8464
    %8466 = vdwg.mxu0
    %8467 = vmatpush.msra.mxu0 0.0
    %8468 = vmatpush.msra.mxu0 0.0
    %8469 = vmatpush.msra.mxu0 0.0
    %8470 = vmatpush.msra.mxu0 0.0
    %8471 = vmatpush.msra.mxu0 0.0
    %8472 = vmatpush.msra.mxu0 0.0
    %8473 = vmatpush.msra.mxu0 0.0
    %8474 = vmatpush.msra.mxu0 0.0
    %8475 = vmatpush.msra.mxu0 0.0
    %v8476 = vand.u32 %v1168, 4294901760
    %v8477 = vsub.f32 %v1168, %v8476
    %v8478 = vand.u32 %v8477, 4294901760
    %v8479 = vsub.f32 %v8477, %v8478
    %v8480 = vand.u32 %v8479, 4294901760
    %8481 = vmatpush.msra.mxu0 %v8480
    %v8482 = vand.u32 %v1159, 4294901760
    %v8483 = vsub.f32 %v1159, %v8482
    %v8484 = vand.u32 %v8483, 4294901760
    %v8485 = vsub.f32 %v8483, %v8484
    %v8486 = vand.u32 %v8485, 4294901760
    %8487 = vmatpush.msra.mxu0 %v8486
    %v8488 = vand.u32 %v1157, 4294901760
    %v8489 = vsub.f32 %v1157, %v8488
    %v8490 = vand.u32 %v8489, 4294901760
    %v8491 = vsub.f32 %v8489, %v8490
    %v8492 = vand.u32 %v8491, 4294901760
    %8493 = vmatpush.msra.mxu0 %v8492
    %v8494 = vand.u32 %v1155, 4294901760
    %v8495 = vsub.f32 %v1155, %v8494
    %v8496 = vand.u32 %v8495, 4294901760
    %v8497 = vsub.f32 %v8495, %v8496
    %v8498 = vand.u32 %v8497, 4294901760
    %8499 = vmatpush.msra.mxu0 %v8498
    %v8500 = vand.u32 %v1153, 4294901760
    %v8501 = vsub.f32 %v1153, %v8500
    %v8502 = vand.u32 %v8501, 4294901760
    %v8503 = vsub.f32 %v8501, %v8502
    %v8504 = vand.u32 %v8503, 4294901760
    %8505 = vmatpush.msra.mxu0 %v8504
    %v8506 = vand.u32 %v1151, 4294901760
    %v8507 = vsub.f32 %v1151, %v8506
    %v8508 = vand.u32 %v8507, 4294901760
    %v8509 = vsub.f32 %v8507, %v8508
    %v8510 = vand.u32 %v8509, 4294901760
    %8511 = vmatpush.msra.mxu0 %v8510
    %v8512 = vand.u32 %v1149, 4294901760
    %v8513 = vsub.f32 %v1149, %v8512
    %v8514 = vand.u32 %v8513, 4294901760
    %v8515 = vsub.f32 %v8513, %v8514
    %v8516 = vand.u32 %v8515, 4294901760
    %8517 = vmatpush.msra.mxu0 %v8516
    %v8518 = vand.u32 %v8433, 4294901760
    %8519 = vmatmul.f32.gmra.mxu0 %v8518
    %v8520 = vpop.f32.mrf.mxu0
    %v8521 = vadd.f32 %v8465, %v8520
    %8522 = vdwg.mxu0
    %8523 = vmatpush.msra.mxu0 0.0
    %8524 = vmatpush.msra.mxu0 0.0
    %8525 = vmatpush.msra.mxu0 0.0
    %8526 = vmatpush.msra.mxu0 0.0
    %8527 = vmatpush.msra.mxu0 0.0
    %8528 = vmatpush.msra.mxu0 0.0
    %8529 = vmatpush.msra.mxu0 0.0
    %8530 = vmatpush.msra.mxu0 0.0
    %8531 = vmatpush.msra.mxu0 0.0
    %v8532 = vand.u32 %v1168, 4294901760
    %v8533 = vsub.f32 %v1168, %v8532
    %8534 = vmatpush.msra.mxu0 %v8533
    %v8535 = vand.u32 %v1159, 4294901760
    %v8536 = vsub.f32 %v1159, %v8535
    %8537 = vmatpush.msra.mxu0 %v8536
    %v8538 = vand.u32 %v1157, 4294901760
    %v8539 = vsub.f32 %v1157, %v8538
    %8540 = vmatpush.msra.mxu0 %v8539
    %v8541 = vand.u32 %v1155, 4294901760
    %v8542 = vsub.f32 %v1155, %v8541
    %8543 = vmatpush.msra.mxu0 %v8542
    %v8544 = vand.u32 %v1153, 4294901760
    %v8545 = vsub.f32 %v1153, %v8544
    %8546 = vmatpush.msra.mxu0 %v8545
    %v8547 = vand.u32 %v1151, 4294901760
    %v8548 = vsub.f32 %v1151, %v8547
    %8549 = vmatpush.msra.mxu0 %v8548
    %v8550 = vand.u32 %v1149, 4294901760
    %v8551 = vsub.f32 %v1149, %v8550
    %8552 = vmatpush.msra.mxu0 %v8551
    %v8553 = vand.u32 %v8433, 4294901760
    %v8554 = vsub.f32 %v8433, %v8553
    %8555 = vmatmul.f32.gmra.mxu0 %v8554
    %v8556 = vpop.f32.mrf.mxu0
    %v8557 = vadd.f32 %v8521, %v8556
    %8558 = vdwg.mxu0
    %8559 = vmatpush.msra.mxu0 0.0
    %8560 = vmatpush.msra.mxu0 0.0
    %8561 = vmatpush.msra.mxu0 0.0
    %8562 = vmatpush.msra.mxu0 0.0
    %8563 = vmatpush.msra.mxu0 0.0
    %8564 = vmatpush.msra.mxu0 0.0
    %8565 = vmatpush.msra.mxu0 0.0
    %8566 = vmatpush.msra.mxu0 0.0
    %8567 = vmatpush.msra.mxu0 0.0
    %v8568 = vand.u32 %v1168, 4294901760
    %8569 = vmatpush.msra.mxu0 %v8568
    %v8570 = vand.u32 %v1159, 4294901760
    %8571 = vmatpush.msra.mxu0 %v8570
    %v8572 = vand.u32 %v1157, 4294901760
    %8573 = vmatpush.msra.mxu0 %v8572
    %v8574 = vand.u32 %v1155, 4294901760
    %8575 = vmatpush.msra.mxu0 %v8574
    %v8576 = vand.u32 %v1153, 4294901760
    %8577 = vmatpush.msra.mxu0 %v8576
    %v8578 = vand.u32 %v1151, 4294901760
    %8579 = vmatpush.msra.mxu0 %v8578
    %v8580 = vand.u32 %v1149, 4294901760
    %8581 = vmatpush.msra.mxu0 %v8580
    %v8582 = vand.u32 %v8433, 4294901760
    %v8583 = vsub.f32 %v8433, %v8582
    %v8584 = vand.u32 %v8583, 4294901760
    %8585 = vmatmul.f32.gmra.mxu0 %v8584
    %v8586 = vpop.f32.mrf.mxu0
    %v8587 = vadd.f32 %v8557, %v8586
    %8588 = vdwg.mxu0
    %8589 = vmatpush.msra.mxu0 0.0
    %8590 = vmatpush.msra.mxu0 0.0
    %8591 = vmatpush.msra.mxu0 0.0
    %8592 = vmatpush.msra.mxu0 0.0
    %8593 = vmatpush.msra.mxu0 0.0
    %8594 = vmatpush.msra.mxu0 0.0
    %8595 = vmatpush.msra.mxu0 0.0
    %8596 = vmatpush.msra.mxu0 0.0
    %8597 = vmatpush.msra.mxu0 0.0
    %v8598 = vand.u32 %v1168, 4294901760
    %v8599 = vsub.f32 %v1168, %v8598
    %v8600 = vand.u32 %v8599, 4294901760
    %8601 = vmatpush.msra.mxu0 %v8600
    %v8602 = vand.u32 %v1159, 4294901760
    %v8603 = vsub.f32 %v1159, %v8602
    %v8604 = vand.u32 %v8603, 4294901760
    %8605 = vmatpush.msra.mxu0 %v8604
    %v8606 = vand.u32 %v1157, 4294901760
    %v8607 = vsub.f32 %v1157, %v8606
    %v8608 = vand.u32 %v8607, 4294901760
    %8609 = vmatpush.msra.mxu0 %v8608
    %v8610 = vand.u32 %v1155, 4294901760
    %v8611 = vsub.f32 %v1155, %v8610
    %v8612 = vand.u32 %v8611, 4294901760
    %8613 = vmatpush.msra.mxu0 %v8612
    %v8614 = vand.u32 %v1153, 4294901760
    %v8615 = vsub.f32 %v1153, %v8614
    %v8616 = vand.u32 %v8615, 4294901760
    %8617 = vmatpush.msra.mxu0 %v8616
    %v8618 = vand.u32 %v1151, 4294901760
    %v8619 = vsub.f32 %v1151, %v8618
    %v8620 = vand.u32 %v8619, 4294901760
    %8621 = vmatpush.msra.mxu0 %v8620
    %v8622 = vand.u32 %v1149, 4294901760
    %v8623 = vsub.f32 %v1149, %v8622
    %v8624 = vand.u32 %v8623, 4294901760
    %8625 = vmatpush.msra.mxu0 %v8624
    %v8626 = vand.u32 %v8433, 4294901760
    %8627 = vmatmul.f32.gmra.mxu0 %v8626
    %v8628 = vpop.f32.mrf.mxu0
    %v8629 = vadd.f32 %v8587, %v8628
    %8630 = vdwg.mxu0
    %8631 = vmatpush.msra.mxu0 0.0
    %8632 = vmatpush.msra.mxu0 0.0
    %8633 = vmatpush.msra.mxu0 0.0
    %8634 = vmatpush.msra.mxu0 0.0
    %8635 = vmatpush.msra.mxu0 0.0
    %8636 = vmatpush.msra.mxu0 0.0
    %8637 = vmatpush.msra.mxu0 0.0
    %8638 = vmatpush.msra.mxu0 0.0
    %8639 = vmatpush.msra.mxu0 0.0
    %v8640 = vand.u32 %v1168, 4294901760
    %8641 = vmatpush.msra.mxu0 %v8640
    %v8642 = vand.u32 %v1159, 4294901760
    %8643 = vmatpush.msra.mxu0 %v8642
    %v8644 = vand.u32 %v1157, 4294901760
    %8645 = vmatpush.msra.mxu0 %v8644
    %v8646 = vand.u32 %v1155, 4294901760
    %8647 = vmatpush.msra.mxu0 %v8646
    %v8648 = vand.u32 %v1153, 4294901760
    %8649 = vmatpush.msra.mxu0 %v8648
    %v8650 = vand.u32 %v1151, 4294901760
    %8651 = vmatpush.msra.mxu0 %v8650
    %v8652 = vand.u32 %v1149, 4294901760
    %8653 = vmatpush.msra.mxu0 %v8652
    %v8654 = vand.u32 %v8433, 4294901760
    %8655 = vmatmul.f32.gmra.mxu0 %v8654
    %v8656 = vpop.f32.mrf.mxu0
    %v8657 = vadd.f32 %v8629, %v8656
    %8658 = vdwg.mxu0
    %8659 = vmatpush.msra.mxu0 0.0
    %8660 = vmatpush.msra.mxu0 0.0
    %8661 = vmatpush.msra.mxu0 0.0
    %8662 = vmatpush.msra.mxu0 0.0
    %8663 = vmatpush.msra.mxu0 0.0
    %8664 = vmatpush.msra.mxu0 0.0
    %8665 = vmatpush.msra.mxu0 0.0
    %8666 = vmatpush.msra.mxu0 0.0
    %8667 = vmatpush.msra.mxu0 0.0
    %v8668 = vand.u32 %v1171, 4294901760
    %8669 = vmatpush.msra.mxu0 %v8668
    %v8670 = vand.u32 %v1160, 4294901760
    %8671 = vmatpush.msra.mxu0 %v8670
    %v8672 = vand.u32 %v1158, 4294901760
    %8673 = vmatpush.msra.mxu0 %v8672
    %v8674 = vand.u32 %v1156, 4294901760
    %8675 = vmatpush.msra.mxu0 %v8674
    %v8676 = vand.u32 %v1154, 4294901760
    %8677 = vmatpush.msra.mxu0 %v8676
    %v8678 = vand.u32 %v1152, 4294901760
    %8679 = vmatpush.msra.mxu0 %v8678
    %v8680 = vand.u32 %v1150, 4294901760
    %8681 = vmatpush.msra.mxu0 %v8680
    %v8682 = vand.u32 %v8433, 4294901760
    %v8683 = vsub.f32 %v8433, %v8682
    %v8684 = vand.u32 %v8683, 4294901760
    %v8685 = vsub.f32 %v8683, %v8684
    %v8686 = vand.u32 %v8685, 4294901760
    %8687 = vmatmul.f32.gmra.mxu0 %v8686
    %v8688 = vpop.f32.mrf.mxu0
    %v8689 = vadd.f32 0.0, %v8688
    %8690 = vdwg.mxu0
    %8691 = vmatpush.msra.mxu0 0.0
    %8692 = vmatpush.msra.mxu0 0.0
    %8693 = vmatpush.msra.mxu0 0.0
    %8694 = vmatpush.msra.mxu0 0.0
    %8695 = vmatpush.msra.mxu0 0.0
    %8696 = vmatpush.msra.mxu0 0.0
    %8697 = vmatpush.msra.mxu0 0.0
    %8698 = vmatpush.msra.mxu0 0.0
    %8699 = vmatpush.msra.mxu0 0.0
    %v8700 = vand.u32 %v1171, 4294901760
    %v8701 = vsub.f32 %v1171, %v8700
    %v8702 = vand.u32 %v8701, 4294901760
    %v8703 = vsub.f32 %v8701, %v8702
    %v8704 = vand.u32 %v8703, 4294901760
    %8705 = vmatpush.msra.mxu0 %v8704
    %v8706 = vand.u32 %v1160, 4294901760
    %v8707 = vsub.f32 %v1160, %v8706
    %v8708 = vand.u32 %v8707, 4294901760
    %v8709 = vsub.f32 %v8707, %v8708
    %v8710 = vand.u32 %v8709, 4294901760
    %8711 = vmatpush.msra.mxu0 %v8710
    %v8712 = vand.u32 %v1158, 4294901760
    %v8713 = vsub.f32 %v1158, %v8712
    %v8714 = vand.u32 %v8713, 4294901760
    %v8715 = vsub.f32 %v8713, %v8714
    %v8716 = vand.u32 %v8715, 4294901760
    %8717 = vmatpush.msra.mxu0 %v8716
    %v8718 = vand.u32 %v1156, 4294901760
    %v8719 = vsub.f32 %v1156, %v8718
    %v8720 = vand.u32 %v8719, 4294901760
    %v8721 = vsub.f32 %v8719, %v8720
    %v8722 = vand.u32 %v8721, 4294901760
    %8723 = vmatpush.msra.mxu0 %v8722
    %v8724 = vand.u32 %v1154, 4294901760
    %v8725 = vsub.f32 %v1154, %v8724
    %v8726 = vand.u32 %v8725, 4294901760
    %v8727 = vsub.f32 %v8725, %v8726
    %v8728 = vand.u32 %v8727, 4294901760
    %8729 = vmatpush.msra.mxu0 %v8728
    %v8730 = vand.u32 %v1152, 4294901760
    %v8731 = vsub.f32 %v1152, %v8730
    %v8732 = vand.u32 %v8731, 4294901760
    %v8733 = vsub.f32 %v8731, %v8732
    %v8734 = vand.u32 %v8733, 4294901760
    %8735 = vmatpush.msra.mxu0 %v8734
    %v8736 = vand.u32 %v1150, 4294901760
    %v8737 = vsub.f32 %v1150, %v8736
    %v8738 = vand.u32 %v8737, 4294901760
    %v8739 = vsub.f32 %v8737, %v8738
    %v8740 = vand.u32 %v8739, 4294901760
    %8741 = vmatpush.msra.mxu0 %v8740
    %v8742 = vand.u32 %v8433, 4294901760
    %8743 = vmatmul.f32.gmra.mxu0 %v8742
    %v8744 = vpop.f32.mrf.mxu0
    %v8745 = vadd.f32 %v8689, %v8744
    %8746 = vdwg.mxu0
    %8747 = vmatpush.msra.mxu0 0.0
    %8748 = vmatpush.msra.mxu0 0.0
    %8749 = vmatpush.msra.mxu0 0.0
    %8750 = vmatpush.msra.mxu0 0.0
    %8751 = vmatpush.msra.mxu0 0.0
    %8752 = vmatpush.msra.mxu0 0.0
    %8753 = vmatpush.msra.mxu0 0.0
    %8754 = vmatpush.msra.mxu0 0.0
    %8755 = vmatpush.msra.mxu0 0.0
    %v8756 = vand.u32 %v1171, 4294901760
    %v8757 = vsub.f32 %v1171, %v8756
    %8758 = vmatpush.msra.mxu0 %v8757
    %v8759 = vand.u32 %v1160, 4294901760
    %v8760 = vsub.f32 %v1160, %v8759
    %8761 = vmatpush.msra.mxu0 %v8760
    %v8762 = vand.u32 %v1158, 4294901760
    %v8763 = vsub.f32 %v1158, %v8762
    %8764 = vmatpush.msra.mxu0 %v8763
    %v8765 = vand.u32 %v1156, 4294901760
    %v8766 = vsub.f32 %v1156, %v8765
    %8767 = vmatpush.msra.mxu0 %v8766
    %v8768 = vand.u32 %v1154, 4294901760
    %v8769 = vsub.f32 %v1154, %v8768
    %8770 = vmatpush.msra.mxu0 %v8769
    %v8771 = vand.u32 %v1152, 4294901760
    %v8772 = vsub.f32 %v1152, %v8771
    %8773 = vmatpush.msra.mxu0 %v8772
    %v8774 = vand.u32 %v1150, 4294901760
    %v8775 = vsub.f32 %v1150, %v8774
    %8776 = vmatpush.msra.mxu0 %v8775
    %v8777 = vand.u32 %v8433, 4294901760
    %v8778 = vsub.f32 %v8433, %v8777
    %8779 = vmatmul.f32.gmra.mxu0 %v8778
    %v8780 = vpop.f32.mrf.mxu0
    %v8781 = vadd.f32 %v8745, %v8780
    %8782 = vdwg.mxu0
    %8783 = vmatpush.msra.mxu0 0.0
    %8784 = vmatpush.msra.mxu0 0.0
    %8785 = vmatpush.msra.mxu0 0.0
    %8786 = vmatpush.msra.mxu0 0.0
    %8787 = vmatpush.msra.mxu0 0.0
    %8788 = vmatpush.msra.mxu0 0.0
    %8789 = vmatpush.msra.mxu0 0.0
    %8790 = vmatpush.msra.mxu0 0.0
    %8791 = vmatpush.msra.mxu0 0.0
    %v8792 = vand.u32 %v1171, 4294901760
    %8793 = vmatpush.msra.mxu0 %v8792
    %v8794 = vand.u32 %v1160, 4294901760
    %8795 = vmatpush.msra.mxu0 %v8794
    %v8796 = vand.u32 %v1158, 4294901760
    %8797 = vmatpush.msra.mxu0 %v8796
    %v8798 = vand.u32 %v1156, 4294901760
    %8799 = vmatpush.msra.mxu0 %v8798
    %v8800 = vand.u32 %v1154, 4294901760
    %8801 = vmatpush.msra.mxu0 %v8800
    %v8802 = vand.u32 %v1152, 4294901760
    %8803 = vmatpush.msra.mxu0 %v8802
    %v8804 = vand.u32 %v1150, 4294901760
    %8805 = vmatpush.msra.mxu0 %v8804
    %v8806 = vand.u32 %v8433, 4294901760
    %v8807 = vsub.f32 %v8433, %v8806
    %v8808 = vand.u32 %v8807, 4294901760
    %8809 = vmatmul.f32.gmra.mxu0 %v8808
    %v8810 = vpop.f32.mrf.mxu0
    %v8811 = vadd.f32 %v8781, %v8810
    %8812 = vdwg.mxu0
    %8813 = vmatpush.msra.mxu0 0.0
    %8814 = vmatpush.msra.mxu0 0.0
    %8815 = vmatpush.msra.mxu0 0.0
    %8816 = vmatpush.msra.mxu0 0.0
    %8817 = vmatpush.msra.mxu0 0.0
    %8818 = vmatpush.msra.mxu0 0.0
    %8819 = vmatpush.msra.mxu0 0.0
    %8820 = vmatpush.msra.mxu0 0.0
    %8821 = vmatpush.msra.mxu0 0.0
    %v8822 = vand.u32 %v1171, 4294901760
    %v8823 = vsub.f32 %v1171, %v8822
    %v8824 = vand.u32 %v8823, 4294901760
    %8825 = vmatpush.msra.mxu0 %v8824
    %v8826 = vand.u32 %v1160, 4294901760
    %v8827 = vsub.f32 %v1160, %v8826
    %v8828 = vand.u32 %v8827, 4294901760
    %8829 = vmatpush.msra.mxu0 %v8828
    %v8830 = vand.u32 %v1158, 4294901760
    %v8831 = vsub.f32 %v1158, %v8830
    %v8832 = vand.u32 %v8831, 4294901760
    %8833 = vmatpush.msra.mxu0 %v8832
    %v8834 = vand.u32 %v1156, 4294901760
    %v8835 = vsub.f32 %v1156, %v8834
    %v8836 = vand.u32 %v8835, 4294901760
    %8837 = vmatpush.msra.mxu0 %v8836
    %v8838 = vand.u32 %v1154, 4294901760
    %v8839 = vsub.f32 %v1154, %v8838
    %v8840 = vand.u32 %v8839, 4294901760
    %8841 = vmatpush.msra.mxu0 %v8840
    %v8842 = vand.u32 %v1152, 4294901760
    %v8843 = vsub.f32 %v1152, %v8842
    %v8844 = vand.u32 %v8843, 4294901760
    %8845 = vmatpush.msra.mxu0 %v8844
    %v8846 = vand.u32 %v1150, 4294901760
    %v8847 = vsub.f32 %v1150, %v8846
    %v8848 = vand.u32 %v8847, 4294901760
    %8849 = vmatpush.msra.mxu0 %v8848
    %v8850 = vand.u32 %v8433, 4294901760
    %8851 = vmatmul.f32.gmra.mxu0 %v8850
    %v8852 = vpop.f32.mrf.mxu0
    %v8853 = vadd.f32 %v8811, %v8852
    %8854 = vdwg.mxu0
    %8855 = vmatpush.msra.mxu0 0.0
    %8856 = vmatpush.msra.mxu0 0.0
    %8857 = vmatpush.msra.mxu0 0.0
    %8858 = vmatpush.msra.mxu0 0.0
    %8859 = vmatpush.msra.mxu0 0.0
    %8860 = vmatpush.msra.mxu0 0.0
    %8861 = vmatpush.msra.mxu0 0.0
    %8862 = vmatpush.msra.mxu0 0.0
    %8863 = vmatpush.msra.mxu0 0.0
    %v8864 = vand.u32 %v1171, 4294901760
    %8865 = vmatpush.msra.mxu0 %v8864
    %v8866 = vand.u32 %v1160, 4294901760
    %8867 = vmatpush.msra.mxu0 %v8866
    %v8868 = vand.u32 %v1158, 4294901760
    %8869 = vmatpush.msra.mxu0 %v8868
    %v8870 = vand.u32 %v1156, 4294901760
    %8871 = vmatpush.msra.mxu0 %v8870
    %v8872 = vand.u32 %v1154, 4294901760
    %8873 = vmatpush.msra.mxu0 %v8872
    %v8874 = vand.u32 %v1152, 4294901760
    %8875 = vmatpush.msra.mxu0 %v8874
    %v8876 = vand.u32 %v1150, 4294901760
    %8877 = vmatpush.msra.mxu0 %v8876
    %v8878 = vand.u32 %v8433, 4294901760
    %8879 = vmatmul.f32.gmra.mxu0 %v8878
    %v8880 = vpop.f32.mrf.mxu0
    %v8881 = vadd.f32 %v8853, %v8880
    %8882 = vdwg.mxu0
    %v8885 = vrot.slane %v8881, 6
    %v8886 = vsel %vm1107, %v8657, %v8885
    %v8887 = vrot.slane %v8886, 7
    %v8890 = vadd.f32 %v1122, %v8887
    %v8891 = vadd.f32 %v1134, %v8886
    %v8892 = vxor.u32 %v8890, 2147483648
    %v8893 = vxor.u32 %v8891, 2147483648
    %v8894 = vmul.f32 %v8892, 1.442695
    %v8895 = vpow.pop %v8894
    %v8896 = vmul.f32 %v8893, 1.442695
    %v8897 = vpow.pop %v8896
    %v8898 = vadd.f32 %v8895, 1.0
    %v8899 = vadd.f32 %v8897, 1.0
    %v8900 = vrcp.pop %v8898
    %v8901 = vmul.f32 %v8898, %v8900
    %v8902 = vsub.f32 1.0, %v8901
    %v8903 = vmul.f32 %v8900, %v8902
    %v8904 = vadd.f32 %v8900, %v8903
    %vm8905 = vweird.f32 %v8898
    %vm8906 = vweird.f32 %v8900
    %vm8907 = vmor %vm8905, %vm8906
    %v8908 = vsel %vm8907, %v8900, %v8904
    %v8909 = vand.u32 2147483647, %v8898
    %vm8910 = vcmp.eq.f32.partialorder %v8909, 8.507059e+37
    %v8911 = vand.u32 %v8898, 2147483648
    %v8912 = vor.u32 1.1754944e-38, %v8911
    %v8913 = vsel %vm8910, %v8912, %v8908
    %v8914 = vmul.f32 1.0, %v8913
    %v8915 = vrcp.pop %v8899
    %v8916 = vmul.f32 %v8899, %v8915
    %v8917 = vsub.f32 1.0, %v8916
    %v8918 = vmul.f32 %v8915, %v8917
    %v8919 = vadd.f32 %v8915, %v8918
    %vm8920 = vweird.f32 %v8899
    %vm8921 = vweird.f32 %v8915
    %vm8922 = vmor %vm8920, %vm8921
    %v8923 = vsel %vm8922, %v8915, %v8919
    %v8924 = vand.u32 2147483647, %v8899
    %vm8925 = vcmp.eq.f32.partialorder %v8924, 8.507059e+37
    %v8926 = vand.u32 %v8899, 2147483648
    %v8927 = vor.u32 1.1754944e-38, %v8926
    %v8928 = vsel %vm8925, %v8927, %v8923
    %v8929 = vmul.f32 1.0, %v8928
    %8932 = vrot.lane.b32.xlu0 %v8890, 106
    %v8933 = vpop.permute.xlu0 %8932
    %8934 = vrot.lane.b32.xlu0 %v8891, 106
    %v8935 = vpop.permute.xlu0 %8934
    %v8936 = vrot.slane %v8933, 2
    %v8937 = vrot.slane %v8935, 2
    %v8940 = vtanh.pop %v8936
    %v8941 = vtanh.pop %v8937
    %v8944 = vrot.slane %v8402, 7
    %v8945 = vrot.slane %v8403, 7
    %v8948 = vmul.f32 %v8914, %v8944
    %v8949 = vmul.f32 %v8929, %v8945
    %v8950 = vmul.f32 %v8914, %v8940
    %v8951 = vmul.f32 %v8929, %v8941
    %8954 = vrot.lane.b32.xlu0 %v8950, 50
    %v8955 = vpop.permute.xlu0 %8954
    %8956 = vrot.lane.b32.xlu0 %v8951, 50
    %v8957 = vpop.permute.xlu0 %8956
    %v8960 = vadd.f32 %v8948, %v8955
    %v8961 = vadd.f32 %v8949, %v8957
    %v8962 = vtanh.pop %v8960
    %v8963 = vtanh.pop %v8961
    %8966 = vrot.lane.b32.xlu0 %v8962, 50
    %v8967 = vpop.permute.xlu0 %8966
    %8968 = vrot.lane.b32.xlu0 %v8963, 50
    %v8969 = vpop.permute.xlu0 %8968
    %v8970 = vrot.slane %v8967, 6
    %v8971 = vrot.slane %v8969, 6
    %v8972 = vsel %vm1163, %v8970, %v8967
    %v8973 = vsel %vm1163, %v8971, %v8969
    %v8976 = vmul.f32 %v8914, %v8972
    %v8977 = vmul.f32 %v8929, %v8973
    %v8978 = vld [vmem:[%s8] sm:$0xff]
    %v8979 = vld [vmem:[%s8 + $0x8] sm:$0xff]
    %v8980 = vld [vmem:[%s8 + $0x10] sm:$0xff]
    %v8981 = vld [vmem:[%s8 + $0x18] sm:$0xff]
    %v8982 = vld [vmem:[%s8 + $0x20] sm:$0xff]
    %v8983 = vld [vmem:[%s8 + $0x28] sm:$0xff]
    %v8984 = vld [vmem:[%s8 + $0x30] sm:$0x3]
    %v8985 = vld [vmem:[#allocation2] sm:$0x1]
    %v8987 = vperm.slane %v8985, 0
    %v8991 = vperm.slane %v8976, 1
    %v8992 = vperm.slane %v8976, 3
    %v8993 = vperm.slane %v8977, 1
    %v8994 = vperm.slane %v8977, 3
    %v8995 = vsel %vm1716, %v8993, %v8991
    %v8996 = vsel %vm1716, %v8994, %v8992
    %8997 = vrot.lane.b32.xlu0 %v8995, 28
    %v8998 = vpop.permute.xlu0 %8997
    %8999 = vrot.lane.b32.xlu0 %v8996, 28
    %v9000 = vpop.permute.xlu0 %8999
    %v9001 = vsel %vm1723, %v8998, %v9000
    %v9002 = vsel %vm1163, %v9001, 0
    %v9005 = vsel %vm1107, %v8984, 0
    %9007 = vmatpush.msra.mxu0 0.0
    %9008 = vmatpush.msra.mxu0 0.0
    %9009 = vmatpush.msra.mxu0 0.0
    %9010 = vmatpush.msra.mxu0 0.0
    %9011 = vmatpush.msra.mxu0 0.0
    %9012 = vmatpush.msra.mxu0 0.0
    %9013 = vmatpush.msra.mxu0 0.0
    %9014 = vmatpush.msra.mxu0 0.0
    %9015 = vmatpush.msra.mxu0 0.0
    %v9016 = vand.u32 %v9005, 4294901760
    %9017 = vmatpush.msra.mxu0 %v9016
    %v9018 = vand.u32 %v8983, 4294901760
    %9019 = vmatpush.msra.mxu0 %v9018
    %v9020 = vand.u32 %v8982, 4294901760
    %9021 = vmatpush.msra.mxu0 %v9020
    %v9022 = vand.u32 %v8981, 4294901760
    %9023 = vmatpush.msra.mxu0 %v9022
    %v9024 = vand.u32 %v8980, 4294901760
    %9025 = vmatpush.msra.mxu0 %v9024
    %v9026 = vand.u32 %v8979, 4294901760
    %9027 = vmatpush.msra.mxu0 %v9026
    %v9028 = vand.u32 %v8978, 4294901760
    %9029 = vmatpush.msra.mxu0 %v9028
    %v9030 = vand.u32 %v9002, 4294901760
    %v9031 = vsub.f32 %v9002, %v9030
    %v9032 = vand.u32 %v9031, 4294901760
    %v9033 = vsub.f32 %v9031, %v9032
    %v9034 = vand.u32 %v9033, 4294901760
    %9035 = vmatmul.f32.gmra.mxu0 %v9034
    %v9036 = vpop.f32.mrf.mxu0
    %v9037 = vadd.f32 %v8987, %v9036
    %9038 = vdwg.mxu0
    %9039 = vmatpush.msra.mxu0 0.0
    %9040 = vmatpush.msra.mxu0 0.0
    %9041 = vmatpush.msra.mxu0 0.0
    %9042 = vmatpush.msra.mxu0 0.0
    %9043 = vmatpush.msra.mxu0 0.0
    %9044 = vmatpush.msra.mxu0 0.0
    %9045 = vmatpush.msra.mxu0 0.0
    %9046 = vmatpush.msra.mxu0 0.0
    %9047 = vmatpush.msra.mxu0 0.0
    %v9048 = vand.u32 %v9005, 4294901760
    %v9049 = vsub.f32 %v9005, %v9048
    %v9050 = vand.u32 %v9049, 4294901760
    %v9051 = vsub.f32 %v9049, %v9050
    %v9052 = vand.u32 %v9051, 4294901760
    %9053 = vmatpush.msra.mxu0 %v9052
    %v9054 = vand.u32 %v8983, 4294901760
    %v9055 = vsub.f32 %v8983, %v9054
    %v9056 = vand.u32 %v9055, 4294901760
    %v9057 = vsub.f32 %v9055, %v9056
    %v9058 = vand.u32 %v9057, 4294901760
    %9059 = vmatpush.msra.mxu0 %v9058
    %v9060 = vand.u32 %v8982, 4294901760
    %v9061 = vsub.f32 %v8982, %v9060
    %v9062 = vand.u32 %v9061, 4294901760
    %v9063 = vsub.f32 %v9061, %v9062
    %v9064 = vand.u32 %v9063, 4294901760
    %9065 = vmatpush.msra.mxu0 %v9064
    %v9066 = vand.u32 %v8981, 4294901760
    %v9067 = vsub.f32 %v8981, %v9066
    %v9068 = vand.u32 %v9067, 4294901760
    %v9069 = vsub.f32 %v9067, %v9068
    %v9070 = vand.u32 %v9069, 4294901760
    %9071 = vmatpush.msra.mxu0 %v9070
    %v9072 = vand.u32 %v8980, 4294901760
    %v9073 = vsub.f32 %v8980, %v9072
    %v9074 = vand.u32 %v9073, 4294901760
    %v9075 = vsub.f32 %v9073, %v9074
    %v9076 = vand.u32 %v9075, 4294901760
    %9077 = vmatpush.msra.mxu0 %v9076
    %v9078 = vand.u32 %v8979, 4294901760
    %v9079 = vsub.f32 %v8979, %v9078
    %v9080 = vand.u32 %v9079, 4294901760
    %v9081 = vsub.f32 %v9079, %v9080
    %v9082 = vand.u32 %v9081, 4294901760
    %9083 = vmatpush.msra.mxu0 %v9082
    %v9084 = vand.u32 %v8978, 4294901760
    %v9085 = vsub.f32 %v8978, %v9084
    %v9086 = vand.u32 %v9085, 4294901760
    %v9087 = vsub.f32 %v9085, %v9086
    %v9088 = vand.u32 %v9087, 4294901760
    %9089 = vmatpush.msra.mxu0 %v9088
    %v9090 = vand.u32 %v9002, 4294901760
    %9091 = vmatmul.f32.gmra.mxu0 %v9090
    %v9092 = vpop.f32.mrf.mxu0
    %v9093 = vadd.f32 %v9037, %v9092
    %9094 = vdwg.mxu0
    %9095 = vmatpush.msra.mxu0 0.0
    %9096 = vmatpush.msra.mxu0 0.0
    %9097 = vmatpush.msra.mxu0 0.0
    %9098 = vmatpush.msra.mxu0 0.0
    %9099 = vmatpush.msra.mxu0 0.0
    %9100 = vmatpush.msra.mxu0 0.0
    %9101 = vmatpush.msra.mxu0 0.0
    %9102 = vmatpush.msra.mxu0 0.0
    %9103 = vmatpush.msra.mxu0 0.0
    %v9104 = vand.u32 %v9005, 4294901760
    %v9105 = vsub.f32 %v9005, %v9104
    %9106 = vmatpush.msra.mxu0 %v9105
    %v9107 = vand.u32 %v8983, 4294901760
    %v9108 = vsub.f32 %v8983, %v9107
    %9109 = vmatpush.msra.mxu0 %v9108
    %v9110 = vand.u32 %v8982, 4294901760
    %v9111 = vsub.f32 %v8982, %v9110
    %9112 = vmatpush.msra.mxu0 %v9111
    %v9113 = vand.u32 %v8981, 4294901760
    %v9114 = vsub.f32 %v8981, %v9113
    %9115 = vmatpush.msra.mxu0 %v9114
    %v9116 = vand.u32 %v8980, 4294901760
    %v9117 = vsub.f32 %v8980, %v9116
    %9118 = vmatpush.msra.mxu0 %v9117
    %v9119 = vand.u32 %v8979, 4294901760
    %v9120 = vsub.f32 %v8979, %v9119
    %9121 = vmatpush.msra.mxu0 %v9120
    %v9122 = vand.u32 %v8978, 4294901760
    %v9123 = vsub.f32 %v8978, %v9122
    %9124 = vmatpush.msra.mxu0 %v9123
    %v9125 = vand.u32 %v9002, 4294901760
    %v9126 = vsub.f32 %v9002, %v9125
    %9127 = vmatmul.f32.gmra.mxu0 %v9126
    %v9128 = vpop.f32.mrf.mxu0
    %v9129 = vadd.f32 %v9093, %v9128
    %9130 = vdwg.mxu0
    %9131 = vmatpush.msra.mxu0 0.0
    %9132 = vmatpush.msra.mxu0 0.0
    %9133 = vmatpush.msra.mxu0 0.0
    %9134 = vmatpush.msra.mxu0 0.0
    %9135 = vmatpush.msra.mxu0 0.0
    %9136 = vmatpush.msra.mxu0 0.0
    %9137 = vmatpush.msra.mxu0 0.0
    %9138 = vmatpush.msra.mxu0 0.0
    %9139 = vmatpush.msra.mxu0 0.0
    %v9140 = vand.u32 %v9005, 4294901760
    %9141 = vmatpush.msra.mxu0 %v9140
    %v9142 = vand.u32 %v8983, 4294901760
    %9143 = vmatpush.msra.mxu0 %v9142
    %v9144 = vand.u32 %v8982, 4294901760
    %9145 = vmatpush.msra.mxu0 %v9144
    %v9146 = vand.u32 %v8981, 4294901760
    %9147 = vmatpush.msra.mxu0 %v9146
    %v9148 = vand.u32 %v8980, 4294901760
    %9149 = vmatpush.msra.mxu0 %v9148
    %v9150 = vand.u32 %v8979, 4294901760
    %9151 = vmatpush.msra.mxu0 %v9150
    %v9152 = vand.u32 %v8978, 4294901760
    %9153 = vmatpush.msra.mxu0 %v9152
    %v9154 = vand.u32 %v9002, 4294901760
    %v9155 = vsub.f32 %v9002, %v9154
    %v9156 = vand.u32 %v9155, 4294901760
    %9157 = vmatmul.f32.gmra.mxu0 %v9156
    %v9158 = vpop.f32.mrf.mxu0
    %v9159 = vadd.f32 %v9129, %v9158
    %9160 = vdwg.mxu0
    %9161 = vmatpush.msra.mxu0 0.0
    %9162 = vmatpush.msra.mxu0 0.0
    %9163 = vmatpush.msra.mxu0 0.0
    %9164 = vmatpush.msra.mxu0 0.0
    %9165 = vmatpush.msra.mxu0 0.0
    %9166 = vmatpush.msra.mxu0 0.0
    %9167 = vmatpush.msra.mxu0 0.0
    %9168 = vmatpush.msra.mxu0 0.0
    %9169 = vmatpush.msra.mxu0 0.0
    %v9170 = vand.u32 %v9005, 4294901760
    %v9171 = vsub.f32 %v9005, %v9170
    %v9172 = vand.u32 %v9171, 4294901760
    %9173 = vmatpush.msra.mxu0 %v9172
    %v9174 = vand.u32 %v8983, 4294901760
    %v9175 = vsub.f32 %v8983, %v9174
    %v9176 = vand.u32 %v9175, 4294901760
    %9177 = vmatpush.msra.mxu0 %v9176
    %v9178 = vand.u32 %v8982, 4294901760
    %v9179 = vsub.f32 %v8982, %v9178
    %v9180 = vand.u32 %v9179, 4294901760
    %9181 = vmatpush.msra.mxu0 %v9180
    %v9182 = vand.u32 %v8981, 4294901760
    %v9183 = vsub.f32 %v8981, %v9182
    %v9184 = vand.u32 %v9183, 4294901760
    %9185 = vmatpush.msra.mxu0 %v9184
    %v9186 = vand.u32 %v8980, 4294901760
    %v9187 = vsub.f32 %v8980, %v9186
    %v9188 = vand.u32 %v9187, 4294901760
    %9189 = vmatpush.msra.mxu0 %v9188
    %v9190 = vand.u32 %v8979, 4294901760
    %v9191 = vsub.f32 %v8979, %v9190
    %v9192 = vand.u32 %v9191, 4294901760
    %9193 = vmatpush.msra.mxu0 %v9192
    %v9194 = vand.u32 %v8978, 4294901760
    %v9195 = vsub.f32 %v8978, %v9194
    %v9196 = vand.u32 %v9195, 4294901760
    %9197 = vmatpush.msra.mxu0 %v9196
    %v9198 = vand.u32 %v9002, 4294901760
    %9199 = vmatmul.f32.gmra.mxu0 %v9198
    %v9200 = vpop.f32.mrf.mxu0
    %v9201 = vadd.f32 %v9159, %v9200
    %9202 = vdwg.mxu0
    %9203 = vmatpush.msra.mxu0 0.0
    %9204 = vmatpush.msra.mxu0 0.0
    %9205 = vmatpush.msra.mxu0 0.0
    %9206 = vmatpush.msra.mxu0 0.0
    %9207 = vmatpush.msra.mxu0 0.0
    %9208 = vmatpush.msra.mxu0 0.0
    %9209 = vmatpush.msra.mxu0 0.0
    %9210 = vmatpush.msra.mxu0 0.0
    %9211 = vmatpush.msra.mxu0 0.0
    %v9212 = vand.u32 %v9005, 4294901760
    %9213 = vmatpush.msra.mxu0 %v9212
    %v9214 = vand.u32 %v8983, 4294901760
    %9215 = vmatpush.msra.mxu0 %v9214
    %v9216 = vand.u32 %v8982, 4294901760
    %9217 = vmatpush.msra.mxu0 %v9216
    %v9218 = vand.u32 %v8981, 4294901760
    %9219 = vmatpush.msra.mxu0 %v9218
    %v9220 = vand.u32 %v8980, 4294901760
    %9221 = vmatpush.msra.mxu0 %v9220
    %v9222 = vand.u32 %v8979, 4294901760
    %9223 = vmatpush.msra.mxu0 %v9222
    %v9224 = vand.u32 %v8978, 4294901760
    %9225 = vmatpush.msra.mxu0 %v9224
    %v9226 = vand.u32 %v9002, 4294901760
    %9227 = vmatmul.f32.gmra.mxu0 %v9226
    %v9228 = vpop.f32.mrf.mxu0
    %v9229 = vadd.f32 %v9201, %v9228
    %9230 = vdwg.mxu0
    %v9231 = vmul.f32 %v9229, 1.442695
    %v9232 = vpow.pop %v9231
    %vm9233 = vcmask 1024
    %9234 = vst.msk [vmem:[%s10] sm:$0x3] %vm9233, %v9232
    // Predicated region
    $region50: #{tpu_custom_call.1} parent=1 // pred_check
      _
    $region51: #{tpu_custom_call.1} parent=1 // pred_check_branch
      %9236 = sbr.rel (0) target = $region53
    $region52: #{tpu_custom_call.1} parent=1 // pred_region
      _
    $region53: #{tpu_custom_call.1} parent=1 // pred_fallthru
      _
    // Predicated region
    $region54: #{tpu_custom_call.1} parent=1 // pred_check
      _
    $region55: #{tpu_custom_call.1} parent=1 // pred_check_branch
      %9238 = sbr.rel (0) target = $region57
    $region56: #{tpu_custom_call.1} parent=1 // pred_region
      _
    $region57: #{tpu_custom_call.1} parent=1 // pred_fallthru
      _
    %9239 = vsyncpa [#allocation4], 1
    %9240 = vsyncpa [#allocation6], 1

</llo_original>
